<compile_context>
chip_gen: v7x
topology: tpu7x:2x2x1
jax: 0.10.0
libtpu: 0.0.40
codegen_flags: <defaults>
</compile_context>

<pallas_src>
import jax
import jax.numpy as jnp
from jax.experimental import pallas as pl
from jax.experimental.pallas import tpu as pltpu


# ----------------------------- Pallas kernel --------------------------------

def fused_valuenet_kernel(xp_ref, wconv_ref, bconv_ref, wfc_ref, bfc_ref, o_ref):
    """Processes a batch tile of B samples per grid step.

    xp_ref    : (B, Hp*Wp*C)        bf16  padded NHWC input, flattened per sample
    wconv_ref : (Hp*Wp*C, H*W*Cout) bf16  conv folded into one block-banded matmul
    bconv_ref : (1, H*W*Cout)       f32   conv bias tiled over (h, w)
    wfc_ref   : (H*W*Cout, K)       bf16  FC weight permuted to (h, w, cout) order
    bfc_ref   : (1, K)              f32
    o_ref     : (B, K)              f32   softmax probabilities
    """
    # Conv2d(k=3, pad=1) + bias + ReLU as ONE MXU matmul (f32 accumulation).
    act = jnp.dot(xp_ref[...], wconv_ref[...], preferred_element_type=jnp.float32)
    act = jnp.maximum(act + bconv_ref[...], 0.0)          # (B, H*W*Cout) f32

    # Linear over flattened (h, w, cout) features: one matmul, activation stays
    # in registers (no VMEM scratch round trip).
    logits = jnp.dot(act.astype(jnp.bfloat16), wfc_ref[...],
                     preferred_element_type=jnp.float32) + bfc_ref[...]

    # Softmax over classes (exact divide: K is tiny, rows must sum to 1).
    m = jnp.max(logits, axis=-1, keepdims=True)
    e = jnp.exp(logits - m)
    s = jnp.sum(e, axis=-1, keepdims=True)
    o_ref[...] = (e / s).astype(o_ref.dtype)


# ------------------------------ JAX glue -------------------------------------

def _fold_conv_to_matmul(w_conv, H, W):
    """Fold Conv2d(k, pad=k//2) into a dense (Hp*Wp*C, H*W*Cout) matrix.

    W_full[h'*(Wp*C) + w'*C + c, h*(W*Cout) + w*Cout + co] = w_conv[co, c, di, dj]
    for h' = h + di, w' = w + dj.  Built once at trace time (cache it / treat
    params as compile-time constants in a real serving path).
    """
    Cout, C, KH, KW = w_conv.shape
    PH, PW = KH // 2, KW // 2
    Hp, Wp = H + 2 * PH, W + 2 * PW
    w_full = jnp.zeros((Hp, Wp, C, H, W, Cout), jnp.float32)
    for di in range(KH):
        eh = jnp.eye(Hp, H, k=-di, dtype=jnp.float32)       # eh[h+di, h] = 1
        for dj in range(KW):
            ew = jnp.eye(Wp, W, k=-dj, dtype=jnp.float32)   # ew[w+dj, w] = 1
            tap = w_conv[:, :, di, dj].T                     # (C, Cout)
            w_full = w_full + jnp.einsum('ph,qw,cd->pqchwd', eh, ew, tap)
    return w_full.reshape(Hp * Wp * C, H * W * Cout)


def value_net_forward(x, params, *, batch_tile=None):
    """ValueNet.forward: softmax(baseNet(x)); baseNet = conv->relu->flatten->linear."""
    N, C, H, W = x.shape
    w_conv, b_conv = params["w_conv"], params["b_conv"]
    w_fc, b_fc = params["w_fc"], params["b_fc"]
    Cout, _, KH, KW = w_conv.shape
    K = w_fc.shape[0]
    PH, PW = KH // 2, KW // 2
    Hp, Wp = H + 2 * PH, W + 2 * PW
    L = Hp * Wp * C          # flattened padded-input length  (1296)
    F = H * W * Cout         # flattened feature length       (2048)

    # Batch tile = MXU M dim per step. Bump toward 128/256 for large N (keep
    # >= 2 grid steps on v7x so both TensorCores get work).
    B = batch_tile if batch_tile is not None else (16 if N >= 16 else 8)
    Np = pl.cdiv(N, B) * B

    # --- tiny input prep: NCHW -> NHWC, spatial pad, flatten, bf16, pad batch ---
    x_nhwc = jnp.transpose(x, (0, 2, 3, 1))
    xp = jnp.pad(x_nhwc, ((0, Np - N), (PH, PH), (PW, PW), (0, 0)))
    xp = xp.reshape(Np, L).astype(jnp.bfloat16)

    # --- weights folded once at trace time into kernel-friendly layouts ---
    wconv_full = _fold_conv_to_matmul(w_conv, H, W).astype(jnp.bfloat16)   # (L, F)
    bconv_full = jnp.tile(b_conv, (H * W,)).reshape(1, F).astype(jnp.float32)
    # FC weight permuted to (h, w, cout, K) so it matches the conv activation
    # layout (PyTorch NCHW flatten: feature = co*H*W + h*W + w).
    wfc_full = (w_fc.reshape(K, Cout, H, W)
                    .transpose(2, 3, 1, 0)                                  # (H, W, Cout, K)
                    .reshape(F, K)
                    .astype(jnp.bfloat16))
    bfc2 = b_fc.reshape(1, K).astype(jnp.float32)

    out = pl.pallas_call(
        fused_valuenet_kernel,
        out_shape=jax.ShapeDtypeStruct((Np, K), jnp.float32),
        grid=(Np // B,),
        in_specs=[
            pl.BlockSpec((B, L), lambda n: (n, 0)),     # per-step batch tile
            pl.BlockSpec((L, F), lambda n: (0, 0)),     # constant -> DMA'd once
            pl.BlockSpec((1, F), lambda n: (0, 0)),
            pl.BlockSpec((F, K), lambda n: (0, 0)),
            pl.BlockSpec((1, K), lambda n: (0, 0)),
        ],
        out_specs=pl.BlockSpec((B, K), lambda n: (n, 0)),
        compiler_params=pltpu.CompilerParams(
            dimension_semantics=("parallel",),
            vmem_limit_bytes=32 * 1024 * 1024),
    )(xp, wconv_full, bconv_full, wfc_full, bfc2)

    return out[:N]


def reference_forward(x, params):
    """Pure-JAX f32 reference of the same baseNet + softmax."""
    y = jax.lax.conv_general_dilated(
        x, params["w_conv"], window_strides=(1, 1), padding=((1, 1), (1, 1)),
        dimension_numbers=("NCHW", "OIHW", "NCHW"))
    y = jnp.maximum(y + params["b_conv"][None, :, None, None], 0.0)
    y = y.reshape(x.shape[0], -1)
    logits = y @ params["w_fc"].T + params["b_fc"]
    return jax.nn.softmax(logits, axis=-1)


def init_params(key, c_in=4, c_out=8, h=16, w=16, num_classes=10):
    k1, k2, k3, k4 = jax.random.split(key, 4)
    feat = c_out * h * w
    return {
        "w_conv": 0.1 * jax.random.normal(k1, (c_out, c_in, 3, 3), jnp.float32),
        "b_conv": 0.1 * jax.random.normal(k2, (c_out,), jnp.float32),
        "w_fc":   0.05 * jax.random.normal(k3, (num_classes, feat), jnp.float32),
        "b_fc":   0.05 * jax.random.normal(k4, (num_classes,), jnp.float32),
    }


if __name__ == "__main__":
    key = jax.random.PRNGKey(0)
    kx, kp = jax.random.split(key)

    N, C, H, W = 2, 4, 16, 16
    x = jax.random.normal(kx, (N, C, H, W), jnp.float32)    # NCHW, like PyTorch
    params = init_params(kp, c_in=C, c_out=8, h=H, w=W, num_classes=10)

    probs = jax.jit(value_net_forward)(x, params)
    probs = jax.block_until_ready(probs)

    # Sanity: shape, exact softmax rows ~1, agreement with pure-JAX f32 reference
    # (bf16 MXU inputs with f32 accumulation -> loose tolerance on probabilities).
    assert probs.shape == (N, 10)
    assert bool(jnp.allclose(jnp.sum(probs, axis=-1), 1.0, atol=1e-4))
    ref = reference_forward(x, params)
    assert bool(jnp.allclose(probs, ref, atol=3e-2))
    print("KERNEL_OK")
</pallas_src>

<mosaic_0001>
module attributes {stable_mosaic.version = 11 : i64} {
  func.func @fused_valuenet_kernel(%arg0: i32, %arg1: memref<8x1296xbf16, #tpu.memory_space<vmem>>, %arg2: memref<1296x2048xbf16, #tpu.memory_space<vmem>>, %arg3: memref<1x2048xf32, #tpu.memory_space<vmem>>, %arg4: memref<2048x10xbf16, #tpu.memory_space<vmem>>, %arg5: memref<1x10xf32, #tpu.memory_space<vmem>>, %arg6: memref<8x10xf32, #tpu.memory_space<vmem>>) attributes {dimension_semantics = [#tpu.dimension_semantics<parallel>], iteration_bounds = array<i64: 1>, scalar_prefetch = 0 : i64, scratch_operands = 0 : i64, tpu.core_type = #tpu.core_type<tc>, window_params = [{transform_indices = @transform_0, window_bounds = array<i64: 8, 1296>}, {pipeline_mode = #tpu.pipeline_mode<synchronous>, transform_indices = @transform_1, window_bounds = array<i64: 1296, 2048>}, {pipeline_mode = #tpu.pipeline_mode<synchronous>, transform_indices = @transform_2, window_bounds = array<i64: 1, 2048>}, {pipeline_mode = #tpu.pipeline_mode<synchronous>, transform_indices = @transform_3, window_bounds = array<i64: 2048, 10>}, {pipeline_mode = #tpu.pipeline_mode<synchronous>, transform_indices = @transform_4, window_bounds = array<i64: 1, 10>}, {transform_indices = @transform_5, window_bounds = array<i64: 8, 10>}]} {
    %c0 = arith.constant 0 : index
    %c0_0 = arith.constant 0 : index
    %0 = vector.load %arg1[%c0, %c0_0] : memref<8x1296xbf16, #tpu.memory_space<vmem>>, vector<8x1296xbf16>
    %c0_1 = arith.constant 0 : index
    %c0_2 = arith.constant 0 : index
    %1 = vector.load %arg2[%c0_1, %c0_2] : memref<1296x2048xbf16, #tpu.memory_space<vmem>>, vector<1296x2048xbf16>
    %cst = arith.constant dense<0.000000e+00> : vector<8x2048xf32>
    %2 = tpu.matmul %0, %1, %cst {dimension_numbers = #tpu.dot_dimension_numbers<[1], [0], [0], [1], [0, 0, 1, 1], [], []>} : vector<8x1296xbf16>, vector<1296x2048xbf16>, vector<8x2048xf32> -> vector<8x2048xf32>
    %c0_3 = arith.constant 0 : index
    %c0_4 = arith.constant 0 : index
    %3 = vector.load %arg3[%c0_3, %c0_4] : memref<1x2048xf32, #tpu.memory_space<vmem>>, vector<1x2048xf32>
    %4 = vector.broadcast %3 : vector<1x2048xf32> to vector<8x2048xf32>
    %5 = arith.addf %2, %4 : vector<8x2048xf32>
    %cst_5 = arith.constant 0.000000e+00 : f32
    %6 = vector.broadcast %cst_5 : f32 to vector<8x2048xf32>
    %7 = arith.maximumf %5, %6 : vector<8x2048xf32>
    %8 = arith.truncf %7 : vector<8x2048xf32> to vector<8x2048xbf16>
    %c0_6 = arith.constant 0 : index
    %c0_7 = arith.constant 0 : index
    %9 = vector.load %arg4[%c0_6, %c0_7] : memref<2048x10xbf16, #tpu.memory_space<vmem>>, vector<2048x10xbf16>
    %cst_8 = arith.constant dense<0.000000e+00> : vector<8x10xf32>
    %10 = tpu.matmul %8, %9, %cst_8 {dimension_numbers = #tpu.dot_dimension_numbers<[1], [0], [0], [1], [0, 0, 1, 1], [], []>} : vector<8x2048xbf16>, vector<2048x10xbf16>, vector<8x10xf32> -> vector<8x10xf32>
    %c0_9 = arith.constant 0 : index
    %c0_10 = arith.constant 0 : index
    %11 = vector.load %arg5[%c0_9, %c0_10] : memref<1x10xf32, #tpu.memory_space<vmem>>, vector<1x10xf32>
    %12 = vector.broadcast %11 : vector<1x10xf32> to vector<8x10xf32>
    %13 = arith.addf %10, %12 : vector<8x10xf32>
    %cst_11 = arith.constant dense<0xFF800000> : vector<8xf32>
    %14 = vector.multi_reduction <maximumf>, %13, %cst_11 [1] : vector<8x10xf32> to vector<8xf32>
    %15 = vector.shape_cast %14 : vector<8xf32> to vector<8x1xf32>
    %16 = vector.broadcast %15 : vector<8x1xf32> to vector<8x10xf32>
    %17 = arith.subf %13, %16 : vector<8x10xf32>
    %18 = math.exp %17 : vector<8x10xf32>
    %cst_12 = arith.constant dense<0.000000e+00> : vector<8xf32>
    %19 = vector.multi_reduction <add>, %18, %cst_12 [1] : vector<8x10xf32> to vector<8xf32>
    %20 = vector.shape_cast %19 : vector<8xf32> to vector<8x1xf32>
    %21 = vector.broadcast %20 : vector<8x1xf32> to vector<8x10xf32>
    %22 = arith.divf %18, %21 : vector<8x10xf32>
    %c0_13 = arith.constant 0 : index
    %c0_14 = arith.constant 0 : index
    %23 = vector.load %arg6[%c0_13, %c0_14] : memref<8x10xf32, #tpu.memory_space<vmem>>, vector<8x10xf32>
    tpu.vector_store %arg6[%c0_13, %c0_14], %22 {strides = array<i32>} : memref<8x10xf32, #tpu.memory_space<vmem>>, vector<8x10xf32>,
    return
  }
  func.func @transform_0(%arg0: i32) -> (i32, i32) {
    %c0_i32 = arith.constant 0 : i32
    %c0_i32_0 = arith.constant 0 : i32
    return %arg0, %c0_i32 : i32, i32
  }
  func.func @transform_1(%arg0: i32) -> (i32, i32) {
    %c0_i32 = arith.constant 0 : i32
    %c0_i32_0 = arith.constant 0 : i32
    %c0_i32_1 = arith.constant 0 : i32
    return %c0_i32, %c0_i32_0 : i32, i32
  }
  func.func @transform_2(%arg0: i32) -> (i32, i32) {
    %c0_i32 = arith.constant 0 : i32
    %c0_i32_0 = arith.constant 0 : i32
    %c0_i32_1 = arith.constant 0 : i32
    return %c0_i32, %c0_i32_0 : i32, i32
  }
  func.func @transform_3(%arg0: i32) -> (i32, i32) {
    %c0_i32 = arith.constant 0 : i32
    %c0_i32_0 = arith.constant 0 : i32
    %c0_i32_1 = arith.constant 0 : i32
    return %c0_i32, %c0_i32_0 : i32, i32
  }
  func.func @transform_4(%arg0: i32) -> (i32, i32) {
    %c0_i32 = arith.constant 0 : i32
    %c0_i32_0 = arith.constant 0 : i32
    %c0_i32_1 = arith.constant 0 : i32
    return %c0_i32, %c0_i32_0 : i32, i32
  }
  func.func @transform_5(%arg0: i32) -> (i32, i32) {
    %c0_i32 = arith.constant 0 : i32
    %c0_i32_0 = arith.constant 0 : i32
    return %arg0, %c0_i32 : i32, i32
  }
}

</mosaic_0001>

<llo_original>
// kernel: tile.8
$region0: #{tile.8}
  #allocation0 [shape = 's32[1]{0}', space=sflag, size = 0x4, scoped, tag = 'scoped memory for tile.8']
  %s0 = inlined_call_operand.vmem [shape: f32[8], index: 0, kind: input, shape index: {}]
  %s1 = inlined_call_operand.vmem [shape: f32[256,8], index: 1, kind: output, shape index: {}]
  // Predicated region
  $region2: #{tile.8} parent=0 // pred_check
    _
  $region3: #{tile.8} parent=0 // pred_check_branch
    %3 = sbr.rel (0) target = $region5
  $region4: #{tile.8} parent=0 // pred_region
    _
  $region5: #{tile.8} parent=0 // pred_fallthru
    _
  %v4 = vld [vmem:[%s0] ss:$0 sm:$0xff]
  %5 = vst [vmem:[%s1] sm:$0xff] %v4
  %s6 = scalar_lea.vmem %s1, 8
  %7 = vst [vmem:[%s6] sm:$0xff] %v4
  %s8 = scalar_lea.vmem %s1, 16
  %9 = vst [vmem:[%s8] sm:$0xff] %v4
  %s10 = scalar_lea.vmem %s1, 24
  %11 = vst [vmem:[%s10] sm:$0xff] %v4
  %s12 = scalar_lea.vmem %s1, 32
  %13 = vst [vmem:[%s12] sm:$0xff] %v4
  %s14 = scalar_lea.vmem %s1, 40
  %15 = vst [vmem:[%s14] sm:$0xff] %v4
  %s16 = scalar_lea.vmem %s1, 48
  %17 = vst [vmem:[%s16] sm:$0xff] %v4
  %s18 = scalar_lea.vmem %s1, 56
  %19 = vst [vmem:[%s18] sm:$0xff] %v4
  %s20 = scalar_lea.vmem %s1, 64
  %21 = vst [vmem:[%s20] sm:$0xff] %v4
  %s22 = scalar_lea.vmem %s1, 72
  %23 = vst [vmem:[%s22] sm:$0xff] %v4
  %s24 = scalar_lea.vmem %s1, 80
  %25 = vst [vmem:[%s24] sm:$0xff] %v4
  %s26 = scalar_lea.vmem %s1, 88
  %27 = vst [vmem:[%s26] sm:$0xff] %v4
  %s28 = scalar_lea.vmem %s1, 96
  %29 = vst [vmem:[%s28] sm:$0xff] %v4
  %s30 = scalar_lea.vmem %s1, 104
  %31 = vst [vmem:[%s30] sm:$0xff] %v4
  %s32 = scalar_lea.vmem %s1, 112
  %33 = vst [vmem:[%s32] sm:$0xff] %v4
  %s34 = scalar_lea.vmem %s1, 120
  %35 = vst [vmem:[%s34] sm:$0xff] %v4
  %s36 = scalar_lea.vmem %s1, 128
  %37 = vst [vmem:[%s36] sm:$0xff] %v4
  %s38 = scalar_lea.vmem %s1, 136
  %39 = vst [vmem:[%s38] sm:$0xff] %v4
  %s40 = scalar_lea.vmem %s1, 144
  %41 = vst [vmem:[%s40] sm:$0xff] %v4
  %s42 = scalar_lea.vmem %s1, 152
  %43 = vst [vmem:[%s42] sm:$0xff] %v4
  %s44 = scalar_lea.vmem %s1, 160
  %45 = vst [vmem:[%s44] sm:$0xff] %v4
  %s46 = scalar_lea.vmem %s1, 168
  %47 = vst [vmem:[%s46] sm:$0xff] %v4
  %s48 = scalar_lea.vmem %s1, 176
  %49 = vst [vmem:[%s48] sm:$0xff] %v4
  %s50 = scalar_lea.vmem %s1, 184
  %51 = vst [vmem:[%s50] sm:$0xff] %v4
  %s52 = scalar_lea.vmem %s1, 192
  %53 = vst [vmem:[%s52] sm:$0xff] %v4
  %s54 = scalar_lea.vmem %s1, 200
  %55 = vst [vmem:[%s54] sm:$0xff] %v4
  %s56 = scalar_lea.vmem %s1, 208
  %57 = vst [vmem:[%s56] sm:$0xff] %v4
  %s58 = scalar_lea.vmem %s1, 216
  %59 = vst [vmem:[%s58] sm:$0xff] %v4
  %s60 = scalar_lea.vmem %s1, 224
  %61 = vst [vmem:[%s60] sm:$0xff] %v4
  %s62 = scalar_lea.vmem %s1, 232
  %63 = vst [vmem:[%s62] sm:$0xff] %v4
  %s64 = scalar_lea.vmem %s1, 240
  %65 = vst [vmem:[%s64] sm:$0xff] %v4
  %s66 = scalar_lea.vmem %s1, 248
  %67 = vst [vmem:[%s66] sm:$0xff] %v4

// kernel: tile.9
$region0: #{tile.9}
  %s0 = inlined_call_operand.vmem [shape: f32[256,8], index: 0, kind: input, shape index: {}]
  %s1 = inlined_call_operand.vmem [shape: f32[1,2048], index: 1, kind: output, shape index: {}]
  $region1: #{tile.9} parent=0
    #allocation0 [shape = 'u8[65536]{0}', space=vmem, size = 0x10000, scoped, tag = 'scoped mem for output reshape']
    %s2 = smov 3
    %v3 = vld [vmem:[%s0] ss:$16 sm:%s2]
    %s4 = smov 12
    %v5 = vld [vmem:[%s0] ss:$16 sm:%s4]
    %vm6 = vcmask 1043458
    %v7 = vsel %vm6, %v5, %v3
    %s8 = smov 48
    %v9 = vld [vmem:[%s0] ss:$16 sm:%s8]
    %vm10 = vcmask 1045508
    %v11 = vsel %vm10, %v9, %v7
    %s12 = smov 192
    %v13 = vld [vmem:[%s0] ss:$16 sm:%s12]
    %vm14 = vcmask 1047558
    %v15 = vsel %vm14, %v13, %v11
    %vm16 = vcmask 64512
    %17 = vst.msk [vmem:[#allocation0] ss:$8 sm:$0xf] %vm16, %v15
    %18 = vst.msk [vmem:[#allocation0] ss:$8 sm:$0xf0] %vm16, %v15
    %s19 = scalar_lea.vmem %s0, 128
    %s20 = smov 3
    %v21 = vld [vmem:[%s19] ss:$16 sm:%s20]
    %s22 = scalar_lea.vmem %s0, 128
    %s23 = smov 12
    %v24 = vld [vmem:[%s22] ss:$16 sm:%s23]
    %vm25 = vcmask 1043458
    %v26 = vsel %vm25, %v24, %v21
    %s27 = scalar_lea.vmem %s0, 128
    %s28 = smov 48
    %v29 = vld [vmem:[%s27] ss:$16 sm:%s28]
    %vm30 = vcmask 1045508
    %v31 = vsel %vm30, %v29, %v26
    %s32 = scalar_lea.vmem %s0, 128
    %s33 = smov 192
    %v34 = vld [vmem:[%s32] ss:$16 sm:%s33]
    %vm35 = vcmask 1047558
    %v36 = vsel %vm35, %v34, %v31
    %vm37 = vcmask 64512
    %s38 = scalar_lea.vmem [#allocation0], 64
    %39 = vst.msk [vmem:[%s38] ss:$8 sm:$0xf] %vm37, %v36
    %s40 = scalar_lea.vmem [#allocation0], 64
    %41 = vst.msk [vmem:[%s40] ss:$8 sm:$0xf0] %vm37, %v36
    %s42 = scalar_lea.vmem %s0, 15
    %s43 = smov 3
    %v44 = vld [vmem:[%s42] ss:$16 sm:%s43]
    %s45 = scalar_lea.vmem %s0, 15
    %s46 = smov 12
    %v47 = vld [vmem:[%s45] ss:$16 sm:%s46]
    %vm48 = vcmask 1043458
    %v49 = vsel %vm48, %v47, %v44
    %s50 = scalar_lea.vmem %s0, 15
    %s51 = smov 48
    %v52 = vld [vmem:[%s50] ss:$16 sm:%s51]
    %vm53 = vcmask 1045508
    %v54 = vsel %vm53, %v52, %v49
    %s55 = scalar_lea.vmem %s0, 15
    %s56 = smov 192
    %v57 = vld [vmem:[%s55] ss:$16 sm:%s56]
    %vm58 = vcmask 1047558
    %v59 = vsel %vm58, %v57, %v54
    %60 = vrot.lane.b32.xlu0 %v59, 120
    %v61 = vpop.permute.xlu0 %60
    %vm62 = vcmask 1048512
    %63 = vst.msk [vmem:[#allocation0] ss:$8 sm:$0xf] %vm62, %v61
    %64 = vst.msk [vmem:[#allocation0] ss:$8 sm:$0xf0] %vm62, %v61
    %s65 = scalar_lea.vmem %s0, 143
    %s66 = smov 3
    %v67 = vld [vmem:[%s65] ss:$16 sm:%s66]
    %s68 = scalar_lea.vmem %s0, 143
    %s69 = smov 12
    %v70 = vld [vmem:[%s68] ss:$16 sm:%s69]
    %vm71 = vcmask 1043458
    %v72 = vsel %vm71, %v70, %v67
    %s73 = scalar_lea.vmem %s0, 143
    %s74 = smov 48
    %v75 = vld [vmem:[%s73] ss:$16 sm:%s74]
    %vm76 = vcmask 1045508
    %v77 = vsel %vm76, %v75, %v72
    %s78 = scalar_lea.vmem %s0, 143
    %s79 = smov 192
    %v80 = vld [vmem:[%s78] ss:$16 sm:%s79]
    %vm81 = vcmask 1047558
    %v82 = vsel %vm81, %v80, %v77
    %83 = vrot.lane.b32.xlu0 %v82, 120
    %v84 = vpop.permute.xlu0 %83
    %vm85 = vcmask 1048512
    %s86 = scalar_lea.vmem [#allocation0], 64
    %87 = vst.msk [vmem:[%s86] ss:$8 sm:$0xf] %vm85, %v84
    %s88 = scalar_lea.vmem [#allocation0], 64
    %89 = vst.msk [vmem:[%s88] ss:$8 sm:$0xf0] %vm85, %v84
    %s90 = scalar_lea.vmem %s0, 14
    %s91 = smov 3
    %v92 = vld [vmem:[%s90] ss:$16 sm:%s91]
    %s93 = scalar_lea.vmem %s0, 14
    %s94 = smov 12
    %v95 = vld [vmem:[%s93] ss:$16 sm:%s94]
    %vm96 = vcmask 1043458
    %v97 = vsel %vm96, %v95, %v92
    %s98 = scalar_lea.vmem %s0, 14
    %s99 = smov 48
    %v100 = vld [vmem:[%s98] ss:$16 sm:%s99]
    %vm101 = vcmask 1045508
    %v102 = vsel %vm101, %v100, %v97
    %s103 = scalar_lea.vmem %s0, 14
    %s104 = smov 192
    %v105 = vld [vmem:[%s103] ss:$16 sm:%s104]
    %vm106 = vcmask 1047558
    %v107 = vsel %vm106, %v105, %v102
    %108 = vrot.lane.b32.xlu0 %v107, 112
    %v109 = vpop.permute.xlu0 %108
    %vm110 = vcmask 982912
    %111 = vst.msk [vmem:[#allocation0] ss:$8 sm:$0xf] %vm110, %v109
    %112 = vst.msk [vmem:[#allocation0] ss:$8 sm:$0xf0] %vm110, %v109
    %s113 = scalar_lea.vmem %s0, 142
    %s114 = smov 3
    %v115 = vld [vmem:[%s113] ss:$16 sm:%s114]
    %s116 = scalar_lea.vmem %s0, 142
    %s117 = smov 12
    %v118 = vld [vmem:[%s116] ss:$16 sm:%s117]
    %vm119 = vcmask 1043458
    %v120 = vsel %vm119, %v118, %v115
    %s121 = scalar_lea.vmem %s0, 142
    %s122 = smov 48
    %v123 = vld [vmem:[%s121] ss:$16 sm:%s122]
    %vm124 = vcmask 1045508
    %v125 = vsel %vm124, %v123, %v120
    %s126 = scalar_lea.vmem %s0, 142
    %s127 = smov 192
    %v128 = vld [vmem:[%s126] ss:$16 sm:%s127]
    %vm129 = vcmask 1047558
    %v130 = vsel %vm129, %v128, %v125
    %131 = vrot.lane.b32.xlu0 %v130, 112
    %v132 = vpop.permute.xlu0 %131
    %vm133 = vcmask 982912
    %s134 = scalar_lea.vmem [#allocation0], 64
    %135 = vst.msk [vmem:[%s134] ss:$8 sm:$0xf] %vm133, %v132
    %s136 = scalar_lea.vmem [#allocation0], 64
    %137 = vst.msk [vmem:[%s136] ss:$8 sm:$0xf0] %vm133, %v132
    %s138 = scalar_lea.vmem %s0, 13
    %s139 = smov 3
    %v140 = vld [vmem:[%s138] ss:$16 sm:%s139]
    %s141 = scalar_lea.vmem %s0, 13
    %s142 = smov 12
    %v143 = vld [vmem:[%s141] ss:$16 sm:%s142]
    %vm144 = vcmask 1043458
    %v145 = vsel %vm144, %v143, %v140
    %s146 = scalar_lea.vmem %s0, 13
    %s147 = smov 48
    %v148 = vld [vmem:[%s146] ss:$16 sm:%s147]
    %vm149 = vcmask 1045508
    %v150 = vsel %vm149, %v148, %v145
    %s151 = scalar_lea.vmem %s0, 13
    %s152 = smov 192
    %v153 = vld [vmem:[%s151] ss:$16 sm:%s152]
    %vm154 = vcmask 1047558
    %v155 = vsel %vm154, %v153, %v150
    %156 = vrot.lane.b32.xlu0 %v155, 104
    %v157 = vpop.permute.xlu0 %156
    %vm158 = vcmask 917312
    %159 = vst.msk [vmem:[#allocation0] ss:$8 sm:$0xf] %vm158, %v157
    %160 = vst.msk [vmem:[#allocation0] ss:$8 sm:$0xf0] %vm158, %v157
    %s161 = scalar_lea.vmem %s0, 141
    %s162 = smov 3
    %v163 = vld [vmem:[%s161] ss:$16 sm:%s162]
    %s164 = scalar_lea.vmem %s0, 141
    %s165 = smov 12
    %v166 = vld [vmem:[%s164] ss:$16 sm:%s165]
    %vm167 = vcmask 1043458
    %v168 = vsel %vm167, %v166, %v163
    %s169 = scalar_lea.vmem %s0, 141
    %s170 = smov 48
    %v171 = vld [vmem:[%s169] ss:$16 sm:%s170]
    %vm172 = vcmask 1045508
    %v173 = vsel %vm172, %v171, %v168
    %s174 = scalar_lea.vmem %s0, 141
    %s175 = smov 192
    %v176 = vld [vmem:[%s174] ss:$16 sm:%s175]
    %vm177 = vcmask 1047558
    %v178 = vsel %vm177, %v176, %v173
    %179 = vrot.lane.b32.xlu0 %v178, 104
    %v180 = vpop.permute.xlu0 %179
    %vm181 = vcmask 917312
    %s182 = scalar_lea.vmem [#allocation0], 64
    %183 = vst.msk [vmem:[%s182] ss:$8 sm:$0xf] %vm181, %v180
    %s184 = scalar_lea.vmem [#allocation0], 64
    %185 = vst.msk [vmem:[%s184] ss:$8 sm:$0xf0] %vm181, %v180
    %s186 = scalar_lea.vmem %s0, 12
    %s187 = smov 3
    %v188 = vld [vmem:[%s186] ss:$16 sm:%s187]
    %s189 = scalar_lea.vmem %s0, 12
    %s190 = smov 12
    %v191 = vld [vmem:[%s189] ss:$16 sm:%s190]
    %vm192 = vcmask 1043458
    %v193 = vsel %vm192, %v191, %v188
    %s194 = scalar_lea.vmem %s0, 12
    %s195 = smov 48
    %v196 = vld [vmem:[%s194] ss:$16 sm:%s195]
    %vm197 = vcmask 1045508
    %v198 = vsel %vm197, %v196, %v193
    %s199 = scalar_lea.vmem %s0, 12
    %s200 = smov 192
    %v201 = vld [vmem:[%s199] ss:$16 sm:%s200]
    %vm202 = vcmask 1047558
    %v203 = vsel %vm202, %v201, %v198
    %204 = vrot.lane.b32.xlu0 %v203, 96
    %v205 = vpop.permute.xlu0 %204
    %vm206 = vcmask 851712
    %207 = vst.msk [vmem:[#allocation0] ss:$8 sm:$0xf] %vm206, %v205
    %208 = vst.msk [vmem:[#allocation0] ss:$8 sm:$0xf0] %vm206, %v205
    %s209 = scalar_lea.vmem %s0, 140
    %s210 = smov 3
    %v211 = vld [vmem:[%s209] ss:$16 sm:%s210]
    %s212 = scalar_lea.vmem %s0, 140
    %s213 = smov 12
    %v214 = vld [vmem:[%s212] ss:$16 sm:%s213]
    %vm215 = vcmask 1043458
    %v216 = vsel %vm215, %v214, %v211
    %s217 = scalar_lea.vmem %s0, 140
    %s218 = smov 48
    %v219 = vld [vmem:[%s217] ss:$16 sm:%s218]
    %vm220 = vcmask 1045508
    %v221 = vsel %vm220, %v219, %v216
    %s222 = scalar_lea.vmem %s0, 140
    %s223 = smov 192
    %v224 = vld [vmem:[%s222] ss:$16 sm:%s223]
    %vm225 = vcmask 1047558
    %v226 = vsel %vm225, %v224, %v221
    %227 = vrot.lane.b32.xlu0 %v226, 96
    %v228 = vpop.permute.xlu0 %227
    %vm229 = vcmask 851712
    %s230 = scalar_lea.vmem [#allocation0], 64
    %231 = vst.msk [vmem:[%s230] ss:$8 sm:$0xf] %vm229, %v228
    %s232 = scalar_lea.vmem [#allocation0], 64
    %233 = vst.msk [vmem:[%s232] ss:$8 sm:$0xf0] %vm229, %v228
    %s234 = scalar_lea.vmem %s0, 11
    %s235 = smov 3
    %v236 = vld [vmem:[%s234] ss:$16 sm:%s235]
    %s237 = scalar_lea.vmem %s0, 11
    %s238 = smov 12
    %v239 = vld [vmem:[%s237] ss:$16 sm:%s238]
    %vm240 = vcmask 1043458
    %v241 = vsel %vm240, %v239, %v236
    %s242 = scalar_lea.vmem %s0, 11
    %s243 = smov 48
    %v244 = vld [vmem:[%s242] ss:$16 sm:%s243]
    %vm245 = vcmask 1045508
    %v246 = vsel %vm245, %v244, %v241
    %s247 = scalar_lea.vmem %s0, 11
    %s248 = smov 192
    %v249 = vld [vmem:[%s247] ss:$16 sm:%s248]
    %vm250 = vcmask 1047558
    %v251 = vsel %vm250, %v249, %v246
    %252 = vrot.lane.b32.xlu0 %v251, 88
    %v253 = vpop.permute.xlu0 %252
    %vm254 = vcmask 786112
    %255 = vst.msk [vmem:[#allocation0] ss:$8 sm:$0xf] %vm254, %v253
    %256 = vst.msk [vmem:[#allocation0] ss:$8 sm:$0xf0] %vm254, %v253
    %s257 = scalar_lea.vmem %s0, 139
    %s258 = smov 3
    %v259 = vld [vmem:[%s257] ss:$16 sm:%s258]
    %s260 = scalar_lea.vmem %s0, 139
    %s261 = smov 12
    %v262 = vld [vmem:[%s260] ss:$16 sm:%s261]
    %vm263 = vcmask 1043458
    %v264 = vsel %vm263, %v262, %v259
    %s265 = scalar_lea.vmem %s0, 139
    %s266 = smov 48
    %v267 = vld [vmem:[%s265] ss:$16 sm:%s266]
    %vm268 = vcmask 1045508
    %v269 = vsel %vm268, %v267, %v264
    %s270 = scalar_lea.vmem %s0, 139
    %s271 = smov 192
    %v272 = vld [vmem:[%s270] ss:$16 sm:%s271]
    %vm273 = vcmask 1047558
    %v274 = vsel %vm273, %v272, %v269
    %275 = vrot.lane.b32.xlu0 %v274, 88
    %v276 = vpop.permute.xlu0 %275
    %vm277 = vcmask 786112
    %s278 = scalar_lea.vmem [#allocation0], 64
    %279 = vst.msk [vmem:[%s278] ss:$8 sm:$0xf] %vm277, %v276
    %s280 = scalar_lea.vmem [#allocation0], 64
    %281 = vst.msk [vmem:[%s280] ss:$8 sm:$0xf0] %vm277, %v276
    %s282 = scalar_lea.vmem %s0, 10
    %s283 = smov 3
    %v284 = vld [vmem:[%s282] ss:$16 sm:%s283]
    %s285 = scalar_lea.vmem %s0, 10
    %s286 = smov 12
    %v287 = vld [vmem:[%s285] ss:$16 sm:%s286]
    %vm288 = vcmask 1043458
    %v289 = vsel %vm288, %v287, %v284
    %s290 = scalar_lea.vmem %s0, 10
    %s291 = smov 48
    %v292 = vld [vmem:[%s290] ss:$16 sm:%s291]
    %vm293 = vcmask 1045508
    %v294 = vsel %vm293, %v292, %v289
    %s295 = scalar_lea.vmem %s0, 10
    %s296 = smov 192
    %v297 = vld [vmem:[%s295] ss:$16 sm:%s296]
    %vm298 = vcmask 1047558
    %v299 = vsel %vm298, %v297, %v294
    %300 = vrot.lane.b32.xlu0 %v299, 80
    %v301 = vpop.permute.xlu0 %300
    %vm302 = vcmask 720512
    %303 = vst.msk [vmem:[#allocation0] ss:$8 sm:$0xf] %vm302, %v301
    %304 = vst.msk [vmem:[#allocation0] ss:$8 sm:$0xf0] %vm302, %v301
    %s305 = scalar_lea.vmem %s0, 138
    %s306 = smov 3
    %v307 = vld [vmem:[%s305] ss:$16 sm:%s306]
    %s308 = scalar_lea.vmem %s0, 138
    %s309 = smov 12
    %v310 = vld [vmem:[%s308] ss:$16 sm:%s309]
    %vm311 = vcmask 1043458
    %v312 = vsel %vm311, %v310, %v307
    %s313 = scalar_lea.vmem %s0, 138
    %s314 = smov 48
    %v315 = vld [vmem:[%s313] ss:$16 sm:%s314]
    %vm316 = vcmask 1045508
    %v317 = vsel %vm316, %v315, %v312
    %s318 = scalar_lea.vmem %s0, 138
    %s319 = smov 192
    %v320 = vld [vmem:[%s318] ss:$16 sm:%s319]
    %vm321 = vcmask 1047558
    %v322 = vsel %vm321, %v320, %v317
    %323 = vrot.lane.b32.xlu0 %v322, 80
    %v324 = vpop.permute.xlu0 %323
    %vm325 = vcmask 720512
    %s326 = scalar_lea.vmem [#allocation0], 64
    %327 = vst.msk [vmem:[%s326] ss:$8 sm:$0xf] %vm325, %v324
    %s328 = scalar_lea.vmem [#allocation0], 64
    %329 = vst.msk [vmem:[%s328] ss:$8 sm:$0xf0] %vm325, %v324
    %s330 = scalar_lea.vmem %s0, 9
    %s331 = smov 3
    %v332 = vld [vmem:[%s330] ss:$16 sm:%s331]
    %s333 = scalar_lea.vmem %s0, 9
    %s334 = smov 12
    %v335 = vld [vmem:[%s333] ss:$16 sm:%s334]
    %vm336 = vcmask 1043458
    %v337 = vsel %vm336, %v335, %v332
    %s338 = scalar_lea.vmem %s0, 9
    %s339 = smov 48
    %v340 = vld [vmem:[%s338] ss:$16 sm:%s339]
    %vm341 = vcmask 1045508
    %v342 = vsel %vm341, %v340, %v337
    %s343 = scalar_lea.vmem %s0, 9
    %s344 = smov 192
    %v345 = vld [vmem:[%s343] ss:$16 sm:%s344]
    %vm346 = vcmask 1047558
    %v347 = vsel %vm346, %v345, %v342
    %348 = vrot.lane.b32.xlu0 %v347, 72
    %v349 = vpop.permute.xlu0 %348
    %vm350 = vcmask 654912
    %351 = vst.msk [vmem:[#allocation0] ss:$8 sm:$0xf] %vm350, %v349
    %352 = vst.msk [vmem:[#allocation0] ss:$8 sm:$0xf0] %vm350, %v349
    %s353 = scalar_lea.vmem %s0, 137
    %s354 = smov 3
    %v355 = vld [vmem:[%s353] ss:$16 sm:%s354]
    %s356 = scalar_lea.vmem %s0, 137
    %s357 = smov 12
    %v358 = vld [vmem:[%s356] ss:$16 sm:%s357]
    %vm359 = vcmask 1043458
    %v360 = vsel %vm359, %v358, %v355
    %s361 = scalar_lea.vmem %s0, 137
    %s362 = smov 48
    %v363 = vld [vmem:[%s361] ss:$16 sm:%s362]
    %vm364 = vcmask 1045508
    %v365 = vsel %vm364, %v363, %v360
    %s366 = scalar_lea.vmem %s0, 137
    %s367 = smov 192
    %v368 = vld [vmem:[%s366] ss:$16 sm:%s367]
    %vm369 = vcmask 1047558
    %v370 = vsel %vm369, %v368, %v365
    %371 = vrot.lane.b32.xlu0 %v370, 72
    %v372 = vpop.permute.xlu0 %371
    %vm373 = vcmask 654912
    %s374 = scalar_lea.vmem [#allocation0], 64
    %375 = vst.msk [vmem:[%s374] ss:$8 sm:$0xf] %vm373, %v372
    %s376 = scalar_lea.vmem [#allocation0], 64
    %377 = vst.msk [vmem:[%s376] ss:$8 sm:$0xf0] %vm373, %v372
    %s378 = scalar_lea.vmem %s0, 8
    %s379 = smov 3
    %v380 = vld [vmem:[%s378] ss:$16 sm:%s379]
    %s381 = scalar_lea.vmem %s0, 8
    %s382 = smov 12
    %v383 = vld [vmem:[%s381] ss:$16 sm:%s382]
    %vm384 = vcmask 1043458
    %v385 = vsel %vm384, %v383, %v380
    %s386 = scalar_lea.vmem %s0, 8
    %s387 = smov 48
    %v388 = vld [vmem:[%s386] ss:$16 sm:%s387]
    %vm389 = vcmask 1045508
    %v390 = vsel %vm389, %v388, %v385
    %s391 = scalar_lea.vmem %s0, 8
    %s392 = smov 192
    %v393 = vld [vmem:[%s391] ss:$16 sm:%s392]
    %vm394 = vcmask 1047558
    %v395 = vsel %vm394, %v393, %v390
    %396 = vrot.lane.b32.xlu0 %v395, 64
    %v397 = vpop.permute.xlu0 %396
    %vm398 = vcmask 589312
    %399 = vst.msk [vmem:[#allocation0] ss:$8 sm:$0xf] %vm398, %v397
    %400 = vst.msk [vmem:[#allocation0] ss:$8 sm:$0xf0] %vm398, %v397
    %s401 = scalar_lea.vmem %s0, 136
    %s402 = smov 3
    %v403 = vld [vmem:[%s401] ss:$16 sm:%s402]
    %s404 = scalar_lea.vmem %s0, 136
    %s405 = smov 12
    %v406 = vld [vmem:[%s404] ss:$16 sm:%s405]
    %vm407 = vcmask 1043458
    %v408 = vsel %vm407, %v406, %v403
    %s409 = scalar_lea.vmem %s0, 136
    %s410 = smov 48
    %v411 = vld [vmem:[%s409] ss:$16 sm:%s410]
    %vm412 = vcmask 1045508
    %v413 = vsel %vm412, %v411, %v408
    %s414 = scalar_lea.vmem %s0, 136
    %s415 = smov 192
    %v416 = vld [vmem:[%s414] ss:$16 sm:%s415]
    %vm417 = vcmask 1047558
    %v418 = vsel %vm417, %v416, %v413
    %419 = vrot.lane.b32.xlu0 %v418, 64
    %v420 = vpop.permute.xlu0 %419
    %vm421 = vcmask 589312
    %s422 = scalar_lea.vmem [#allocation0], 64
    %423 = vst.msk [vmem:[%s422] ss:$8 sm:$0xf] %vm421, %v420
    %s424 = scalar_lea.vmem [#allocation0], 64
    %425 = vst.msk [vmem:[%s424] ss:$8 sm:$0xf0] %vm421, %v420
    %s426 = scalar_lea.vmem %s0, 7
    %s427 = smov 3
    %v428 = vld [vmem:[%s426] ss:$16 sm:%s427]
    %s429 = scalar_lea.vmem %s0, 7
    %s430 = smov 12
    %v431 = vld [vmem:[%s429] ss:$16 sm:%s430]
    %vm432 = vcmask 1043458
    %v433 = vsel %vm432, %v431, %v428
    %s434 = scalar_lea.vmem %s0, 7
    %s435 = smov 48
    %v436 = vld [vmem:[%s434] ss:$16 sm:%s435]
    %vm437 = vcmask 1045508
    %v438 = vsel %vm437, %v436, %v433
    %s439 = scalar_lea.vmem %s0, 7
    %s440 = smov 192
    %v441 = vld [vmem:[%s439] ss:$16 sm:%s440]
    %vm442 = vcmask 1047558
    %v443 = vsel %vm442, %v441, %v438
    %444 = vrot.lane.b32.xlu0 %v443, 56
    %v445 = vpop.permute.xlu0 %444
    %vm446 = vcmask 523712
    %447 = vst.msk [vmem:[#allocation0] ss:$8 sm:$0xf] %vm446, %v445
    %448 = vst.msk [vmem:[#allocation0] ss:$8 sm:$0xf0] %vm446, %v445
    %s449 = scalar_lea.vmem %s0, 135
    %s450 = smov 3
    %v451 = vld [vmem:[%s449] ss:$16 sm:%s450]
    %s452 = scalar_lea.vmem %s0, 135
    %s453 = smov 12
    %v454 = vld [vmem:[%s452] ss:$16 sm:%s453]
    %vm455 = vcmask 1043458
    %v456 = vsel %vm455, %v454, %v451
    %s457 = scalar_lea.vmem %s0, 135
    %s458 = smov 48
    %v459 = vld [vmem:[%s457] ss:$16 sm:%s458]
    %vm460 = vcmask 1045508
    %v461 = vsel %vm460, %v459, %v456
    %s462 = scalar_lea.vmem %s0, 135
    %s463 = smov 192
    %v464 = vld [vmem:[%s462] ss:$16 sm:%s463]
    %vm465 = vcmask 1047558
    %v466 = vsel %vm465, %v464, %v461
    %467 = vrot.lane.b32.xlu0 %v466, 56
    %v468 = vpop.permute.xlu0 %467
    %vm469 = vcmask 523712
    %s470 = scalar_lea.vmem [#allocation0], 64
    %471 = vst.msk [vmem:[%s470] ss:$8 sm:$0xf] %vm469, %v468
    %s472 = scalar_lea.vmem [#allocation0], 64
    %473 = vst.msk [vmem:[%s472] ss:$8 sm:$0xf0] %vm469, %v468
    %s474 = scalar_lea.vmem %s0, 6
    %s475 = smov 3
    %v476 = vld [vmem:[%s474] ss:$16 sm:%s475]
    %s477 = scalar_lea.vmem %s0, 6
    %s478 = smov 12
    %v479 = vld [vmem:[%s477] ss:$16 sm:%s478]
    %vm480 = vcmask 1043458
    %v481 = vsel %vm480, %v479, %v476
    %s482 = scalar_lea.vmem %s0, 6
    %s483 = smov 48
    %v484 = vld [vmem:[%s482] ss:$16 sm:%s483]
    %vm485 = vcmask 1045508
    %v486 = vsel %vm485, %v484, %v481
    %s487 = scalar_lea.vmem %s0, 6
    %s488 = smov 192
    %v489 = vld [vmem:[%s487] ss:$16 sm:%s488]
    %vm490 = vcmask 1047558
    %v491 = vsel %vm490, %v489, %v486
    %492 = vrot.lane.b32.xlu0 %v491, 48
    %v493 = vpop.permute.xlu0 %492
    %vm494 = vcmask 458112
    %495 = vst.msk [vmem:[#allocation0] ss:$8 sm:$0xf] %vm494, %v493
    %496 = vst.msk [vmem:[#allocation0] ss:$8 sm:$0xf0] %vm494, %v493
    %s497 = scalar_lea.vmem %s0, 134
    %s498 = smov 3
    %v499 = vld [vmem:[%s497] ss:$16 sm:%s498]
    %s500 = scalar_lea.vmem %s0, 134
    %s501 = smov 12
    %v502 = vld [vmem:[%s500] ss:$16 sm:%s501]
    %vm503 = vcmask 1043458
    %v504 = vsel %vm503, %v502, %v499
    %s505 = scalar_lea.vmem %s0, 134
    %s506 = smov 48
    %v507 = vld [vmem:[%s505] ss:$16 sm:%s506]
    %vm508 = vcmask 1045508
    %v509 = vsel %vm508, %v507, %v504
    %s510 = scalar_lea.vmem %s0, 134
    %s511 = smov 192
    %v512 = vld [vmem:[%s510] ss:$16 sm:%s511]
    %vm513 = vcmask 1047558
    %v514 = vsel %vm513, %v512, %v509
    %515 = vrot.lane.b32.xlu0 %v514, 48
    %v516 = vpop.permute.xlu0 %515
    %vm517 = vcmask 458112
    %s518 = scalar_lea.vmem [#allocation0], 64
    %519 = vst.msk [vmem:[%s518] ss:$8 sm:$0xf] %vm517, %v516
    %s520 = scalar_lea.vmem [#allocation0], 64
    %521 = vst.msk [vmem:[%s520] ss:$8 sm:$0xf0] %vm517, %v516
    %s522 = scalar_lea.vmem %s0, 5
    %s523 = smov 3
    %v524 = vld [vmem:[%s522] ss:$16 sm:%s523]
    %s525 = scalar_lea.vmem %s0, 5
    %s526 = smov 12
    %v527 = vld [vmem:[%s525] ss:$16 sm:%s526]
    %vm528 = vcmask 1043458
    %v529 = vsel %vm528, %v527, %v524
    %s530 = scalar_lea.vmem %s0, 5
    %s531 = smov 48
    %v532 = vld [vmem:[%s530] ss:$16 sm:%s531]
    %vm533 = vcmask 1045508
    %v534 = vsel %vm533, %v532, %v529
    %s535 = scalar_lea.vmem %s0, 5
    %s536 = smov 192
    %v537 = vld [vmem:[%s535] ss:$16 sm:%s536]
    %vm538 = vcmask 1047558
    %v539 = vsel %vm538, %v537, %v534
    %540 = vrot.lane.b32.xlu0 %v539, 40
    %v541 = vpop.permute.xlu0 %540
    %vm542 = vcmask 392512
    %543 = vst.msk [vmem:[#allocation0] ss:$8 sm:$0xf] %vm542, %v541
    %544 = vst.msk [vmem:[#allocation0] ss:$8 sm:$0xf0] %vm542, %v541
    %s545 = scalar_lea.vmem %s0, 133
    %s546 = smov 3
    %v547 = vld [vmem:[%s545] ss:$16 sm:%s546]
    %s548 = scalar_lea.vmem %s0, 133
    %s549 = smov 12
    %v550 = vld [vmem:[%s548] ss:$16 sm:%s549]
    %vm551 = vcmask 1043458
    %v552 = vsel %vm551, %v550, %v547
    %s553 = scalar_lea.vmem %s0, 133
    %s554 = smov 48
    %v555 = vld [vmem:[%s553] ss:$16 sm:%s554]
    %vm556 = vcmask 1045508
    %v557 = vsel %vm556, %v555, %v552
    %s558 = scalar_lea.vmem %s0, 133
    %s559 = smov 192
    %v560 = vld [vmem:[%s558] ss:$16 sm:%s559]
    %vm561 = vcmask 1047558
    %v562 = vsel %vm561, %v560, %v557
    %563 = vrot.lane.b32.xlu0 %v562, 40
    %v564 = vpop.permute.xlu0 %563
    %vm565 = vcmask 392512
    %s566 = scalar_lea.vmem [#allocation0], 64
    %567 = vst.msk [vmem:[%s566] ss:$8 sm:$0xf] %vm565, %v564
    %s568 = scalar_lea.vmem [#allocation0], 64
    %569 = vst.msk [vmem:[%s568] ss:$8 sm:$0xf0] %vm565, %v564
    %s570 = scalar_lea.vmem %s0, 4
    %s571 = smov 3
    %v572 = vld [vmem:[%s570] ss:$16 sm:%s571]
    %s573 = scalar_lea.vmem %s0, 4
    %s574 = smov 12
    %v575 = vld [vmem:[%s573] ss:$16 sm:%s574]
    %vm576 = vcmask 1043458
    %v577 = vsel %vm576, %v575, %v572
    %s578 = scalar_lea.vmem %s0, 4
    %s579 = smov 48
    %v580 = vld [vmem:[%s578] ss:$16 sm:%s579]
    %vm581 = vcmask 1045508
    %v582 = vsel %vm581, %v580, %v577
    %s583 = scalar_lea.vmem %s0, 4
    %s584 = smov 192
    %v585 = vld [vmem:[%s583] ss:$16 sm:%s584]
    %vm586 = vcmask 1047558
    %v587 = vsel %vm586, %v585, %v582
    %588 = vrot.lane.b32.xlu0 %v587, 32
    %v589 = vpop.permute.xlu0 %588
    %vm590 = vcmask 326912
    %591 = vst.msk [vmem:[#allocation0] ss:$8 sm:$0xf] %vm590, %v589
    %592 = vst.msk [vmem:[#allocation0] ss:$8 sm:$0xf0] %vm590, %v589
    %s593 = scalar_lea.vmem %s0, 132
    %s594 = smov 3
    %v595 = vld [vmem:[%s593] ss:$16 sm:%s594]
    %s596 = scalar_lea.vmem %s0, 132
    %s597 = smov 12
    %v598 = vld [vmem:[%s596] ss:$16 sm:%s597]
    %vm599 = vcmask 1043458
    %v600 = vsel %vm599, %v598, %v595
    %s601 = scalar_lea.vmem %s0, 132
    %s602 = smov 48
    %v603 = vld [vmem:[%s601] ss:$16 sm:%s602]
    %vm604 = vcmask 1045508
    %v605 = vsel %vm604, %v603, %v600
    %s606 = scalar_lea.vmem %s0, 132
    %s607 = smov 192
    %v608 = vld [vmem:[%s606] ss:$16 sm:%s607]
    %vm609 = vcmask 1047558
    %v610 = vsel %vm609, %v608, %v605
    %611 = vrot.lane.b32.xlu0 %v610, 32
    %v612 = vpop.permute.xlu0 %611
    %vm613 = vcmask 326912
    %s614 = scalar_lea.vmem [#allocation0], 64
    %615 = vst.msk [vmem:[%s614] ss:$8 sm:$0xf] %vm613, %v612
    %s616 = scalar_lea.vmem [#allocation0], 64
    %617 = vst.msk [vmem:[%s616] ss:$8 sm:$0xf0] %vm613, %v612
    %s618 = scalar_lea.vmem %s0, 3
    %s619 = smov 3
    %v620 = vld [vmem:[%s618] ss:$16 sm:%s619]
    %s621 = scalar_lea.vmem %s0, 3
    %s622 = smov 12
    %v623 = vld [vmem:[%s621] ss:$16 sm:%s622]
    %vm624 = vcmask 1043458
    %v625 = vsel %vm624, %v623, %v620
    %s626 = scalar_lea.vmem %s0, 3
    %s627 = smov 48
    %v628 = vld [vmem:[%s626] ss:$16 sm:%s627]
    %vm629 = vcmask 1045508
    %v630 = vsel %vm629, %v628, %v625
    %s631 = scalar_lea.vmem %s0, 3
    %s632 = smov 192
    %v633 = vld [vmem:[%s631] ss:$16 sm:%s632]
    %vm634 = vcmask 1047558
    %v635 = vsel %vm634, %v633, %v630
    %636 = vrot.lane.b32.xlu0 %v635, 24
    %v637 = vpop.permute.xlu0 %636
    %vm638 = vcmask 261312
    %639 = vst.msk [vmem:[#allocation0] ss:$8 sm:$0xf] %vm638, %v637
    %640 = vst.msk [vmem:[#allocation0] ss:$8 sm:$0xf0] %vm638, %v637
    %s641 = scalar_lea.vmem %s0, 131
    %s642 = smov 3
    %v643 = vld [vmem:[%s641] ss:$16 sm:%s642]
    %s644 = scalar_lea.vmem %s0, 131
    %s645 = smov 12
    %v646 = vld [vmem:[%s644] ss:$16 sm:%s645]
    %vm647 = vcmask 1043458
    %v648 = vsel %vm647, %v646, %v643
    %s649 = scalar_lea.vmem %s0, 131
    %s650 = smov 48
    %v651 = vld [vmem:[%s649] ss:$16 sm:%s650]
    %vm652 = vcmask 1045508
    %v653 = vsel %vm652, %v651, %v648
    %s654 = scalar_lea.vmem %s0, 131
    %s655 = smov 192
    %v656 = vld [vmem:[%s654] ss:$16 sm:%s655]
    %vm657 = vcmask 1047558
    %v658 = vsel %vm657, %v656, %v653
    %659 = vrot.lane.b32.xlu0 %v658, 24
    %v660 = vpop.permute.xlu0 %659
    %vm661 = vcmask 261312
    %s662 = scalar_lea.vmem [#allocation0], 64
    %663 = vst.msk [vmem:[%s662] ss:$8 sm:$0xf] %vm661, %v660
    %s664 = scalar_lea.vmem [#allocation0], 64
    %665 = vst.msk [vmem:[%s664] ss:$8 sm:$0xf0] %vm661, %v660
    %s666 = scalar_lea.vmem %s0, 2
    %s667 = smov 3
    %v668 = vld [vmem:[%s666] ss:$16 sm:%s667]
    %s669 = scalar_lea.vmem %s0, 2
    %s670 = smov 12
    %v671 = vld [vmem:[%s669] ss:$16 sm:%s670]
    %vm672 = vcmask 1043458
    %v673 = vsel %vm672, %v671, %v668
    %s674 = scalar_lea.vmem %s0, 2
    %s675 = smov 48
    %v676 = vld [vmem:[%s674] ss:$16 sm:%s675]
    %vm677 = vcmask 1045508
    %v678 = vsel %vm677, %v676, %v673
    %s679 = scalar_lea.vmem %s0, 2
    %s680 = smov 192
    %v681 = vld [vmem:[%s679] ss:$16 sm:%s680]
    %vm682 = vcmask 1047558
    %v683 = vsel %vm682, %v681, %v678
    %684 = vrot.lane.b32.xlu0 %v683, 16
    %v685 = vpop.permute.xlu0 %684
    %vm686 = vcmask 195712
    %687 = vst.msk [vmem:[#allocation0] ss:$8 sm:$0xf] %vm686, %v685
    %688 = vst.msk [vmem:[#allocation0] ss:$8 sm:$0xf0] %vm686, %v685
    %s689 = scalar_lea.vmem %s0, 130
    %s690 = smov 3
    %v691 = vld [vmem:[%s689] ss:$16 sm:%s690]
    %s692 = scalar_lea.vmem %s0, 130
    %s693 = smov 12
    %v694 = vld [vmem:[%s692] ss:$16 sm:%s693]
    %vm695 = vcmask 1043458
    %v696 = vsel %vm695, %v694, %v691
    %s697 = scalar_lea.vmem %s0, 130
    %s698 = smov 48
    %v699 = vld [vmem:[%s697] ss:$16 sm:%s698]
    %vm700 = vcmask 1045508
    %v701 = vsel %vm700, %v699, %v696
    %s702 = scalar_lea.vmem %s0, 130
    %s703 = smov 192
    %v704 = vld [vmem:[%s702] ss:$16 sm:%s703]
    %vm705 = vcmask 1047558
    %v706 = vsel %vm705, %v704, %v701
    %707 = vrot.lane.b32.xlu0 %v706, 16
    %v708 = vpop.permute.xlu0 %707
    %vm709 = vcmask 195712
    %s710 = scalar_lea.vmem [#allocation0], 64
    %711 = vst.msk [vmem:[%s710] ss:$8 sm:$0xf] %vm709, %v708
    %s712 = scalar_lea.vmem [#allocation0], 64
    %713 = vst.msk [vmem:[%s712] ss:$8 sm:$0xf0] %vm709, %v708
    %s714 = scalar_lea.vmem %s0, 1
    %s715 = smov 3
    %v716 = vld [vmem:[%s714] ss:$16 sm:%s715]
    %s717 = scalar_lea.vmem %s0, 1
    %s718 = smov 12
    %v719 = vld [vmem:[%s717] ss:$16 sm:%s718]
    %vm720 = vcmask 1043458
    %v721 = vsel %vm720, %v719, %v716
    %s722 = scalar_lea.vmem %s0, 1
    %s723 = smov 48
    %v724 = vld [vmem:[%s722] ss:$16 sm:%s723]
    %vm725 = vcmask 1045508
    %v726 = vsel %vm725, %v724, %v721
    %s727 = scalar_lea.vmem %s0, 1
    %s728 = smov 192
    %v729 = vld [vmem:[%s727] ss:$16 sm:%s728]
    %vm730 = vcmask 1047558
    %v731 = vsel %vm730, %v729, %v726
    %732 = vrot.lane.b32.xlu0 %v731, 8
    %v733 = vpop.permute.xlu0 %732
    %vm734 = vcmask 130112
    %735 = vst.msk [vmem:[#allocation0] ss:$8 sm:$0xf] %vm734, %v733
    %736 = vst.msk [vmem:[#allocation0] ss:$8 sm:$0xf0] %vm734, %v733
    %s737 = scalar_lea.vmem %s0, 129
    %s738 = smov 3
    %v739 = vld [vmem:[%s737] ss:$16 sm:%s738]
    %s740 = scalar_lea.vmem %s0, 129
    %s741 = smov 12
    %v742 = vld [vmem:[%s740] ss:$16 sm:%s741]
    %vm743 = vcmask 1043458
    %v744 = vsel %vm743, %v742, %v739
    %s745 = scalar_lea.vmem %s0, 129
    %s746 = smov 48
    %v747 = vld [vmem:[%s745] ss:$16 sm:%s746]
    %vm748 = vcmask 1045508
    %v749 = vsel %vm748, %v747, %v744
    %s750 = scalar_lea.vmem %s0, 129
    %s751 = smov 192
    %v752 = vld [vmem:[%s750] ss:$16 sm:%s751]
    %vm753 = vcmask 1047558
    %v754 = vsel %vm753, %v752, %v749
    %755 = vrot.lane.b32.xlu0 %v754, 8
    %v756 = vpop.permute.xlu0 %755
    %vm757 = vcmask 130112
    %s758 = scalar_lea.vmem [#allocation0], 64
    %759 = vst.msk [vmem:[%s758] ss:$8 sm:$0xf] %vm757, %v756
    %s760 = scalar_lea.vmem [#allocation0], 64
    %761 = vst.msk [vmem:[%s760] ss:$8 sm:$0xf0] %vm757, %v756
    %s763 = sshllo.u32 0, 1
    %v765 = vld [vmem:[#allocation0] sm:%s763]
    %s766 = sshllo.u32 0, 1
    %767 = vst [vmem:[%s1] sm:%s766] %v765
    %s768 = scalar_lea.vmem [#allocation0], 8
    %v769 = vld [vmem:[%s768] sm:%s763]
    %s770 = sshllo.u32 0, 1
    %s771 = scalar_lea.vmem %s1, 1
    %772 = vst [vmem:[%s771] sm:%s770] %v769
    %s773 = scalar_lea.vmem [#allocation0], 16
    %v774 = vld [vmem:[%s773] sm:%s763]
    %s775 = sshllo.u32 0, 1
    %s776 = smul.addr 1, 2
    %s777 = scalar_lea.vmem %s1, %s776
    %778 = vst [vmem:[%s777] sm:%s775] %v774
    %s779 = scalar_lea.vmem [#allocation0], 24
    %v780 = vld [vmem:[%s779] sm:%s763]
    %s781 = sshllo.u32 0, 1
    %s782 = smul.addr 1, 3
    %s783 = scalar_lea.vmem %s1, %s782
    %784 = vst [vmem:[%s783] sm:%s781] %v780
    %s785 = scalar_lea.vmem [#allocation0], 32
    %v786 = vld [vmem:[%s785] sm:%s763]
    %s787 = sshllo.u32 0, 1
    %s788 = smul.addr 1, 4
    %s789 = scalar_lea.vmem %s1, %s788
    %790 = vst [vmem:[%s789] sm:%s787] %v786
    %s791 = scalar_lea.vmem [#allocation0], 40
    %v792 = vld [vmem:[%s791] sm:%s763]
    %s793 = sshllo.u32 0, 1
    %s794 = smul.addr 1, 5
    %s795 = scalar_lea.vmem %s1, %s794
    %796 = vst [vmem:[%s795] sm:%s793] %v792
    %s797 = scalar_lea.vmem [#allocation0], 48
    %v798 = vld [vmem:[%s797] sm:%s763]
    %s799 = sshllo.u32 0, 1
    %s800 = smul.addr 1, 6
    %s801 = scalar_lea.vmem %s1, %s800
    %802 = vst [vmem:[%s801] sm:%s799] %v798
    %s803 = scalar_lea.vmem [#allocation0], 56
    %v804 = vld [vmem:[%s803] sm:%s763]
    %s805 = sshllo.u32 0, 1
    %s806 = smul.addr 1, 7
    %s807 = scalar_lea.vmem %s1, %s806
    %808 = vst [vmem:[%s807] sm:%s805] %v804
    %s809 = scalar_lea.vmem [#allocation0], 64
    %v810 = vld [vmem:[%s809] sm:%s763]
    %s811 = sshllo.u32 0, 1
    %s812 = smul.addr 1, 8
    %s813 = scalar_lea.vmem %s1, %s812
    %814 = vst [vmem:[%s813] sm:%s811] %v810
    %s815 = scalar_lea.vmem [#allocation0], 72
    %v816 = vld [vmem:[%s815] sm:%s763]
    %s817 = sshllo.u32 0, 1
    %s818 = smul.addr 1, 9
    %s819 = scalar_lea.vmem %s1, %s818
    %820 = vst [vmem:[%s819] sm:%s817] %v816
    %s821 = scalar_lea.vmem [#allocation0], 80
    %v822 = vld [vmem:[%s821] sm:%s763]
    %s823 = sshllo.u32 0, 1
    %s824 = smul.addr 1, 10
    %s825 = scalar_lea.vmem %s1, %s824
    %826 = vst [vmem:[%s825] sm:%s823] %v822
    %s827 = scalar_lea.vmem [#allocation0], 88
    %v828 = vld [vmem:[%s827] sm:%s763]
    %s829 = sshllo.u32 0, 1
    %s830 = smul.addr 1, 11
    %s831 = scalar_lea.vmem %s1, %s830
    %832 = vst [vmem:[%s831] sm:%s829] %v828
    %s833 = scalar_lea.vmem [#allocation0], 96
    %v834 = vld [vmem:[%s833] sm:%s763]
    %s835 = sshllo.u32 0, 1
    %s836 = smul.addr 1, 12
    %s837 = scalar_lea.vmem %s1, %s836
    %838 = vst [vmem:[%s837] sm:%s835] %v834
    %s839 = scalar_lea.vmem [#allocation0], 104
    %v840 = vld [vmem:[%s839] sm:%s763]
    %s841 = sshllo.u32 0, 1
    %s842 = smul.addr 1, 13
    %s843 = scalar_lea.vmem %s1, %s842
    %844 = vst [vmem:[%s843] sm:%s841] %v840
    %s845 = scalar_lea.vmem [#allocation0], 112
    %v846 = vld [vmem:[%s845] sm:%s763]
    %s847 = sshllo.u32 0, 1
    %s848 = smul.addr 1, 14
    %s849 = scalar_lea.vmem %s1, %s848
    %850 = vst [vmem:[%s849] sm:%s847] %v846
    %s851 = scalar_lea.vmem [#allocation0], 120
    %v852 = vld [vmem:[%s851] sm:%s763]
    %s853 = sshllo.u32 0, 1
    %s854 = smul.addr 1, 15
    %s855 = scalar_lea.vmem %s1, %s854
    %856 = vst [vmem:[%s855] sm:%s853] %v852

// kernel: value_net_forward.1
$region0: #{value_net_forward.1}
  #allocation0 [shape = 'u32[]', space=smem, size = 0x4, offset = 0x4, fixed_abs, tag = 'smem constant byte address 0x4 - core index']
  #allocation1 [shape = 'u32[144,128]{1,0:T(1,128)}', space=vmem, size = 0x12000, scoped, tag = 'internal scratch']
  %s0 = inlined_call_operand.vmem [shape: bf16[8,1296], index: 0, kind: input, shape index: {}]
  %s1 = inlined_call_operand.vmem [shape: bf16[1296,2048], index: 1, kind: input, shape index: {}]
  %s2 = inlined_call_operand.vmem [shape: f32[1,2048], index: 2, kind: input, shape index: {}]
  %s3 = inlined_call_operand.vmem [shape: bf16[2048,10], index: 3, kind: input, shape index: {}]
  %s4 = inlined_call_operand.vmem [shape: f32[1,10], index: 4, kind: input, shape index: {}]
  %s5 = inlined_call_operand.vmem [shape: f32[8,10], index: 5, kind: output, shape index: {}]
  %s6 = sld [smem:[#allocation0]]
  $region30: #{value_net_forward.1} parent=0
    _
  %s8 = ssub.s32 1, %s6
  %s9 = scalar_select 0, %s8, %s6
  // Predicated region
  $region2: #{value_net_forward.1} parent=0 // pred_check
    _
  $region3: #{value_net_forward.1} parent=0 // pred_check_branch
    %11 = sbr.rel (0) target = $region5
  $region4: #{value_net_forward.1} parent=0 // pred_region
    _
  $region5: #{value_net_forward.1} parent=0 // pred_fallthru
    _
  // Predicated region
  $region6: #{value_net_forward.1} parent=0 // pred_check
    _
  $region7: #{value_net_forward.1} parent=0 // pred_check_branch
    %13 = sbr.rel (0) target = $region9
  $region8: #{value_net_forward.1} parent=0 // pred_region
    _
  $region9: #{value_net_forward.1} parent=0 // pred_fallthru
    _
  // Predicated region
  $region10: #{value_net_forward.1} parent=0 // pred_check
    _
  $region11: #{value_net_forward.1} parent=0 // pred_check_branch
    %15 = sbr.rel (0) target = $region13
  $region12: #{value_net_forward.1} parent=0 // pred_region
    _
  $region13: #{value_net_forward.1} parent=0 // pred_fallthru
    _
  // Predicated region
  $region14: #{value_net_forward.1} parent=0 // pred_check
    _
  $region15: #{value_net_forward.1} parent=0 // pred_check_branch
    %17 = sbr.rel (0) target = $region17
  $region16: #{value_net_forward.1} parent=0 // pred_region
    _
  $region17: #{value_net_forward.1} parent=0 // pred_fallthru
    _
  // Predicated region
  $region18: #{value_net_forward.1} parent=0 // pred_check
    _
  $region19: #{value_net_forward.1} parent=0 // pred_check_branch
    %19 = sbr.rel (0) target = $region21
  $region20: #{value_net_forward.1} parent=0 // pred_region
    _
  $region21: #{value_net_forward.1} parent=0 // pred_fallthru
    _
  %v21 = vld [vmem:[%s0] sm:$0xff]
  %v22 = vld [vmem:[%s0 + $0x8] sm:$0xff]
  %v23 = vld [vmem:[%s0 + $0x10] sm:$0xff]
  %v24 = vld [vmem:[%s0 + $0x18] sm:$0xff]
  %v25 = vld [vmem:[%s0 + $0x20] sm:$0xff]
  %v26 = vld [vmem:[%s0 + $0x28] sm:$0xf]
  %v27 = vld [vmem:[%s1] sm:$0xff]
  %v28 = vld [vmem:[%s1 + $0x8] sm:$0xff]
  %v29 = vld [vmem:[%s1 + $0x10] sm:$0xff]
  %v30 = vld [vmem:[%s1 + $0x18] sm:$0xff]
  %v31 = vld [vmem:[%s1 + $0x20] sm:$0xff]
  %v32 = vld [vmem:[%s1 + $0x28] sm:$0xff]
  %v33 = vld [vmem:[%s1 + $0x30] sm:$0xff]
  %v34 = vld [vmem:[%s1 + $0x38] sm:$0xff]
  %v35 = vld [vmem:[%s1 + $0x40] sm:$0xff]
  %v36 = vld [vmem:[%s1 + $0x48] sm:$0xff]
  %v37 = vld [vmem:[%s1 + $0x50] sm:$0xff]
  %v38 = vld [vmem:[%s1 + $0x58] sm:$0xff]
  %v39 = vld [vmem:[%s1 + $0x60] sm:$0xff]
  %v40 = vld [vmem:[%s1 + $0x68] sm:$0xff]
  %v41 = vld [vmem:[%s1 + $0x70] sm:$0xff]
  %v42 = vld [vmem:[%s1 + $0x78] sm:$0xff]
  %v43 = vld [vmem:[%s1 + $0x80] sm:$0xff]
  %v44 = vld [vmem:[%s1 + $0x88] sm:$0xff]
  %v45 = vld [vmem:[%s1 + $0x90] sm:$0xff]
  %v46 = vld [vmem:[%s1 + $0x98] sm:$0xff]
  %v47 = vld [vmem:[%s1 + $0xa0] sm:$0xff]
  %v48 = vld [vmem:[%s1 + $0xa8] sm:$0xff]
  %v49 = vld [vmem:[%s1 + $0xb0] sm:$0xff]
  %v50 = vld [vmem:[%s1 + $0xb8] sm:$0xff]
  %v51 = vld [vmem:[%s1 + $0xc0] sm:$0xff]
  %v52 = vld [vmem:[%s1 + $0xc8] sm:$0xff]
  %v53 = vld [vmem:[%s1 + $0xd0] sm:$0xff]
  %v54 = vld [vmem:[%s1 + $0xd8] sm:$0xff]
  %v55 = vld [vmem:[%s1 + $0xe0] sm:$0xff]
  %v56 = vld [vmem:[%s1 + $0xe8] sm:$0xff]
  %v57 = vld [vmem:[%s1 + $0xf0] sm:$0xff]
  %v58 = vld [vmem:[%s1 + $0xf8] sm:$0xff]
  %v59 = vld [vmem:[%s1 + $0x100] sm:$0xff]
  %v60 = vld [vmem:[%s1 + $0x108] sm:$0xff]
  %v61 = vld [vmem:[%s1 + $0x110] sm:$0xff]
  %v62 = vld [vmem:[%s1 + $0x118] sm:$0xff]
  %v63 = vld [vmem:[%s1 + $0x120] sm:$0xff]
  %v64 = vld [vmem:[%s1 + $0x128] sm:$0xff]
  %v65 = vld [vmem:[%s1 + $0x130] sm:$0xff]
  %v66 = vld [vmem:[%s1 + $0x138] sm:$0xff]
  %v67 = vld [vmem:[%s1 + $0x140] sm:$0xff]
  %v68 = vld [vmem:[%s1 + $0x148] sm:$0xff]
  %v69 = vld [vmem:[%s1 + $0x150] sm:$0xff]
  %v70 = vld [vmem:[%s1 + $0x158] sm:$0xff]
  %v71 = vld [vmem:[%s1 + $0x160] sm:$0xff]
  %v72 = vld [vmem:[%s1 + $0x168] sm:$0xff]
  %v73 = vld [vmem:[%s1 + $0x170] sm:$0xff]
  %v74 = vld [vmem:[%s1 + $0x178] sm:$0xff]
  %v75 = vld [vmem:[%s1 + $0x180] sm:$0xff]
  %v76 = vld [vmem:[%s1 + $0x188] sm:$0xff]
  %v77 = vld [vmem:[%s1 + $0x190] sm:$0xff]
  %v78 = vld [vmem:[%s1 + $0x198] sm:$0xff]
  %v79 = vld [vmem:[%s1 + $0x1a0] sm:$0xff]
  %v80 = vld [vmem:[%s1 + $0x1a8] sm:$0xff]
  %v81 = vld [vmem:[%s1 + $0x1b0] sm:$0xff]
  %v82 = vld [vmem:[%s1 + $0x1b8] sm:$0xff]
  %v83 = vld [vmem:[%s1 + $0x1c0] sm:$0xff]
  %v84 = vld [vmem:[%s1 + $0x1c8] sm:$0xff]
  %v85 = vld [vmem:[%s1 + $0x1d0] sm:$0xff]
  %v86 = vld [vmem:[%s1 + $0x1d8] sm:$0xff]
  %v87 = vld [vmem:[%s1 + $0x1e0] sm:$0xff]
  %v88 = vld [vmem:[%s1 + $0x1e8] sm:$0xff]
  %v89 = vld [vmem:[%s1 + $0x1f0] sm:$0xff]
  %v90 = vld [vmem:[%s1 + $0x1f8] sm:$0xff]
  %v91 = vld [vmem:[%s1 + $0x200] sm:$0xff]
  %v92 = vld [vmem:[%s1 + $0x208] sm:$0xff]
  %v93 = vld [vmem:[%s1 + $0x210] sm:$0xff]
  %v94 = vld [vmem:[%s1 + $0x218] sm:$0xff]
  %v95 = vld [vmem:[%s1 + $0x220] sm:$0xff]
  %v96 = vld [vmem:[%s1 + $0x228] sm:$0xff]
  %v97 = vld [vmem:[%s1 + $0x230] sm:$0xff]
  %v98 = vld [vmem:[%s1 + $0x238] sm:$0xff]
  %v99 = vld [vmem:[%s1 + $0x240] sm:$0xff]
  %v100 = vld [vmem:[%s1 + $0x248] sm:$0xff]
  %v101 = vld [vmem:[%s1 + $0x250] sm:$0xff]
  %v102 = vld [vmem:[%s1 + $0x258] sm:$0xff]
  %v103 = vld [vmem:[%s1 + $0x260] sm:$0xff]
  %v104 = vld [vmem:[%s1 + $0x268] sm:$0xff]
  %v105 = vld [vmem:[%s1 + $0x270] sm:$0xff]
  %v106 = vld [vmem:[%s1 + $0x278] sm:$0xff]
  %v107 = vld [vmem:[%s1 + $0x280] sm:$0xff]
  %v108 = vld [vmem:[%s1 + $0x288] sm:$0xff]
  %v109 = vld [vmem:[%s1 + $0x290] sm:$0xff]
  %v110 = vld [vmem:[%s1 + $0x298] sm:$0xff]
  %v111 = vld [vmem:[%s1 + $0x2a0] sm:$0xff]
  %v112 = vld [vmem:[%s1 + $0x2a8] sm:$0xff]
  %v113 = vld [vmem:[%s1 + $0x2b0] sm:$0xff]
  %v114 = vld [vmem:[%s1 + $0x2b8] sm:$0xff]
  %v115 = vld [vmem:[%s1 + $0x2c0] sm:$0xff]
  %v116 = vld [vmem:[%s1 + $0x2c8] sm:$0xff]
  %v117 = vld [vmem:[%s1 + $0x2d0] sm:$0xff]
  %v118 = vld [vmem:[%s1 + $0x2d8] sm:$0xff]
  %v119 = vld [vmem:[%s1 + $0x2e0] sm:$0xff]
  %v120 = vld [vmem:[%s1 + $0x2e8] sm:$0xff]
  %v121 = vld [vmem:[%s1 + $0x2f0] sm:$0xff]
  %v122 = vld [vmem:[%s1 + $0x2f8] sm:$0xff]
  %v123 = vld [vmem:[%s1 + $0x300] sm:$0xff]
  %v124 = vld [vmem:[%s1 + $0x308] sm:$0xff]
  %v125 = vld [vmem:[%s1 + $0x310] sm:$0xff]
  %v126 = vld [vmem:[%s1 + $0x318] sm:$0xff]
  %v127 = vld [vmem:[%s1 + $0x320] sm:$0xff]
  %v128 = vld [vmem:[%s1 + $0x328] sm:$0xff]
  %v129 = vld [vmem:[%s1 + $0x330] sm:$0xff]
  %v130 = vld [vmem:[%s1 + $0x338] sm:$0xff]
  %v131 = vld [vmem:[%s1 + $0x340] sm:$0xff]
  %v132 = vld [vmem:[%s1 + $0x348] sm:$0xff]
  %v133 = vld [vmem:[%s1 + $0x350] sm:$0xff]
  %v134 = vld [vmem:[%s1 + $0x358] sm:$0xff]
  %v135 = vld [vmem:[%s1 + $0x360] sm:$0xff]
  %v136 = vld [vmem:[%s1 + $0x368] sm:$0xff]
  %v137 = vld [vmem:[%s1 + $0x370] sm:$0xff]
  %v138 = vld [vmem:[%s1 + $0x378] sm:$0xff]
  %v139 = vld [vmem:[%s1 + $0x380] sm:$0xff]
  %v140 = vld [vmem:[%s1 + $0x388] sm:$0xff]
  %v141 = vld [vmem:[%s1 + $0x390] sm:$0xff]
  %v142 = vld [vmem:[%s1 + $0x398] sm:$0xff]
  %v143 = vld [vmem:[%s1 + $0x3a0] sm:$0xff]
  %v144 = vld [vmem:[%s1 + $0x3a8] sm:$0xff]
  %v145 = vld [vmem:[%s1 + $0x3b0] sm:$0xff]
  %v146 = vld [vmem:[%s1 + $0x3b8] sm:$0xff]
  %v147 = vld [vmem:[%s1 + $0x3c0] sm:$0xff]
  %v148 = vld [vmem:[%s1 + $0x3c8] sm:$0xff]
  %v149 = vld [vmem:[%s1 + $0x3d0] sm:$0xff]
  %v150 = vld [vmem:[%s1 + $0x3d8] sm:$0xff]
  %v151 = vld [vmem:[%s1 + $0x3e0] sm:$0xff]
  %v152 = vld [vmem:[%s1 + $0x3e8] sm:$0xff]
  %v153 = vld [vmem:[%s1 + $0x3f0] sm:$0xff]
  %v154 = vld [vmem:[%s1 + $0x3f8] sm:$0xff]
  %v155 = vld [vmem:[%s1 + $0x400] sm:$0xff]
  %v156 = vld [vmem:[%s1 + $0x408] sm:$0xff]
  %v157 = vld [vmem:[%s1 + $0x410] sm:$0xff]
  %v158 = vld [vmem:[%s1 + $0x418] sm:$0xff]
  %v159 = vld [vmem:[%s1 + $0x420] sm:$0xff]
  %v160 = vld [vmem:[%s1 + $0x428] sm:$0xff]
  %v161 = vld [vmem:[%s1 + $0x430] sm:$0xff]
  %v162 = vld [vmem:[%s1 + $0x438] sm:$0xff]
  %v163 = vld [vmem:[%s1 + $0x440] sm:$0xff]
  %v164 = vld [vmem:[%s1 + $0x448] sm:$0xff]
  %v165 = vld [vmem:[%s1 + $0x450] sm:$0xff]
  %v166 = vld [vmem:[%s1 + $0x458] sm:$0xff]
  %v167 = vld [vmem:[%s1 + $0x460] sm:$0xff]
  %v168 = vld [vmem:[%s1 + $0x468] sm:$0xff]
  %v169 = vld [vmem:[%s1 + $0x470] sm:$0xff]
  %v170 = vld [vmem:[%s1 + $0x478] sm:$0xff]
  %v171 = vld [vmem:[%s1 + $0x480] sm:$0xff]
  %v172 = vld [vmem:[%s1 + $0x488] sm:$0xff]
  %v173 = vld [vmem:[%s1 + $0x490] sm:$0xff]
  %v174 = vld [vmem:[%s1 + $0x498] sm:$0xff]
  %v175 = vld [vmem:[%s1 + $0x4a0] sm:$0xff]
  %v176 = vld [vmem:[%s1 + $0x4a8] sm:$0xff]
  %v177 = vld [vmem:[%s1 + $0x4b0] sm:$0xff]
  %v178 = vld [vmem:[%s1 + $0x4b8] sm:$0xff]
  %v179 = vld [vmem:[%s1 + $0x4c0] sm:$0xff]
  %v180 = vld [vmem:[%s1 + $0x4c8] sm:$0xff]
  %v181 = vld [vmem:[%s1 + $0x4d0] sm:$0xff]
  %v182 = vld [vmem:[%s1 + $0x4d8] sm:$0xff]
  %v183 = vld [vmem:[%s1 + $0x4e0] sm:$0xff]
  %v184 = vld [vmem:[%s1 + $0x4e8] sm:$0xff]
  %v185 = vld [vmem:[%s1 + $0x4f0] sm:$0xff]
  %v186 = vld [vmem:[%s1 + $0x4f8] sm:$0xff]
  %v187 = vld [vmem:[%s1 + $0x500] sm:$0xff]
  %v188 = vld [vmem:[%s1 + $0x508] sm:$0xff]
  %v189 = vld [vmem:[%s1 + $0x510] sm:$0xff]
  %v190 = vld [vmem:[%s1 + $0x518] sm:$0xff]
  %v191 = vld [vmem:[%s1 + $0x520] sm:$0xff]
  %v192 = vld [vmem:[%s1 + $0x528] sm:$0xff]
  %v193 = vld [vmem:[%s1 + $0x530] sm:$0xff]
  %v194 = vld [vmem:[%s1 + $0x538] sm:$0xff]
  %v195 = vld [vmem:[%s1 + $0x540] sm:$0xff]
  %v196 = vld [vmem:[%s1 + $0x548] sm:$0xff]
  %v197 = vld [vmem:[%s1 + $0x550] sm:$0xff]
  %v198 = vld [vmem:[%s1 + $0x558] sm:$0xff]
  %v199 = vld [vmem:[%s1 + $0x560] sm:$0xff]
  %v200 = vld [vmem:[%s1 + $0x568] sm:$0xff]
  %v201 = vld [vmem:[%s1 + $0x570] sm:$0xff]
  %v202 = vld [vmem:[%s1 + $0x578] sm:$0xff]
  %v203 = vld [vmem:[%s1 + $0x580] sm:$0xff]
  %v204 = vld [vmem:[%s1 + $0x588] sm:$0xff]
  %v205 = vld [vmem:[%s1 + $0x590] sm:$0xff]
  %v206 = vld [vmem:[%s1 + $0x598] sm:$0xff]
  %v207 = vld [vmem:[%s1 + $0x5a0] sm:$0xff]
  %v208 = vld [vmem:[%s1 + $0x5a8] sm:$0xff]
  %v209 = vld [vmem:[%s1 + $0x5b0] sm:$0xff]
  %v210 = vld [vmem:[%s1 + $0x5b8] sm:$0xff]
  %v211 = vld [vmem:[%s1 + $0x5c0] sm:$0xff]
  %v212 = vld [vmem:[%s1 + $0x5c8] sm:$0xff]
  %v213 = vld [vmem:[%s1 + $0x5d0] sm:$0xff]
  %v214 = vld [vmem:[%s1 + $0x5d8] sm:$0xff]
  %v215 = vld [vmem:[%s1 + $0x5e0] sm:$0xff]
  %v216 = vld [vmem:[%s1 + $0x5e8] sm:$0xff]
  %v217 = vld [vmem:[%s1 + $0x5f0] sm:$0xff]
  %v218 = vld [vmem:[%s1 + $0x5f8] sm:$0xff]
  %v219 = vld [vmem:[%s1 + $0x600] sm:$0xff]
  %v220 = vld [vmem:[%s1 + $0x608] sm:$0xff]
  %v221 = vld [vmem:[%s1 + $0x610] sm:$0xff]
  %v222 = vld [vmem:[%s1 + $0x618] sm:$0xff]
  %v223 = vld [vmem:[%s1 + $0x620] sm:$0xff]
  %v224 = vld [vmem:[%s1 + $0x628] sm:$0xff]
  %v225 = vld [vmem:[%s1 + $0x630] sm:$0xff]
  %v226 = vld [vmem:[%s1 + $0x638] sm:$0xff]
  %v227 = vld [vmem:[%s1 + $0x640] sm:$0xff]
  %v228 = vld [vmem:[%s1 + $0x648] sm:$0xff]
  %v229 = vld [vmem:[%s1 + $0x650] sm:$0xff]
  %v230 = vld [vmem:[%s1 + $0x658] sm:$0xff]
  %v231 = vld [vmem:[%s1 + $0x660] sm:$0xff]
  %v232 = vld [vmem:[%s1 + $0x668] sm:$0xff]
  %v233 = vld [vmem:[%s1 + $0x670] sm:$0xff]
  %v234 = vld [vmem:[%s1 + $0x678] sm:$0xff]
  %v235 = vld [vmem:[%s1 + $0x680] sm:$0xff]
  %v236 = vld [vmem:[%s1 + $0x688] sm:$0xff]
  %v237 = vld [vmem:[%s1 + $0x690] sm:$0xff]
  %v238 = vld [vmem:[%s1 + $0x698] sm:$0xff]
  %v239 = vld [vmem:[%s1 + $0x6a0] sm:$0xff]
  %v240 = vld [vmem:[%s1 + $0x6a8] sm:$0xff]
  %v241 = vld [vmem:[%s1 + $0x6b0] sm:$0xff]
  %v242 = vld [vmem:[%s1 + $0x6b8] sm:$0xff]
  %v243 = vld [vmem:[%s1 + $0x6c0] sm:$0xff]
  %v244 = vld [vmem:[%s1 + $0x6c8] sm:$0xff]
  %v245 = vld [vmem:[%s1 + $0x6d0] sm:$0xff]
  %v246 = vld [vmem:[%s1 + $0x6d8] sm:$0xff]
  %v247 = vld [vmem:[%s1 + $0x6e0] sm:$0xff]
  %v248 = vld [vmem:[%s1 + $0x6e8] sm:$0xff]
  %v249 = vld [vmem:[%s1 + $0x6f0] sm:$0xff]
  %v250 = vld [vmem:[%s1 + $0x6f8] sm:$0xff]
  %v251 = vld [vmem:[%s1 + $0x700] sm:$0xff]
  %v252 = vld [vmem:[%s1 + $0x708] sm:$0xff]
  %v253 = vld [vmem:[%s1 + $0x710] sm:$0xff]
  %v254 = vld [vmem:[%s1 + $0x718] sm:$0xff]
  %v255 = vld [vmem:[%s1 + $0x720] sm:$0xff]
  %v256 = vld [vmem:[%s1 + $0x728] sm:$0xff]
  %v257 = vld [vmem:[%s1 + $0x730] sm:$0xff]
  %v258 = vld [vmem:[%s1 + $0x738] sm:$0xff]
  %v259 = vld [vmem:[%s1 + $0x740] sm:$0xff]
  %v260 = vld [vmem:[%s1 + $0x748] sm:$0xff]
  %v261 = vld [vmem:[%s1 + $0x750] sm:$0xff]
  %v262 = vld [vmem:[%s1 + $0x758] sm:$0xff]
  %v263 = vld [vmem:[%s1 + $0x760] sm:$0xff]
  %v264 = vld [vmem:[%s1 + $0x768] sm:$0xff]
  %v265 = vld [vmem:[%s1 + $0x770] sm:$0xff]
  %v266 = vld [vmem:[%s1 + $0x778] sm:$0xff]
  %v267 = vld [vmem:[%s1 + $0x780] sm:$0xff]
  %v268 = vld [vmem:[%s1 + $0x788] sm:$0xff]
  %v269 = vld [vmem:[%s1 + $0x790] sm:$0xff]
  %v270 = vld [vmem:[%s1 + $0x798] sm:$0xff]
  %v271 = vld [vmem:[%s1 + $0x7a0] sm:$0xff]
  %v272 = vld [vmem:[%s1 + $0x7a8] sm:$0xff]
  %v273 = vld [vmem:[%s1 + $0x7b0] sm:$0xff]
  %v274 = vld [vmem:[%s1 + $0x7b8] sm:$0xff]
  %v275 = vld [vmem:[%s1 + $0x7c0] sm:$0xff]
  %v276 = vld [vmem:[%s1 + $0x7c8] sm:$0xff]
  %v277 = vld [vmem:[%s1 + $0x7d0] sm:$0xff]
  %v278 = vld [vmem:[%s1 + $0x7d8] sm:$0xff]
  %v279 = vld [vmem:[%s1 + $0x7e0] sm:$0xff]
  %v280 = vld [vmem:[%s1 + $0x7e8] sm:$0xff]
  %v281 = vld [vmem:[%s1 + $0x7f0] sm:$0xff]
  %v282 = vld [vmem:[%s1 + $0x7f8] sm:$0xff]
  %v283 = vld [vmem:[%s1 + $0x800] sm:$0xff]
  %v284 = vld [vmem:[%s1 + $0x808] sm:$0xff]
  %v285 = vld [vmem:[%s1 + $0x810] sm:$0xff]
  %v286 = vld [vmem:[%s1 + $0x818] sm:$0xff]
  %v287 = vld [vmem:[%s1 + $0x820] sm:$0xff]
  %v288 = vld [vmem:[%s1 + $0x828] sm:$0xff]
  %v289 = vld [vmem:[%s1 + $0x830] sm:$0xff]
  %v290 = vld [vmem:[%s1 + $0x838] sm:$0xff]
  %v291 = vld [vmem:[%s1 + $0x840] sm:$0xff]
  %v292 = vld [vmem:[%s1 + $0x848] sm:$0xff]
  %v293 = vld [vmem:[%s1 + $0x850] sm:$0xff]
  %v294 = vld [vmem:[%s1 + $0x858] sm:$0xff]
  %v295 = vld [vmem:[%s1 + $0x860] sm:$0xff]
  %v296 = vld [vmem:[%s1 + $0x868] sm:$0xff]
  %v297 = vld [vmem:[%s1 + $0x870] sm:$0xff]
  %v298 = vld [vmem:[%s1 + $0x878] sm:$0xff]
  %v299 = vld [vmem:[%s1 + $0x880] sm:$0xff]
  %v300 = vld [vmem:[%s1 + $0x888] sm:$0xff]
  %v301 = vld [vmem:[%s1 + $0x890] sm:$0xff]
  %v302 = vld [vmem:[%s1 + $0x898] sm:$0xff]
  %v303 = vld [vmem:[%s1 + $0x8a0] sm:$0xff]
  %v304 = vld [vmem:[%s1 + $0x8a8] sm:$0xff]
  %v305 = vld [vmem:[%s1 + $0x8b0] sm:$0xff]
  %v306 = vld [vmem:[%s1 + $0x8b8] sm:$0xff]
  %v307 = vld [vmem:[%s1 + $0x8c0] sm:$0xff]
  %v308 = vld [vmem:[%s1 + $0x8c8] sm:$0xff]
  %v309 = vld [vmem:[%s1 + $0x8d0] sm:$0xff]
  %v310 = vld [vmem:[%s1 + $0x8d8] sm:$0xff]
  %v311 = vld [vmem:[%s1 + $0x8e0] sm:$0xff]
  %v312 = vld [vmem:[%s1 + $0x8e8] sm:$0xff]
  %v313 = vld [vmem:[%s1 + $0x8f0] sm:$0xff]
  %v314 = vld [vmem:[%s1 + $0x8f8] sm:$0xff]
  %v315 = vld [vmem:[%s1 + $0x900] sm:$0xff]
  %v316 = vld [vmem:[%s1 + $0x908] sm:$0xff]
  %v317 = vld [vmem:[%s1 + $0x910] sm:$0xff]
  %v318 = vld [vmem:[%s1 + $0x918] sm:$0xff]
  %v319 = vld [vmem:[%s1 + $0x920] sm:$0xff]
  %v320 = vld [vmem:[%s1 + $0x928] sm:$0xff]
  %v321 = vld [vmem:[%s1 + $0x930] sm:$0xff]
  %v322 = vld [vmem:[%s1 + $0x938] sm:$0xff]
  %v323 = vld [vmem:[%s1 + $0x940] sm:$0xff]
  %v324 = vld [vmem:[%s1 + $0x948] sm:$0xff]
  %v325 = vld [vmem:[%s1 + $0x950] sm:$0xff]
  %v326 = vld [vmem:[%s1 + $0x958] sm:$0xff]
  %v327 = vld [vmem:[%s1 + $0x960] sm:$0xff]
  %v328 = vld [vmem:[%s1 + $0x968] sm:$0xff]
  %v329 = vld [vmem:[%s1 + $0x970] sm:$0xff]
  %v330 = vld [vmem:[%s1 + $0x978] sm:$0xff]
  %v331 = vld [vmem:[%s1 + $0x980] sm:$0xff]
  %v332 = vld [vmem:[%s1 + $0x988] sm:$0xff]
  %v333 = vld [vmem:[%s1 + $0x990] sm:$0xff]
  %v334 = vld [vmem:[%s1 + $0x998] sm:$0xff]
  %v335 = vld [vmem:[%s1 + $0x9a0] sm:$0xff]
  %v336 = vld [vmem:[%s1 + $0x9a8] sm:$0xff]
  %v337 = vld [vmem:[%s1 + $0x9b0] sm:$0xff]
  %v338 = vld [vmem:[%s1 + $0x9b8] sm:$0xff]
  %v339 = vld [vmem:[%s1 + $0x9c0] sm:$0xff]
  %v340 = vld [vmem:[%s1 + $0x9c8] sm:$0xff]
  %v341 = vld [vmem:[%s1 + $0x9d0] sm:$0xff]
  %v342 = vld [vmem:[%s1 + $0x9d8] sm:$0xff]
  %v343 = vld [vmem:[%s1 + $0x9e0] sm:$0xff]
  %v344 = vld [vmem:[%s1 + $0x9e8] sm:$0xff]
  %v345 = vld [vmem:[%s1 + $0x9f0] sm:$0xff]
  %v346 = vld [vmem:[%s1 + $0x9f8] sm:$0xff]
  %v347 = vld [vmem:[%s1 + $0xa00] sm:$0xff]
  %v348 = vld [vmem:[%s1 + $0xa08] sm:$0xff]
  %v349 = vld [vmem:[%s1 + $0xa10] sm:$0xff]
  %v350 = vld [vmem:[%s1 + $0xa18] sm:$0xff]
  %v351 = vld [vmem:[%s1 + $0xa20] sm:$0xff]
  %v352 = vld [vmem:[%s1 + $0xa28] sm:$0xff]
  %v353 = vld [vmem:[%s1 + $0xa30] sm:$0xff]
  %v354 = vld [vmem:[%s1 + $0xa38] sm:$0xff]
  %v355 = vld [vmem:[%s1 + $0xa40] sm:$0xff]
  %v356 = vld [vmem:[%s1 + $0xa48] sm:$0xff]
  %v357 = vld [vmem:[%s1 + $0xa50] sm:$0xff]
  %v358 = vld [vmem:[%s1 + $0xa58] sm:$0xff]
  %v359 = vld [vmem:[%s1 + $0xa60] sm:$0xff]
  %v360 = vld [vmem:[%s1 + $0xa68] sm:$0xff]
  %v361 = vld [vmem:[%s1 + $0xa70] sm:$0xff]
  %v362 = vld [vmem:[%s1 + $0xa78] sm:$0xff]
  %v363 = vld [vmem:[%s1 + $0xa80] sm:$0xff]
  %v364 = vld [vmem:[%s1 + $0xa88] sm:$0xff]
  %v365 = vld [vmem:[%s1 + $0xa90] sm:$0xff]
  %v366 = vld [vmem:[%s1 + $0xa98] sm:$0xff]
  %v367 = vld [vmem:[%s1 + $0xaa0] sm:$0xff]
  %v368 = vld [vmem:[%s1 + $0xaa8] sm:$0xff]
  %v369 = vld [vmem:[%s1 + $0xab0] sm:$0xff]
  %v370 = vld [vmem:[%s1 + $0xab8] sm:$0xff]
  %v371 = vld [vmem:[%s1 + $0xac0] sm:$0xff]
  %v372 = vld [vmem:[%s1 + $0xac8] sm:$0xff]
  %v373 = vld [vmem:[%s1 + $0xad0] sm:$0xff]
  %v374 = vld [vmem:[%s1 + $0xad8] sm:$0xff]
  %v375 = vld [vmem:[%s1 + $0xae0] sm:$0xff]
  %v376 = vld [vmem:[%s1 + $0xae8] sm:$0xff]
  %v377 = vld [vmem:[%s1 + $0xaf0] sm:$0xff]
  %v378 = vld [vmem:[%s1 + $0xaf8] sm:$0xff]
  %v379 = vld [vmem:[%s1 + $0xb00] sm:$0xff]
  %v380 = vld [vmem:[%s1 + $0xb08] sm:$0xff]
  %v381 = vld [vmem:[%s1 + $0xb10] sm:$0xff]
  %v382 = vld [vmem:[%s1 + $0xb18] sm:$0xff]
  %v383 = vld [vmem:[%s1 + $0xb20] sm:$0xff]
  %v384 = vld [vmem:[%s1 + $0xb28] sm:$0xff]
  %v385 = vld [vmem:[%s1 + $0xb30] sm:$0xff]
  %v386 = vld [vmem:[%s1 + $0xb38] sm:$0xff]
  %v387 = vld [vmem:[%s1 + $0xb40] sm:$0xff]
  %v388 = vld [vmem:[%s1 + $0xb48] sm:$0xff]
  %v389 = vld [vmem:[%s1 + $0xb50] sm:$0xff]
  %v390 = vld [vmem:[%s1 + $0xb58] sm:$0xff]
  %v391 = vld [vmem:[%s1 + $0xb60] sm:$0xff]
  %v392 = vld [vmem:[%s1 + $0xb68] sm:$0xff]
  %v393 = vld [vmem:[%s1 + $0xb70] sm:$0xff]
  %v394 = vld [vmem:[%s1 + $0xb78] sm:$0xff]
  %v395 = vld [vmem:[%s1 + $0xb80] sm:$0xff]
  %v396 = vld [vmem:[%s1 + $0xb88] sm:$0xff]
  %v397 = vld [vmem:[%s1 + $0xb90] sm:$0xff]
  %v398 = vld [vmem:[%s1 + $0xb98] sm:$0xff]
  %v399 = vld [vmem:[%s1 + $0xba0] sm:$0xff]
  %v400 = vld [vmem:[%s1 + $0xba8] sm:$0xff]
  %v401 = vld [vmem:[%s1 + $0xbb0] sm:$0xff]
  %v402 = vld [vmem:[%s1 + $0xbb8] sm:$0xff]
  %v403 = vld [vmem:[%s1 + $0xbc0] sm:$0xff]
  %v404 = vld [vmem:[%s1 + $0xbc8] sm:$0xff]
  %v405 = vld [vmem:[%s1 + $0xbd0] sm:$0xff]
  %v406 = vld [vmem:[%s1 + $0xbd8] sm:$0xff]
  %v407 = vld [vmem:[%s1 + $0xbe0] sm:$0xff]
  %v408 = vld [vmem:[%s1 + $0xbe8] sm:$0xff]
  %v409 = vld [vmem:[%s1 + $0xbf0] sm:$0xff]
  %v410 = vld [vmem:[%s1 + $0xbf8] sm:$0xff]
  %v411 = vld [vmem:[%s1 + $0xc00] sm:$0xff]
  %v412 = vld [vmem:[%s1 + $0xc08] sm:$0xff]
  %v413 = vld [vmem:[%s1 + $0xc10] sm:$0xff]
  %v414 = vld [vmem:[%s1 + $0xc18] sm:$0xff]
  %v415 = vld [vmem:[%s1 + $0xc20] sm:$0xff]
  %v416 = vld [vmem:[%s1 + $0xc28] sm:$0xff]
  %v417 = vld [vmem:[%s1 + $0xc30] sm:$0xff]
  %v418 = vld [vmem:[%s1 + $0xc38] sm:$0xff]
  %v419 = vld [vmem:[%s1 + $0xc40] sm:$0xff]
  %v420 = vld [vmem:[%s1 + $0xc48] sm:$0xff]
  %v421 = vld [vmem:[%s1 + $0xc50] sm:$0xff]
  %v422 = vld [vmem:[%s1 + $0xc58] sm:$0xff]
  %v423 = vld [vmem:[%s1 + $0xc60] sm:$0xff]
  %v424 = vld [vmem:[%s1 + $0xc68] sm:$0xff]
  %v425 = vld [vmem:[%s1 + $0xc70] sm:$0xff]
  %v426 = vld [vmem:[%s1 + $0xc78] sm:$0xff]
  %v427 = vld [vmem:[%s1 + $0xc80] sm:$0xff]
  %v428 = vld [vmem:[%s1 + $0xc88] sm:$0xff]
  %v429 = vld [vmem:[%s1 + $0xc90] sm:$0xff]
  %v430 = vld [vmem:[%s1 + $0xc98] sm:$0xff]
  %v431 = vld [vmem:[%s1 + $0xca0] sm:$0xff]
  %v432 = vld [vmem:[%s1 + $0xca8] sm:$0xff]
  %v433 = vld [vmem:[%s1 + $0xcb0] sm:$0xff]
  %v434 = vld [vmem:[%s1 + $0xcb8] sm:$0xff]
  %v435 = vld [vmem:[%s1 + $0xcc0] sm:$0xff]
  %v436 = vld [vmem:[%s1 + $0xcc8] sm:$0xff]
  %v437 = vld [vmem:[%s1 + $0xcd0] sm:$0xff]
  %v438 = vld [vmem:[%s1 + $0xcd8] sm:$0xff]
  %v439 = vld [vmem:[%s1 + $0xce0] sm:$0xff]
  %v440 = vld [vmem:[%s1 + $0xce8] sm:$0xff]
  %v441 = vld [vmem:[%s1 + $0xcf0] sm:$0xff]
  %v442 = vld [vmem:[%s1 + $0xcf8] sm:$0xff]
  %v443 = vld [vmem:[%s1 + $0xd00] sm:$0xff]
  %v444 = vld [vmem:[%s1 + $0xd08] sm:$0xff]
  %v445 = vld [vmem:[%s1 + $0xd10] sm:$0xff]
  %v446 = vld [vmem:[%s1 + $0xd18] sm:$0xff]
  %v447 = vld [vmem:[%s1 + $0xd20] sm:$0xff]
  %v448 = vld [vmem:[%s1 + $0xd28] sm:$0xff]
  %v449 = vld [vmem:[%s1 + $0xd30] sm:$0xff]
  %v450 = vld [vmem:[%s1 + $0xd38] sm:$0xff]
  %v451 = vld [vmem:[%s1 + $0xd40] sm:$0xff]
  %v452 = vld [vmem:[%s1 + $0xd48] sm:$0xff]
  %v453 = vld [vmem:[%s1 + $0xd50] sm:$0xff]
  %v454 = vld [vmem:[%s1 + $0xd58] sm:$0xff]
  %v455 = vld [vmem:[%s1 + $0xd60] sm:$0xff]
  %v456 = vld [vmem:[%s1 + $0xd68] sm:$0xff]
  %v457 = vld [vmem:[%s1 + $0xd70] sm:$0xff]
  %v458 = vld [vmem:[%s1 + $0xd78] sm:$0xff]
  %v459 = vld [vmem:[%s1 + $0xd80] sm:$0xff]
  %v460 = vld [vmem:[%s1 + $0xd88] sm:$0xff]
  %v461 = vld [vmem:[%s1 + $0xd90] sm:$0xff]
  %v462 = vld [vmem:[%s1 + $0xd98] sm:$0xff]
  %v463 = vld [vmem:[%s1 + $0xda0] sm:$0xff]
  %v464 = vld [vmem:[%s1 + $0xda8] sm:$0xff]
  %v465 = vld [vmem:[%s1 + $0xdb0] sm:$0xff]
  %v466 = vld [vmem:[%s1 + $0xdb8] sm:$0xff]
  %v467 = vld [vmem:[%s1 + $0xdc0] sm:$0xff]
  %v468 = vld [vmem:[%s1 + $0xdc8] sm:$0xff]
  %v469 = vld [vmem:[%s1 + $0xdd0] sm:$0xff]
  %v470 = vld [vmem:[%s1 + $0xdd8] sm:$0xff]
  %v471 = vld [vmem:[%s1 + $0xde0] sm:$0xff]
  %v472 = vld [vmem:[%s1 + $0xde8] sm:$0xff]
  %v473 = vld [vmem:[%s1 + $0xdf0] sm:$0xff]
  %v474 = vld [vmem:[%s1 + $0xdf8] sm:$0xff]
  %v475 = vld [vmem:[%s1 + $0xe00] sm:$0xff]
  %v476 = vld [vmem:[%s1 + $0xe08] sm:$0xff]
  %v477 = vld [vmem:[%s1 + $0xe10] sm:$0xff]
  %v478 = vld [vmem:[%s1 + $0xe18] sm:$0xff]
  %v479 = vld [vmem:[%s1 + $0xe20] sm:$0xff]
  %v480 = vld [vmem:[%s1 + $0xe28] sm:$0xff]
  %v481 = vld [vmem:[%s1 + $0xe30] sm:$0xff]
  %v482 = vld [vmem:[%s1 + $0xe38] sm:$0xff]
  %v483 = vld [vmem:[%s1 + $0xe40] sm:$0xff]
  %v484 = vld [vmem:[%s1 + $0xe48] sm:$0xff]
  %v485 = vld [vmem:[%s1 + $0xe50] sm:$0xff]
  %v486 = vld [vmem:[%s1 + $0xe58] sm:$0xff]
  %v487 = vld [vmem:[%s1 + $0xe60] sm:$0xff]
  %v488 = vld [vmem:[%s1 + $0xe68] sm:$0xff]
  %v489 = vld [vmem:[%s1 + $0xe70] sm:$0xff]
  %v490 = vld [vmem:[%s1 + $0xe78] sm:$0xff]
  %v491 = vld [vmem:[%s1 + $0xe80] sm:$0xff]
  %v492 = vld [vmem:[%s1 + $0xe88] sm:$0xff]
  %v493 = vld [vmem:[%s1 + $0xe90] sm:$0xff]
  %v494 = vld [vmem:[%s1 + $0xe98] sm:$0xff]
  %v495 = vld [vmem:[%s1 + $0xea0] sm:$0xff]
  %v496 = vld [vmem:[%s1 + $0xea8] sm:$0xff]
  %v497 = vld [vmem:[%s1 + $0xeb0] sm:$0xff]
  %v498 = vld [vmem:[%s1 + $0xeb8] sm:$0xff]
  %v499 = vld [vmem:[%s1 + $0xec0] sm:$0xff]
  %v500 = vld [vmem:[%s1 + $0xec8] sm:$0xff]
  %v501 = vld [vmem:[%s1 + $0xed0] sm:$0xff]
  %v502 = vld [vmem:[%s1 + $0xed8] sm:$0xff]
  %v503 = vld [vmem:[%s1 + $0xee0] sm:$0xff]
  %v504 = vld [vmem:[%s1 + $0xee8] sm:$0xff]
  %v505 = vld [vmem:[%s1 + $0xef0] sm:$0xff]
  %v506 = vld [vmem:[%s1 + $0xef8] sm:$0xff]
  %v507 = vld [vmem:[%s1 + $0xf00] sm:$0xff]
  %v508 = vld [vmem:[%s1 + $0xf08] sm:$0xff]
  %v509 = vld [vmem:[%s1 + $0xf10] sm:$0xff]
  %v510 = vld [vmem:[%s1 + $0xf18] sm:$0xff]
  %v511 = vld [vmem:[%s1 + $0xf20] sm:$0xff]
  %v512 = vld [vmem:[%s1 + $0xf28] sm:$0xff]
  %v513 = vld [vmem:[%s1 + $0xf30] sm:$0xff]
  %v514 = vld [vmem:[%s1 + $0xf38] sm:$0xff]
  %v515 = vld [vmem:[%s1 + $0xf40] sm:$0xff]
  %v516 = vld [vmem:[%s1 + $0xf48] sm:$0xff]
  %v517 = vld [vmem:[%s1 + $0xf50] sm:$0xff]
  %v518 = vld [vmem:[%s1 + $0xf58] sm:$0xff]
  %v519 = vld [vmem:[%s1 + $0xf60] sm:$0xff]
  %v520 = vld [vmem:[%s1 + $0xf68] sm:$0xff]
  %v521 = vld [vmem:[%s1 + $0xf70] sm:$0xff]
  %v522 = vld [vmem:[%s1 + $0xf78] sm:$0xff]
  %v523 = vld [vmem:[%s1 + $0xf80] sm:$0xff]
  %v524 = vld [vmem:[%s1 + $0xf88] sm:$0xff]
  %v525 = vld [vmem:[%s1 + $0xf90] sm:$0xff]
  %v526 = vld [vmem:[%s1 + $0xf98] sm:$0xff]
  %v527 = vld [vmem:[%s1 + $0xfa0] sm:$0xff]
  %v528 = vld [vmem:[%s1 + $0xfa8] sm:$0xff]
  %v529 = vld [vmem:[%s1 + $0xfb0] sm:$0xff]
  %v530 = vld [vmem:[%s1 + $0xfb8] sm:$0xff]
  %v531 = vld [vmem:[%s1 + $0xfc0] sm:$0xff]
  %v532 = vld [vmem:[%s1 + $0xfc8] sm:$0xff]
  %v533 = vld [vmem:[%s1 + $0xfd0] sm:$0xff]
  %v534 = vld [vmem:[%s1 + $0xfd8] sm:$0xff]
  %v535 = vld [vmem:[%s1 + $0xfe0] sm:$0xff]
  %v536 = vld [vmem:[%s1 + $0xfe8] sm:$0xff]
  %v537 = vld [vmem:[%s1 + $0xff0] sm:$0xff]
  %v538 = vld [vmem:[%s1 + $0xff8] sm:$0xff]
  %v539 = vld [vmem:[%s1 + $0x1000] sm:$0xff]
  %v540 = vld [vmem:[%s1 + $0x1008] sm:$0xff]
  %v541 = vld [vmem:[%s1 + $0x1010] sm:$0xff]
  %v542 = vld [vmem:[%s1 + $0x1018] sm:$0xff]
  %v543 = vld [vmem:[%s1 + $0x1020] sm:$0xff]
  %v544 = vld [vmem:[%s1 + $0x1028] sm:$0xff]
  %v545 = vld [vmem:[%s1 + $0x1030] sm:$0xff]
  %v546 = vld [vmem:[%s1 + $0x1038] sm:$0xff]
  %v547 = vld [vmem:[%s1 + $0x1040] sm:$0xff]
  %v548 = vld [vmem:[%s1 + $0x1048] sm:$0xff]
  %v549 = vld [vmem:[%s1 + $0x1050] sm:$0xff]
  %v550 = vld [vmem:[%s1 + $0x1058] sm:$0xff]
  %v551 = vld [vmem:[%s1 + $0x1060] sm:$0xff]
  %v552 = vld [vmem:[%s1 + $0x1068] sm:$0xff]
  %v553 = vld [vmem:[%s1 + $0x1070] sm:$0xff]
  %v554 = vld [vmem:[%s1 + $0x1078] sm:$0xff]
  %v555 = vld [vmem:[%s1 + $0x1080] sm:$0xff]
  %v556 = vld [vmem:[%s1 + $0x1088] sm:$0xff]
  %v557 = vld [vmem:[%s1 + $0x1090] sm:$0xff]
  %v558 = vld [vmem:[%s1 + $0x1098] sm:$0xff]
  %v559 = vld [vmem:[%s1 + $0x10a0] sm:$0xff]
  %v560 = vld [vmem:[%s1 + $0x10a8] sm:$0xff]
  %v561 = vld [vmem:[%s1 + $0x10b0] sm:$0xff]
  %v562 = vld [vmem:[%s1 + $0x10b8] sm:$0xff]
  %v563 = vld [vmem:[%s1 + $0x10c0] sm:$0xff]
  %v564 = vld [vmem:[%s1 + $0x10c8] sm:$0xff]
  %v565 = vld [vmem:[%s1 + $0x10d0] sm:$0xff]
  %v566 = vld [vmem:[%s1 + $0x10d8] sm:$0xff]
  %v567 = vld [vmem:[%s1 + $0x10e0] sm:$0xff]
  %v568 = vld [vmem:[%s1 + $0x10e8] sm:$0xff]
  %v569 = vld [vmem:[%s1 + $0x10f0] sm:$0xff]
  %v570 = vld [vmem:[%s1 + $0x10f8] sm:$0xff]
  %v571 = vld [vmem:[%s1 + $0x1100] sm:$0xff]
  %v572 = vld [vmem:[%s1 + $0x1108] sm:$0xff]
  %v573 = vld [vmem:[%s1 + $0x1110] sm:$0xff]
  %v574 = vld [vmem:[%s1 + $0x1118] sm:$0xff]
  %v575 = vld [vmem:[%s1 + $0x1120] sm:$0xff]
  %v576 = vld [vmem:[%s1 + $0x1128] sm:$0xff]
  %v577 = vld [vmem:[%s1 + $0x1130] sm:$0xff]
  %v578 = vld [vmem:[%s1 + $0x1138] sm:$0xff]
  %v579 = vld [vmem:[%s1 + $0x1140] sm:$0xff]
  %v580 = vld [vmem:[%s1 + $0x1148] sm:$0xff]
  %v581 = vld [vmem:[%s1 + $0x1150] sm:$0xff]
  %v582 = vld [vmem:[%s1 + $0x1158] sm:$0xff]
  %v583 = vld [vmem:[%s1 + $0x1160] sm:$0xff]
  %v584 = vld [vmem:[%s1 + $0x1168] sm:$0xff]
  %v585 = vld [vmem:[%s1 + $0x1170] sm:$0xff]
  %v586 = vld [vmem:[%s1 + $0x1178] sm:$0xff]
  %v587 = vld [vmem:[%s1 + $0x1180] sm:$0xff]
  %v588 = vld [vmem:[%s1 + $0x1188] sm:$0xff]
  %v589 = vld [vmem:[%s1 + $0x1190] sm:$0xff]
  %v590 = vld [vmem:[%s1 + $0x1198] sm:$0xff]
  %v591 = vld [vmem:[%s1 + $0x11a0] sm:$0xff]
  %v592 = vld [vmem:[%s1 + $0x11a8] sm:$0xff]
  %v593 = vld [vmem:[%s1 + $0x11b0] sm:$0xff]
  %v594 = vld [vmem:[%s1 + $0x11b8] sm:$0xff]
  %v595 = vld [vmem:[%s1 + $0x11c0] sm:$0xff]
  %v596 = vld [vmem:[%s1 + $0x11c8] sm:$0xff]
  %v597 = vld [vmem:[%s1 + $0x11d0] sm:$0xff]
  %v598 = vld [vmem:[%s1 + $0x11d8] sm:$0xff]
  %v599 = vld [vmem:[%s1 + $0x11e0] sm:$0xff]
  %v600 = vld [vmem:[%s1 + $0x11e8] sm:$0xff]
  %v601 = vld [vmem:[%s1 + $0x11f0] sm:$0xff]
  %v602 = vld [vmem:[%s1 + $0x11f8] sm:$0xff]
  %v603 = vld [vmem:[%s1 + $0x1200] sm:$0xff]
  %v604 = vld [vmem:[%s1 + $0x1208] sm:$0xff]
  %v605 = vld [vmem:[%s1 + $0x1210] sm:$0xff]
  %v606 = vld [vmem:[%s1 + $0x1218] sm:$0xff]
  %v607 = vld [vmem:[%s1 + $0x1220] sm:$0xff]
  %v608 = vld [vmem:[%s1 + $0x1228] sm:$0xff]
  %v609 = vld [vmem:[%s1 + $0x1230] sm:$0xff]
  %v610 = vld [vmem:[%s1 + $0x1238] sm:$0xff]
  %v611 = vld [vmem:[%s1 + $0x1240] sm:$0xff]
  %v612 = vld [vmem:[%s1 + $0x1248] sm:$0xff]
  %v613 = vld [vmem:[%s1 + $0x1250] sm:$0xff]
  %v614 = vld [vmem:[%s1 + $0x1258] sm:$0xff]
  %v615 = vld [vmem:[%s1 + $0x1260] sm:$0xff]
  %v616 = vld [vmem:[%s1 + $0x1268] sm:$0xff]
  %v617 = vld [vmem:[%s1 + $0x1270] sm:$0xff]
  %v618 = vld [vmem:[%s1 + $0x1278] sm:$0xff]
  %v619 = vld [vmem:[%s1 + $0x1280] sm:$0xff]
  %v620 = vld [vmem:[%s1 + $0x1288] sm:$0xff]
  %v621 = vld [vmem:[%s1 + $0x1290] sm:$0xff]
  %v622 = vld [vmem:[%s1 + $0x1298] sm:$0xff]
  %v623 = vld [vmem:[%s1 + $0x12a0] sm:$0xff]
  %v624 = vld [vmem:[%s1 + $0x12a8] sm:$0xff]
  %v625 = vld [vmem:[%s1 + $0x12b0] sm:$0xff]
  %v626 = vld [vmem:[%s1 + $0x12b8] sm:$0xff]
  %v627 = vld [vmem:[%s1 + $0x12c0] sm:$0xff]
  %v628 = vld [vmem:[%s1 + $0x12c8] sm:$0xff]
  %v629 = vld [vmem:[%s1 + $0x12d0] sm:$0xff]
  %v630 = vld [vmem:[%s1 + $0x12d8] sm:$0xff]
  %v631 = vld [vmem:[%s1 + $0x12e0] sm:$0xff]
  %v632 = vld [vmem:[%s1 + $0x12e8] sm:$0xff]
  %v633 = vld [vmem:[%s1 + $0x12f0] sm:$0xff]
  %v634 = vld [vmem:[%s1 + $0x12f8] sm:$0xff]
  %v635 = vld [vmem:[%s1 + $0x1300] sm:$0xff]
  %v636 = vld [vmem:[%s1 + $0x1308] sm:$0xff]
  %v637 = vld [vmem:[%s1 + $0x1310] sm:$0xff]
  %v638 = vld [vmem:[%s1 + $0x1318] sm:$0xff]
  %v639 = vld [vmem:[%s1 + $0x1320] sm:$0xff]
  %v640 = vld [vmem:[%s1 + $0x1328] sm:$0xff]
  %v641 = vld [vmem:[%s1 + $0x1330] sm:$0xff]
  %v642 = vld [vmem:[%s1 + $0x1338] sm:$0xff]
  %v643 = vld [vmem:[%s1 + $0x1340] sm:$0xff]
  %v644 = vld [vmem:[%s1 + $0x1348] sm:$0xff]
  %v645 = vld [vmem:[%s1 + $0x1350] sm:$0xff]
  %v646 = vld [vmem:[%s1 + $0x1358] sm:$0xff]
  %v647 = vld [vmem:[%s1 + $0x1360] sm:$0xff]
  %v648 = vld [vmem:[%s1 + $0x1368] sm:$0xff]
  %v649 = vld [vmem:[%s1 + $0x1370] sm:$0xff]
  %v650 = vld [vmem:[%s1 + $0x1378] sm:$0xff]
  %v651 = vld [vmem:[%s1 + $0x1380] sm:$0xff]
  %v652 = vld [vmem:[%s1 + $0x1388] sm:$0xff]
  %v653 = vld [vmem:[%s1 + $0x1390] sm:$0xff]
  %v654 = vld [vmem:[%s1 + $0x1398] sm:$0xff]
  %v655 = vld [vmem:[%s1 + $0x13a0] sm:$0xff]
  %v656 = vld [vmem:[%s1 + $0x13a8] sm:$0xff]
  %v657 = vld [vmem:[%s1 + $0x13b0] sm:$0xff]
  %v658 = vld [vmem:[%s1 + $0x13b8] sm:$0xff]
  %v659 = vld [vmem:[%s1 + $0x13c0] sm:$0xff]
  %v660 = vld [vmem:[%s1 + $0x13c8] sm:$0xff]
  %v661 = vld [vmem:[%s1 + $0x13d0] sm:$0xff]
  %v662 = vld [vmem:[%s1 + $0x13d8] sm:$0xff]
  %v663 = vld [vmem:[%s1 + $0x13e0] sm:$0xff]
  %v664 = vld [vmem:[%s1 + $0x13e8] sm:$0xff]
  %v665 = vld [vmem:[%s1 + $0x13f0] sm:$0xff]
  %v666 = vld [vmem:[%s1 + $0x13f8] sm:$0xff]
  %v667 = vld [vmem:[%s1 + $0x1400] sm:$0xff]
  %v668 = vld [vmem:[%s1 + $0x1408] sm:$0xff]
  %v669 = vld [vmem:[%s1 + $0x1410] sm:$0xff]
  %v670 = vld [vmem:[%s1 + $0x1418] sm:$0xff]
  %v671 = vld [vmem:[%s1 + $0x1420] sm:$0xff]
  %v672 = vld [vmem:[%s1 + $0x1428] sm:$0xff]
  %v673 = vld [vmem:[%s1 + $0x1430] sm:$0xff]
  %v674 = vld [vmem:[%s1 + $0x1438] sm:$0xff]
  %v675 = vld [vmem:[%s1 + $0x1440] sm:$0xff]
  %v676 = vld [vmem:[%s1 + $0x1448] sm:$0xff]
  %v677 = vld [vmem:[%s1 + $0x1450] sm:$0xff]
  %v678 = vld [vmem:[%s1 + $0x1458] sm:$0xff]
  %v679 = vld [vmem:[%s1 + $0x1460] sm:$0xff]
  %v680 = vld [vmem:[%s1 + $0x1468] sm:$0xff]
  %v681 = vld [vmem:[%s1 + $0x1470] sm:$0xff]
  %v682 = vld [vmem:[%s1 + $0x1478] sm:$0xff]
  %v683 = vld [vmem:[%s1 + $0x1480] sm:$0xff]
  %v684 = vld [vmem:[%s1 + $0x1488] sm:$0xff]
  %v685 = vld [vmem:[%s1 + $0x1490] sm:$0xff]
  %v686 = vld [vmem:[%s1 + $0x1498] sm:$0xff]
  %v687 = vld [vmem:[%s1 + $0x14a0] sm:$0xff]
  %v688 = vld [vmem:[%s1 + $0x14a8] sm:$0xff]
  %v689 = vld [vmem:[%s1 + $0x14b0] sm:$0xff]
  %v690 = vld [vmem:[%s1 + $0x14b8] sm:$0xff]
  %v691 = vld [vmem:[%s1 + $0x14c0] sm:$0xff]
  %v692 = vld [vmem:[%s1 + $0x14c8] sm:$0xff]
  %v693 = vld [vmem:[%s1 + $0x14d0] sm:$0xff]
  %v694 = vld [vmem:[%s1 + $0x14d8] sm:$0xff]
  %v695 = vld [vmem:[%s1 + $0x14e0] sm:$0xff]
  %v696 = vld [vmem:[%s1 + $0x14e8] sm:$0xff]
  %v697 = vld [vmem:[%s1 + $0x14f0] sm:$0xff]
  %v698 = vld [vmem:[%s1 + $0x14f8] sm:$0xff]
  %v699 = vld [vmem:[%s1 + $0x1500] sm:$0xff]
  %v700 = vld [vmem:[%s1 + $0x1508] sm:$0xff]
  %v701 = vld [vmem:[%s1 + $0x1510] sm:$0xff]
  %v702 = vld [vmem:[%s1 + $0x1518] sm:$0xff]
  %v703 = vld [vmem:[%s1 + $0x1520] sm:$0xff]
  %v704 = vld [vmem:[%s1 + $0x1528] sm:$0xff]
  %v705 = vld [vmem:[%s1 + $0x1530] sm:$0xff]
  %v706 = vld [vmem:[%s1 + $0x1538] sm:$0xff]
  %v707 = vld [vmem:[%s1 + $0x1540] sm:$0xff]
  %v708 = vld [vmem:[%s1 + $0x1548] sm:$0xff]
  %v709 = vld [vmem:[%s1 + $0x1550] sm:$0xff]
  %v710 = vld [vmem:[%s1 + $0x1558] sm:$0xff]
  %v711 = vld [vmem:[%s1 + $0x1560] sm:$0xff]
  %v712 = vld [vmem:[%s1 + $0x1568] sm:$0xff]
  %v713 = vld [vmem:[%s1 + $0x1570] sm:$0xff]
  %v714 = vld [vmem:[%s1 + $0x1578] sm:$0xff]
  %v715 = vld [vmem:[%s1 + $0x1580] sm:$0xff]
  %v716 = vld [vmem:[%s1 + $0x1588] sm:$0xff]
  %v717 = vld [vmem:[%s1 + $0x1590] sm:$0xff]
  %v718 = vld [vmem:[%s1 + $0x1598] sm:$0xff]
  %v719 = vld [vmem:[%s1 + $0x15a0] sm:$0xff]
  %v720 = vld [vmem:[%s1 + $0x15a8] sm:$0xff]
  %v721 = vld [vmem:[%s1 + $0x15b0] sm:$0xff]
  %v722 = vld [vmem:[%s1 + $0x15b8] sm:$0xff]
  %v723 = vld [vmem:[%s1 + $0x15c0] sm:$0xff]
  %v724 = vld [vmem:[%s1 + $0x15c8] sm:$0xff]
  %v725 = vld [vmem:[%s1 + $0x15d0] sm:$0xff]
  %v726 = vld [vmem:[%s1 + $0x15d8] sm:$0xff]
  %v727 = vld [vmem:[%s1 + $0x15e0] sm:$0xff]
  %v728 = vld [vmem:[%s1 + $0x15e8] sm:$0xff]
  %v729 = vld [vmem:[%s1 + $0x15f0] sm:$0xff]
  %v730 = vld [vmem:[%s1 + $0x15f8] sm:$0xff]
  %v731 = vld [vmem:[%s1 + $0x1600] sm:$0xff]
  %v732 = vld [vmem:[%s1 + $0x1608] sm:$0xff]
  %v733 = vld [vmem:[%s1 + $0x1610] sm:$0xff]
  %v734 = vld [vmem:[%s1 + $0x1618] sm:$0xff]
  %v735 = vld [vmem:[%s1 + $0x1620] sm:$0xff]
  %v736 = vld [vmem:[%s1 + $0x1628] sm:$0xff]
  %v737 = vld [vmem:[%s1 + $0x1630] sm:$0xff]
  %v738 = vld [vmem:[%s1 + $0x1638] sm:$0xff]
  %v739 = vld [vmem:[%s1 + $0x1640] sm:$0xff]
  %v740 = vld [vmem:[%s1 + $0x1648] sm:$0xff]
  %v741 = vld [vmem:[%s1 + $0x1650] sm:$0xff]
  %v742 = vld [vmem:[%s1 + $0x1658] sm:$0xff]
  %v743 = vld [vmem:[%s1 + $0x1660] sm:$0xff]
  %v744 = vld [vmem:[%s1 + $0x1668] sm:$0xff]
  %v745 = vld [vmem:[%s1 + $0x1670] sm:$0xff]
  %v746 = vld [vmem:[%s1 + $0x1678] sm:$0xff]
  %v747 = vld [vmem:[%s1 + $0x1680] sm:$0xff]
  %v748 = vld [vmem:[%s1 + $0x1688] sm:$0xff]
  %v749 = vld [vmem:[%s1 + $0x1690] sm:$0xff]
  %v750 = vld [vmem:[%s1 + $0x1698] sm:$0xff]
  %v751 = vld [vmem:[%s1 + $0x16a0] sm:$0xff]
  %v752 = vld [vmem:[%s1 + $0x16a8] sm:$0xff]
  %v753 = vld [vmem:[%s1 + $0x16b0] sm:$0xff]
  %v754 = vld [vmem:[%s1 + $0x16b8] sm:$0xff]
  %v755 = vld [vmem:[%s1 + $0x16c0] sm:$0xff]
  %v756 = vld [vmem:[%s1 + $0x16c8] sm:$0xff]
  %v757 = vld [vmem:[%s1 + $0x16d0] sm:$0xff]
  %v758 = vld [vmem:[%s1 + $0x16d8] sm:$0xff]
  %v759 = vld [vmem:[%s1 + $0x16e0] sm:$0xff]
  %v760 = vld [vmem:[%s1 + $0x16e8] sm:$0xff]
  %v761 = vld [vmem:[%s1 + $0x16f0] sm:$0xff]
  %v762 = vld [vmem:[%s1 + $0x16f8] sm:$0xff]
  %v763 = vld [vmem:[%s1 + $0x1700] sm:$0xff]
  %v764 = vld [vmem:[%s1 + $0x1708] sm:$0xff]
  %v765 = vld [vmem:[%s1 + $0x1710] sm:$0xff]
  %v766 = vld [vmem:[%s1 + $0x1718] sm:$0xff]
  %v767 = vld [vmem:[%s1 + $0x1720] sm:$0xff]
  %v768 = vld [vmem:[%s1 + $0x1728] sm:$0xff]
  %v769 = vld [vmem:[%s1 + $0x1730] sm:$0xff]
  %v770 = vld [vmem:[%s1 + $0x1738] sm:$0xff]
  %v771 = vld [vmem:[%s1 + $0x1740] sm:$0xff]
  %v772 = vld [vmem:[%s1 + $0x1748] sm:$0xff]
  %v773 = vld [vmem:[%s1 + $0x1750] sm:$0xff]
  %v774 = vld [vmem:[%s1 + $0x1758] sm:$0xff]
  %v775 = vld [vmem:[%s1 + $0x1760] sm:$0xff]
  %v776 = vld [vmem:[%s1 + $0x1768] sm:$0xff]
  %v777 = vld [vmem:[%s1 + $0x1770] sm:$0xff]
  %v778 = vld [vmem:[%s1 + $0x1778] sm:$0xff]
  %v779 = vld [vmem:[%s1 + $0x1780] sm:$0xff]
  %v780 = vld [vmem:[%s1 + $0x1788] sm:$0xff]
  %v781 = vld [vmem:[%s1 + $0x1790] sm:$0xff]
  %v782 = vld [vmem:[%s1 + $0x1798] sm:$0xff]
  %v783 = vld [vmem:[%s1 + $0x17a0] sm:$0xff]
  %v784 = vld [vmem:[%s1 + $0x17a8] sm:$0xff]
  %v785 = vld [vmem:[%s1 + $0x17b0] sm:$0xff]
  %v786 = vld [vmem:[%s1 + $0x17b8] sm:$0xff]
  %v787 = vld [vmem:[%s1 + $0x17c0] sm:$0xff]
  %v788 = vld [vmem:[%s1 + $0x17c8] sm:$0xff]
  %v789 = vld [vmem:[%s1 + $0x17d0] sm:$0xff]
  %v790 = vld [vmem:[%s1 + $0x17d8] sm:$0xff]
  %v791 = vld [vmem:[%s1 + $0x17e0] sm:$0xff]
  %v792 = vld [vmem:[%s1 + $0x17e8] sm:$0xff]
  %v793 = vld [vmem:[%s1 + $0x17f0] sm:$0xff]
  %v794 = vld [vmem:[%s1 + $0x17f8] sm:$0xff]
  %v795 = vld [vmem:[%s1 + $0x1800] sm:$0xff]
  %v796 = vld [vmem:[%s1 + $0x1808] sm:$0xff]
  %v797 = vld [vmem:[%s1 + $0x1810] sm:$0xff]
  %v798 = vld [vmem:[%s1 + $0x1818] sm:$0xff]
  %v799 = vld [vmem:[%s1 + $0x1820] sm:$0xff]
  %v800 = vld [vmem:[%s1 + $0x1828] sm:$0xff]
  %v801 = vld [vmem:[%s1 + $0x1830] sm:$0xff]
  %v802 = vld [vmem:[%s1 + $0x1838] sm:$0xff]
  %v803 = vld [vmem:[%s1 + $0x1840] sm:$0xff]
  %v804 = vld [vmem:[%s1 + $0x1848] sm:$0xff]
  %v805 = vld [vmem:[%s1 + $0x1850] sm:$0xff]
  %v806 = vld [vmem:[%s1 + $0x1858] sm:$0xff]
  %v807 = vld [vmem:[%s1 + $0x1860] sm:$0xff]
  %v808 = vld [vmem:[%s1 + $0x1868] sm:$0xff]
  %v809 = vld [vmem:[%s1 + $0x1870] sm:$0xff]
  %v810 = vld [vmem:[%s1 + $0x1878] sm:$0xff]
  %v811 = vld [vmem:[%s1 + $0x1880] sm:$0xff]
  %v812 = vld [vmem:[%s1 + $0x1888] sm:$0xff]
  %v813 = vld [vmem:[%s1 + $0x1890] sm:$0xff]
  %v814 = vld [vmem:[%s1 + $0x1898] sm:$0xff]
  %v815 = vld [vmem:[%s1 + $0x18a0] sm:$0xff]
  %v816 = vld [vmem:[%s1 + $0x18a8] sm:$0xff]
  %v817 = vld [vmem:[%s1 + $0x18b0] sm:$0xff]
  %v818 = vld [vmem:[%s1 + $0x18b8] sm:$0xff]
  %v819 = vld [vmem:[%s1 + $0x18c0] sm:$0xff]
  %v820 = vld [vmem:[%s1 + $0x18c8] sm:$0xff]
  %v821 = vld [vmem:[%s1 + $0x18d0] sm:$0xff]
  %v822 = vld [vmem:[%s1 + $0x18d8] sm:$0xff]
  %v823 = vld [vmem:[%s1 + $0x18e0] sm:$0xff]
  %v824 = vld [vmem:[%s1 + $0x18e8] sm:$0xff]
  %v825 = vld [vmem:[%s1 + $0x18f0] sm:$0xff]
  %v826 = vld [vmem:[%s1 + $0x18f8] sm:$0xff]
  %v827 = vld [vmem:[%s1 + $0x1900] sm:$0xff]
  %v828 = vld [vmem:[%s1 + $0x1908] sm:$0xff]
  %v829 = vld [vmem:[%s1 + $0x1910] sm:$0xff]
  %v830 = vld [vmem:[%s1 + $0x1918] sm:$0xff]
  %v831 = vld [vmem:[%s1 + $0x1920] sm:$0xff]
  %v832 = vld [vmem:[%s1 + $0x1928] sm:$0xff]
  %v833 = vld [vmem:[%s1 + $0x1930] sm:$0xff]
  %v834 = vld [vmem:[%s1 + $0x1938] sm:$0xff]
  %v835 = vld [vmem:[%s1 + $0x1940] sm:$0xff]
  %v836 = vld [vmem:[%s1 + $0x1948] sm:$0xff]
  %v837 = vld [vmem:[%s1 + $0x1950] sm:$0xff]
  %v838 = vld [vmem:[%s1 + $0x1958] sm:$0xff]
  %v839 = vld [vmem:[%s1 + $0x1960] sm:$0xff]
  %v840 = vld [vmem:[%s1 + $0x1968] sm:$0xff]
  %v841 = vld [vmem:[%s1 + $0x1970] sm:$0xff]
  %v842 = vld [vmem:[%s1 + $0x1978] sm:$0xff]
  %v843 = vld [vmem:[%s1 + $0x1980] sm:$0xff]
  %v844 = vld [vmem:[%s1 + $0x1988] sm:$0xff]
  %v845 = vld [vmem:[%s1 + $0x1990] sm:$0xff]
  %v846 = vld [vmem:[%s1 + $0x1998] sm:$0xff]
  %v847 = vld [vmem:[%s1 + $0x19a0] sm:$0xff]
  %v848 = vld [vmem:[%s1 + $0x19a8] sm:$0xff]
  %v849 = vld [vmem:[%s1 + $0x19b0] sm:$0xff]
  %v850 = vld [vmem:[%s1 + $0x19b8] sm:$0xff]
  %v851 = vld [vmem:[%s1 + $0x19c0] sm:$0xff]
  %v852 = vld [vmem:[%s1 + $0x19c8] sm:$0xff]
  %v853 = vld [vmem:[%s1 + $0x19d0] sm:$0xff]
  %v854 = vld [vmem:[%s1 + $0x19d8] sm:$0xff]
  %v855 = vld [vmem:[%s1 + $0x19e0] sm:$0xff]
  %v856 = vld [vmem:[%s1 + $0x19e8] sm:$0xff]
  %v857 = vld [vmem:[%s1 + $0x19f0] sm:$0xff]
  %v858 = vld [vmem:[%s1 + $0x19f8] sm:$0xff]
  %v859 = vld [vmem:[%s1 + $0x1a00] sm:$0xff]
  %v860 = vld [vmem:[%s1 + $0x1a08] sm:$0xff]
  %v861 = vld [vmem:[%s1 + $0x1a10] sm:$0xff]
  %v862 = vld [vmem:[%s1 + $0x1a18] sm:$0xff]
  %v863 = vld [vmem:[%s1 + $0x1a20] sm:$0xff]
  %v864 = vld [vmem:[%s1 + $0x1a28] sm:$0xff]
  %v865 = vld [vmem:[%s1 + $0x1a30] sm:$0xff]
  %v866 = vld [vmem:[%s1 + $0x1a38] sm:$0xff]
  %v867 = vld [vmem:[%s1 + $0x1a40] sm:$0xff]
  %v868 = vld [vmem:[%s1 + $0x1a48] sm:$0xff]
  %v869 = vld [vmem:[%s1 + $0x1a50] sm:$0xff]
  %v870 = vld [vmem:[%s1 + $0x1a58] sm:$0xff]
  %v871 = vld [vmem:[%s1 + $0x1a60] sm:$0xff]
  %v872 = vld [vmem:[%s1 + $0x1a68] sm:$0xff]
  %v873 = vld [vmem:[%s1 + $0x1a70] sm:$0xff]
  %v874 = vld [vmem:[%s1 + $0x1a78] sm:$0xff]
  %v875 = vld [vmem:[%s1 + $0x1a80] sm:$0xff]
  %v876 = vld [vmem:[%s1 + $0x1a88] sm:$0xff]
  %v877 = vld [vmem:[%s1 + $0x1a90] sm:$0xff]
  %v878 = vld [vmem:[%s1 + $0x1a98] sm:$0xff]
  %v879 = vld [vmem:[%s1 + $0x1aa0] sm:$0xff]
  %v880 = vld [vmem:[%s1 + $0x1aa8] sm:$0xff]
  %v881 = vld [vmem:[%s1 + $0x1ab0] sm:$0xff]
  %v882 = vld [vmem:[%s1 + $0x1ab8] sm:$0xff]
  %v883 = vld [vmem:[%s1 + $0x1ac0] sm:$0xff]
  %v884 = vld [vmem:[%s1 + $0x1ac8] sm:$0xff]
  %v885 = vld [vmem:[%s1 + $0x1ad0] sm:$0xff]
  %v886 = vld [vmem:[%s1 + $0x1ad8] sm:$0xff]
  %v887 = vld [vmem:[%s1 + $0x1ae0] sm:$0xff]
  %v888 = vld [vmem:[%s1 + $0x1ae8] sm:$0xff]
  %v889 = vld [vmem:[%s1 + $0x1af0] sm:$0xff]
  %v890 = vld [vmem:[%s1 + $0x1af8] sm:$0xff]
  %v891 = vld [vmem:[%s1 + $0x1b00] sm:$0xff]
  %v892 = vld [vmem:[%s1 + $0x1b08] sm:$0xff]
  %v893 = vld [vmem:[%s1 + $0x1b10] sm:$0xff]
  %v894 = vld [vmem:[%s1 + $0x1b18] sm:$0xff]
  %v895 = vld [vmem:[%s1 + $0x1b20] sm:$0xff]
  %v896 = vld [vmem:[%s1 + $0x1b28] sm:$0xff]
  %v897 = vld [vmem:[%s1 + $0x1b30] sm:$0xff]
  %v898 = vld [vmem:[%s1 + $0x1b38] sm:$0xff]
  %v899 = vld [vmem:[%s1 + $0x1b40] sm:$0xff]
  %v900 = vld [vmem:[%s1 + $0x1b48] sm:$0xff]
  %v901 = vld [vmem:[%s1 + $0x1b50] sm:$0xff]
  %v902 = vld [vmem:[%s1 + $0x1b58] sm:$0xff]
  %v903 = vld [vmem:[%s1 + $0x1b60] sm:$0xff]
  %v904 = vld [vmem:[%s1 + $0x1b68] sm:$0xff]
  %v905 = vld [vmem:[%s1 + $0x1b70] sm:$0xff]
  %v906 = vld [vmem:[%s1 + $0x1b78] sm:$0xff]
  %v907 = vld [vmem:[%s1 + $0x1b80] sm:$0xff]
  %v908 = vld [vmem:[%s1 + $0x1b88] sm:$0xff]
  %v909 = vld [vmem:[%s1 + $0x1b90] sm:$0xff]
  %v910 = vld [vmem:[%s1 + $0x1b98] sm:$0xff]
  %v911 = vld [vmem:[%s1 + $0x1ba0] sm:$0xff]
  %v912 = vld [vmem:[%s1 + $0x1ba8] sm:$0xff]
  %v913 = vld [vmem:[%s1 + $0x1bb0] sm:$0xff]
  %v914 = vld [vmem:[%s1 + $0x1bb8] sm:$0xff]
  %v915 = vld [vmem:[%s1 + $0x1bc0] sm:$0xff]
  %v916 = vld [vmem:[%s1 + $0x1bc8] sm:$0xff]
  %v917 = vld [vmem:[%s1 + $0x1bd0] sm:$0xff]
  %v918 = vld [vmem:[%s1 + $0x1bd8] sm:$0xff]
  %v919 = vld [vmem:[%s1 + $0x1be0] sm:$0xff]
  %v920 = vld [vmem:[%s1 + $0x1be8] sm:$0xff]
  %v921 = vld [vmem:[%s1 + $0x1bf0] sm:$0xff]
  %v922 = vld [vmem:[%s1 + $0x1bf8] sm:$0xff]
  %v923 = vld [vmem:[%s1 + $0x1c00] sm:$0xff]
  %v924 = vld [vmem:[%s1 + $0x1c08] sm:$0xff]
  %v925 = vld [vmem:[%s1 + $0x1c10] sm:$0xff]
  %v926 = vld [vmem:[%s1 + $0x1c18] sm:$0xff]
  %v927 = vld [vmem:[%s1 + $0x1c20] sm:$0xff]
  %v928 = vld [vmem:[%s1 + $0x1c28] sm:$0xff]
  %v929 = vld [vmem:[%s1 + $0x1c30] sm:$0xff]
  %v930 = vld [vmem:[%s1 + $0x1c38] sm:$0xff]
  %v931 = vld [vmem:[%s1 + $0x1c40] sm:$0xff]
  %v932 = vld [vmem:[%s1 + $0x1c48] sm:$0xff]
  %v933 = vld [vmem:[%s1 + $0x1c50] sm:$0xff]
  %v934 = vld [vmem:[%s1 + $0x1c58] sm:$0xff]
  %v935 = vld [vmem:[%s1 + $0x1c60] sm:$0xff]
  %v936 = vld [vmem:[%s1 + $0x1c68] sm:$0xff]
  %v937 = vld [vmem:[%s1 + $0x1c70] sm:$0xff]
  %v938 = vld [vmem:[%s1 + $0x1c78] sm:$0xff]
  %v939 = vld [vmem:[%s1 + $0x1c80] sm:$0xff]
  %v940 = vld [vmem:[%s1 + $0x1c88] sm:$0xff]
  %v941 = vld [vmem:[%s1 + $0x1c90] sm:$0xff]
  %v942 = vld [vmem:[%s1 + $0x1c98] sm:$0xff]
  %v943 = vld [vmem:[%s1 + $0x1ca0] sm:$0xff]
  %v944 = vld [vmem:[%s1 + $0x1ca8] sm:$0xff]
  %v945 = vld [vmem:[%s1 + $0x1cb0] sm:$0xff]
  %v946 = vld [vmem:[%s1 + $0x1cb8] sm:$0xff]
  %v947 = vld [vmem:[%s1 + $0x1cc0] sm:$0xff]
  %v948 = vld [vmem:[%s1 + $0x1cc8] sm:$0xff]
  %v949 = vld [vmem:[%s1 + $0x1cd0] sm:$0xff]
  %v950 = vld [vmem:[%s1 + $0x1cd8] sm:$0xff]
  %v951 = vld [vmem:[%s1 + $0x1ce0] sm:$0xff]
  %v952 = vld [vmem:[%s1 + $0x1ce8] sm:$0xff]
  %v953 = vld [vmem:[%s1 + $0x1cf0] sm:$0xff]
  %v954 = vld [vmem:[%s1 + $0x1cf8] sm:$0xff]
  %v955 = vld [vmem:[%s1 + $0x1d00] sm:$0xff]
  %v956 = vld [vmem:[%s1 + $0x1d08] sm:$0xff]
  %v957 = vld [vmem:[%s1 + $0x1d10] sm:$0xff]
  %v958 = vld [vmem:[%s1 + $0x1d18] sm:$0xff]
  %v959 = vld [vmem:[%s1 + $0x1d20] sm:$0xff]
  %v960 = vld [vmem:[%s1 + $0x1d28] sm:$0xff]
  %v961 = vld [vmem:[%s1 + $0x1d30] sm:$0xff]
  %v962 = vld [vmem:[%s1 + $0x1d38] sm:$0xff]
  %v963 = vld [vmem:[%s1 + $0x1d40] sm:$0xff]
  %v964 = vld [vmem:[%s1 + $0x1d48] sm:$0xff]
  %v965 = vld [vmem:[%s1 + $0x1d50] sm:$0xff]
  %v966 = vld [vmem:[%s1 + $0x1d58] sm:$0xff]
  %v967 = vld [vmem:[%s1 + $0x1d60] sm:$0xff]
  %v968 = vld [vmem:[%s1 + $0x1d68] sm:$0xff]
  %v969 = vld [vmem:[%s1 + $0x1d70] sm:$0xff]
  %v970 = vld [vmem:[%s1 + $0x1d78] sm:$0xff]
  %v971 = vld [vmem:[%s1 + $0x1d80] sm:$0xff]
  %v972 = vld [vmem:[%s1 + $0x1d88] sm:$0xff]
  %v973 = vld [vmem:[%s1 + $0x1d90] sm:$0xff]
  %v974 = vld [vmem:[%s1 + $0x1d98] sm:$0xff]
  %v975 = vld [vmem:[%s1 + $0x1da0] sm:$0xff]
  %v976 = vld [vmem:[%s1 + $0x1da8] sm:$0xff]
  %v977 = vld [vmem:[%s1 + $0x1db0] sm:$0xff]
  %v978 = vld [vmem:[%s1 + $0x1db8] sm:$0xff]
  %v979 = vld [vmem:[%s1 + $0x1dc0] sm:$0xff]
  %v980 = vld [vmem:[%s1 + $0x1dc8] sm:$0xff]
  %v981 = vld [vmem:[%s1 + $0x1dd0] sm:$0xff]
  %v982 = vld [vmem:[%s1 + $0x1dd8] sm:$0xff]
  %v983 = vld [vmem:[%s1 + $0x1de0] sm:$0xff]
  %v984 = vld [vmem:[%s1 + $0x1de8] sm:$0xff]
  %v985 = vld [vmem:[%s1 + $0x1df0] sm:$0xff]
  %v986 = vld [vmem:[%s1 + $0x1df8] sm:$0xff]
  %v987 = vld [vmem:[%s1 + $0x1e00] sm:$0xff]
  %v988 = vld [vmem:[%s1 + $0x1e08] sm:$0xff]
  %v989 = vld [vmem:[%s1 + $0x1e10] sm:$0xff]
  %v990 = vld [vmem:[%s1 + $0x1e18] sm:$0xff]
  %v991 = vld [vmem:[%s1 + $0x1e20] sm:$0xff]
  %v992 = vld [vmem:[%s1 + $0x1e28] sm:$0xff]
  %v993 = vld [vmem:[%s1 + $0x1e30] sm:$0xff]
  %v994 = vld [vmem:[%s1 + $0x1e38] sm:$0xff]
  %v995 = vld [vmem:[%s1 + $0x1e40] sm:$0xff]
  %v996 = vld [vmem:[%s1 + $0x1e48] sm:$0xff]
  %v997 = vld [vmem:[%s1 + $0x1e50] sm:$0xff]
  %v998 = vld [vmem:[%s1 + $0x1e58] sm:$0xff]
  %v999 = vld [vmem:[%s1 + $0x1e60] sm:$0xff]
  %v1000 = vld [vmem:[%s1 + $0x1e68] sm:$0xff]
  %v1001 = vld [vmem:[%s1 + $0x1e70] sm:$0xff]
  %v1002 = vld [vmem:[%s1 + $0x1e78] sm:$0xff]
  %v1003 = vld [vmem:[%s1 + $0x1e80] sm:$0xff]
  %v1004 = vld [vmem:[%s1 + $0x1e88] sm:$0xff]
  %v1005 = vld [vmem:[%s1 + $0x1e90] sm:$0xff]
  %v1006 = vld [vmem:[%s1 + $0x1e98] sm:$0xff]
  %v1007 = vld [vmem:[%s1 + $0x1ea0] sm:$0xff]
  %v1008 = vld [vmem:[%s1 + $0x1ea8] sm:$0xff]
  %v1009 = vld [vmem:[%s1 + $0x1eb0] sm:$0xff]
  %v1010 = vld [vmem:[%s1 + $0x1eb8] sm:$0xff]
  %v1011 = vld [vmem:[%s1 + $0x1ec0] sm:$0xff]
  %v1012 = vld [vmem:[%s1 + $0x1ec8] sm:$0xff]
  %v1013 = vld [vmem:[%s1 + $0x1ed0] sm:$0xff]
  %v1014 = vld [vmem:[%s1 + $0x1ed8] sm:$0xff]
  %v1015 = vld [vmem:[%s1 + $0x1ee0] sm:$0xff]
  %v1016 = vld [vmem:[%s1 + $0x1ee8] sm:$0xff]
  %v1017 = vld [vmem:[%s1 + $0x1ef0] sm:$0xff]
  %v1018 = vld [vmem:[%s1 + $0x1ef8] sm:$0xff]
  %v1019 = vld [vmem:[%s1 + $0x1f00] sm:$0xff]
  %v1020 = vld [vmem:[%s1 + $0x1f08] sm:$0xff]
  %v1021 = vld [vmem:[%s1 + $0x1f10] sm:$0xff]
  %v1022 = vld [vmem:[%s1 + $0x1f18] sm:$0xff]
  %v1023 = vld [vmem:[%s1 + $0x1f20] sm:$0xff]
  %v1024 = vld [vmem:[%s1 + $0x1f28] sm:$0xff]
  %v1025 = vld [vmem:[%s1 + $0x1f30] sm:$0xff]
  %v1026 = vld [vmem:[%s1 + $0x1f38] sm:$0xff]
  %v1027 = vld [vmem:[%s1 + $0x1f40] sm:$0xff]
  %v1028 = vld [vmem:[%s1 + $0x1f48] sm:$0xff]
  %v1029 = vld [vmem:[%s1 + $0x1f50] sm:$0xff]
  %v1030 = vld [vmem:[%s1 + $0x1f58] sm:$0xff]
  %v1031 = vld [vmem:[%s1 + $0x1f60] sm:$0xff]
  %v1032 = vld [vmem:[%s1 + $0x1f68] sm:$0xff]
  %v1033 = vld [vmem:[%s1 + $0x1f70] sm:$0xff]
  %v1034 = vld [vmem:[%s1 + $0x1f78] sm:$0xff]
  %v1035 = vld [vmem:[%s1 + $0x1f80] sm:$0xff]
  %v1036 = vld [vmem:[%s1 + $0x1f88] sm:$0xff]
  %v1037 = vld [vmem:[%s1 + $0x1f90] sm:$0xff]
  %v1038 = vld [vmem:[%s1 + $0x1f98] sm:$0xff]
  %v1039 = vld [vmem:[%s1 + $0x1fa0] sm:$0xff]
  %v1040 = vld [vmem:[%s1 + $0x1fa8] sm:$0xff]
  %v1041 = vld [vmem:[%s1 + $0x1fb0] sm:$0xff]
  %v1042 = vld [vmem:[%s1 + $0x1fb8] sm:$0xff]
  %v1043 = vld [vmem:[%s1 + $0x1fc0] sm:$0xff]
  %v1044 = vld [vmem:[%s1 + $0x1fc8] sm:$0xff]
  %v1045 = vld [vmem:[%s1 + $0x1fd0] sm:$0xff]
  %v1046 = vld [vmem:[%s1 + $0x1fd8] sm:$0xff]
  %v1047 = vld [vmem:[%s1 + $0x1fe0] sm:$0xff]
  %v1048 = vld [vmem:[%s1 + $0x1fe8] sm:$0xff]
  %v1049 = vld [vmem:[%s1 + $0x1ff0] sm:$0xff]
  %v1050 = vld [vmem:[%s1 + $0x1ff8] sm:$0xff]
  %v1051 = vld [vmem:[%s1 + $0x2000] sm:$0xff]
  %v1052 = vld [vmem:[%s1 + $0x2008] sm:$0xff]
  %v1053 = vld [vmem:[%s1 + $0x2010] sm:$0xff]
  %v1054 = vld [vmem:[%s1 + $0x2018] sm:$0xff]
  %v1055 = vld [vmem:[%s1 + $0x2020] sm:$0xff]
  %v1056 = vld [vmem:[%s1 + $0x2028] sm:$0xff]
  %v1057 = vld [vmem:[%s1 + $0x2030] sm:$0xff]
  %v1058 = vld [vmem:[%s1 + $0x2038] sm:$0xff]
  %v1059 = vld [vmem:[%s1 + $0x2040] sm:$0xff]
  %v1060 = vld [vmem:[%s1 + $0x2048] sm:$0xff]
  %v1061 = vld [vmem:[%s1 + $0x2050] sm:$0xff]
  %v1062 = vld [vmem:[%s1 + $0x2058] sm:$0xff]
  %v1063 = vld [vmem:[%s1 + $0x2060] sm:$0xff]
  %v1064 = vld [vmem:[%s1 + $0x2068] sm:$0xff]
  %v1065 = vld [vmem:[%s1 + $0x2070] sm:$0xff]
  %v1066 = vld [vmem:[%s1 + $0x2078] sm:$0xff]
  %v1067 = vld [vmem:[%s1 + $0x2080] sm:$0xff]
  %v1068 = vld [vmem:[%s1 + $0x2088] sm:$0xff]
  %v1069 = vld [vmem:[%s1 + $0x2090] sm:$0xff]
  %v1070 = vld [vmem:[%s1 + $0x2098] sm:$0xff]
  %v1071 = vld [vmem:[%s1 + $0x20a0] sm:$0xff]
  %v1072 = vld [vmem:[%s1 + $0x20a8] sm:$0xff]
  %v1073 = vld [vmem:[%s1 + $0x20b0] sm:$0xff]
  %v1074 = vld [vmem:[%s1 + $0x20b8] sm:$0xff]
  %v1075 = vld [vmem:[%s1 + $0x20c0] sm:$0xff]
  %v1076 = vld [vmem:[%s1 + $0x20c8] sm:$0xff]
  %v1077 = vld [vmem:[%s1 + $0x20d0] sm:$0xff]
  %v1078 = vld [vmem:[%s1 + $0x20d8] sm:$0xff]
  %v1079 = vld [vmem:[%s1 + $0x20e0] sm:$0xff]
  %v1080 = vld [vmem:[%s1 + $0x20e8] sm:$0xff]
  %v1081 = vld [vmem:[%s1 + $0x20f0] sm:$0xff]
  %v1082 = vld [vmem:[%s1 + $0x20f8] sm:$0xff]
  %v1083 = vld [vmem:[%s1 + $0x2100] sm:$0xff]
  %v1084 = vld [vmem:[%s1 + $0x2108] sm:$0xff]
  %v1085 = vld [vmem:[%s1 + $0x2110] sm:$0xff]
  %v1086 = vld [vmem:[%s1 + $0x2118] sm:$0xff]
  %v1087 = vld [vmem:[%s1 + $0x2120] sm:$0xff]
  %v1088 = vld [vmem:[%s1 + $0x2128] sm:$0xff]
  %v1089 = vld [vmem:[%s1 + $0x2130] sm:$0xff]
  %v1090 = vld [vmem:[%s1 + $0x2138] sm:$0xff]
  %v1091 = vld [vmem:[%s1 + $0x2140] sm:$0xff]
  %v1092 = vld [vmem:[%s1 + $0x2148] sm:$0xff]
  %v1093 = vld [vmem:[%s1 + $0x2150] sm:$0xff]
  %v1094 = vld [vmem:[%s1 + $0x2158] sm:$0xff]
  %v1095 = vld [vmem:[%s1 + $0x2160] sm:$0xff]
  %v1096 = vld [vmem:[%s1 + $0x2168] sm:$0xff]
  %v1097 = vld [vmem:[%s1 + $0x2170] sm:$0xff]
  %v1098 = vld [vmem:[%s1 + $0x2178] sm:$0xff]
  %v1099 = vld [vmem:[%s1 + $0x2180] sm:$0xff]
  %v1100 = vld [vmem:[%s1 + $0x2188] sm:$0xff]
  %v1101 = vld [vmem:[%s1 + $0x2190] sm:$0xff]
  %v1102 = vld [vmem:[%s1 + $0x2198] sm:$0xff]
  %v1103 = vld [vmem:[%s1 + $0x21a0] sm:$0xff]
  %v1104 = vld [vmem:[%s1 + $0x21a8] sm:$0xff]
  %v1105 = vld [vmem:[%s1 + $0x21b0] sm:$0xff]
  %v1106 = vld [vmem:[%s1 + $0x21b8] sm:$0xff]
  %v1107 = vld [vmem:[%s1 + $0x21c0] sm:$0xff]
  %v1108 = vld [vmem:[%s1 + $0x21c8] sm:$0xff]
  %v1109 = vld [vmem:[%s1 + $0x21d0] sm:$0xff]
  %v1110 = vld [vmem:[%s1 + $0x21d8] sm:$0xff]
  %v1111 = vld [vmem:[%s1 + $0x21e0] sm:$0xff]
  %v1112 = vld [vmem:[%s1 + $0x21e8] sm:$0xff]
  %v1113 = vld [vmem:[%s1 + $0x21f0] sm:$0xff]
  %v1114 = vld [vmem:[%s1 + $0x21f8] sm:$0xff]
  %v1115 = vld [vmem:[%s1 + $0x2200] sm:$0xff]
  %v1116 = vld [vmem:[%s1 + $0x2208] sm:$0xff]
  %v1117 = vld [vmem:[%s1 + $0x2210] sm:$0xff]
  %v1118 = vld [vmem:[%s1 + $0x2218] sm:$0xff]
  %v1119 = vld [vmem:[%s1 + $0x2220] sm:$0xff]
  %v1120 = vld [vmem:[%s1 + $0x2228] sm:$0xff]
  %v1121 = vld [vmem:[%s1 + $0x2230] sm:$0xff]
  %v1122 = vld [vmem:[%s1 + $0x2238] sm:$0xff]
  %v1123 = vld [vmem:[%s1 + $0x2240] sm:$0xff]
  %v1124 = vld [vmem:[%s1 + $0x2248] sm:$0xff]
  %v1125 = vld [vmem:[%s1 + $0x2250] sm:$0xff]
  %v1126 = vld [vmem:[%s1 + $0x2258] sm:$0xff]
  %v1127 = vld [vmem:[%s1 + $0x2260] sm:$0xff]
  %v1128 = vld [vmem:[%s1 + $0x2268] sm:$0xff]
  %v1129 = vld [vmem:[%s1 + $0x2270] sm:$0xff]
  %v1130 = vld [vmem:[%s1 + $0x2278] sm:$0xff]
  %v1131 = vld [vmem:[%s1 + $0x2280] sm:$0xff]
  %v1132 = vld [vmem:[%s1 + $0x2288] sm:$0xff]
  %v1133 = vld [vmem:[%s1 + $0x2290] sm:$0xff]
  %v1134 = vld [vmem:[%s1 + $0x2298] sm:$0xff]
  %v1135 = vld [vmem:[%s1 + $0x22a0] sm:$0xff]
  %v1136 = vld [vmem:[%s1 + $0x22a8] sm:$0xff]
  %v1137 = vld [vmem:[%s1 + $0x22b0] sm:$0xff]
  %v1138 = vld [vmem:[%s1 + $0x22b8] sm:$0xff]
  %v1139 = vld [vmem:[%s1 + $0x22c0] sm:$0xff]
  %v1140 = vld [vmem:[%s1 + $0x22c8] sm:$0xff]
  %v1141 = vld [vmem:[%s1 + $0x22d0] sm:$0xff]
  %v1142 = vld [vmem:[%s1 + $0x22d8] sm:$0xff]
  %v1143 = vld [vmem:[%s1 + $0x22e0] sm:$0xff]
  %v1144 = vld [vmem:[%s1 + $0x22e8] sm:$0xff]
  %v1145 = vld [vmem:[%s1 + $0x22f0] sm:$0xff]
  %v1146 = vld [vmem:[%s1 + $0x22f8] sm:$0xff]
  %v1147 = vld [vmem:[%s1 + $0x2300] sm:$0xff]
  %v1148 = vld [vmem:[%s1 + $0x2308] sm:$0xff]
  %v1149 = vld [vmem:[%s1 + $0x2310] sm:$0xff]
  %v1150 = vld [vmem:[%s1 + $0x2318] sm:$0xff]
  %v1151 = vld [vmem:[%s1 + $0x2320] sm:$0xff]
  %v1152 = vld [vmem:[%s1 + $0x2328] sm:$0xff]
  %v1153 = vld [vmem:[%s1 + $0x2330] sm:$0xff]
  %v1154 = vld [vmem:[%s1 + $0x2338] sm:$0xff]
  %v1155 = vld [vmem:[%s1 + $0x2340] sm:$0xff]
  %v1156 = vld [vmem:[%s1 + $0x2348] sm:$0xff]
  %v1157 = vld [vmem:[%s1 + $0x2350] sm:$0xff]
  %v1158 = vld [vmem:[%s1 + $0x2358] sm:$0xff]
  %v1159 = vld [vmem:[%s1 + $0x2360] sm:$0xff]
  %v1160 = vld [vmem:[%s1 + $0x2368] sm:$0xff]
  %v1161 = vld [vmem:[%s1 + $0x2370] sm:$0xff]
  %v1162 = vld [vmem:[%s1 + $0x2378] sm:$0xff]
  %v1163 = vld [vmem:[%s1 + $0x2380] sm:$0xff]
  %v1164 = vld [vmem:[%s1 + $0x2388] sm:$0xff]
  %v1165 = vld [vmem:[%s1 + $0x2390] sm:$0xff]
  %v1166 = vld [vmem:[%s1 + $0x2398] sm:$0xff]
  %v1167 = vld [vmem:[%s1 + $0x23a0] sm:$0xff]
  %v1168 = vld [vmem:[%s1 + $0x23a8] sm:$0xff]
  %v1169 = vld [vmem:[%s1 + $0x23b0] sm:$0xff]
  %v1170 = vld [vmem:[%s1 + $0x23b8] sm:$0xff]
  %v1171 = vld [vmem:[%s1 + $0x23c0] sm:$0xff]
  %v1172 = vld [vmem:[%s1 + $0x23c8] sm:$0xff]
  %v1173 = vld [vmem:[%s1 + $0x23d0] sm:$0xff]
  %v1174 = vld [vmem:[%s1 + $0x23d8] sm:$0xff]
  %v1175 = vld [vmem:[%s1 + $0x23e0] sm:$0xff]
  %v1176 = vld [vmem:[%s1 + $0x23e8] sm:$0xff]
  %v1177 = vld [vmem:[%s1 + $0x23f0] sm:$0xff]
  %v1178 = vld [vmem:[%s1 + $0x23f8] sm:$0xff]
  %v1179 = vld [vmem:[%s1 + $0x2400] sm:$0xff]
  %v1180 = vld [vmem:[%s1 + $0x2408] sm:$0xff]
  %v1181 = vld [vmem:[%s1 + $0x2410] sm:$0xff]
  %v1182 = vld [vmem:[%s1 + $0x2418] sm:$0xff]
  %v1183 = vld [vmem:[%s1 + $0x2420] sm:$0xff]
  %v1184 = vld [vmem:[%s1 + $0x2428] sm:$0xff]
  %v1185 = vld [vmem:[%s1 + $0x2430] sm:$0xff]
  %v1186 = vld [vmem:[%s1 + $0x2438] sm:$0xff]
  %v1187 = vld [vmem:[%s1 + $0x2440] sm:$0xff]
  %v1188 = vld [vmem:[%s1 + $0x2448] sm:$0xff]
  %v1189 = vld [vmem:[%s1 + $0x2450] sm:$0xff]
  %v1190 = vld [vmem:[%s1 + $0x2458] sm:$0xff]
  %v1191 = vld [vmem:[%s1 + $0x2460] sm:$0xff]
  %v1192 = vld [vmem:[%s1 + $0x2468] sm:$0xff]
  %v1193 = vld [vmem:[%s1 + $0x2470] sm:$0xff]
  %v1194 = vld [vmem:[%s1 + $0x2478] sm:$0xff]
  %v1195 = vld [vmem:[%s1 + $0x2480] sm:$0xff]
  %v1196 = vld [vmem:[%s1 + $0x2488] sm:$0xff]
  %v1197 = vld [vmem:[%s1 + $0x2490] sm:$0xff]
  %v1198 = vld [vmem:[%s1 + $0x2498] sm:$0xff]
  %v1199 = vld [vmem:[%s1 + $0x24a0] sm:$0xff]
  %v1200 = vld [vmem:[%s1 + $0x24a8] sm:$0xff]
  %v1201 = vld [vmem:[%s1 + $0x24b0] sm:$0xff]
  %v1202 = vld [vmem:[%s1 + $0x24b8] sm:$0xff]
  %v1203 = vld [vmem:[%s1 + $0x24c0] sm:$0xff]
  %v1204 = vld [vmem:[%s1 + $0x24c8] sm:$0xff]
  %v1205 = vld [vmem:[%s1 + $0x24d0] sm:$0xff]
  %v1206 = vld [vmem:[%s1 + $0x24d8] sm:$0xff]
  %v1207 = vld [vmem:[%s1 + $0x24e0] sm:$0xff]
  %v1208 = vld [vmem:[%s1 + $0x24e8] sm:$0xff]
  %v1209 = vld [vmem:[%s1 + $0x24f0] sm:$0xff]
  %v1210 = vld [vmem:[%s1 + $0x24f8] sm:$0xff]
  %v1211 = vld [vmem:[%s1 + $0x2500] sm:$0xff]
  %v1212 = vld [vmem:[%s1 + $0x2508] sm:$0xff]
  %v1213 = vld [vmem:[%s1 + $0x2510] sm:$0xff]
  %v1214 = vld [vmem:[%s1 + $0x2518] sm:$0xff]
  %v1215 = vld [vmem:[%s1 + $0x2520] sm:$0xff]
  %v1216 = vld [vmem:[%s1 + $0x2528] sm:$0xff]
  %v1217 = vld [vmem:[%s1 + $0x2530] sm:$0xff]
  %v1218 = vld [vmem:[%s1 + $0x2538] sm:$0xff]
  %v1219 = vld [vmem:[%s1 + $0x2540] sm:$0xff]
  %v1220 = vld [vmem:[%s1 + $0x2548] sm:$0xff]
  %v1221 = vld [vmem:[%s1 + $0x2550] sm:$0xff]
  %v1222 = vld [vmem:[%s1 + $0x2558] sm:$0xff]
  %v1223 = vld [vmem:[%s1 + $0x2560] sm:$0xff]
  %v1224 = vld [vmem:[%s1 + $0x2568] sm:$0xff]
  %v1225 = vld [vmem:[%s1 + $0x2570] sm:$0xff]
  %v1226 = vld [vmem:[%s1 + $0x2578] sm:$0xff]
  %v1227 = vld [vmem:[%s1 + $0x2580] sm:$0xff]
  %v1228 = vld [vmem:[%s1 + $0x2588] sm:$0xff]
  %v1229 = vld [vmem:[%s1 + $0x2590] sm:$0xff]
  %v1230 = vld [vmem:[%s1 + $0x2598] sm:$0xff]
  %v1231 = vld [vmem:[%s1 + $0x25a0] sm:$0xff]
  %v1232 = vld [vmem:[%s1 + $0x25a8] sm:$0xff]
  %v1233 = vld [vmem:[%s1 + $0x25b0] sm:$0xff]
  %v1234 = vld [vmem:[%s1 + $0x25b8] sm:$0xff]
  %v1235 = vld [vmem:[%s1 + $0x25c0] sm:$0xff]
  %v1236 = vld [vmem:[%s1 + $0x25c8] sm:$0xff]
  %v1237 = vld [vmem:[%s1 + $0x25d0] sm:$0xff]
  %v1238 = vld [vmem:[%s1 + $0x25d8] sm:$0xff]
  %v1239 = vld [vmem:[%s1 + $0x25e0] sm:$0xff]
  %v1240 = vld [vmem:[%s1 + $0x25e8] sm:$0xff]
  %v1241 = vld [vmem:[%s1 + $0x25f0] sm:$0xff]
  %v1242 = vld [vmem:[%s1 + $0x25f8] sm:$0xff]
  %v1243 = vld [vmem:[%s1 + $0x2600] sm:$0xff]
  %v1244 = vld [vmem:[%s1 + $0x2608] sm:$0xff]
  %v1245 = vld [vmem:[%s1 + $0x2610] sm:$0xff]
  %v1246 = vld [vmem:[%s1 + $0x2618] sm:$0xff]
  %v1247 = vld [vmem:[%s1 + $0x2620] sm:$0xff]
  %v1248 = vld [vmem:[%s1 + $0x2628] sm:$0xff]
  %v1249 = vld [vmem:[%s1 + $0x2630] sm:$0xff]
  %v1250 = vld [vmem:[%s1 + $0x2638] sm:$0xff]
  %v1251 = vld [vmem:[%s1 + $0x2640] sm:$0xff]
  %v1252 = vld [vmem:[%s1 + $0x2648] sm:$0xff]
  %v1253 = vld [vmem:[%s1 + $0x2650] sm:$0xff]
  %v1254 = vld [vmem:[%s1 + $0x2658] sm:$0xff]
  %v1255 = vld [vmem:[%s1 + $0x2660] sm:$0xff]
  %v1256 = vld [vmem:[%s1 + $0x2668] sm:$0xff]
  %v1257 = vld [vmem:[%s1 + $0x2670] sm:$0xff]
  %v1258 = vld [vmem:[%s1 + $0x2678] sm:$0xff]
  %v1259 = vld [vmem:[%s1 + $0x2680] sm:$0xff]
  %v1260 = vld [vmem:[%s1 + $0x2688] sm:$0xff]
  %v1261 = vld [vmem:[%s1 + $0x2690] sm:$0xff]
  %v1262 = vld [vmem:[%s1 + $0x2698] sm:$0xff]
  %v1263 = vld [vmem:[%s1 + $0x26a0] sm:$0xff]
  %v1264 = vld [vmem:[%s1 + $0x26a8] sm:$0xff]
  %v1265 = vld [vmem:[%s1 + $0x26b0] sm:$0xff]
  %v1266 = vld [vmem:[%s1 + $0x26b8] sm:$0xff]
  %v1267 = vld [vmem:[%s1 + $0x26c0] sm:$0xff]
  %v1268 = vld [vmem:[%s1 + $0x26c8] sm:$0xff]
  %v1269 = vld [vmem:[%s1 + $0x26d0] sm:$0xff]
  %v1270 = vld [vmem:[%s1 + $0x26d8] sm:$0xff]
  %v1271 = vld [vmem:[%s1 + $0x26e0] sm:$0xff]
  %v1272 = vld [vmem:[%s1 + $0x26e8] sm:$0xff]
  %v1273 = vld [vmem:[%s1 + $0x26f0] sm:$0xff]
  %v1274 = vld [vmem:[%s1 + $0x26f8] sm:$0xff]
  %v1275 = vld [vmem:[%s1 + $0x2700] sm:$0xff]
  %v1276 = vld [vmem:[%s1 + $0x2708] sm:$0xff]
  %v1277 = vld [vmem:[%s1 + $0x2710] sm:$0xff]
  %v1278 = vld [vmem:[%s1 + $0x2718] sm:$0xff]
  %v1279 = vld [vmem:[%s1 + $0x2720] sm:$0xff]
  %v1280 = vld [vmem:[%s1 + $0x2728] sm:$0xff]
  %v1281 = vld [vmem:[%s1 + $0x2730] sm:$0xff]
  %v1282 = vld [vmem:[%s1 + $0x2738] sm:$0xff]
  %v1283 = vld [vmem:[%s1 + $0x2740] sm:$0xff]
  %v1284 = vld [vmem:[%s1 + $0x2748] sm:$0xff]
  %v1285 = vld [vmem:[%s1 + $0x2750] sm:$0xff]
  %v1286 = vld [vmem:[%s1 + $0x2758] sm:$0xff]
  %v1287 = vld [vmem:[%s1 + $0x2760] sm:$0xff]
  %v1288 = vld [vmem:[%s1 + $0x2768] sm:$0xff]
  %v1289 = vld [vmem:[%s1 + $0x2770] sm:$0xff]
  %v1290 = vld [vmem:[%s1 + $0x2778] sm:$0xff]
  %v1291 = vld [vmem:[%s1 + $0x2780] sm:$0xff]
  %v1292 = vld [vmem:[%s1 + $0x2788] sm:$0xff]
  %v1293 = vld [vmem:[%s1 + $0x2790] sm:$0xff]
  %v1294 = vld [vmem:[%s1 + $0x2798] sm:$0xff]
  %v1295 = vld [vmem:[%s1 + $0x27a0] sm:$0xff]
  %v1296 = vld [vmem:[%s1 + $0x27a8] sm:$0xff]
  %v1297 = vld [vmem:[%s1 + $0x27b0] sm:$0xff]
  %v1298 = vld [vmem:[%s1 + $0x27b8] sm:$0xff]
  %v1299 = vld [vmem:[%s1 + $0x27c0] sm:$0xff]
  %v1300 = vld [vmem:[%s1 + $0x27c8] sm:$0xff]
  %v1301 = vld [vmem:[%s1 + $0x27d0] sm:$0xff]
  %v1302 = vld [vmem:[%s1 + $0x27d8] sm:$0xff]
  %v1303 = vld [vmem:[%s1 + $0x27e0] sm:$0xff]
  %v1304 = vld [vmem:[%s1 + $0x27e8] sm:$0xff]
  %v1305 = vld [vmem:[%s1 + $0x27f0] sm:$0xff]
  %v1306 = vld [vmem:[%s1 + $0x27f8] sm:$0xff]
  %v1307 = vld [vmem:[%s1 + $0x2800] sm:$0xff]
  %v1308 = vld [vmem:[%s1 + $0x2808] sm:$0xff]
  %v1309 = vld [vmem:[%s1 + $0x2810] sm:$0xff]
  %v1310 = vld [vmem:[%s1 + $0x2818] sm:$0xff]
  %v1311 = vld [vmem:[%s1 + $0x2820] sm:$0xff]
  %v1312 = vld [vmem:[%s1 + $0x2828] sm:$0xff]
  %v1313 = vld [vmem:[%s1 + $0x2830] sm:$0xff]
  %v1314 = vld [vmem:[%s1 + $0x2838] sm:$0xff]
  %v1315 = vld [vmem:[%s1 + $0x2840] sm:$0xff]
  %v1316 = vld [vmem:[%s1 + $0x2848] sm:$0xff]
  %v1317 = vld [vmem:[%s1 + $0x2850] sm:$0xff]
  %v1318 = vld [vmem:[%s1 + $0x2858] sm:$0xff]
  %v1319 = vld [vmem:[%s1 + $0x2860] sm:$0xff]
  %v1320 = vld [vmem:[%s1 + $0x2868] sm:$0xff]
  %v1321 = vld [vmem:[%s1 + $0x2870] sm:$0xff]
  %v1322 = vld [vmem:[%s1 + $0x2878] sm:$0xff]
  %v1323 = vld [vmem:[%s2] sm:$0xff]
  %v1324 = vld [vmem:[%s2 + $0x8] sm:$0xff]
  %v1327 = vlaneseq
  %v1328 = vshrl.u32 %v1327, 7
  %v1329 = vsub.s32 0, %v1328
  %v1330 = vrot.slane %v1323, %v1329
  %v1331 = vlaneseq
  %v1332 = vshrl.u32 %v1331, 7
  %v1333 = vsub.s32 1, %v1332
  %v1334 = vrot.slane %v1323, %v1333
  %v1335 = vlaneseq
  %v1336 = vshrl.u32 %v1335, 7
  %v1337 = vsub.s32 2, %v1336
  %v1338 = vrot.slane %v1323, %v1337
  %v1339 = vlaneseq
  %v1340 = vshrl.u32 %v1339, 7
  %v1341 = vsub.s32 3, %v1340
  %v1342 = vrot.slane %v1323, %v1341
  %v1343 = vlaneseq
  %v1344 = vshrl.u32 %v1343, 7
  %v1345 = vsub.s32 4, %v1344
  %v1346 = vrot.slane %v1323, %v1345
  %v1347 = vlaneseq
  %v1348 = vshrl.u32 %v1347, 7
  %v1349 = vsub.s32 5, %v1348
  %v1350 = vrot.slane %v1323, %v1349
  %v1351 = vlaneseq
  %v1352 = vshrl.u32 %v1351, 7
  %v1353 = vsub.s32 6, %v1352
  %v1354 = vrot.slane %v1323, %v1353
  %v1355 = vlaneseq
  %v1356 = vshrl.u32 %v1355, 7
  %v1357 = vsub.s32 7, %v1356
  %v1358 = vrot.slane %v1323, %v1357
  %v1359 = vlaneseq
  %v1360 = vshrl.u32 %v1359, 7
  %v1361 = vsub.s32 0, %v1360
  %v1362 = vrot.slane %v1324, %v1361
  %v1363 = vlaneseq
  %v1364 = vshrl.u32 %v1363, 7
  %v1365 = vsub.s32 1, %v1364
  %v1366 = vrot.slane %v1324, %v1365
  %v1367 = vlaneseq
  %v1368 = vshrl.u32 %v1367, 7
  %v1369 = vsub.s32 2, %v1368
  %v1370 = vrot.slane %v1324, %v1369
  %v1371 = vlaneseq
  %v1372 = vshrl.u32 %v1371, 7
  %v1373 = vsub.s32 3, %v1372
  %v1374 = vrot.slane %v1324, %v1373
  %v1375 = vlaneseq
  %v1376 = vshrl.u32 %v1375, 7
  %v1377 = vsub.s32 4, %v1376
  %v1378 = vrot.slane %v1324, %v1377
  %v1379 = vlaneseq
  %v1380 = vshrl.u32 %v1379, 7
  %v1381 = vsub.s32 5, %v1380
  %v1382 = vrot.slane %v1324, %v1381
  %v1383 = vlaneseq
  %v1384 = vshrl.u32 %v1383, 7
  %v1385 = vsub.s32 6, %v1384
  %v1386 = vrot.slane %v1324, %v1385
  %v1387 = vlaneseq
  %v1388 = vshrl.u32 %v1387, 7
  %v1389 = vsub.s32 7, %v1388
  %v1390 = vrot.slane %v1324, %v1389
  %v1413 = vunpack.c.l.b16 %v21
  %v1414 = vunpack.c.h.b16 %v21
  %v1415 = vunpack.c.l.b16 %v22
  %v1416 = vunpack.c.h.b16 %v22
  %v1417 = vunpack.c.l.b16 %v23
  %v1418 = vunpack.c.h.b16 %v23
  %v1419 = vunpack.c.l.b16 %v24
  %v1420 = vunpack.c.h.b16 %v24
  %v1421 = vunpack.c.l.b16 %v25
  %v1422 = vunpack.c.h.b16 %v25
  %v1423 = vunpack.c.l.b16 %v26
  %v1424 = vpack.c.b16 %v1413, %v1413
  %v1425 = vpack.c.b16 %v1414, %v1414
  %v1426 = vpack.c.b16 %v1415, %v1415
  %v1427 = vpack.c.b16 %v1416, %v1416
  %v1428 = vpack.c.b16 %v1417, %v1417
  %v1429 = vpack.c.b16 %v1418, %v1418
  %v1430 = vpack.c.b16 %v1419, %v1419
  %v1431 = vpack.c.b16 %v1420, %v1420
  %v1432 = vpack.c.b16 %v1421, %v1421
  %v1433 = vpack.c.b16 %v1422, %v1422
  %v1434 = vpack.c.b16 %v1423, %v1423
  %v2741 = vunpack.c.l.b16 %v27
  %v2742 = vunpack.c.h.b16 %v27
  %v2743 = vunpack.c.l.b16 %v28
  %v2744 = vunpack.c.h.b16 %v28
  %v2745 = vunpack.c.l.b16 %v29
  %v2746 = vunpack.c.h.b16 %v29
  %v2747 = vunpack.c.l.b16 %v30
  %v2748 = vunpack.c.h.b16 %v30
  %v2749 = vunpack.c.l.b16 %v31
  %v2750 = vunpack.c.h.b16 %v31
  %v2751 = vunpack.c.l.b16 %v32
  %v2752 = vunpack.c.h.b16 %v32
  %v2753 = vunpack.c.l.b16 %v33
  %v2754 = vunpack.c.h.b16 %v33
  %v2755 = vunpack.c.l.b16 %v34
  %v2756 = vunpack.c.h.b16 %v34
  %v2757 = vunpack.c.l.b16 %v35
  %v2758 = vunpack.c.h.b16 %v35
  %v2759 = vunpack.c.l.b16 %v36
  %v2760 = vunpack.c.h.b16 %v36
  %v2761 = vunpack.c.l.b16 %v37
  %v2762 = vunpack.c.h.b16 %v37
  %v2763 = vunpack.c.l.b16 %v38
  %v2764 = vunpack.c.h.b16 %v38
  %v2765 = vunpack.c.l.b16 %v39
  %v2766 = vunpack.c.h.b16 %v39
  %v2767 = vunpack.c.l.b16 %v40
  %v2768 = vunpack.c.h.b16 %v40
  %v2769 = vunpack.c.l.b16 %v41
  %v2770 = vunpack.c.h.b16 %v41
  %v2771 = vunpack.c.l.b16 %v42
  %v2772 = vunpack.c.h.b16 %v42
  %v2773 = vunpack.c.l.b16 %v43
  %v2774 = vunpack.c.h.b16 %v43
  %v2775 = vunpack.c.l.b16 %v44
  %v2776 = vunpack.c.h.b16 %v44
  %v2777 = vunpack.c.l.b16 %v45
  %v2778 = vunpack.c.h.b16 %v45
  %v2779 = vunpack.c.l.b16 %v46
  %v2780 = vunpack.c.h.b16 %v46
  %v2781 = vunpack.c.l.b16 %v47
  %v2782 = vunpack.c.h.b16 %v47
  %v2783 = vunpack.c.l.b16 %v48
  %v2784 = vunpack.c.h.b16 %v48
  %v2785 = vunpack.c.l.b16 %v49
  %v2786 = vunpack.c.h.b16 %v49
  %v2787 = vunpack.c.l.b16 %v50
  %v2788 = vunpack.c.h.b16 %v50
  %v2789 = vunpack.c.l.b16 %v51
  %v2790 = vunpack.c.h.b16 %v51
  %v2791 = vunpack.c.l.b16 %v52
  %v2792 = vunpack.c.h.b16 %v52
  %v2793 = vunpack.c.l.b16 %v53
  %v2794 = vunpack.c.h.b16 %v53
  %v2795 = vunpack.c.l.b16 %v54
  %v2796 = vunpack.c.h.b16 %v54
  %v2797 = vunpack.c.l.b16 %v55
  %v2798 = vunpack.c.h.b16 %v55
  %v2799 = vunpack.c.l.b16 %v56
  %v2800 = vunpack.c.h.b16 %v56
  %v2801 = vunpack.c.l.b16 %v57
  %v2802 = vunpack.c.h.b16 %v57
  %v2803 = vunpack.c.l.b16 %v58
  %v2804 = vunpack.c.h.b16 %v58
  %v2805 = vunpack.c.l.b16 %v59
  %v2806 = vunpack.c.h.b16 %v59
  %v2807 = vunpack.c.l.b16 %v60
  %v2808 = vunpack.c.h.b16 %v60
  %v2809 = vunpack.c.l.b16 %v61
  %v2810 = vunpack.c.h.b16 %v61
  %v2811 = vunpack.c.l.b16 %v62
  %v2812 = vunpack.c.h.b16 %v62
  %v2813 = vunpack.c.l.b16 %v63
  %v2814 = vunpack.c.h.b16 %v63
  %v2815 = vunpack.c.l.b16 %v64
  %v2816 = vunpack.c.h.b16 %v64
  %v2817 = vunpack.c.l.b16 %v65
  %v2818 = vunpack.c.h.b16 %v65
  %v2819 = vunpack.c.l.b16 %v66
  %v2820 = vunpack.c.h.b16 %v66
  %v2821 = vunpack.c.l.b16 %v67
  %v2822 = vunpack.c.h.b16 %v67
  %v2823 = vunpack.c.l.b16 %v68
  %v2824 = vunpack.c.h.b16 %v68
  %v2825 = vunpack.c.l.b16 %v69
  %v2826 = vunpack.c.h.b16 %v69
  %v2827 = vunpack.c.l.b16 %v70
  %v2828 = vunpack.c.h.b16 %v70
  %v2829 = vunpack.c.l.b16 %v71
  %v2830 = vunpack.c.h.b16 %v71
  %v2831 = vunpack.c.l.b16 %v72
  %v2832 = vunpack.c.h.b16 %v72
  %v2833 = vunpack.c.l.b16 %v73
  %v2834 = vunpack.c.h.b16 %v73
  %v2835 = vunpack.c.l.b16 %v74
  %v2836 = vunpack.c.h.b16 %v74
  %v2837 = vunpack.c.l.b16 %v75
  %v2838 = vunpack.c.h.b16 %v75
  %v2839 = vunpack.c.l.b16 %v76
  %v2840 = vunpack.c.h.b16 %v76
  %v2841 = vunpack.c.l.b16 %v77
  %v2842 = vunpack.c.h.b16 %v77
  %v2843 = vunpack.c.l.b16 %v78
  %v2844 = vunpack.c.h.b16 %v78
  %v2845 = vunpack.c.l.b16 %v79
  %v2846 = vunpack.c.h.b16 %v79
  %v2847 = vunpack.c.l.b16 %v80
  %v2848 = vunpack.c.h.b16 %v80
  %v2849 = vunpack.c.l.b16 %v81
  %v2850 = vunpack.c.h.b16 %v81
  %v2851 = vunpack.c.l.b16 %v82
  %v2852 = vunpack.c.h.b16 %v82
  %v2853 = vunpack.c.l.b16 %v83
  %v2854 = vunpack.c.h.b16 %v83
  %v2855 = vunpack.c.l.b16 %v84
  %v2856 = vunpack.c.h.b16 %v84
  %v2857 = vunpack.c.l.b16 %v85
  %v2858 = vunpack.c.h.b16 %v85
  %v2859 = vunpack.c.l.b16 %v86
  %v2860 = vunpack.c.h.b16 %v86
  %v2861 = vunpack.c.l.b16 %v87
  %v2862 = vunpack.c.h.b16 %v87
  %v2863 = vunpack.c.l.b16 %v88
  %v2864 = vunpack.c.h.b16 %v88
  %v2865 = vunpack.c.l.b16 %v89
  %v2866 = vunpack.c.h.b16 %v89
  %v2867 = vunpack.c.l.b16 %v90
  %v2868 = vunpack.c.h.b16 %v90
  %v2869 = vunpack.c.l.b16 %v91
  %v2870 = vunpack.c.h.b16 %v91
  %v2871 = vunpack.c.l.b16 %v92
  %v2872 = vunpack.c.h.b16 %v92
  %v2873 = vunpack.c.l.b16 %v93
  %v2874 = vunpack.c.h.b16 %v93
  %v2875 = vunpack.c.l.b16 %v94
  %v2876 = vunpack.c.h.b16 %v94
  %v2877 = vunpack.c.l.b16 %v95
  %v2878 = vunpack.c.h.b16 %v95
  %v2879 = vunpack.c.l.b16 %v96
  %v2880 = vunpack.c.h.b16 %v96
  %v2881 = vunpack.c.l.b16 %v97
  %v2882 = vunpack.c.h.b16 %v97
  %v2883 = vunpack.c.l.b16 %v98
  %v2884 = vunpack.c.h.b16 %v98
  %v2885 = vunpack.c.l.b16 %v99
  %v2886 = vunpack.c.h.b16 %v99
  %v2887 = vunpack.c.l.b16 %v100
  %v2888 = vunpack.c.h.b16 %v100
  %v2889 = vunpack.c.l.b16 %v101
  %v2890 = vunpack.c.h.b16 %v101
  %v2891 = vunpack.c.l.b16 %v102
  %v2892 = vunpack.c.h.b16 %v102
  %v2893 = vunpack.c.l.b16 %v103
  %v2894 = vunpack.c.h.b16 %v103
  %v2895 = vunpack.c.l.b16 %v104
  %v2896 = vunpack.c.h.b16 %v104
  %v2897 = vunpack.c.l.b16 %v105
  %v2898 = vunpack.c.h.b16 %v105
  %v2899 = vunpack.c.l.b16 %v106
  %v2900 = vunpack.c.h.b16 %v106
  %v2901 = vunpack.c.l.b16 %v107
  %v2902 = vunpack.c.h.b16 %v107
  %v2903 = vunpack.c.l.b16 %v108
  %v2904 = vunpack.c.h.b16 %v108
  %v2905 = vunpack.c.l.b16 %v109
  %v2906 = vunpack.c.h.b16 %v109
  %v2907 = vunpack.c.l.b16 %v110
  %v2908 = vunpack.c.h.b16 %v110
  %v2909 = vunpack.c.l.b16 %v111
  %v2910 = vunpack.c.h.b16 %v111
  %v2911 = vunpack.c.l.b16 %v112
  %v2912 = vunpack.c.h.b16 %v112
  %v2913 = vunpack.c.l.b16 %v113
  %v2914 = vunpack.c.h.b16 %v113
  %v2915 = vunpack.c.l.b16 %v114
  %v2916 = vunpack.c.h.b16 %v114
  %v2917 = vunpack.c.l.b16 %v115
  %v2918 = vunpack.c.h.b16 %v115
  %v2919 = vunpack.c.l.b16 %v116
  %v2920 = vunpack.c.h.b16 %v116
  %v2921 = vunpack.c.l.b16 %v117
  %v2922 = vunpack.c.h.b16 %v117
  %v2923 = vunpack.c.l.b16 %v118
  %v2924 = vunpack.c.h.b16 %v118
  %v2925 = vunpack.c.l.b16 %v119
  %v2926 = vunpack.c.h.b16 %v119
  %v2927 = vunpack.c.l.b16 %v120
  %v2928 = vunpack.c.h.b16 %v120
  %v2929 = vunpack.c.l.b16 %v121
  %v2930 = vunpack.c.h.b16 %v121
  %v2931 = vunpack.c.l.b16 %v122
  %v2932 = vunpack.c.h.b16 %v122
  %v2933 = vunpack.c.l.b16 %v123
  %v2934 = vunpack.c.h.b16 %v123
  %v2935 = vunpack.c.l.b16 %v124
  %v2936 = vunpack.c.h.b16 %v124
  %v2937 = vunpack.c.l.b16 %v125
  %v2938 = vunpack.c.h.b16 %v125
  %v2939 = vunpack.c.l.b16 %v126
  %v2940 = vunpack.c.h.b16 %v126
  %v2941 = vunpack.c.l.b16 %v127
  %v2942 = vunpack.c.h.b16 %v127
  %v2943 = vunpack.c.l.b16 %v128
  %v2944 = vunpack.c.h.b16 %v128
  %v2945 = vunpack.c.l.b16 %v129
  %v2946 = vunpack.c.h.b16 %v129
  %v2947 = vunpack.c.l.b16 %v130
  %v2948 = vunpack.c.h.b16 %v130
  %v2949 = vunpack.c.l.b16 %v131
  %v2950 = vunpack.c.h.b16 %v131
  %v2951 = vunpack.c.l.b16 %v132
  %v2952 = vunpack.c.h.b16 %v132
  %v2953 = vunpack.c.l.b16 %v133
  %v2954 = vunpack.c.h.b16 %v133
  %v2955 = vunpack.c.l.b16 %v134
  %v2956 = vunpack.c.h.b16 %v134
  %v2957 = vunpack.c.l.b16 %v135
  %v2958 = vunpack.c.h.b16 %v135
  %v2959 = vunpack.c.l.b16 %v136
  %v2960 = vunpack.c.h.b16 %v136
  %v2961 = vunpack.c.l.b16 %v137
  %v2962 = vunpack.c.h.b16 %v137
  %v2963 = vunpack.c.l.b16 %v138
  %v2964 = vunpack.c.h.b16 %v138
  %v2965 = vunpack.c.l.b16 %v139
  %v2966 = vunpack.c.h.b16 %v139
  %v2967 = vunpack.c.l.b16 %v140
  %v2968 = vunpack.c.h.b16 %v140
  %v2969 = vunpack.c.l.b16 %v141
  %v2970 = vunpack.c.h.b16 %v141
  %v2971 = vunpack.c.l.b16 %v142
  %v2972 = vunpack.c.h.b16 %v142
  %v2973 = vunpack.c.l.b16 %v143
  %v2974 = vunpack.c.h.b16 %v143
  %v2975 = vunpack.c.l.b16 %v144
  %v2976 = vunpack.c.h.b16 %v144
  %v2977 = vunpack.c.l.b16 %v145
  %v2978 = vunpack.c.h.b16 %v145
  %v2979 = vunpack.c.l.b16 %v146
  %v2980 = vunpack.c.h.b16 %v146
  %v2981 = vunpack.c.l.b16 %v147
  %v2982 = vunpack.c.h.b16 %v147
  %v2983 = vunpack.c.l.b16 %v148
  %v2984 = vunpack.c.h.b16 %v148
  %v2985 = vunpack.c.l.b16 %v149
  %v2986 = vunpack.c.h.b16 %v149
  %v2987 = vunpack.c.l.b16 %v150
  %v2988 = vunpack.c.h.b16 %v150
  %v2989 = vunpack.c.l.b16 %v151
  %v2990 = vunpack.c.h.b16 %v151
  %v2991 = vunpack.c.l.b16 %v152
  %v2992 = vunpack.c.h.b16 %v152
  %v2993 = vunpack.c.l.b16 %v153
  %v2994 = vunpack.c.h.b16 %v153
  %v2995 = vunpack.c.l.b16 %v154
  %v2996 = vunpack.c.h.b16 %v154
  %v2997 = vunpack.c.l.b16 %v155
  %v2998 = vunpack.c.h.b16 %v155
  %v2999 = vunpack.c.l.b16 %v156
  %v3000 = vunpack.c.h.b16 %v156
  %v3001 = vunpack.c.l.b16 %v157
  %v3002 = vunpack.c.h.b16 %v157
  %v3003 = vunpack.c.l.b16 %v158
  %v3004 = vunpack.c.h.b16 %v158
  %v3005 = vunpack.c.l.b16 %v159
  %v3006 = vunpack.c.h.b16 %v159
  %v3007 = vunpack.c.l.b16 %v160
  %v3008 = vunpack.c.h.b16 %v160
  %v3009 = vunpack.c.l.b16 %v161
  %v3010 = vunpack.c.h.b16 %v161
  %v3011 = vunpack.c.l.b16 %v162
  %v3012 = vunpack.c.h.b16 %v162
  %v3013 = vunpack.c.l.b16 %v163
  %v3014 = vunpack.c.h.b16 %v163
  %v3015 = vunpack.c.l.b16 %v164
  %v3016 = vunpack.c.h.b16 %v164
  %v3017 = vunpack.c.l.b16 %v165
  %v3018 = vunpack.c.h.b16 %v165
  %v3019 = vunpack.c.l.b16 %v166
  %v3020 = vunpack.c.h.b16 %v166
  %v3021 = vunpack.c.l.b16 %v167
  %v3022 = vunpack.c.h.b16 %v167
  %v3023 = vunpack.c.l.b16 %v168
  %v3024 = vunpack.c.h.b16 %v168
  %v3025 = vunpack.c.l.b16 %v169
  %v3026 = vunpack.c.h.b16 %v169
  %v3027 = vunpack.c.l.b16 %v170
  %v3028 = vunpack.c.h.b16 %v170
  %v3029 = vunpack.c.l.b16 %v171
  %v3030 = vunpack.c.h.b16 %v171
  %v3031 = vunpack.c.l.b16 %v172
  %v3032 = vunpack.c.h.b16 %v172
  %v3033 = vunpack.c.l.b16 %v173
  %v3034 = vunpack.c.h.b16 %v173
  %v3035 = vunpack.c.l.b16 %v174
  %v3036 = vunpack.c.h.b16 %v174
  %v3037 = vunpack.c.l.b16 %v175
  %v3038 = vunpack.c.h.b16 %v175
  %v3039 = vunpack.c.l.b16 %v176
  %v3040 = vunpack.c.h.b16 %v176
  %v3041 = vunpack.c.l.b16 %v177
  %v3042 = vunpack.c.h.b16 %v177
  %v3043 = vunpack.c.l.b16 %v178
  %v3044 = vunpack.c.h.b16 %v178
  %v3045 = vunpack.c.l.b16 %v179
  %v3046 = vunpack.c.h.b16 %v179
  %v3047 = vunpack.c.l.b16 %v180
  %v3048 = vunpack.c.h.b16 %v180
  %v3049 = vunpack.c.l.b16 %v181
  %v3050 = vunpack.c.h.b16 %v181
  %v3051 = vunpack.c.l.b16 %v182
  %v3052 = vunpack.c.h.b16 %v182
  %v3053 = vunpack.c.l.b16 %v183
  %v3054 = vunpack.c.h.b16 %v183
  %v3055 = vunpack.c.l.b16 %v184
  %v3056 = vunpack.c.h.b16 %v184
  %v3057 = vunpack.c.l.b16 %v185
  %v3058 = vunpack.c.h.b16 %v185
  %v3059 = vunpack.c.l.b16 %v186
  %v3060 = vunpack.c.h.b16 %v186
  %v3061 = vunpack.c.l.b16 %v187
  %v3062 = vunpack.c.h.b16 %v187
  %v3063 = vunpack.c.l.b16 %v188
  %v3064 = vunpack.c.h.b16 %v188
  %v3065 = vunpack.c.l.b16 %v189
  %v3066 = vunpack.c.h.b16 %v189
  %v3067 = vunpack.c.l.b16 %v190
  %v3068 = vunpack.c.h.b16 %v190
  %v3069 = vunpack.c.l.b16 %v191
  %v3070 = vunpack.c.h.b16 %v191
  %v3071 = vunpack.c.l.b16 %v192
  %v3072 = vunpack.c.h.b16 %v192
  %v3073 = vunpack.c.l.b16 %v193
  %v3074 = vunpack.c.h.b16 %v193
  %v3075 = vunpack.c.l.b16 %v194
  %v3076 = vunpack.c.h.b16 %v194
  %v3077 = vunpack.c.l.b16 %v195
  %v3078 = vunpack.c.h.b16 %v195
  %v3079 = vunpack.c.l.b16 %v196
  %v3080 = vunpack.c.h.b16 %v196
  %v3081 = vunpack.c.l.b16 %v197
  %v3082 = vunpack.c.h.b16 %v197
  %v3083 = vunpack.c.l.b16 %v198
  %v3084 = vunpack.c.h.b16 %v198
  %v3085 = vunpack.c.l.b16 %v199
  %v3086 = vunpack.c.h.b16 %v199
  %v3087 = vunpack.c.l.b16 %v200
  %v3088 = vunpack.c.h.b16 %v200
  %v3089 = vunpack.c.l.b16 %v201
  %v3090 = vunpack.c.h.b16 %v201
  %v3091 = vunpack.c.l.b16 %v202
  %v3092 = vunpack.c.h.b16 %v202
  %v3093 = vunpack.c.l.b16 %v203
  %v3094 = vunpack.c.h.b16 %v203
  %v3095 = vunpack.c.l.b16 %v204
  %v3096 = vunpack.c.h.b16 %v204
  %v3097 = vunpack.c.l.b16 %v205
  %v3098 = vunpack.c.h.b16 %v205
  %v3099 = vunpack.c.l.b16 %v206
  %v3100 = vunpack.c.h.b16 %v206
  %v3101 = vunpack.c.l.b16 %v207
  %v3102 = vunpack.c.h.b16 %v207
  %v3103 = vunpack.c.l.b16 %v208
  %v3104 = vunpack.c.h.b16 %v208
  %v3105 = vunpack.c.l.b16 %v209
  %v3106 = vunpack.c.h.b16 %v209
  %v3107 = vunpack.c.l.b16 %v210
  %v3108 = vunpack.c.h.b16 %v210
  %v3109 = vunpack.c.l.b16 %v211
  %v3110 = vunpack.c.h.b16 %v211
  %v3111 = vunpack.c.l.b16 %v212
  %v3112 = vunpack.c.h.b16 %v212
  %v3113 = vunpack.c.l.b16 %v213
  %v3114 = vunpack.c.h.b16 %v213
  %v3115 = vunpack.c.l.b16 %v214
  %v3116 = vunpack.c.h.b16 %v214
  %v3117 = vunpack.c.l.b16 %v215
  %v3118 = vunpack.c.h.b16 %v215
  %v3119 = vunpack.c.l.b16 %v216
  %v3120 = vunpack.c.h.b16 %v216
  %v3121 = vunpack.c.l.b16 %v217
  %v3122 = vunpack.c.h.b16 %v217
  %v3123 = vunpack.c.l.b16 %v218
  %v3124 = vunpack.c.h.b16 %v218
  %v3125 = vunpack.c.l.b16 %v219
  %v3126 = vunpack.c.h.b16 %v219
  %v3127 = vunpack.c.l.b16 %v220
  %v3128 = vunpack.c.h.b16 %v220
  %v3129 = vunpack.c.l.b16 %v221
  %v3130 = vunpack.c.h.b16 %v221
  %v3131 = vunpack.c.l.b16 %v222
  %v3132 = vunpack.c.h.b16 %v222
  %v3133 = vunpack.c.l.b16 %v223
  %v3134 = vunpack.c.h.b16 %v223
  %v3135 = vunpack.c.l.b16 %v224
  %v3136 = vunpack.c.h.b16 %v224
  %v3137 = vunpack.c.l.b16 %v225
  %v3138 = vunpack.c.h.b16 %v225
  %v3139 = vunpack.c.l.b16 %v226
  %v3140 = vunpack.c.h.b16 %v226
  %v3141 = vunpack.c.l.b16 %v227
  %v3142 = vunpack.c.h.b16 %v227
  %v3143 = vunpack.c.l.b16 %v228
  %v3144 = vunpack.c.h.b16 %v228
  %v3145 = vunpack.c.l.b16 %v229
  %v3146 = vunpack.c.h.b16 %v229
  %v3147 = vunpack.c.l.b16 %v230
  %v3148 = vunpack.c.h.b16 %v230
  %v3149 = vunpack.c.l.b16 %v231
  %v3150 = vunpack.c.h.b16 %v231
  %v3151 = vunpack.c.l.b16 %v232
  %v3152 = vunpack.c.h.b16 %v232
  %v3153 = vunpack.c.l.b16 %v233
  %v3154 = vunpack.c.h.b16 %v233
  %v3155 = vunpack.c.l.b16 %v234
  %v3156 = vunpack.c.h.b16 %v234
  %v3157 = vunpack.c.l.b16 %v235
  %v3158 = vunpack.c.h.b16 %v235
  %v3159 = vunpack.c.l.b16 %v236
  %v3160 = vunpack.c.h.b16 %v236
  %v3161 = vunpack.c.l.b16 %v237
  %v3162 = vunpack.c.h.b16 %v237
  %v3163 = vunpack.c.l.b16 %v238
  %v3164 = vunpack.c.h.b16 %v238
  %v3165 = vunpack.c.l.b16 %v239
  %v3166 = vunpack.c.h.b16 %v239
  %v3167 = vunpack.c.l.b16 %v240
  %v3168 = vunpack.c.h.b16 %v240
  %v3169 = vunpack.c.l.b16 %v241
  %v3170 = vunpack.c.h.b16 %v241
  %v3171 = vunpack.c.l.b16 %v242
  %v3172 = vunpack.c.h.b16 %v242
  %v3173 = vunpack.c.l.b16 %v243
  %v3174 = vunpack.c.h.b16 %v243
  %v3175 = vunpack.c.l.b16 %v244
  %v3176 = vunpack.c.h.b16 %v244
  %v3177 = vunpack.c.l.b16 %v245
  %v3178 = vunpack.c.h.b16 %v245
  %v3179 = vunpack.c.l.b16 %v246
  %v3180 = vunpack.c.h.b16 %v246
  %v3181 = vunpack.c.l.b16 %v247
  %v3182 = vunpack.c.h.b16 %v247
  %v3183 = vunpack.c.l.b16 %v248
  %v3184 = vunpack.c.h.b16 %v248
  %v3185 = vunpack.c.l.b16 %v249
  %v3186 = vunpack.c.h.b16 %v249
  %v3187 = vunpack.c.l.b16 %v250
  %v3188 = vunpack.c.h.b16 %v250
  %v3189 = vunpack.c.l.b16 %v251
  %v3190 = vunpack.c.h.b16 %v251
  %v3191 = vunpack.c.l.b16 %v252
  %v3192 = vunpack.c.h.b16 %v252
  %v3193 = vunpack.c.l.b16 %v253
  %v3194 = vunpack.c.h.b16 %v253
  %v3195 = vunpack.c.l.b16 %v254
  %v3196 = vunpack.c.h.b16 %v254
  %v3197 = vunpack.c.l.b16 %v255
  %v3198 = vunpack.c.h.b16 %v255
  %v3199 = vunpack.c.l.b16 %v256
  %v3200 = vunpack.c.h.b16 %v256
  %v3201 = vunpack.c.l.b16 %v257
  %v3202 = vunpack.c.h.b16 %v257
  %v3203 = vunpack.c.l.b16 %v258
  %v3204 = vunpack.c.h.b16 %v258
  %v3205 = vunpack.c.l.b16 %v259
  %v3206 = vunpack.c.h.b16 %v259
  %v3207 = vunpack.c.l.b16 %v260
  %v3208 = vunpack.c.h.b16 %v260
  %v3209 = vunpack.c.l.b16 %v261
  %v3210 = vunpack.c.h.b16 %v261
  %v3211 = vunpack.c.l.b16 %v262
  %v3212 = vunpack.c.h.b16 %v262
  %v3213 = vunpack.c.l.b16 %v263
  %v3214 = vunpack.c.h.b16 %v263
  %v3215 = vunpack.c.l.b16 %v264
  %v3216 = vunpack.c.h.b16 %v264
  %v3217 = vunpack.c.l.b16 %v265
  %v3218 = vunpack.c.h.b16 %v265
  %v3219 = vunpack.c.l.b16 %v266
  %v3220 = vunpack.c.h.b16 %v266
  %v3221 = vunpack.c.l.b16 %v267
  %v3222 = vunpack.c.h.b16 %v267
  %v3223 = vunpack.c.l.b16 %v268
  %v3224 = vunpack.c.h.b16 %v268
  %v3225 = vunpack.c.l.b16 %v269
  %v3226 = vunpack.c.h.b16 %v269
  %v3227 = vunpack.c.l.b16 %v270
  %v3228 = vunpack.c.h.b16 %v270
  %v3229 = vunpack.c.l.b16 %v271
  %v3230 = vunpack.c.h.b16 %v271
  %v3231 = vunpack.c.l.b16 %v272
  %v3232 = vunpack.c.h.b16 %v272
  %v3233 = vunpack.c.l.b16 %v273
  %v3234 = vunpack.c.h.b16 %v273
  %v3235 = vunpack.c.l.b16 %v274
  %v3236 = vunpack.c.h.b16 %v274
  %v3237 = vunpack.c.l.b16 %v275
  %v3238 = vunpack.c.h.b16 %v275
  %v3239 = vunpack.c.l.b16 %v276
  %v3240 = vunpack.c.h.b16 %v276
  %v3241 = vunpack.c.l.b16 %v277
  %v3242 = vunpack.c.h.b16 %v277
  %v3243 = vunpack.c.l.b16 %v278
  %v3244 = vunpack.c.h.b16 %v278
  %v3245 = vunpack.c.l.b16 %v279
  %v3246 = vunpack.c.h.b16 %v279
  %v3247 = vunpack.c.l.b16 %v280
  %v3248 = vunpack.c.h.b16 %v280
  %v3249 = vunpack.c.l.b16 %v281
  %v3250 = vunpack.c.h.b16 %v281
  %v3251 = vunpack.c.l.b16 %v282
  %v3252 = vunpack.c.h.b16 %v282
  %v3253 = vunpack.c.l.b16 %v283
  %v3254 = vunpack.c.h.b16 %v283
  %v3255 = vunpack.c.l.b16 %v284
  %v3256 = vunpack.c.h.b16 %v284
  %v3257 = vunpack.c.l.b16 %v285
  %v3258 = vunpack.c.h.b16 %v285
  %v3259 = vunpack.c.l.b16 %v286
  %v3260 = vunpack.c.h.b16 %v286
  %v3261 = vunpack.c.l.b16 %v287
  %v3262 = vunpack.c.h.b16 %v287
  %v3263 = vunpack.c.l.b16 %v288
  %v3264 = vunpack.c.h.b16 %v288
  %v3265 = vunpack.c.l.b16 %v289
  %v3266 = vunpack.c.h.b16 %v289
  %v3267 = vunpack.c.l.b16 %v290
  %v3268 = vunpack.c.h.b16 %v290
  %v3269 = vunpack.c.l.b16 %v291
  %v3270 = vunpack.c.h.b16 %v291
  %v3271 = vunpack.c.l.b16 %v292
  %v3272 = vunpack.c.h.b16 %v292
  %v3273 = vunpack.c.l.b16 %v293
  %v3274 = vunpack.c.h.b16 %v293
  %v3275 = vunpack.c.l.b16 %v294
  %v3276 = vunpack.c.h.b16 %v294
  %v3277 = vunpack.c.l.b16 %v295
  %v3278 = vunpack.c.h.b16 %v295
  %v3279 = vunpack.c.l.b16 %v296
  %v3280 = vunpack.c.h.b16 %v296
  %v3281 = vunpack.c.l.b16 %v297
  %v3282 = vunpack.c.h.b16 %v297
  %v3283 = vunpack.c.l.b16 %v298
  %v3284 = vunpack.c.h.b16 %v298
  %v3285 = vunpack.c.l.b16 %v299
  %v3286 = vunpack.c.h.b16 %v299
  %v3287 = vunpack.c.l.b16 %v300
  %v3288 = vunpack.c.h.b16 %v300
  %v3289 = vunpack.c.l.b16 %v301
  %v3290 = vunpack.c.h.b16 %v301
  %v3291 = vunpack.c.l.b16 %v302
  %v3292 = vunpack.c.h.b16 %v302
  %v3293 = vunpack.c.l.b16 %v303
  %v3294 = vunpack.c.h.b16 %v303
  %v3295 = vunpack.c.l.b16 %v304
  %v3296 = vunpack.c.h.b16 %v304
  %v3297 = vunpack.c.l.b16 %v305
  %v3298 = vunpack.c.h.b16 %v305
  %v3299 = vunpack.c.l.b16 %v306
  %v3300 = vunpack.c.h.b16 %v306
  %v3301 = vunpack.c.l.b16 %v307
  %v3302 = vunpack.c.h.b16 %v307
  %v3303 = vunpack.c.l.b16 %v308
  %v3304 = vunpack.c.h.b16 %v308
  %v3305 = vunpack.c.l.b16 %v309
  %v3306 = vunpack.c.h.b16 %v309
  %v3307 = vunpack.c.l.b16 %v310
  %v3308 = vunpack.c.h.b16 %v310
  %v3309 = vunpack.c.l.b16 %v311
  %v3310 = vunpack.c.h.b16 %v311
  %v3311 = vunpack.c.l.b16 %v312
  %v3312 = vunpack.c.h.b16 %v312
  %v3313 = vunpack.c.l.b16 %v313
  %v3314 = vunpack.c.h.b16 %v313
  %v3315 = vunpack.c.l.b16 %v314
  %v3316 = vunpack.c.h.b16 %v314
  %v3317 = vunpack.c.l.b16 %v315
  %v3318 = vunpack.c.h.b16 %v315
  %v3319 = vunpack.c.l.b16 %v316
  %v3320 = vunpack.c.h.b16 %v316
  %v3321 = vunpack.c.l.b16 %v317
  %v3322 = vunpack.c.h.b16 %v317
  %v3323 = vunpack.c.l.b16 %v318
  %v3324 = vunpack.c.h.b16 %v318
  %v3325 = vunpack.c.l.b16 %v319
  %v3326 = vunpack.c.h.b16 %v319
  %v3327 = vunpack.c.l.b16 %v320
  %v3328 = vunpack.c.h.b16 %v320
  %v3329 = vunpack.c.l.b16 %v321
  %v3330 = vunpack.c.h.b16 %v321
  %v3331 = vunpack.c.l.b16 %v322
  %v3332 = vunpack.c.h.b16 %v322
  %v3333 = vunpack.c.l.b16 %v323
  %v3334 = vunpack.c.h.b16 %v323
  %v3335 = vunpack.c.l.b16 %v324
  %v3336 = vunpack.c.h.b16 %v324
  %v3337 = vunpack.c.l.b16 %v325
  %v3338 = vunpack.c.h.b16 %v325
  %v3339 = vunpack.c.l.b16 %v326
  %v3340 = vunpack.c.h.b16 %v326
  %v3341 = vunpack.c.l.b16 %v327
  %v3342 = vunpack.c.h.b16 %v327
  %v3343 = vunpack.c.l.b16 %v328
  %v3344 = vunpack.c.h.b16 %v328
  %v3345 = vunpack.c.l.b16 %v329
  %v3346 = vunpack.c.h.b16 %v329
  %v3347 = vunpack.c.l.b16 %v330
  %v3348 = vunpack.c.h.b16 %v330
  %v3349 = vunpack.c.l.b16 %v331
  %v3350 = vunpack.c.h.b16 %v331
  %v3351 = vunpack.c.l.b16 %v332
  %v3352 = vunpack.c.h.b16 %v332
  %v3353 = vunpack.c.l.b16 %v333
  %v3354 = vunpack.c.h.b16 %v333
  %v3355 = vunpack.c.l.b16 %v334
  %v3356 = vunpack.c.h.b16 %v334
  %v3357 = vunpack.c.l.b16 %v335
  %v3358 = vunpack.c.h.b16 %v335
  %v3359 = vunpack.c.l.b16 %v336
  %v3360 = vunpack.c.h.b16 %v336
  %v3361 = vunpack.c.l.b16 %v337
  %v3362 = vunpack.c.h.b16 %v337
  %v3363 = vunpack.c.l.b16 %v338
  %v3364 = vunpack.c.h.b16 %v338
  %v3365 = vunpack.c.l.b16 %v339
  %v3366 = vunpack.c.h.b16 %v339
  %v3367 = vunpack.c.l.b16 %v340
  %v3368 = vunpack.c.h.b16 %v340
  %v3369 = vunpack.c.l.b16 %v341
  %v3370 = vunpack.c.h.b16 %v341
  %v3371 = vunpack.c.l.b16 %v342
  %v3372 = vunpack.c.h.b16 %v342
  %v3373 = vunpack.c.l.b16 %v343
  %v3374 = vunpack.c.h.b16 %v343
  %v3375 = vunpack.c.l.b16 %v344
  %v3376 = vunpack.c.h.b16 %v344
  %v3377 = vunpack.c.l.b16 %v345
  %v3378 = vunpack.c.h.b16 %v345
  %v3379 = vunpack.c.l.b16 %v346
  %v3380 = vunpack.c.h.b16 %v346
  %v3381 = vunpack.c.l.b16 %v347
  %v3382 = vunpack.c.h.b16 %v347
  %v3383 = vunpack.c.l.b16 %v348
  %v3384 = vunpack.c.h.b16 %v348
  %v3385 = vunpack.c.l.b16 %v349
  %v3386 = vunpack.c.h.b16 %v349
  %v3387 = vunpack.c.l.b16 %v350
  %v3388 = vunpack.c.h.b16 %v350
  %v3389 = vunpack.c.l.b16 %v351
  %v3390 = vunpack.c.h.b16 %v351
  %v3391 = vunpack.c.l.b16 %v352
  %v3392 = vunpack.c.h.b16 %v352
  %v3393 = vunpack.c.l.b16 %v353
  %v3394 = vunpack.c.h.b16 %v353
  %v3395 = vunpack.c.l.b16 %v354
  %v3396 = vunpack.c.h.b16 %v354
  %v3397 = vunpack.c.l.b16 %v355
  %v3398 = vunpack.c.h.b16 %v355
  %v3399 = vunpack.c.l.b16 %v356
  %v3400 = vunpack.c.h.b16 %v356
  %v3401 = vunpack.c.l.b16 %v357
  %v3402 = vunpack.c.h.b16 %v357
  %v3403 = vunpack.c.l.b16 %v358
  %v3404 = vunpack.c.h.b16 %v358
  %v3405 = vunpack.c.l.b16 %v359
  %v3406 = vunpack.c.h.b16 %v359
  %v3407 = vunpack.c.l.b16 %v360
  %v3408 = vunpack.c.h.b16 %v360
  %v3409 = vunpack.c.l.b16 %v361
  %v3410 = vunpack.c.h.b16 %v361
  %v3411 = vunpack.c.l.b16 %v362
  %v3412 = vunpack.c.h.b16 %v362
  %v3413 = vunpack.c.l.b16 %v363
  %v3414 = vunpack.c.h.b16 %v363
  %v3415 = vunpack.c.l.b16 %v364
  %v3416 = vunpack.c.h.b16 %v364
  %v3417 = vunpack.c.l.b16 %v365
  %v3418 = vunpack.c.h.b16 %v365
  %v3419 = vunpack.c.l.b16 %v366
  %v3420 = vunpack.c.h.b16 %v366
  %v3421 = vunpack.c.l.b16 %v367
  %v3422 = vunpack.c.h.b16 %v367
  %v3423 = vunpack.c.l.b16 %v368
  %v3424 = vunpack.c.h.b16 %v368
  %v3425 = vunpack.c.l.b16 %v369
  %v3426 = vunpack.c.h.b16 %v369
  %v3427 = vunpack.c.l.b16 %v370
  %v3428 = vunpack.c.h.b16 %v370
  %v3429 = vunpack.c.l.b16 %v371
  %v3430 = vunpack.c.h.b16 %v371
  %v3431 = vunpack.c.l.b16 %v372
  %v3432 = vunpack.c.h.b16 %v372
  %v3433 = vunpack.c.l.b16 %v373
  %v3434 = vunpack.c.h.b16 %v373
  %v3435 = vunpack.c.l.b16 %v374
  %v3436 = vunpack.c.h.b16 %v374
  %v3437 = vunpack.c.l.b16 %v375
  %v3438 = vunpack.c.h.b16 %v375
  %v3439 = vunpack.c.l.b16 %v376
  %v3440 = vunpack.c.h.b16 %v376
  %v3441 = vunpack.c.l.b16 %v377
  %v3442 = vunpack.c.h.b16 %v377
  %v3443 = vunpack.c.l.b16 %v378
  %v3444 = vunpack.c.h.b16 %v378
  %v3445 = vunpack.c.l.b16 %v379
  %v3446 = vunpack.c.h.b16 %v379
  %v3447 = vunpack.c.l.b16 %v380
  %v3448 = vunpack.c.h.b16 %v380
  %v3449 = vunpack.c.l.b16 %v381
  %v3450 = vunpack.c.h.b16 %v381
  %v3451 = vunpack.c.l.b16 %v382
  %v3452 = vunpack.c.h.b16 %v382
  %v3453 = vunpack.c.l.b16 %v383
  %v3454 = vunpack.c.h.b16 %v383
  %v3455 = vunpack.c.l.b16 %v384
  %v3456 = vunpack.c.h.b16 %v384
  %v3457 = vunpack.c.l.b16 %v385
  %v3458 = vunpack.c.h.b16 %v385
  %v3459 = vunpack.c.l.b16 %v386
  %v3460 = vunpack.c.h.b16 %v386
  %v3461 = vunpack.c.l.b16 %v387
  %v3462 = vunpack.c.h.b16 %v387
  %v3463 = vunpack.c.l.b16 %v388
  %v3464 = vunpack.c.h.b16 %v388
  %v3465 = vunpack.c.l.b16 %v389
  %v3466 = vunpack.c.h.b16 %v389
  %v3467 = vunpack.c.l.b16 %v390
  %v3468 = vunpack.c.h.b16 %v390
  %v3469 = vunpack.c.l.b16 %v391
  %v3470 = vunpack.c.h.b16 %v391
  %v3471 = vunpack.c.l.b16 %v392
  %v3472 = vunpack.c.h.b16 %v392
  %v3473 = vunpack.c.l.b16 %v393
  %v3474 = vunpack.c.h.b16 %v393
  %v3475 = vunpack.c.l.b16 %v394
  %v3476 = vunpack.c.h.b16 %v394
  %v3477 = vunpack.c.l.b16 %v395
  %v3478 = vunpack.c.h.b16 %v395
  %v3479 = vunpack.c.l.b16 %v396
  %v3480 = vunpack.c.h.b16 %v396
  %v3481 = vunpack.c.l.b16 %v397
  %v3482 = vunpack.c.h.b16 %v397
  %v3483 = vunpack.c.l.b16 %v398
  %v3484 = vunpack.c.h.b16 %v398
  %v3485 = vunpack.c.l.b16 %v399
  %v3486 = vunpack.c.h.b16 %v399
  %v3487 = vunpack.c.l.b16 %v400
  %v3488 = vunpack.c.h.b16 %v400
  %v3489 = vunpack.c.l.b16 %v401
  %v3490 = vunpack.c.h.b16 %v401
  %v3491 = vunpack.c.l.b16 %v402
  %v3492 = vunpack.c.h.b16 %v402
  %v3493 = vunpack.c.l.b16 %v403
  %v3494 = vunpack.c.h.b16 %v403
  %v3495 = vunpack.c.l.b16 %v404
  %v3496 = vunpack.c.h.b16 %v404
  %v3497 = vunpack.c.l.b16 %v405
  %v3498 = vunpack.c.h.b16 %v405
  %v3499 = vunpack.c.l.b16 %v406
  %v3500 = vunpack.c.h.b16 %v406
  %v3501 = vunpack.c.l.b16 %v407
  %v3502 = vunpack.c.h.b16 %v407
  %v3503 = vunpack.c.l.b16 %v408
  %v3504 = vunpack.c.h.b16 %v408
  %v3505 = vunpack.c.l.b16 %v409
  %v3506 = vunpack.c.h.b16 %v409
  %v3507 = vunpack.c.l.b16 %v410
  %v3508 = vunpack.c.h.b16 %v410
  %v3509 = vunpack.c.l.b16 %v411
  %v3510 = vunpack.c.h.b16 %v411
  %v3511 = vunpack.c.l.b16 %v412
  %v3512 = vunpack.c.h.b16 %v412
  %v3513 = vunpack.c.l.b16 %v413
  %v3514 = vunpack.c.h.b16 %v413
  %v3515 = vunpack.c.l.b16 %v414
  %v3516 = vunpack.c.h.b16 %v414
  %v3517 = vunpack.c.l.b16 %v415
  %v3518 = vunpack.c.h.b16 %v415
  %v3519 = vunpack.c.l.b16 %v416
  %v3520 = vunpack.c.h.b16 %v416
  %v3521 = vunpack.c.l.b16 %v417
  %v3522 = vunpack.c.h.b16 %v417
  %v3523 = vunpack.c.l.b16 %v418
  %v3524 = vunpack.c.h.b16 %v418
  %v3525 = vunpack.c.l.b16 %v419
  %v3526 = vunpack.c.h.b16 %v419
  %v3527 = vunpack.c.l.b16 %v420
  %v3528 = vunpack.c.h.b16 %v420
  %v3529 = vunpack.c.l.b16 %v421
  %v3530 = vunpack.c.h.b16 %v421
  %v3531 = vunpack.c.l.b16 %v422
  %v3532 = vunpack.c.h.b16 %v422
  %v3533 = vunpack.c.l.b16 %v423
  %v3534 = vunpack.c.h.b16 %v423
  %v3535 = vunpack.c.l.b16 %v424
  %v3536 = vunpack.c.h.b16 %v424
  %v3537 = vunpack.c.l.b16 %v425
  %v3538 = vunpack.c.h.b16 %v425
  %v3539 = vunpack.c.l.b16 %v426
  %v3540 = vunpack.c.h.b16 %v426
  %v3541 = vunpack.c.l.b16 %v427
  %v3542 = vunpack.c.h.b16 %v427
  %v3543 = vunpack.c.l.b16 %v428
  %v3544 = vunpack.c.h.b16 %v428
  %v3545 = vunpack.c.l.b16 %v429
  %v3546 = vunpack.c.h.b16 %v429
  %v3547 = vunpack.c.l.b16 %v430
  %v3548 = vunpack.c.h.b16 %v430
  %v3549 = vunpack.c.l.b16 %v431
  %v3550 = vunpack.c.h.b16 %v431
  %v3551 = vunpack.c.l.b16 %v432
  %v3552 = vunpack.c.h.b16 %v432
  %v3553 = vunpack.c.l.b16 %v433
  %v3554 = vunpack.c.h.b16 %v433
  %v3555 = vunpack.c.l.b16 %v434
  %v3556 = vunpack.c.h.b16 %v434
  %v3557 = vunpack.c.l.b16 %v435
  %v3558 = vunpack.c.h.b16 %v435
  %v3559 = vunpack.c.l.b16 %v436
  %v3560 = vunpack.c.h.b16 %v436
  %v3561 = vunpack.c.l.b16 %v437
  %v3562 = vunpack.c.h.b16 %v437
  %v3563 = vunpack.c.l.b16 %v438
  %v3564 = vunpack.c.h.b16 %v438
  %v3565 = vunpack.c.l.b16 %v439
  %v3566 = vunpack.c.h.b16 %v439
  %v3567 = vunpack.c.l.b16 %v440
  %v3568 = vunpack.c.h.b16 %v440
  %v3569 = vunpack.c.l.b16 %v441
  %v3570 = vunpack.c.h.b16 %v441
  %v3571 = vunpack.c.l.b16 %v442
  %v3572 = vunpack.c.h.b16 %v442
  %v3573 = vunpack.c.l.b16 %v443
  %v3574 = vunpack.c.h.b16 %v443
  %v3575 = vunpack.c.l.b16 %v444
  %v3576 = vunpack.c.h.b16 %v444
  %v3577 = vunpack.c.l.b16 %v445
  %v3578 = vunpack.c.h.b16 %v445
  %v3579 = vunpack.c.l.b16 %v446
  %v3580 = vunpack.c.h.b16 %v446
  %v3581 = vunpack.c.l.b16 %v447
  %v3582 = vunpack.c.h.b16 %v447
  %v3583 = vunpack.c.l.b16 %v448
  %v3584 = vunpack.c.h.b16 %v448
  %v3585 = vunpack.c.l.b16 %v449
  %v3586 = vunpack.c.h.b16 %v449
  %v3587 = vunpack.c.l.b16 %v450
  %v3588 = vunpack.c.h.b16 %v450
  %v3589 = vunpack.c.l.b16 %v451
  %v3590 = vunpack.c.h.b16 %v451
  %v3591 = vunpack.c.l.b16 %v452
  %v3592 = vunpack.c.h.b16 %v452
  %v3593 = vunpack.c.l.b16 %v453
  %v3594 = vunpack.c.h.b16 %v453
  %v3595 = vunpack.c.l.b16 %v454
  %v3596 = vunpack.c.h.b16 %v454
  %v3597 = vunpack.c.l.b16 %v455
  %v3598 = vunpack.c.h.b16 %v455
  %v3599 = vunpack.c.l.b16 %v456
  %v3600 = vunpack.c.h.b16 %v456
  %v3601 = vunpack.c.l.b16 %v457
  %v3602 = vunpack.c.h.b16 %v457
  %v3603 = vunpack.c.l.b16 %v458
  %v3604 = vunpack.c.h.b16 %v458
  %v3605 = vunpack.c.l.b16 %v459
  %v3606 = vunpack.c.h.b16 %v459
  %v3607 = vunpack.c.l.b16 %v460
  %v3608 = vunpack.c.h.b16 %v460
  %v3609 = vunpack.c.l.b16 %v461
  %v3610 = vunpack.c.h.b16 %v461
  %v3611 = vunpack.c.l.b16 %v462
  %v3612 = vunpack.c.h.b16 %v462
  %v3613 = vunpack.c.l.b16 %v463
  %v3614 = vunpack.c.h.b16 %v463
  %v3615 = vunpack.c.l.b16 %v464
  %v3616 = vunpack.c.h.b16 %v464
  %v3617 = vunpack.c.l.b16 %v465
  %v3618 = vunpack.c.h.b16 %v465
  %v3619 = vunpack.c.l.b16 %v466
  %v3620 = vunpack.c.h.b16 %v466
  %v3621 = vunpack.c.l.b16 %v467
  %v3622 = vunpack.c.h.b16 %v467
  %v3623 = vunpack.c.l.b16 %v468
  %v3624 = vunpack.c.h.b16 %v468
  %v3625 = vunpack.c.l.b16 %v469
  %v3626 = vunpack.c.h.b16 %v469
  %v3627 = vunpack.c.l.b16 %v470
  %v3628 = vunpack.c.h.b16 %v470
  %v3629 = vunpack.c.l.b16 %v471
  %v3630 = vunpack.c.h.b16 %v471
  %v3631 = vunpack.c.l.b16 %v472
  %v3632 = vunpack.c.h.b16 %v472
  %v3633 = vunpack.c.l.b16 %v473
  %v3634 = vunpack.c.h.b16 %v473
  %v3635 = vunpack.c.l.b16 %v474
  %v3636 = vunpack.c.h.b16 %v474
  %v3637 = vunpack.c.l.b16 %v475
  %v3638 = vunpack.c.h.b16 %v475
  %v3639 = vunpack.c.l.b16 %v476
  %v3640 = vunpack.c.h.b16 %v476
  %v3641 = vunpack.c.l.b16 %v477
  %v3642 = vunpack.c.h.b16 %v477
  %v3643 = vunpack.c.l.b16 %v478
  %v3644 = vunpack.c.h.b16 %v478
  %v3645 = vunpack.c.l.b16 %v479
  %v3646 = vunpack.c.h.b16 %v479
  %v3647 = vunpack.c.l.b16 %v480
  %v3648 = vunpack.c.h.b16 %v480
  %v3649 = vunpack.c.l.b16 %v481
  %v3650 = vunpack.c.h.b16 %v481
  %v3651 = vunpack.c.l.b16 %v482
  %v3652 = vunpack.c.h.b16 %v482
  %v3653 = vunpack.c.l.b16 %v483
  %v3654 = vunpack.c.h.b16 %v483
  %v3655 = vunpack.c.l.b16 %v484
  %v3656 = vunpack.c.h.b16 %v484
  %v3657 = vunpack.c.l.b16 %v485
  %v3658 = vunpack.c.h.b16 %v485
  %v3659 = vunpack.c.l.b16 %v486
  %v3660 = vunpack.c.h.b16 %v486
  %v3661 = vunpack.c.l.b16 %v487
  %v3662 = vunpack.c.h.b16 %v487
  %v3663 = vunpack.c.l.b16 %v488
  %v3664 = vunpack.c.h.b16 %v488
  %v3665 = vunpack.c.l.b16 %v489
  %v3666 = vunpack.c.h.b16 %v489
  %v3667 = vunpack.c.l.b16 %v490
  %v3668 = vunpack.c.h.b16 %v490
  %v3669 = vunpack.c.l.b16 %v491
  %v3670 = vunpack.c.h.b16 %v491
  %v3671 = vunpack.c.l.b16 %v492
  %v3672 = vunpack.c.h.b16 %v492
  %v3673 = vunpack.c.l.b16 %v493
  %v3674 = vunpack.c.h.b16 %v493
  %v3675 = vunpack.c.l.b16 %v494
  %v3676 = vunpack.c.h.b16 %v494
  %v3677 = vunpack.c.l.b16 %v495
  %v3678 = vunpack.c.h.b16 %v495
  %v3679 = vunpack.c.l.b16 %v496
  %v3680 = vunpack.c.h.b16 %v496
  %v3681 = vunpack.c.l.b16 %v497
  %v3682 = vunpack.c.h.b16 %v497
  %v3683 = vunpack.c.l.b16 %v498
  %v3684 = vunpack.c.h.b16 %v498
  %v3685 = vunpack.c.l.b16 %v499
  %v3686 = vunpack.c.h.b16 %v499
  %v3687 = vunpack.c.l.b16 %v500
  %v3688 = vunpack.c.h.b16 %v500
  %v3689 = vunpack.c.l.b16 %v501
  %v3690 = vunpack.c.h.b16 %v501
  %v3691 = vunpack.c.l.b16 %v502
  %v3692 = vunpack.c.h.b16 %v502
  %v3693 = vunpack.c.l.b16 %v503
  %v3694 = vunpack.c.h.b16 %v503
  %v3695 = vunpack.c.l.b16 %v504
  %v3696 = vunpack.c.h.b16 %v504
  %v3697 = vunpack.c.l.b16 %v505
  %v3698 = vunpack.c.h.b16 %v505
  %v3699 = vunpack.c.l.b16 %v506
  %v3700 = vunpack.c.h.b16 %v506
  %v3701 = vunpack.c.l.b16 %v507
  %v3702 = vunpack.c.h.b16 %v507
  %v3703 = vunpack.c.l.b16 %v508
  %v3704 = vunpack.c.h.b16 %v508
  %v3705 = vunpack.c.l.b16 %v509
  %v3706 = vunpack.c.h.b16 %v509
  %v3707 = vunpack.c.l.b16 %v510
  %v3708 = vunpack.c.h.b16 %v510
  %v3709 = vunpack.c.l.b16 %v511
  %v3710 = vunpack.c.h.b16 %v511
  %v3711 = vunpack.c.l.b16 %v512
  %v3712 = vunpack.c.h.b16 %v512
  %v3713 = vunpack.c.l.b16 %v513
  %v3714 = vunpack.c.h.b16 %v513
  %v3715 = vunpack.c.l.b16 %v514
  %v3716 = vunpack.c.h.b16 %v514
  %v3717 = vunpack.c.l.b16 %v515
  %v3718 = vunpack.c.h.b16 %v515
  %v3719 = vunpack.c.l.b16 %v516
  %v3720 = vunpack.c.h.b16 %v516
  %v3721 = vunpack.c.l.b16 %v517
  %v3722 = vunpack.c.h.b16 %v517
  %v3723 = vunpack.c.l.b16 %v518
  %v3724 = vunpack.c.h.b16 %v518
  %v3725 = vunpack.c.l.b16 %v519
  %v3726 = vunpack.c.h.b16 %v519
  %v3727 = vunpack.c.l.b16 %v520
  %v3728 = vunpack.c.h.b16 %v520
  %v3729 = vunpack.c.l.b16 %v521
  %v3730 = vunpack.c.h.b16 %v521
  %v3731 = vunpack.c.l.b16 %v522
  %v3732 = vunpack.c.h.b16 %v522
  %v3733 = vunpack.c.l.b16 %v523
  %v3734 = vunpack.c.h.b16 %v523
  %v3735 = vunpack.c.l.b16 %v524
  %v3736 = vunpack.c.h.b16 %v524
  %v3737 = vunpack.c.l.b16 %v525
  %v3738 = vunpack.c.h.b16 %v525
  %v3739 = vunpack.c.l.b16 %v526
  %v3740 = vunpack.c.h.b16 %v526
  %v3741 = vunpack.c.l.b16 %v527
  %v3742 = vunpack.c.h.b16 %v527
  %v3743 = vunpack.c.l.b16 %v528
  %v3744 = vunpack.c.h.b16 %v528
  %v3745 = vunpack.c.l.b16 %v529
  %v3746 = vunpack.c.h.b16 %v529
  %v3747 = vunpack.c.l.b16 %v530
  %v3748 = vunpack.c.h.b16 %v530
  %v3749 = vunpack.c.l.b16 %v531
  %v3750 = vunpack.c.h.b16 %v531
  %v3751 = vunpack.c.l.b16 %v532
  %v3752 = vunpack.c.h.b16 %v532
  %v3753 = vunpack.c.l.b16 %v533
  %v3754 = vunpack.c.h.b16 %v533
  %v3755 = vunpack.c.l.b16 %v534
  %v3756 = vunpack.c.h.b16 %v534
  %v3757 = vunpack.c.l.b16 %v535
  %v3758 = vunpack.c.h.b16 %v535
  %v3759 = vunpack.c.l.b16 %v536
  %v3760 = vunpack.c.h.b16 %v536
  %v3761 = vunpack.c.l.b16 %v537
  %v3762 = vunpack.c.h.b16 %v537
  %v3763 = vunpack.c.l.b16 %v538
  %v3764 = vunpack.c.h.b16 %v538
  %v3765 = vunpack.c.l.b16 %v539
  %v3766 = vunpack.c.h.b16 %v539
  %v3767 = vunpack.c.l.b16 %v540
  %v3768 = vunpack.c.h.b16 %v540
  %v3769 = vunpack.c.l.b16 %v541
  %v3770 = vunpack.c.h.b16 %v541
  %v3771 = vunpack.c.l.b16 %v542
  %v3772 = vunpack.c.h.b16 %v542
  %v3773 = vunpack.c.l.b16 %v543
  %v3774 = vunpack.c.h.b16 %v543
  %v3775 = vunpack.c.l.b16 %v544
  %v3776 = vunpack.c.h.b16 %v544
  %v3777 = vunpack.c.l.b16 %v545
  %v3778 = vunpack.c.h.b16 %v545
  %v3779 = vunpack.c.l.b16 %v546
  %v3780 = vunpack.c.h.b16 %v546
  %v3781 = vunpack.c.l.b16 %v547
  %v3782 = vunpack.c.h.b16 %v547
  %v3783 = vunpack.c.l.b16 %v548
  %v3784 = vunpack.c.h.b16 %v548
  %v3785 = vunpack.c.l.b16 %v549
  %v3786 = vunpack.c.h.b16 %v549
  %v3787 = vunpack.c.l.b16 %v550
  %v3788 = vunpack.c.h.b16 %v550
  %v3789 = vunpack.c.l.b16 %v551
  %v3790 = vunpack.c.h.b16 %v551
  %v3791 = vunpack.c.l.b16 %v552
  %v3792 = vunpack.c.h.b16 %v552
  %v3793 = vunpack.c.l.b16 %v553
  %v3794 = vunpack.c.h.b16 %v553
  %v3795 = vunpack.c.l.b16 %v554
  %v3796 = vunpack.c.h.b16 %v554
  %v3797 = vunpack.c.l.b16 %v555
  %v3798 = vunpack.c.h.b16 %v555
  %v3799 = vunpack.c.l.b16 %v556
  %v3800 = vunpack.c.h.b16 %v556
  %v3801 = vunpack.c.l.b16 %v557
  %v3802 = vunpack.c.h.b16 %v557
  %v3803 = vunpack.c.l.b16 %v558
  %v3804 = vunpack.c.h.b16 %v558
  %v3805 = vunpack.c.l.b16 %v559
  %v3806 = vunpack.c.h.b16 %v559
  %v3807 = vunpack.c.l.b16 %v560
  %v3808 = vunpack.c.h.b16 %v560
  %v3809 = vunpack.c.l.b16 %v561
  %v3810 = vunpack.c.h.b16 %v561
  %v3811 = vunpack.c.l.b16 %v562
  %v3812 = vunpack.c.h.b16 %v562
  %v3813 = vunpack.c.l.b16 %v563
  %v3814 = vunpack.c.h.b16 %v563
  %v3815 = vunpack.c.l.b16 %v564
  %v3816 = vunpack.c.h.b16 %v564
  %v3817 = vunpack.c.l.b16 %v565
  %v3818 = vunpack.c.h.b16 %v565
  %v3819 = vunpack.c.l.b16 %v566
  %v3820 = vunpack.c.h.b16 %v566
  %v3821 = vunpack.c.l.b16 %v567
  %v3822 = vunpack.c.h.b16 %v567
  %v3823 = vunpack.c.l.b16 %v568
  %v3824 = vunpack.c.h.b16 %v568
  %v3825 = vunpack.c.l.b16 %v569
  %v3826 = vunpack.c.h.b16 %v569
  %v3827 = vunpack.c.l.b16 %v570
  %v3828 = vunpack.c.h.b16 %v570
  %v3829 = vunpack.c.l.b16 %v571
  %v3830 = vunpack.c.h.b16 %v571
  %v3831 = vunpack.c.l.b16 %v572
  %v3832 = vunpack.c.h.b16 %v572
  %v3833 = vunpack.c.l.b16 %v573
  %v3834 = vunpack.c.h.b16 %v573
  %v3835 = vunpack.c.l.b16 %v574
  %v3836 = vunpack.c.h.b16 %v574
  %v3837 = vunpack.c.l.b16 %v575
  %v3838 = vunpack.c.h.b16 %v575
  %v3839 = vunpack.c.l.b16 %v576
  %v3840 = vunpack.c.h.b16 %v576
  %v3841 = vunpack.c.l.b16 %v577
  %v3842 = vunpack.c.h.b16 %v577
  %v3843 = vunpack.c.l.b16 %v578
  %v3844 = vunpack.c.h.b16 %v578
  %v3845 = vunpack.c.l.b16 %v579
  %v3846 = vunpack.c.h.b16 %v579
  %v3847 = vunpack.c.l.b16 %v580
  %v3848 = vunpack.c.h.b16 %v580
  %v3849 = vunpack.c.l.b16 %v581
  %v3850 = vunpack.c.h.b16 %v581
  %v3851 = vunpack.c.l.b16 %v582
  %v3852 = vunpack.c.h.b16 %v582
  %v3853 = vunpack.c.l.b16 %v583
  %v3854 = vunpack.c.h.b16 %v583
  %v3855 = vunpack.c.l.b16 %v584
  %v3856 = vunpack.c.h.b16 %v584
  %v3857 = vunpack.c.l.b16 %v585
  %v3858 = vunpack.c.h.b16 %v585
  %v3859 = vunpack.c.l.b16 %v586
  %v3860 = vunpack.c.h.b16 %v586
  %v3861 = vunpack.c.l.b16 %v587
  %v3862 = vunpack.c.h.b16 %v587
  %v3863 = vunpack.c.l.b16 %v588
  %v3864 = vunpack.c.h.b16 %v588
  %v3865 = vunpack.c.l.b16 %v589
  %v3866 = vunpack.c.h.b16 %v589
  %v3867 = vunpack.c.l.b16 %v590
  %v3868 = vunpack.c.h.b16 %v590
  %v3869 = vunpack.c.l.b16 %v591
  %v3870 = vunpack.c.h.b16 %v591
  %v3871 = vunpack.c.l.b16 %v592
  %v3872 = vunpack.c.h.b16 %v592
  %v3873 = vunpack.c.l.b16 %v593
  %v3874 = vunpack.c.h.b16 %v593
  %v3875 = vunpack.c.l.b16 %v594
  %v3876 = vunpack.c.h.b16 %v594
  %v3877 = vunpack.c.l.b16 %v595
  %v3878 = vunpack.c.h.b16 %v595
  %v3879 = vunpack.c.l.b16 %v596
  %v3880 = vunpack.c.h.b16 %v596
  %v3881 = vunpack.c.l.b16 %v597
  %v3882 = vunpack.c.h.b16 %v597
  %v3883 = vunpack.c.l.b16 %v598
  %v3884 = vunpack.c.h.b16 %v598
  %v3885 = vunpack.c.l.b16 %v599
  %v3886 = vunpack.c.h.b16 %v599
  %v3887 = vunpack.c.l.b16 %v600
  %v3888 = vunpack.c.h.b16 %v600
  %v3889 = vunpack.c.l.b16 %v601
  %v3890 = vunpack.c.h.b16 %v601
  %v3891 = vunpack.c.l.b16 %v602
  %v3892 = vunpack.c.h.b16 %v602
  %v3893 = vunpack.c.l.b16 %v603
  %v3894 = vunpack.c.h.b16 %v603
  %v3895 = vunpack.c.l.b16 %v604
  %v3896 = vunpack.c.h.b16 %v604
  %v3897 = vunpack.c.l.b16 %v605
  %v3898 = vunpack.c.h.b16 %v605
  %v3899 = vunpack.c.l.b16 %v606
  %v3900 = vunpack.c.h.b16 %v606
  %v3901 = vunpack.c.l.b16 %v607
  %v3902 = vunpack.c.h.b16 %v607
  %v3903 = vunpack.c.l.b16 %v608
  %v3904 = vunpack.c.h.b16 %v608
  %v3905 = vunpack.c.l.b16 %v609
  %v3906 = vunpack.c.h.b16 %v609
  %v3907 = vunpack.c.l.b16 %v610
  %v3908 = vunpack.c.h.b16 %v610
  %v3909 = vunpack.c.l.b16 %v611
  %v3910 = vunpack.c.h.b16 %v611
  %v3911 = vunpack.c.l.b16 %v612
  %v3912 = vunpack.c.h.b16 %v612
  %v3913 = vunpack.c.l.b16 %v613
  %v3914 = vunpack.c.h.b16 %v613
  %v3915 = vunpack.c.l.b16 %v614
  %v3916 = vunpack.c.h.b16 %v614
  %v3917 = vunpack.c.l.b16 %v615
  %v3918 = vunpack.c.h.b16 %v615
  %v3919 = vunpack.c.l.b16 %v616
  %v3920 = vunpack.c.h.b16 %v616
  %v3921 = vunpack.c.l.b16 %v617
  %v3922 = vunpack.c.h.b16 %v617
  %v3923 = vunpack.c.l.b16 %v618
  %v3924 = vunpack.c.h.b16 %v618
  %v3925 = vunpack.c.l.b16 %v619
  %v3926 = vunpack.c.h.b16 %v619
  %v3927 = vunpack.c.l.b16 %v620
  %v3928 = vunpack.c.h.b16 %v620
  %v3929 = vunpack.c.l.b16 %v621
  %v3930 = vunpack.c.h.b16 %v621
  %v3931 = vunpack.c.l.b16 %v622
  %v3932 = vunpack.c.h.b16 %v622
  %v3933 = vunpack.c.l.b16 %v623
  %v3934 = vunpack.c.h.b16 %v623
  %v3935 = vunpack.c.l.b16 %v624
  %v3936 = vunpack.c.h.b16 %v624
  %v3937 = vunpack.c.l.b16 %v625
  %v3938 = vunpack.c.h.b16 %v625
  %v3939 = vunpack.c.l.b16 %v626
  %v3940 = vunpack.c.h.b16 %v626
  %v3941 = vunpack.c.l.b16 %v627
  %v3942 = vunpack.c.h.b16 %v627
  %v3943 = vunpack.c.l.b16 %v628
  %v3944 = vunpack.c.h.b16 %v628
  %v3945 = vunpack.c.l.b16 %v629
  %v3946 = vunpack.c.h.b16 %v629
  %v3947 = vunpack.c.l.b16 %v630
  %v3948 = vunpack.c.h.b16 %v630
  %v3949 = vunpack.c.l.b16 %v631
  %v3950 = vunpack.c.h.b16 %v631
  %v3951 = vunpack.c.l.b16 %v632
  %v3952 = vunpack.c.h.b16 %v632
  %v3953 = vunpack.c.l.b16 %v633
  %v3954 = vunpack.c.h.b16 %v633
  %v3955 = vunpack.c.l.b16 %v634
  %v3956 = vunpack.c.h.b16 %v634
  %v3957 = vunpack.c.l.b16 %v635
  %v3958 = vunpack.c.h.b16 %v635
  %v3959 = vunpack.c.l.b16 %v636
  %v3960 = vunpack.c.h.b16 %v636
  %v3961 = vunpack.c.l.b16 %v637
  %v3962 = vunpack.c.h.b16 %v637
  %v3963 = vunpack.c.l.b16 %v638
  %v3964 = vunpack.c.h.b16 %v638
  %v3965 = vunpack.c.l.b16 %v639
  %v3966 = vunpack.c.h.b16 %v639
  %v3967 = vunpack.c.l.b16 %v640
  %v3968 = vunpack.c.h.b16 %v640
  %v3969 = vunpack.c.l.b16 %v641
  %v3970 = vunpack.c.h.b16 %v641
  %v3971 = vunpack.c.l.b16 %v642
  %v3972 = vunpack.c.h.b16 %v642
  %v3973 = vunpack.c.l.b16 %v643
  %v3974 = vunpack.c.h.b16 %v643
  %v3975 = vunpack.c.l.b16 %v644
  %v3976 = vunpack.c.h.b16 %v644
  %v3977 = vunpack.c.l.b16 %v645
  %v3978 = vunpack.c.h.b16 %v645
  %v3979 = vunpack.c.l.b16 %v646
  %v3980 = vunpack.c.h.b16 %v646
  %v3981 = vunpack.c.l.b16 %v647
  %v3982 = vunpack.c.h.b16 %v647
  %v3983 = vunpack.c.l.b16 %v648
  %v3984 = vunpack.c.h.b16 %v648
  %v3985 = vunpack.c.l.b16 %v649
  %v3986 = vunpack.c.h.b16 %v649
  %v3987 = vunpack.c.l.b16 %v650
  %v3988 = vunpack.c.h.b16 %v650
  %v3989 = vunpack.c.l.b16 %v651
  %v3990 = vunpack.c.h.b16 %v651
  %v3991 = vunpack.c.l.b16 %v652
  %v3992 = vunpack.c.h.b16 %v652
  %v3993 = vunpack.c.l.b16 %v653
  %v3994 = vunpack.c.h.b16 %v653
  %v3995 = vunpack.c.l.b16 %v654
  %v3996 = vunpack.c.h.b16 %v654
  %v3997 = vunpack.c.l.b16 %v655
  %v3998 = vunpack.c.h.b16 %v655
  %v3999 = vunpack.c.l.b16 %v656
  %v4000 = vunpack.c.h.b16 %v656
  %v4001 = vunpack.c.l.b16 %v657
  %v4002 = vunpack.c.h.b16 %v657
  %v4003 = vunpack.c.l.b16 %v658
  %v4004 = vunpack.c.h.b16 %v658
  %v4005 = vunpack.c.l.b16 %v659
  %v4006 = vunpack.c.h.b16 %v659
  %v4007 = vunpack.c.l.b16 %v660
  %v4008 = vunpack.c.h.b16 %v660
  %v4009 = vunpack.c.l.b16 %v661
  %v4010 = vunpack.c.h.b16 %v661
  %v4011 = vunpack.c.l.b16 %v662
  %v4012 = vunpack.c.h.b16 %v662
  %v4013 = vunpack.c.l.b16 %v663
  %v4014 = vunpack.c.h.b16 %v663
  %v4015 = vunpack.c.l.b16 %v664
  %v4016 = vunpack.c.h.b16 %v664
  %v4017 = vunpack.c.l.b16 %v665
  %v4018 = vunpack.c.h.b16 %v665
  %v4019 = vunpack.c.l.b16 %v666
  %v4020 = vunpack.c.h.b16 %v666
  %v4021 = vunpack.c.l.b16 %v667
  %v4022 = vunpack.c.h.b16 %v667
  %v4023 = vunpack.c.l.b16 %v668
  %v4024 = vunpack.c.h.b16 %v668
  %v4025 = vunpack.c.l.b16 %v669
  %v4026 = vunpack.c.h.b16 %v669
  %v4027 = vunpack.c.l.b16 %v670
  %v4028 = vunpack.c.h.b16 %v670
  %v4029 = vunpack.c.l.b16 %v671
  %v4030 = vunpack.c.h.b16 %v671
  %v4031 = vunpack.c.l.b16 %v672
  %v4032 = vunpack.c.h.b16 %v672
  %v4033 = vunpack.c.l.b16 %v673
  %v4034 = vunpack.c.h.b16 %v673
  %v4035 = vunpack.c.l.b16 %v674
  %v4036 = vunpack.c.h.b16 %v674
  %v4037 = vunpack.c.l.b16 %v675
  %v4038 = vunpack.c.h.b16 %v675
  %v4039 = vunpack.c.l.b16 %v676
  %v4040 = vunpack.c.h.b16 %v676
  %v4041 = vunpack.c.l.b16 %v677
  %v4042 = vunpack.c.h.b16 %v677
  %v4043 = vunpack.c.l.b16 %v678
  %v4044 = vunpack.c.h.b16 %v678
  %v4045 = vunpack.c.l.b16 %v679
  %v4046 = vunpack.c.h.b16 %v679
  %v4047 = vunpack.c.l.b16 %v680
  %v4048 = vunpack.c.h.b16 %v680
  %v4049 = vunpack.c.l.b16 %v681
  %v4050 = vunpack.c.h.b16 %v681
  %v4051 = vunpack.c.l.b16 %v682
  %v4052 = vunpack.c.h.b16 %v682
  %v4053 = vunpack.c.l.b16 %v683
  %v4054 = vunpack.c.h.b16 %v683
  %v4055 = vunpack.c.l.b16 %v684
  %v4056 = vunpack.c.h.b16 %v684
  %v4057 = vunpack.c.l.b16 %v685
  %v4058 = vunpack.c.h.b16 %v685
  %v4059 = vunpack.c.l.b16 %v686
  %v4060 = vunpack.c.h.b16 %v686
  %v4061 = vunpack.c.l.b16 %v687
  %v4062 = vunpack.c.h.b16 %v687
  %v4063 = vunpack.c.l.b16 %v688
  %v4064 = vunpack.c.h.b16 %v688
  %v4065 = vunpack.c.l.b16 %v689
  %v4066 = vunpack.c.h.b16 %v689
  %v4067 = vunpack.c.l.b16 %v690
  %v4068 = vunpack.c.h.b16 %v690
  %v4069 = vunpack.c.l.b16 %v691
  %v4070 = vunpack.c.h.b16 %v691
  %v4071 = vunpack.c.l.b16 %v692
  %v4072 = vunpack.c.h.b16 %v692
  %v4073 = vunpack.c.l.b16 %v693
  %v4074 = vunpack.c.h.b16 %v693
  %v4075 = vunpack.c.l.b16 %v694
  %v4076 = vunpack.c.h.b16 %v694
  %v4077 = vunpack.c.l.b16 %v695
  %v4078 = vunpack.c.h.b16 %v695
  %v4079 = vunpack.c.l.b16 %v696
  %v4080 = vunpack.c.h.b16 %v696
  %v4081 = vunpack.c.l.b16 %v697
  %v4082 = vunpack.c.h.b16 %v697
  %v4083 = vunpack.c.l.b16 %v698
  %v4084 = vunpack.c.h.b16 %v698
  %v4085 = vunpack.c.l.b16 %v699
  %v4086 = vunpack.c.h.b16 %v699
  %v4087 = vunpack.c.l.b16 %v700
  %v4088 = vunpack.c.h.b16 %v700
  %v4089 = vunpack.c.l.b16 %v701
  %v4090 = vunpack.c.h.b16 %v701
  %v4091 = vunpack.c.l.b16 %v702
  %v4092 = vunpack.c.h.b16 %v702
  %v4093 = vunpack.c.l.b16 %v703
  %v4094 = vunpack.c.h.b16 %v703
  %v4095 = vunpack.c.l.b16 %v704
  %v4096 = vunpack.c.h.b16 %v704
  %v4097 = vunpack.c.l.b16 %v705
  %v4098 = vunpack.c.h.b16 %v705
  %v4099 = vunpack.c.l.b16 %v706
  %v4100 = vunpack.c.h.b16 %v706
  %v4101 = vunpack.c.l.b16 %v707
  %v4102 = vunpack.c.h.b16 %v707
  %v4103 = vunpack.c.l.b16 %v708
  %v4104 = vunpack.c.h.b16 %v708
  %v4105 = vunpack.c.l.b16 %v709
  %v4106 = vunpack.c.h.b16 %v709
  %v4107 = vunpack.c.l.b16 %v710
  %v4108 = vunpack.c.h.b16 %v710
  %v4109 = vunpack.c.l.b16 %v711
  %v4110 = vunpack.c.h.b16 %v711
  %v4111 = vunpack.c.l.b16 %v712
  %v4112 = vunpack.c.h.b16 %v712
  %v4113 = vunpack.c.l.b16 %v713
  %v4114 = vunpack.c.h.b16 %v713
  %v4115 = vunpack.c.l.b16 %v714
  %v4116 = vunpack.c.h.b16 %v714
  %v4117 = vunpack.c.l.b16 %v715
  %v4118 = vunpack.c.h.b16 %v715
  %v4119 = vunpack.c.l.b16 %v716
  %v4120 = vunpack.c.h.b16 %v716
  %v4121 = vunpack.c.l.b16 %v717
  %v4122 = vunpack.c.h.b16 %v717
  %v4123 = vunpack.c.l.b16 %v718
  %v4124 = vunpack.c.h.b16 %v718
  %v4125 = vunpack.c.l.b16 %v719
  %v4126 = vunpack.c.h.b16 %v719
  %v4127 = vunpack.c.l.b16 %v720
  %v4128 = vunpack.c.h.b16 %v720
  %v4129 = vunpack.c.l.b16 %v721
  %v4130 = vunpack.c.h.b16 %v721
  %v4131 = vunpack.c.l.b16 %v722
  %v4132 = vunpack.c.h.b16 %v722
  %v4133 = vunpack.c.l.b16 %v723
  %v4134 = vunpack.c.h.b16 %v723
  %v4135 = vunpack.c.l.b16 %v724
  %v4136 = vunpack.c.h.b16 %v724
  %v4137 = vunpack.c.l.b16 %v725
  %v4138 = vunpack.c.h.b16 %v725
  %v4139 = vunpack.c.l.b16 %v726
  %v4140 = vunpack.c.h.b16 %v726
  %v4141 = vunpack.c.l.b16 %v727
  %v4142 = vunpack.c.h.b16 %v727
  %v4143 = vunpack.c.l.b16 %v728
  %v4144 = vunpack.c.h.b16 %v728
  %v4145 = vunpack.c.l.b16 %v729
  %v4146 = vunpack.c.h.b16 %v729
  %v4147 = vunpack.c.l.b16 %v730
  %v4148 = vunpack.c.h.b16 %v730
  %v4149 = vunpack.c.l.b16 %v731
  %v4150 = vunpack.c.h.b16 %v731
  %v4151 = vunpack.c.l.b16 %v732
  %v4152 = vunpack.c.h.b16 %v732
  %v4153 = vunpack.c.l.b16 %v733
  %v4154 = vunpack.c.h.b16 %v733
  %v4155 = vunpack.c.l.b16 %v734
  %v4156 = vunpack.c.h.b16 %v734
  %v4157 = vunpack.c.l.b16 %v735
  %v4158 = vunpack.c.h.b16 %v735
  %v4159 = vunpack.c.l.b16 %v736
  %v4160 = vunpack.c.h.b16 %v736
  %v4161 = vunpack.c.l.b16 %v737
  %v4162 = vunpack.c.h.b16 %v737
  %v4163 = vunpack.c.l.b16 %v738
  %v4164 = vunpack.c.h.b16 %v738
  %v4165 = vunpack.c.l.b16 %v739
  %v4166 = vunpack.c.h.b16 %v739
  %v4167 = vunpack.c.l.b16 %v740
  %v4168 = vunpack.c.h.b16 %v740
  %v4169 = vunpack.c.l.b16 %v741
  %v4170 = vunpack.c.h.b16 %v741
  %v4171 = vunpack.c.l.b16 %v742
  %v4172 = vunpack.c.h.b16 %v742
  %v4173 = vunpack.c.l.b16 %v743
  %v4174 = vunpack.c.h.b16 %v743
  %v4175 = vunpack.c.l.b16 %v744
  %v4176 = vunpack.c.h.b16 %v744
  %v4177 = vunpack.c.l.b16 %v745
  %v4178 = vunpack.c.h.b16 %v745
  %v4179 = vunpack.c.l.b16 %v746
  %v4180 = vunpack.c.h.b16 %v746
  %v4181 = vunpack.c.l.b16 %v747
  %v4182 = vunpack.c.h.b16 %v747
  %v4183 = vunpack.c.l.b16 %v748
  %v4184 = vunpack.c.h.b16 %v748
  %v4185 = vunpack.c.l.b16 %v749
  %v4186 = vunpack.c.h.b16 %v749
  %v4187 = vunpack.c.l.b16 %v750
  %v4188 = vunpack.c.h.b16 %v750
  %v4189 = vunpack.c.l.b16 %v751
  %v4190 = vunpack.c.h.b16 %v751
  %v4191 = vunpack.c.l.b16 %v752
  %v4192 = vunpack.c.h.b16 %v752
  %v4193 = vunpack.c.l.b16 %v753
  %v4194 = vunpack.c.h.b16 %v753
  %v4195 = vunpack.c.l.b16 %v754
  %v4196 = vunpack.c.h.b16 %v754
  %v4197 = vunpack.c.l.b16 %v755
  %v4198 = vunpack.c.h.b16 %v755
  %v4199 = vunpack.c.l.b16 %v756
  %v4200 = vunpack.c.h.b16 %v756
  %v4201 = vunpack.c.l.b16 %v757
  %v4202 = vunpack.c.h.b16 %v757
  %v4203 = vunpack.c.l.b16 %v758
  %v4204 = vunpack.c.h.b16 %v758
  %v4205 = vunpack.c.l.b16 %v759
  %v4206 = vunpack.c.h.b16 %v759
  %v4207 = vunpack.c.l.b16 %v760
  %v4208 = vunpack.c.h.b16 %v760
  %v4209 = vunpack.c.l.b16 %v761
  %v4210 = vunpack.c.h.b16 %v761
  %v4211 = vunpack.c.l.b16 %v762
  %v4212 = vunpack.c.h.b16 %v762
  %v4213 = vunpack.c.l.b16 %v763
  %v4214 = vunpack.c.h.b16 %v763
  %v4215 = vunpack.c.l.b16 %v764
  %v4216 = vunpack.c.h.b16 %v764
  %v4217 = vunpack.c.l.b16 %v765
  %v4218 = vunpack.c.h.b16 %v765
  %v4219 = vunpack.c.l.b16 %v766
  %v4220 = vunpack.c.h.b16 %v766
  %v4221 = vunpack.c.l.b16 %v767
  %v4222 = vunpack.c.h.b16 %v767
  %v4223 = vunpack.c.l.b16 %v768
  %v4224 = vunpack.c.h.b16 %v768
  %v4225 = vunpack.c.l.b16 %v769
  %v4226 = vunpack.c.h.b16 %v769
  %v4227 = vunpack.c.l.b16 %v770
  %v4228 = vunpack.c.h.b16 %v770
  %v4229 = vunpack.c.l.b16 %v771
  %v4230 = vunpack.c.h.b16 %v771
  %v4231 = vunpack.c.l.b16 %v772
  %v4232 = vunpack.c.h.b16 %v772
  %v4233 = vunpack.c.l.b16 %v773
  %v4234 = vunpack.c.h.b16 %v773
  %v4235 = vunpack.c.l.b16 %v774
  %v4236 = vunpack.c.h.b16 %v774
  %v4237 = vunpack.c.l.b16 %v775
  %v4238 = vunpack.c.h.b16 %v775
  %v4239 = vunpack.c.l.b16 %v776
  %v4240 = vunpack.c.h.b16 %v776
  %v4241 = vunpack.c.l.b16 %v777
  %v4242 = vunpack.c.h.b16 %v777
  %v4243 = vunpack.c.l.b16 %v778
  %v4244 = vunpack.c.h.b16 %v778
  %v4245 = vunpack.c.l.b16 %v779
  %v4246 = vunpack.c.h.b16 %v779
  %v4247 = vunpack.c.l.b16 %v780
  %v4248 = vunpack.c.h.b16 %v780
  %v4249 = vunpack.c.l.b16 %v781
  %v4250 = vunpack.c.h.b16 %v781
  %v4251 = vunpack.c.l.b16 %v782
  %v4252 = vunpack.c.h.b16 %v782
  %v4253 = vunpack.c.l.b16 %v783
  %v4254 = vunpack.c.h.b16 %v783
  %v4255 = vunpack.c.l.b16 %v784
  %v4256 = vunpack.c.h.b16 %v784
  %v4257 = vunpack.c.l.b16 %v785
  %v4258 = vunpack.c.h.b16 %v785
  %v4259 = vunpack.c.l.b16 %v786
  %v4260 = vunpack.c.h.b16 %v786
  %v4261 = vunpack.c.l.b16 %v787
  %v4262 = vunpack.c.h.b16 %v787
  %v4263 = vunpack.c.l.b16 %v788
  %v4264 = vunpack.c.h.b16 %v788
  %v4265 = vunpack.c.l.b16 %v789
  %v4266 = vunpack.c.h.b16 %v789
  %v4267 = vunpack.c.l.b16 %v790
  %v4268 = vunpack.c.h.b16 %v790
  %v4269 = vunpack.c.l.b16 %v791
  %v4270 = vunpack.c.h.b16 %v791
  %v4271 = vunpack.c.l.b16 %v792
  %v4272 = vunpack.c.h.b16 %v792
  %v4273 = vunpack.c.l.b16 %v793
  %v4274 = vunpack.c.h.b16 %v793
  %v4275 = vunpack.c.l.b16 %v794
  %v4276 = vunpack.c.h.b16 %v794
  %v4277 = vunpack.c.l.b16 %v795
  %v4278 = vunpack.c.h.b16 %v795
  %v4279 = vunpack.c.l.b16 %v796
  %v4280 = vunpack.c.h.b16 %v796
  %v4281 = vunpack.c.l.b16 %v797
  %v4282 = vunpack.c.h.b16 %v797
  %v4283 = vunpack.c.l.b16 %v798
  %v4284 = vunpack.c.h.b16 %v798
  %v4285 = vunpack.c.l.b16 %v799
  %v4286 = vunpack.c.h.b16 %v799
  %v4287 = vunpack.c.l.b16 %v800
  %v4288 = vunpack.c.h.b16 %v800
  %v4289 = vunpack.c.l.b16 %v801
  %v4290 = vunpack.c.h.b16 %v801
  %v4291 = vunpack.c.l.b16 %v802
  %v4292 = vunpack.c.h.b16 %v802
  %v4293 = vunpack.c.l.b16 %v803
  %v4294 = vunpack.c.h.b16 %v803
  %v4295 = vunpack.c.l.b16 %v804
  %v4296 = vunpack.c.h.b16 %v804
  %v4297 = vunpack.c.l.b16 %v805
  %v4298 = vunpack.c.h.b16 %v805
  %v4299 = vunpack.c.l.b16 %v806
  %v4300 = vunpack.c.h.b16 %v806
  %v4301 = vunpack.c.l.b16 %v807
  %v4302 = vunpack.c.h.b16 %v807
  %v4303 = vunpack.c.l.b16 %v808
  %v4304 = vunpack.c.h.b16 %v808
  %v4305 = vunpack.c.l.b16 %v809
  %v4306 = vunpack.c.h.b16 %v809
  %v4307 = vunpack.c.l.b16 %v810
  %v4308 = vunpack.c.h.b16 %v810
  %v4309 = vunpack.c.l.b16 %v811
  %v4310 = vunpack.c.h.b16 %v811
  %v4311 = vunpack.c.l.b16 %v812
  %v4312 = vunpack.c.h.b16 %v812
  %v4313 = vunpack.c.l.b16 %v813
  %v4314 = vunpack.c.h.b16 %v813
  %v4315 = vunpack.c.l.b16 %v814
  %v4316 = vunpack.c.h.b16 %v814
  %v4317 = vunpack.c.l.b16 %v815
  %v4318 = vunpack.c.h.b16 %v815
  %v4319 = vunpack.c.l.b16 %v816
  %v4320 = vunpack.c.h.b16 %v816
  %v4321 = vunpack.c.l.b16 %v817
  %v4322 = vunpack.c.h.b16 %v817
  %v4323 = vunpack.c.l.b16 %v818
  %v4324 = vunpack.c.h.b16 %v818
  %v4325 = vunpack.c.l.b16 %v819
  %v4326 = vunpack.c.h.b16 %v819
  %v4327 = vunpack.c.l.b16 %v820
  %v4328 = vunpack.c.h.b16 %v820
  %v4329 = vunpack.c.l.b16 %v821
  %v4330 = vunpack.c.h.b16 %v821
  %v4331 = vunpack.c.l.b16 %v822
  %v4332 = vunpack.c.h.b16 %v822
  %v4333 = vunpack.c.l.b16 %v823
  %v4334 = vunpack.c.h.b16 %v823
  %v4335 = vunpack.c.l.b16 %v824
  %v4336 = vunpack.c.h.b16 %v824
  %v4337 = vunpack.c.l.b16 %v825
  %v4338 = vunpack.c.h.b16 %v825
  %v4339 = vunpack.c.l.b16 %v826
  %v4340 = vunpack.c.h.b16 %v826
  %v4341 = vunpack.c.l.b16 %v827
  %v4342 = vunpack.c.h.b16 %v827
  %v4343 = vunpack.c.l.b16 %v828
  %v4344 = vunpack.c.h.b16 %v828
  %v4345 = vunpack.c.l.b16 %v829
  %v4346 = vunpack.c.h.b16 %v829
  %v4347 = vunpack.c.l.b16 %v830
  %v4348 = vunpack.c.h.b16 %v830
  %v4349 = vunpack.c.l.b16 %v831
  %v4350 = vunpack.c.h.b16 %v831
  %v4351 = vunpack.c.l.b16 %v832
  %v4352 = vunpack.c.h.b16 %v832
  %v4353 = vunpack.c.l.b16 %v833
  %v4354 = vunpack.c.h.b16 %v833
  %v4355 = vunpack.c.l.b16 %v834
  %v4356 = vunpack.c.h.b16 %v834
  %v4357 = vunpack.c.l.b16 %v835
  %v4358 = vunpack.c.h.b16 %v835
  %v4359 = vunpack.c.l.b16 %v836
  %v4360 = vunpack.c.h.b16 %v836
  %v4361 = vunpack.c.l.b16 %v837
  %v4362 = vunpack.c.h.b16 %v837
  %v4363 = vunpack.c.l.b16 %v838
  %v4364 = vunpack.c.h.b16 %v838
  %v4365 = vunpack.c.l.b16 %v839
  %v4366 = vunpack.c.h.b16 %v839
  %v4367 = vunpack.c.l.b16 %v840
  %v4368 = vunpack.c.h.b16 %v840
  %v4369 = vunpack.c.l.b16 %v841
  %v4370 = vunpack.c.h.b16 %v841
  %v4371 = vunpack.c.l.b16 %v842
  %v4372 = vunpack.c.h.b16 %v842
  %v4373 = vunpack.c.l.b16 %v843
  %v4374 = vunpack.c.h.b16 %v843
  %v4375 = vunpack.c.l.b16 %v844
  %v4376 = vunpack.c.h.b16 %v844
  %v4377 = vunpack.c.l.b16 %v845
  %v4378 = vunpack.c.h.b16 %v845
  %v4379 = vunpack.c.l.b16 %v846
  %v4380 = vunpack.c.h.b16 %v846
  %v4381 = vunpack.c.l.b16 %v847
  %v4382 = vunpack.c.h.b16 %v847
  %v4383 = vunpack.c.l.b16 %v848
  %v4384 = vunpack.c.h.b16 %v848
  %v4385 = vunpack.c.l.b16 %v849
  %v4386 = vunpack.c.h.b16 %v849
  %v4387 = vunpack.c.l.b16 %v850
  %v4388 = vunpack.c.h.b16 %v850
  %v4389 = vunpack.c.l.b16 %v851
  %v4390 = vunpack.c.h.b16 %v851
  %v4391 = vunpack.c.l.b16 %v852
  %v4392 = vunpack.c.h.b16 %v852
  %v4393 = vunpack.c.l.b16 %v853
  %v4394 = vunpack.c.h.b16 %v853
  %v4395 = vunpack.c.l.b16 %v854
  %v4396 = vunpack.c.h.b16 %v854
  %v4397 = vunpack.c.l.b16 %v855
  %v4398 = vunpack.c.h.b16 %v855
  %v4399 = vunpack.c.l.b16 %v856
  %v4400 = vunpack.c.h.b16 %v856
  %v4401 = vunpack.c.l.b16 %v857
  %v4402 = vunpack.c.h.b16 %v857
  %v4403 = vunpack.c.l.b16 %v858
  %v4404 = vunpack.c.h.b16 %v858
  %v4405 = vunpack.c.l.b16 %v859
  %v4406 = vunpack.c.h.b16 %v859
  %v4407 = vunpack.c.l.b16 %v860
  %v4408 = vunpack.c.h.b16 %v860
  %v4409 = vunpack.c.l.b16 %v861
  %v4410 = vunpack.c.h.b16 %v861
  %v4411 = vunpack.c.l.b16 %v862
  %v4412 = vunpack.c.h.b16 %v862
  %v4413 = vunpack.c.l.b16 %v863
  %v4414 = vunpack.c.h.b16 %v863
  %v4415 = vunpack.c.l.b16 %v864
  %v4416 = vunpack.c.h.b16 %v864
  %v4417 = vunpack.c.l.b16 %v865
  %v4418 = vunpack.c.h.b16 %v865
  %v4419 = vunpack.c.l.b16 %v866
  %v4420 = vunpack.c.h.b16 %v866
  %v4421 = vunpack.c.l.b16 %v867
  %v4422 = vunpack.c.h.b16 %v867
  %v4423 = vunpack.c.l.b16 %v868
  %v4424 = vunpack.c.h.b16 %v868
  %v4425 = vunpack.c.l.b16 %v869
  %v4426 = vunpack.c.h.b16 %v869
  %v4427 = vunpack.c.l.b16 %v870
  %v4428 = vunpack.c.h.b16 %v870
  %v4429 = vunpack.c.l.b16 %v871
  %v4430 = vunpack.c.h.b16 %v871
  %v4431 = vunpack.c.l.b16 %v872
  %v4432 = vunpack.c.h.b16 %v872
  %v4433 = vunpack.c.l.b16 %v873
  %v4434 = vunpack.c.h.b16 %v873
  %v4435 = vunpack.c.l.b16 %v874
  %v4436 = vunpack.c.h.b16 %v874
  %v4437 = vunpack.c.l.b16 %v875
  %v4438 = vunpack.c.h.b16 %v875
  %v4439 = vunpack.c.l.b16 %v876
  %v4440 = vunpack.c.h.b16 %v876
  %v4441 = vunpack.c.l.b16 %v877
  %v4442 = vunpack.c.h.b16 %v877
  %v4443 = vunpack.c.l.b16 %v878
  %v4444 = vunpack.c.h.b16 %v878
  %v4445 = vunpack.c.l.b16 %v879
  %v4446 = vunpack.c.h.b16 %v879
  %v4447 = vunpack.c.l.b16 %v880
  %v4448 = vunpack.c.h.b16 %v880
  %v4449 = vunpack.c.l.b16 %v881
  %v4450 = vunpack.c.h.b16 %v881
  %v4451 = vunpack.c.l.b16 %v882
  %v4452 = vunpack.c.h.b16 %v882
  %v4453 = vunpack.c.l.b16 %v883
  %v4454 = vunpack.c.h.b16 %v883
  %v4455 = vunpack.c.l.b16 %v884
  %v4456 = vunpack.c.h.b16 %v884
  %v4457 = vunpack.c.l.b16 %v885
  %v4458 = vunpack.c.h.b16 %v885
  %v4459 = vunpack.c.l.b16 %v886
  %v4460 = vunpack.c.h.b16 %v886
  %v4461 = vunpack.c.l.b16 %v887
  %v4462 = vunpack.c.h.b16 %v887
  %v4463 = vunpack.c.l.b16 %v888
  %v4464 = vunpack.c.h.b16 %v888
  %v4465 = vunpack.c.l.b16 %v889
  %v4466 = vunpack.c.h.b16 %v889
  %v4467 = vunpack.c.l.b16 %v890
  %v4468 = vunpack.c.h.b16 %v890
  %v4469 = vunpack.c.l.b16 %v891
  %v4470 = vunpack.c.h.b16 %v891
  %v4471 = vunpack.c.l.b16 %v892
  %v4472 = vunpack.c.h.b16 %v892
  %v4473 = vunpack.c.l.b16 %v893
  %v4474 = vunpack.c.h.b16 %v893
  %v4475 = vunpack.c.l.b16 %v894
  %v4476 = vunpack.c.h.b16 %v894
  %v4477 = vunpack.c.l.b16 %v895
  %v4478 = vunpack.c.h.b16 %v895
  %v4479 = vunpack.c.l.b16 %v896
  %v4480 = vunpack.c.h.b16 %v896
  %v4481 = vunpack.c.l.b16 %v897
  %v4482 = vunpack.c.h.b16 %v897
  %v4483 = vunpack.c.l.b16 %v898
  %v4484 = vunpack.c.h.b16 %v898
  %v4485 = vunpack.c.l.b16 %v899
  %v4486 = vunpack.c.h.b16 %v899
  %v4487 = vunpack.c.l.b16 %v900
  %v4488 = vunpack.c.h.b16 %v900
  %v4489 = vunpack.c.l.b16 %v901
  %v4490 = vunpack.c.h.b16 %v901
  %v4491 = vunpack.c.l.b16 %v902
  %v4492 = vunpack.c.h.b16 %v902
  %v4493 = vunpack.c.l.b16 %v903
  %v4494 = vunpack.c.h.b16 %v903
  %v4495 = vunpack.c.l.b16 %v904
  %v4496 = vunpack.c.h.b16 %v904
  %v4497 = vunpack.c.l.b16 %v905
  %v4498 = vunpack.c.h.b16 %v905
  %v4499 = vunpack.c.l.b16 %v906
  %v4500 = vunpack.c.h.b16 %v906
  %v4501 = vunpack.c.l.b16 %v907
  %v4502 = vunpack.c.h.b16 %v907
  %v4503 = vunpack.c.l.b16 %v908
  %v4504 = vunpack.c.h.b16 %v908
  %v4505 = vunpack.c.l.b16 %v909
  %v4506 = vunpack.c.h.b16 %v909
  %v4507 = vunpack.c.l.b16 %v910
  %v4508 = vunpack.c.h.b16 %v910
  %v4509 = vunpack.c.l.b16 %v911
  %v4510 = vunpack.c.h.b16 %v911
  %v4511 = vunpack.c.l.b16 %v912
  %v4512 = vunpack.c.h.b16 %v912
  %v4513 = vunpack.c.l.b16 %v913
  %v4514 = vunpack.c.h.b16 %v913
  %v4515 = vunpack.c.l.b16 %v914
  %v4516 = vunpack.c.h.b16 %v914
  %v4517 = vunpack.c.l.b16 %v915
  %v4518 = vunpack.c.h.b16 %v915
  %v4519 = vunpack.c.l.b16 %v916
  %v4520 = vunpack.c.h.b16 %v916
  %v4521 = vunpack.c.l.b16 %v917
  %v4522 = vunpack.c.h.b16 %v917
  %v4523 = vunpack.c.l.b16 %v918
  %v4524 = vunpack.c.h.b16 %v918
  %v4525 = vunpack.c.l.b16 %v919
  %v4526 = vunpack.c.h.b16 %v919
  %v4527 = vunpack.c.l.b16 %v920
  %v4528 = vunpack.c.h.b16 %v920
  %v4529 = vunpack.c.l.b16 %v921
  %v4530 = vunpack.c.h.b16 %v921
  %v4531 = vunpack.c.l.b16 %v922
  %v4532 = vunpack.c.h.b16 %v922
  %v4533 = vunpack.c.l.b16 %v923
  %v4534 = vunpack.c.h.b16 %v923
  %v4535 = vunpack.c.l.b16 %v924
  %v4536 = vunpack.c.h.b16 %v924
  %v4537 = vunpack.c.l.b16 %v925
  %v4538 = vunpack.c.h.b16 %v925
  %v4539 = vunpack.c.l.b16 %v926
  %v4540 = vunpack.c.h.b16 %v926
  %v4541 = vunpack.c.l.b16 %v927
  %v4542 = vunpack.c.h.b16 %v927
  %v4543 = vunpack.c.l.b16 %v928
  %v4544 = vunpack.c.h.b16 %v928
  %v4545 = vunpack.c.l.b16 %v929
  %v4546 = vunpack.c.h.b16 %v929
  %v4547 = vunpack.c.l.b16 %v930
  %v4548 = vunpack.c.h.b16 %v930
  %v4549 = vunpack.c.l.b16 %v931
  %v4550 = vunpack.c.h.b16 %v931
  %v4551 = vunpack.c.l.b16 %v932
  %v4552 = vunpack.c.h.b16 %v932
  %v4553 = vunpack.c.l.b16 %v933
  %v4554 = vunpack.c.h.b16 %v933
  %v4555 = vunpack.c.l.b16 %v934
  %v4556 = vunpack.c.h.b16 %v934
  %v4557 = vunpack.c.l.b16 %v935
  %v4558 = vunpack.c.h.b16 %v935
  %v4559 = vunpack.c.l.b16 %v936
  %v4560 = vunpack.c.h.b16 %v936
  %v4561 = vunpack.c.l.b16 %v937
  %v4562 = vunpack.c.h.b16 %v937
  %v4563 = vunpack.c.l.b16 %v938
  %v4564 = vunpack.c.h.b16 %v938
  %v4565 = vunpack.c.l.b16 %v939
  %v4566 = vunpack.c.h.b16 %v939
  %v4567 = vunpack.c.l.b16 %v940
  %v4568 = vunpack.c.h.b16 %v940
  %v4569 = vunpack.c.l.b16 %v941
  %v4570 = vunpack.c.h.b16 %v941
  %v4571 = vunpack.c.l.b16 %v942
  %v4572 = vunpack.c.h.b16 %v942
  %v4573 = vunpack.c.l.b16 %v943
  %v4574 = vunpack.c.h.b16 %v943
  %v4575 = vunpack.c.l.b16 %v944
  %v4576 = vunpack.c.h.b16 %v944
  %v4577 = vunpack.c.l.b16 %v945
  %v4578 = vunpack.c.h.b16 %v945
  %v4579 = vunpack.c.l.b16 %v946
  %v4580 = vunpack.c.h.b16 %v946
  %v4581 = vunpack.c.l.b16 %v947
  %v4582 = vunpack.c.h.b16 %v947
  %v4583 = vunpack.c.l.b16 %v948
  %v4584 = vunpack.c.h.b16 %v948
  %v4585 = vunpack.c.l.b16 %v949
  %v4586 = vunpack.c.h.b16 %v949
  %v4587 = vunpack.c.l.b16 %v950
  %v4588 = vunpack.c.h.b16 %v950
  %v4589 = vunpack.c.l.b16 %v951
  %v4590 = vunpack.c.h.b16 %v951
  %v4591 = vunpack.c.l.b16 %v952
  %v4592 = vunpack.c.h.b16 %v952
  %v4593 = vunpack.c.l.b16 %v953
  %v4594 = vunpack.c.h.b16 %v953
  %v4595 = vunpack.c.l.b16 %v954
  %v4596 = vunpack.c.h.b16 %v954
  %v4597 = vunpack.c.l.b16 %v955
  %v4598 = vunpack.c.h.b16 %v955
  %v4599 = vunpack.c.l.b16 %v956
  %v4600 = vunpack.c.h.b16 %v956
  %v4601 = vunpack.c.l.b16 %v957
  %v4602 = vunpack.c.h.b16 %v957
  %v4603 = vunpack.c.l.b16 %v958
  %v4604 = vunpack.c.h.b16 %v958
  %v4605 = vunpack.c.l.b16 %v959
  %v4606 = vunpack.c.h.b16 %v959
  %v4607 = vunpack.c.l.b16 %v960
  %v4608 = vunpack.c.h.b16 %v960
  %v4609 = vunpack.c.l.b16 %v961
  %v4610 = vunpack.c.h.b16 %v961
  %v4611 = vunpack.c.l.b16 %v962
  %v4612 = vunpack.c.h.b16 %v962
  %v4613 = vunpack.c.l.b16 %v963
  %v4614 = vunpack.c.h.b16 %v963
  %v4615 = vunpack.c.l.b16 %v964
  %v4616 = vunpack.c.h.b16 %v964
  %v4617 = vunpack.c.l.b16 %v965
  %v4618 = vunpack.c.h.b16 %v965
  %v4619 = vunpack.c.l.b16 %v966
  %v4620 = vunpack.c.h.b16 %v966
  %v4621 = vunpack.c.l.b16 %v967
  %v4622 = vunpack.c.h.b16 %v967
  %v4623 = vunpack.c.l.b16 %v968
  %v4624 = vunpack.c.h.b16 %v968
  %v4625 = vunpack.c.l.b16 %v969
  %v4626 = vunpack.c.h.b16 %v969
  %v4627 = vunpack.c.l.b16 %v970
  %v4628 = vunpack.c.h.b16 %v970
  %v4629 = vunpack.c.l.b16 %v971
  %v4630 = vunpack.c.h.b16 %v971
  %v4631 = vunpack.c.l.b16 %v972
  %v4632 = vunpack.c.h.b16 %v972
  %v4633 = vunpack.c.l.b16 %v973
  %v4634 = vunpack.c.h.b16 %v973
  %v4635 = vunpack.c.l.b16 %v974
  %v4636 = vunpack.c.h.b16 %v974
  %v4637 = vunpack.c.l.b16 %v975
  %v4638 = vunpack.c.h.b16 %v975
  %v4639 = vunpack.c.l.b16 %v976
  %v4640 = vunpack.c.h.b16 %v976
  %v4641 = vunpack.c.l.b16 %v977
  %v4642 = vunpack.c.h.b16 %v977
  %v4643 = vunpack.c.l.b16 %v978
  %v4644 = vunpack.c.h.b16 %v978
  %v4645 = vunpack.c.l.b16 %v979
  %v4646 = vunpack.c.h.b16 %v979
  %v4647 = vunpack.c.l.b16 %v980
  %v4648 = vunpack.c.h.b16 %v980
  %v4649 = vunpack.c.l.b16 %v981
  %v4650 = vunpack.c.h.b16 %v981
  %v4651 = vunpack.c.l.b16 %v982
  %v4652 = vunpack.c.h.b16 %v982
  %v4653 = vunpack.c.l.b16 %v983
  %v4654 = vunpack.c.h.b16 %v983
  %v4655 = vunpack.c.l.b16 %v984
  %v4656 = vunpack.c.h.b16 %v984
  %v4657 = vunpack.c.l.b16 %v985
  %v4658 = vunpack.c.h.b16 %v985
  %v4659 = vunpack.c.l.b16 %v986
  %v4660 = vunpack.c.h.b16 %v986
  %v4661 = vunpack.c.l.b16 %v987
  %v4662 = vunpack.c.h.b16 %v987
  %v4663 = vunpack.c.l.b16 %v988
  %v4664 = vunpack.c.h.b16 %v988
  %v4665 = vunpack.c.l.b16 %v989
  %v4666 = vunpack.c.h.b16 %v989
  %v4667 = vunpack.c.l.b16 %v990
  %v4668 = vunpack.c.h.b16 %v990
  %v4669 = vunpack.c.l.b16 %v991
  %v4670 = vunpack.c.h.b16 %v991
  %v4671 = vunpack.c.l.b16 %v992
  %v4672 = vunpack.c.h.b16 %v992
  %v4673 = vunpack.c.l.b16 %v993
  %v4674 = vunpack.c.h.b16 %v993
  %v4675 = vunpack.c.l.b16 %v994
  %v4676 = vunpack.c.h.b16 %v994
  %v4677 = vunpack.c.l.b16 %v995
  %v4678 = vunpack.c.h.b16 %v995
  %v4679 = vunpack.c.l.b16 %v996
  %v4680 = vunpack.c.h.b16 %v996
  %v4681 = vunpack.c.l.b16 %v997
  %v4682 = vunpack.c.h.b16 %v997
  %v4683 = vunpack.c.l.b16 %v998
  %v4684 = vunpack.c.h.b16 %v998
  %v4685 = vunpack.c.l.b16 %v999
  %v4686 = vunpack.c.h.b16 %v999
  %v4687 = vunpack.c.l.b16 %v1000
  %v4688 = vunpack.c.h.b16 %v1000
  %v4689 = vunpack.c.l.b16 %v1001
  %v4690 = vunpack.c.h.b16 %v1001
  %v4691 = vunpack.c.l.b16 %v1002
  %v4692 = vunpack.c.h.b16 %v1002
  %v4693 = vunpack.c.l.b16 %v1003
  %v4694 = vunpack.c.h.b16 %v1003
  %v4695 = vunpack.c.l.b16 %v1004
  %v4696 = vunpack.c.h.b16 %v1004
  %v4697 = vunpack.c.l.b16 %v1005
  %v4698 = vunpack.c.h.b16 %v1005
  %v4699 = vunpack.c.l.b16 %v1006
  %v4700 = vunpack.c.h.b16 %v1006
  %v4701 = vunpack.c.l.b16 %v1007
  %v4702 = vunpack.c.h.b16 %v1007
  %v4703 = vunpack.c.l.b16 %v1008
  %v4704 = vunpack.c.h.b16 %v1008
  %v4705 = vunpack.c.l.b16 %v1009
  %v4706 = vunpack.c.h.b16 %v1009
  %v4707 = vunpack.c.l.b16 %v1010
  %v4708 = vunpack.c.h.b16 %v1010
  %v4709 = vunpack.c.l.b16 %v1011
  %v4710 = vunpack.c.h.b16 %v1011
  %v4711 = vunpack.c.l.b16 %v1012
  %v4712 = vunpack.c.h.b16 %v1012
  %v4713 = vunpack.c.l.b16 %v1013
  %v4714 = vunpack.c.h.b16 %v1013
  %v4715 = vunpack.c.l.b16 %v1014
  %v4716 = vunpack.c.h.b16 %v1014
  %v4717 = vunpack.c.l.b16 %v1015
  %v4718 = vunpack.c.h.b16 %v1015
  %v4719 = vunpack.c.l.b16 %v1016
  %v4720 = vunpack.c.h.b16 %v1016
  %v4721 = vunpack.c.l.b16 %v1017
  %v4722 = vunpack.c.h.b16 %v1017
  %v4723 = vunpack.c.l.b16 %v1018
  %v4724 = vunpack.c.h.b16 %v1018
  %v4725 = vunpack.c.l.b16 %v1019
  %v4726 = vunpack.c.h.b16 %v1019
  %v4727 = vunpack.c.l.b16 %v1020
  %v4728 = vunpack.c.h.b16 %v1020
  %v4729 = vunpack.c.l.b16 %v1021
  %v4730 = vunpack.c.h.b16 %v1021
  %v4731 = vunpack.c.l.b16 %v1022
  %v4732 = vunpack.c.h.b16 %v1022
  %v4733 = vunpack.c.l.b16 %v1023
  %v4734 = vunpack.c.h.b16 %v1023
  %v4735 = vunpack.c.l.b16 %v1024
  %v4736 = vunpack.c.h.b16 %v1024
  %v4737 = vunpack.c.l.b16 %v1025
  %v4738 = vunpack.c.h.b16 %v1025
  %v4739 = vunpack.c.l.b16 %v1026
  %v4740 = vunpack.c.h.b16 %v1026
  %v4741 = vunpack.c.l.b16 %v1027
  %v4742 = vunpack.c.h.b16 %v1027
  %v4743 = vunpack.c.l.b16 %v1028
  %v4744 = vunpack.c.h.b16 %v1028
  %v4745 = vunpack.c.l.b16 %v1029
  %v4746 = vunpack.c.h.b16 %v1029
  %v4747 = vunpack.c.l.b16 %v1030
  %v4748 = vunpack.c.h.b16 %v1030
  %v4749 = vunpack.c.l.b16 %v1031
  %v4750 = vunpack.c.h.b16 %v1031
  %v4751 = vunpack.c.l.b16 %v1032
  %v4752 = vunpack.c.h.b16 %v1032
  %v4753 = vunpack.c.l.b16 %v1033
  %v4754 = vunpack.c.h.b16 %v1033
  %v4755 = vunpack.c.l.b16 %v1034
  %v4756 = vunpack.c.h.b16 %v1034
  %v4757 = vunpack.c.l.b16 %v1035
  %v4758 = vunpack.c.h.b16 %v1035
  %v4759 = vunpack.c.l.b16 %v1036
  %v4760 = vunpack.c.h.b16 %v1036
  %v4761 = vunpack.c.l.b16 %v1037
  %v4762 = vunpack.c.h.b16 %v1037
  %v4763 = vunpack.c.l.b16 %v1038
  %v4764 = vunpack.c.h.b16 %v1038
  %v4765 = vunpack.c.l.b16 %v1039
  %v4766 = vunpack.c.h.b16 %v1039
  %v4767 = vunpack.c.l.b16 %v1040
  %v4768 = vunpack.c.h.b16 %v1040
  %v4769 = vunpack.c.l.b16 %v1041
  %v4770 = vunpack.c.h.b16 %v1041
  %v4771 = vunpack.c.l.b16 %v1042
  %v4772 = vunpack.c.h.b16 %v1042
  %v4773 = vunpack.c.l.b16 %v1043
  %v4774 = vunpack.c.h.b16 %v1043
  %v4775 = vunpack.c.l.b16 %v1044
  %v4776 = vunpack.c.h.b16 %v1044
  %v4777 = vunpack.c.l.b16 %v1045
  %v4778 = vunpack.c.h.b16 %v1045
  %v4779 = vunpack.c.l.b16 %v1046
  %v4780 = vunpack.c.h.b16 %v1046
  %v4781 = vunpack.c.l.b16 %v1047
  %v4782 = vunpack.c.h.b16 %v1047
  %v4783 = vunpack.c.l.b16 %v1048
  %v4784 = vunpack.c.h.b16 %v1048
  %v4785 = vunpack.c.l.b16 %v1049
  %v4786 = vunpack.c.h.b16 %v1049
  %v4787 = vunpack.c.l.b16 %v1050
  %v4788 = vunpack.c.h.b16 %v1050
  %v4789 = vunpack.c.l.b16 %v1051
  %v4790 = vunpack.c.h.b16 %v1051
  %v4791 = vunpack.c.l.b16 %v1052
  %v4792 = vunpack.c.h.b16 %v1052
  %v4793 = vunpack.c.l.b16 %v1053
  %v4794 = vunpack.c.h.b16 %v1053
  %v4795 = vunpack.c.l.b16 %v1054
  %v4796 = vunpack.c.h.b16 %v1054
  %v4797 = vunpack.c.l.b16 %v1055
  %v4798 = vunpack.c.h.b16 %v1055
  %v4799 = vunpack.c.l.b16 %v1056
  %v4800 = vunpack.c.h.b16 %v1056
  %v4801 = vunpack.c.l.b16 %v1057
  %v4802 = vunpack.c.h.b16 %v1057
  %v4803 = vunpack.c.l.b16 %v1058
  %v4804 = vunpack.c.h.b16 %v1058
  %v4805 = vunpack.c.l.b16 %v1059
  %v4806 = vunpack.c.h.b16 %v1059
  %v4807 = vunpack.c.l.b16 %v1060
  %v4808 = vunpack.c.h.b16 %v1060
  %v4809 = vunpack.c.l.b16 %v1061
  %v4810 = vunpack.c.h.b16 %v1061
  %v4811 = vunpack.c.l.b16 %v1062
  %v4812 = vunpack.c.h.b16 %v1062
  %v4813 = vunpack.c.l.b16 %v1063
  %v4814 = vunpack.c.h.b16 %v1063
  %v4815 = vunpack.c.l.b16 %v1064
  %v4816 = vunpack.c.h.b16 %v1064
  %v4817 = vunpack.c.l.b16 %v1065
  %v4818 = vunpack.c.h.b16 %v1065
  %v4819 = vunpack.c.l.b16 %v1066
  %v4820 = vunpack.c.h.b16 %v1066
  %v4821 = vunpack.c.l.b16 %v1067
  %v4822 = vunpack.c.h.b16 %v1067
  %v4823 = vunpack.c.l.b16 %v1068
  %v4824 = vunpack.c.h.b16 %v1068
  %v4825 = vunpack.c.l.b16 %v1069
  %v4826 = vunpack.c.h.b16 %v1069
  %v4827 = vunpack.c.l.b16 %v1070
  %v4828 = vunpack.c.h.b16 %v1070
  %v4829 = vunpack.c.l.b16 %v1071
  %v4830 = vunpack.c.h.b16 %v1071
  %v4831 = vunpack.c.l.b16 %v1072
  %v4832 = vunpack.c.h.b16 %v1072
  %v4833 = vunpack.c.l.b16 %v1073
  %v4834 = vunpack.c.h.b16 %v1073
  %v4835 = vunpack.c.l.b16 %v1074
  %v4836 = vunpack.c.h.b16 %v1074
  %v4837 = vunpack.c.l.b16 %v1075
  %v4838 = vunpack.c.h.b16 %v1075
  %v4839 = vunpack.c.l.b16 %v1076
  %v4840 = vunpack.c.h.b16 %v1076
  %v4841 = vunpack.c.l.b16 %v1077
  %v4842 = vunpack.c.h.b16 %v1077
  %v4843 = vunpack.c.l.b16 %v1078
  %v4844 = vunpack.c.h.b16 %v1078
  %v4845 = vunpack.c.l.b16 %v1079
  %v4846 = vunpack.c.h.b16 %v1079
  %v4847 = vunpack.c.l.b16 %v1080
  %v4848 = vunpack.c.h.b16 %v1080
  %v4849 = vunpack.c.l.b16 %v1081
  %v4850 = vunpack.c.h.b16 %v1081
  %v4851 = vunpack.c.l.b16 %v1082
  %v4852 = vunpack.c.h.b16 %v1082
  %v4853 = vunpack.c.l.b16 %v1083
  %v4854 = vunpack.c.h.b16 %v1083
  %v4855 = vunpack.c.l.b16 %v1084
  %v4856 = vunpack.c.h.b16 %v1084
  %v4857 = vunpack.c.l.b16 %v1085
  %v4858 = vunpack.c.h.b16 %v1085
  %v4859 = vunpack.c.l.b16 %v1086
  %v4860 = vunpack.c.h.b16 %v1086
  %v4861 = vunpack.c.l.b16 %v1087
  %v4862 = vunpack.c.h.b16 %v1087
  %v4863 = vunpack.c.l.b16 %v1088
  %v4864 = vunpack.c.h.b16 %v1088
  %v4865 = vunpack.c.l.b16 %v1089
  %v4866 = vunpack.c.h.b16 %v1089
  %v4867 = vunpack.c.l.b16 %v1090
  %v4868 = vunpack.c.h.b16 %v1090
  %v4869 = vunpack.c.l.b16 %v1091
  %v4870 = vunpack.c.h.b16 %v1091
  %v4871 = vunpack.c.l.b16 %v1092
  %v4872 = vunpack.c.h.b16 %v1092
  %v4873 = vunpack.c.l.b16 %v1093
  %v4874 = vunpack.c.h.b16 %v1093
  %v4875 = vunpack.c.l.b16 %v1094
  %v4876 = vunpack.c.h.b16 %v1094
  %v4877 = vunpack.c.l.b16 %v1095
  %v4878 = vunpack.c.h.b16 %v1095
  %v4879 = vunpack.c.l.b16 %v1096
  %v4880 = vunpack.c.h.b16 %v1096
  %v4881 = vunpack.c.l.b16 %v1097
  %v4882 = vunpack.c.h.b16 %v1097
  %v4883 = vunpack.c.l.b16 %v1098
  %v4884 = vunpack.c.h.b16 %v1098
  %v4885 = vunpack.c.l.b16 %v1099
  %v4886 = vunpack.c.h.b16 %v1099
  %v4887 = vunpack.c.l.b16 %v1100
  %v4888 = vunpack.c.h.b16 %v1100
  %v4889 = vunpack.c.l.b16 %v1101
  %v4890 = vunpack.c.h.b16 %v1101
  %v4891 = vunpack.c.l.b16 %v1102
  %v4892 = vunpack.c.h.b16 %v1102
  %v4893 = vunpack.c.l.b16 %v1103
  %v4894 = vunpack.c.h.b16 %v1103
  %v4895 = vunpack.c.l.b16 %v1104
  %v4896 = vunpack.c.h.b16 %v1104
  %v4897 = vunpack.c.l.b16 %v1105
  %v4898 = vunpack.c.h.b16 %v1105
  %v4899 = vunpack.c.l.b16 %v1106
  %v4900 = vunpack.c.h.b16 %v1106
  %v4901 = vunpack.c.l.b16 %v1107
  %v4902 = vunpack.c.h.b16 %v1107
  %v4903 = vunpack.c.l.b16 %v1108
  %v4904 = vunpack.c.h.b16 %v1108
  %v4905 = vunpack.c.l.b16 %v1109
  %v4906 = vunpack.c.h.b16 %v1109
  %v4907 = vunpack.c.l.b16 %v1110
  %v4908 = vunpack.c.h.b16 %v1110
  %v4909 = vunpack.c.l.b16 %v1111
  %v4910 = vunpack.c.h.b16 %v1111
  %v4911 = vunpack.c.l.b16 %v1112
  %v4912 = vunpack.c.h.b16 %v1112
  %v4913 = vunpack.c.l.b16 %v1113
  %v4914 = vunpack.c.h.b16 %v1113
  %v4915 = vunpack.c.l.b16 %v1114
  %v4916 = vunpack.c.h.b16 %v1114
  %v4917 = vunpack.c.l.b16 %v1115
  %v4918 = vunpack.c.h.b16 %v1115
  %v4919 = vunpack.c.l.b16 %v1116
  %v4920 = vunpack.c.h.b16 %v1116
  %v4921 = vunpack.c.l.b16 %v1117
  %v4922 = vunpack.c.h.b16 %v1117
  %v4923 = vunpack.c.l.b16 %v1118
  %v4924 = vunpack.c.h.b16 %v1118
  %v4925 = vunpack.c.l.b16 %v1119
  %v4926 = vunpack.c.h.b16 %v1119
  %v4927 = vunpack.c.l.b16 %v1120
  %v4928 = vunpack.c.h.b16 %v1120
  %v4929 = vunpack.c.l.b16 %v1121
  %v4930 = vunpack.c.h.b16 %v1121
  %v4931 = vunpack.c.l.b16 %v1122
  %v4932 = vunpack.c.h.b16 %v1122
  %v4933 = vunpack.c.l.b16 %v1123
  %v4934 = vunpack.c.h.b16 %v1123
  %v4935 = vunpack.c.l.b16 %v1124
  %v4936 = vunpack.c.h.b16 %v1124
  %v4937 = vunpack.c.l.b16 %v1125
  %v4938 = vunpack.c.h.b16 %v1125
  %v4939 = vunpack.c.l.b16 %v1126
  %v4940 = vunpack.c.h.b16 %v1126
  %v4941 = vunpack.c.l.b16 %v1127
  %v4942 = vunpack.c.h.b16 %v1127
  %v4943 = vunpack.c.l.b16 %v1128
  %v4944 = vunpack.c.h.b16 %v1128
  %v4945 = vunpack.c.l.b16 %v1129
  %v4946 = vunpack.c.h.b16 %v1129
  %v4947 = vunpack.c.l.b16 %v1130
  %v4948 = vunpack.c.h.b16 %v1130
  %v4949 = vunpack.c.l.b16 %v1131
  %v4950 = vunpack.c.h.b16 %v1131
  %v4951 = vunpack.c.l.b16 %v1132
  %v4952 = vunpack.c.h.b16 %v1132
  %v4953 = vunpack.c.l.b16 %v1133
  %v4954 = vunpack.c.h.b16 %v1133
  %v4955 = vunpack.c.l.b16 %v1134
  %v4956 = vunpack.c.h.b16 %v1134
  %v4957 = vunpack.c.l.b16 %v1135
  %v4958 = vunpack.c.h.b16 %v1135
  %v4959 = vunpack.c.l.b16 %v1136
  %v4960 = vunpack.c.h.b16 %v1136
  %v4961 = vunpack.c.l.b16 %v1137
  %v4962 = vunpack.c.h.b16 %v1137
  %v4963 = vunpack.c.l.b16 %v1138
  %v4964 = vunpack.c.h.b16 %v1138
  %v4965 = vunpack.c.l.b16 %v1139
  %v4966 = vunpack.c.h.b16 %v1139
  %v4967 = vunpack.c.l.b16 %v1140
  %v4968 = vunpack.c.h.b16 %v1140
  %v4969 = vunpack.c.l.b16 %v1141
  %v4970 = vunpack.c.h.b16 %v1141
  %v4971 = vunpack.c.l.b16 %v1142
  %v4972 = vunpack.c.h.b16 %v1142
  %v4973 = vunpack.c.l.b16 %v1143
  %v4974 = vunpack.c.h.b16 %v1143
  %v4975 = vunpack.c.l.b16 %v1144
  %v4976 = vunpack.c.h.b16 %v1144
  %v4977 = vunpack.c.l.b16 %v1145
  %v4978 = vunpack.c.h.b16 %v1145
  %v4979 = vunpack.c.l.b16 %v1146
  %v4980 = vunpack.c.h.b16 %v1146
  %v4981 = vunpack.c.l.b16 %v1147
  %v4982 = vunpack.c.h.b16 %v1147
  %v4983 = vunpack.c.l.b16 %v1148
  %v4984 = vunpack.c.h.b16 %v1148
  %v4985 = vunpack.c.l.b16 %v1149
  %v4986 = vunpack.c.h.b16 %v1149
  %v4987 = vunpack.c.l.b16 %v1150
  %v4988 = vunpack.c.h.b16 %v1150
  %v4989 = vunpack.c.l.b16 %v1151
  %v4990 = vunpack.c.h.b16 %v1151
  %v4991 = vunpack.c.l.b16 %v1152
  %v4992 = vunpack.c.h.b16 %v1152
  %v4993 = vunpack.c.l.b16 %v1153
  %v4994 = vunpack.c.h.b16 %v1153
  %v4995 = vunpack.c.l.b16 %v1154
  %v4996 = vunpack.c.h.b16 %v1154
  %v4997 = vunpack.c.l.b16 %v1155
  %v4998 = vunpack.c.h.b16 %v1155
  %v4999 = vunpack.c.l.b16 %v1156
  %v5000 = vunpack.c.h.b16 %v1156
  %v5001 = vunpack.c.l.b16 %v1157
  %v5002 = vunpack.c.h.b16 %v1157
  %v5003 = vunpack.c.l.b16 %v1158
  %v5004 = vunpack.c.h.b16 %v1158
  %v5005 = vunpack.c.l.b16 %v1159
  %v5006 = vunpack.c.h.b16 %v1159
  %v5007 = vunpack.c.l.b16 %v1160
  %v5008 = vunpack.c.h.b16 %v1160
  %v5009 = vunpack.c.l.b16 %v1161
  %v5010 = vunpack.c.h.b16 %v1161
  %v5011 = vunpack.c.l.b16 %v1162
  %v5012 = vunpack.c.h.b16 %v1162
  %v5013 = vunpack.c.l.b16 %v1163
  %v5014 = vunpack.c.h.b16 %v1163
  %v5015 = vunpack.c.l.b16 %v1164
  %v5016 = vunpack.c.h.b16 %v1164
  %v5017 = vunpack.c.l.b16 %v1165
  %v5018 = vunpack.c.h.b16 %v1165
  %v5019 = vunpack.c.l.b16 %v1166
  %v5020 = vunpack.c.h.b16 %v1166
  %v5021 = vunpack.c.l.b16 %v1167
  %v5022 = vunpack.c.h.b16 %v1167
  %v5023 = vunpack.c.l.b16 %v1168
  %v5024 = vunpack.c.h.b16 %v1168
  %v5025 = vunpack.c.l.b16 %v1169
  %v5026 = vunpack.c.h.b16 %v1169
  %v5027 = vunpack.c.l.b16 %v1170
  %v5028 = vunpack.c.h.b16 %v1170
  %v5029 = vunpack.c.l.b16 %v1171
  %v5030 = vunpack.c.h.b16 %v1171
  %v5031 = vunpack.c.l.b16 %v1172
  %v5032 = vunpack.c.h.b16 %v1172
  %v5033 = vunpack.c.l.b16 %v1173
  %v5034 = vunpack.c.h.b16 %v1173
  %v5035 = vunpack.c.l.b16 %v1174
  %v5036 = vunpack.c.h.b16 %v1174
  %v5037 = vunpack.c.l.b16 %v1175
  %v5038 = vunpack.c.h.b16 %v1175
  %v5039 = vunpack.c.l.b16 %v1176
  %v5040 = vunpack.c.h.b16 %v1176
  %v5041 = vunpack.c.l.b16 %v1177
  %v5042 = vunpack.c.h.b16 %v1177
  %v5043 = vunpack.c.l.b16 %v1178
  %v5044 = vunpack.c.h.b16 %v1178
  %v5045 = vunpack.c.l.b16 %v1179
  %v5046 = vunpack.c.h.b16 %v1179
  %v5047 = vunpack.c.l.b16 %v1180
  %v5048 = vunpack.c.h.b16 %v1180
  %v5049 = vunpack.c.l.b16 %v1181
  %v5050 = vunpack.c.h.b16 %v1181
  %v5051 = vunpack.c.l.b16 %v1182
  %v5052 = vunpack.c.h.b16 %v1182
  %v5053 = vunpack.c.l.b16 %v1183
  %v5054 = vunpack.c.h.b16 %v1183
  %v5055 = vunpack.c.l.b16 %v1184
  %v5056 = vunpack.c.h.b16 %v1184
  %v5057 = vunpack.c.l.b16 %v1185
  %v5058 = vunpack.c.h.b16 %v1185
  %v5059 = vunpack.c.l.b16 %v1186
  %v5060 = vunpack.c.h.b16 %v1186
  %v5061 = vunpack.c.l.b16 %v1187
  %v5062 = vunpack.c.h.b16 %v1187
  %v5063 = vunpack.c.l.b16 %v1188
  %v5064 = vunpack.c.h.b16 %v1188
  %v5065 = vunpack.c.l.b16 %v1189
  %v5066 = vunpack.c.h.b16 %v1189
  %v5067 = vunpack.c.l.b16 %v1190
  %v5068 = vunpack.c.h.b16 %v1190
  %v5069 = vunpack.c.l.b16 %v1191
  %v5070 = vunpack.c.h.b16 %v1191
  %v5071 = vunpack.c.l.b16 %v1192
  %v5072 = vunpack.c.h.b16 %v1192
  %v5073 = vunpack.c.l.b16 %v1193
  %v5074 = vunpack.c.h.b16 %v1193
  %v5075 = vunpack.c.l.b16 %v1194
  %v5076 = vunpack.c.h.b16 %v1194
  %v5077 = vunpack.c.l.b16 %v1195
  %v5078 = vunpack.c.h.b16 %v1195
  %v5079 = vunpack.c.l.b16 %v1196
  %v5080 = vunpack.c.h.b16 %v1196
  %v5081 = vunpack.c.l.b16 %v1197
  %v5082 = vunpack.c.h.b16 %v1197
  %v5083 = vunpack.c.l.b16 %v1198
  %v5084 = vunpack.c.h.b16 %v1198
  %v5085 = vunpack.c.l.b16 %v1199
  %v5086 = vunpack.c.h.b16 %v1199
  %v5087 = vunpack.c.l.b16 %v1200
  %v5088 = vunpack.c.h.b16 %v1200
  %v5089 = vunpack.c.l.b16 %v1201
  %v5090 = vunpack.c.h.b16 %v1201
  %v5091 = vunpack.c.l.b16 %v1202
  %v5092 = vunpack.c.h.b16 %v1202
  %v5093 = vunpack.c.l.b16 %v1203
  %v5094 = vunpack.c.h.b16 %v1203
  %v5095 = vunpack.c.l.b16 %v1204
  %v5096 = vunpack.c.h.b16 %v1204
  %v5097 = vunpack.c.l.b16 %v1205
  %v5098 = vunpack.c.h.b16 %v1205
  %v5099 = vunpack.c.l.b16 %v1206
  %v5100 = vunpack.c.h.b16 %v1206
  %v5101 = vunpack.c.l.b16 %v1207
  %v5102 = vunpack.c.h.b16 %v1207
  %v5103 = vunpack.c.l.b16 %v1208
  %v5104 = vunpack.c.h.b16 %v1208
  %v5105 = vunpack.c.l.b16 %v1209
  %v5106 = vunpack.c.h.b16 %v1209
  %v5107 = vunpack.c.l.b16 %v1210
  %v5108 = vunpack.c.h.b16 %v1210
  %v5109 = vunpack.c.l.b16 %v1211
  %v5110 = vunpack.c.h.b16 %v1211
  %v5111 = vunpack.c.l.b16 %v1212
  %v5112 = vunpack.c.h.b16 %v1212
  %v5113 = vunpack.c.l.b16 %v1213
  %v5114 = vunpack.c.h.b16 %v1213
  %v5115 = vunpack.c.l.b16 %v1214
  %v5116 = vunpack.c.h.b16 %v1214
  %v5117 = vunpack.c.l.b16 %v1215
  %v5118 = vunpack.c.h.b16 %v1215
  %v5119 = vunpack.c.l.b16 %v1216
  %v5120 = vunpack.c.h.b16 %v1216
  %v5121 = vunpack.c.l.b16 %v1217
  %v5122 = vunpack.c.h.b16 %v1217
  %v5123 = vunpack.c.l.b16 %v1218
  %v5124 = vunpack.c.h.b16 %v1218
  %v5125 = vunpack.c.l.b16 %v1219
  %v5126 = vunpack.c.h.b16 %v1219
  %v5127 = vunpack.c.l.b16 %v1220
  %v5128 = vunpack.c.h.b16 %v1220
  %v5129 = vunpack.c.l.b16 %v1221
  %v5130 = vunpack.c.h.b16 %v1221
  %v5131 = vunpack.c.l.b16 %v1222
  %v5132 = vunpack.c.h.b16 %v1222
  %v5133 = vunpack.c.l.b16 %v1223
  %v5134 = vunpack.c.h.b16 %v1223
  %v5135 = vunpack.c.l.b16 %v1224
  %v5136 = vunpack.c.h.b16 %v1224
  %v5137 = vunpack.c.l.b16 %v1225
  %v5138 = vunpack.c.h.b16 %v1225
  %v5139 = vunpack.c.l.b16 %v1226
  %v5140 = vunpack.c.h.b16 %v1226
  %v5141 = vunpack.c.l.b16 %v1227
  %v5142 = vunpack.c.h.b16 %v1227
  %v5143 = vunpack.c.l.b16 %v1228
  %v5144 = vunpack.c.h.b16 %v1228
  %v5145 = vunpack.c.l.b16 %v1229
  %v5146 = vunpack.c.h.b16 %v1229
  %v5147 = vunpack.c.l.b16 %v1230
  %v5148 = vunpack.c.h.b16 %v1230
  %v5149 = vunpack.c.l.b16 %v1231
  %v5150 = vunpack.c.h.b16 %v1231
  %v5151 = vunpack.c.l.b16 %v1232
  %v5152 = vunpack.c.h.b16 %v1232
  %v5153 = vunpack.c.l.b16 %v1233
  %v5154 = vunpack.c.h.b16 %v1233
  %v5155 = vunpack.c.l.b16 %v1234
  %v5156 = vunpack.c.h.b16 %v1234
  %v5157 = vunpack.c.l.b16 %v1235
  %v5158 = vunpack.c.h.b16 %v1235
  %v5159 = vunpack.c.l.b16 %v1236
  %v5160 = vunpack.c.h.b16 %v1236
  %v5161 = vunpack.c.l.b16 %v1237
  %v5162 = vunpack.c.h.b16 %v1237
  %v5163 = vunpack.c.l.b16 %v1238
  %v5164 = vunpack.c.h.b16 %v1238
  %v5165 = vunpack.c.l.b16 %v1239
  %v5166 = vunpack.c.h.b16 %v1239
  %v5167 = vunpack.c.l.b16 %v1240
  %v5168 = vunpack.c.h.b16 %v1240
  %v5169 = vunpack.c.l.b16 %v1241
  %v5170 = vunpack.c.h.b16 %v1241
  %v5171 = vunpack.c.l.b16 %v1242
  %v5172 = vunpack.c.h.b16 %v1242
  %v5173 = vunpack.c.l.b16 %v1243
  %v5174 = vunpack.c.h.b16 %v1243
  %v5175 = vunpack.c.l.b16 %v1244
  %v5176 = vunpack.c.h.b16 %v1244
  %v5177 = vunpack.c.l.b16 %v1245
  %v5178 = vunpack.c.h.b16 %v1245
  %v5179 = vunpack.c.l.b16 %v1246
  %v5180 = vunpack.c.h.b16 %v1246
  %v5181 = vunpack.c.l.b16 %v1247
  %v5182 = vunpack.c.h.b16 %v1247
  %v5183 = vunpack.c.l.b16 %v1248
  %v5184 = vunpack.c.h.b16 %v1248
  %v5185 = vunpack.c.l.b16 %v1249
  %v5186 = vunpack.c.h.b16 %v1249
  %v5187 = vunpack.c.l.b16 %v1250
  %v5188 = vunpack.c.h.b16 %v1250
  %v5189 = vunpack.c.l.b16 %v1251
  %v5190 = vunpack.c.h.b16 %v1251
  %v5191 = vunpack.c.l.b16 %v1252
  %v5192 = vunpack.c.h.b16 %v1252
  %v5193 = vunpack.c.l.b16 %v1253
  %v5194 = vunpack.c.h.b16 %v1253
  %v5195 = vunpack.c.l.b16 %v1254
  %v5196 = vunpack.c.h.b16 %v1254
  %v5197 = vunpack.c.l.b16 %v1255
  %v5198 = vunpack.c.h.b16 %v1255
  %v5199 = vunpack.c.l.b16 %v1256
  %v5200 = vunpack.c.h.b16 %v1256
  %v5201 = vunpack.c.l.b16 %v1257
  %v5202 = vunpack.c.h.b16 %v1257
  %v5203 = vunpack.c.l.b16 %v1258
  %v5204 = vunpack.c.h.b16 %v1258
  %v5205 = vunpack.c.l.b16 %v1259
  %v5206 = vunpack.c.h.b16 %v1259
  %v5207 = vunpack.c.l.b16 %v1260
  %v5208 = vunpack.c.h.b16 %v1260
  %v5209 = vunpack.c.l.b16 %v1261
  %v5210 = vunpack.c.h.b16 %v1261
  %v5211 = vunpack.c.l.b16 %v1262
  %v5212 = vunpack.c.h.b16 %v1262
  %v5213 = vunpack.c.l.b16 %v1263
  %v5214 = vunpack.c.h.b16 %v1263
  %v5215 = vunpack.c.l.b16 %v1264
  %v5216 = vunpack.c.h.b16 %v1264
  %v5217 = vunpack.c.l.b16 %v1265
  %v5218 = vunpack.c.h.b16 %v1265
  %v5219 = vunpack.c.l.b16 %v1266
  %v5220 = vunpack.c.h.b16 %v1266
  %v5221 = vunpack.c.l.b16 %v1267
  %v5222 = vunpack.c.h.b16 %v1267
  %v5223 = vunpack.c.l.b16 %v1268
  %v5224 = vunpack.c.h.b16 %v1268
  %v5225 = vunpack.c.l.b16 %v1269
  %v5226 = vunpack.c.h.b16 %v1269
  %v5227 = vunpack.c.l.b16 %v1270
  %v5228 = vunpack.c.h.b16 %v1270
  %v5229 = vunpack.c.l.b16 %v1271
  %v5230 = vunpack.c.h.b16 %v1271
  %v5231 = vunpack.c.l.b16 %v1272
  %v5232 = vunpack.c.h.b16 %v1272
  %v5233 = vunpack.c.l.b16 %v1273
  %v5234 = vunpack.c.h.b16 %v1273
  %v5235 = vunpack.c.l.b16 %v1274
  %v5236 = vunpack.c.h.b16 %v1274
  %v5237 = vunpack.c.l.b16 %v1275
  %v5238 = vunpack.c.h.b16 %v1275
  %v5239 = vunpack.c.l.b16 %v1276
  %v5240 = vunpack.c.h.b16 %v1276
  %v5241 = vunpack.c.l.b16 %v1277
  %v5242 = vunpack.c.h.b16 %v1277
  %v5243 = vunpack.c.l.b16 %v1278
  %v5244 = vunpack.c.h.b16 %v1278
  %v5245 = vunpack.c.l.b16 %v1279
  %v5246 = vunpack.c.h.b16 %v1279
  %v5247 = vunpack.c.l.b16 %v1280
  %v5248 = vunpack.c.h.b16 %v1280
  %v5249 = vunpack.c.l.b16 %v1281
  %v5250 = vunpack.c.h.b16 %v1281
  %v5251 = vunpack.c.l.b16 %v1282
  %v5252 = vunpack.c.h.b16 %v1282
  %v5253 = vunpack.c.l.b16 %v1283
  %v5254 = vunpack.c.h.b16 %v1283
  %v5255 = vunpack.c.l.b16 %v1284
  %v5256 = vunpack.c.h.b16 %v1284
  %v5257 = vunpack.c.l.b16 %v1285
  %v5258 = vunpack.c.h.b16 %v1285
  %v5259 = vunpack.c.l.b16 %v1286
  %v5260 = vunpack.c.h.b16 %v1286
  %v5261 = vunpack.c.l.b16 %v1287
  %v5262 = vunpack.c.h.b16 %v1287
  %v5263 = vunpack.c.l.b16 %v1288
  %v5264 = vunpack.c.h.b16 %v1288
  %v5265 = vunpack.c.l.b16 %v1289
  %v5266 = vunpack.c.h.b16 %v1289
  %v5267 = vunpack.c.l.b16 %v1290
  %v5268 = vunpack.c.h.b16 %v1290
  %v5269 = vunpack.c.l.b16 %v1291
  %v5270 = vunpack.c.h.b16 %v1291
  %v5271 = vunpack.c.l.b16 %v1292
  %v5272 = vunpack.c.h.b16 %v1292
  %v5273 = vunpack.c.l.b16 %v1293
  %v5274 = vunpack.c.h.b16 %v1293
  %v5275 = vunpack.c.l.b16 %v1294
  %v5276 = vunpack.c.h.b16 %v1294
  %v5277 = vunpack.c.l.b16 %v1295
  %v5278 = vunpack.c.h.b16 %v1295
  %v5279 = vunpack.c.l.b16 %v1296
  %v5280 = vunpack.c.h.b16 %v1296
  %v5281 = vunpack.c.l.b16 %v1297
  %v5282 = vunpack.c.h.b16 %v1297
  %v5283 = vunpack.c.l.b16 %v1298
  %v5284 = vunpack.c.h.b16 %v1298
  %v5285 = vunpack.c.l.b16 %v1299
  %v5286 = vunpack.c.h.b16 %v1299
  %v5287 = vunpack.c.l.b16 %v1300
  %v5288 = vunpack.c.h.b16 %v1300
  %v5289 = vunpack.c.l.b16 %v1301
  %v5290 = vunpack.c.h.b16 %v1301
  %v5291 = vunpack.c.l.b16 %v1302
  %v5292 = vunpack.c.h.b16 %v1302
  %v5293 = vunpack.c.l.b16 %v1303
  %v5294 = vunpack.c.h.b16 %v1303
  %v5295 = vunpack.c.l.b16 %v1304
  %v5296 = vunpack.c.h.b16 %v1304
  %v5297 = vunpack.c.l.b16 %v1305
  %v5298 = vunpack.c.h.b16 %v1305
  %v5299 = vunpack.c.l.b16 %v1306
  %v5300 = vunpack.c.h.b16 %v1306
  %v5301 = vunpack.c.l.b16 %v1307
  %v5302 = vunpack.c.h.b16 %v1307
  %v5303 = vunpack.c.l.b16 %v1308
  %v5304 = vunpack.c.h.b16 %v1308
  %v5305 = vunpack.c.l.b16 %v1309
  %v5306 = vunpack.c.h.b16 %v1309
  %v5307 = vunpack.c.l.b16 %v1310
  %v5308 = vunpack.c.h.b16 %v1310
  %v5309 = vunpack.c.l.b16 %v1311
  %v5310 = vunpack.c.h.b16 %v1311
  %v5311 = vunpack.c.l.b16 %v1312
  %v5312 = vunpack.c.h.b16 %v1312
  %v5313 = vunpack.c.l.b16 %v1313
  %v5314 = vunpack.c.h.b16 %v1313
  %v5315 = vunpack.c.l.b16 %v1314
  %v5316 = vunpack.c.h.b16 %v1314
  %v5317 = vunpack.c.l.b16 %v1315
  %v5318 = vunpack.c.h.b16 %v1315
  %v5319 = vunpack.c.l.b16 %v1316
  %v5320 = vunpack.c.h.b16 %v1316
  %v5321 = vunpack.c.l.b16 %v1317
  %v5322 = vunpack.c.h.b16 %v1317
  %v5323 = vunpack.c.l.b16 %v1318
  %v5324 = vunpack.c.h.b16 %v1318
  %v5325 = vunpack.c.l.b16 %v1319
  %v5326 = vunpack.c.h.b16 %v1319
  %v5327 = vunpack.c.l.b16 %v1320
  %v5328 = vunpack.c.h.b16 %v1320
  %v5329 = vunpack.c.l.b16 %v1321
  %v5330 = vunpack.c.h.b16 %v1321
  %v5331 = vunpack.c.l.b16 %v1322
  %v5332 = vunpack.c.h.b16 %v1322
  %v5333 = vpack.c.b16 %v2757, %v2741
  %v5334 = vpack.c.b16 %v2758, %v2742
  %v5335 = vpack.c.b16 %v2759, %v2743
  %v5336 = vpack.c.b16 %v2760, %v2744
  %v5337 = vpack.c.b16 %v2761, %v2745
  %v5338 = vpack.c.b16 %v2762, %v2746
  %v5339 = vpack.c.b16 %v2763, %v2747
  %v5340 = vpack.c.b16 %v2764, %v2748
  %v5341 = vpack.c.b16 %v2765, %v2749
  %v5342 = vpack.c.b16 %v2766, %v2750
  %v5343 = vpack.c.b16 %v2767, %v2751
  %v5344 = vpack.c.b16 %v2768, %v2752
  %v5345 = vpack.c.b16 %v2769, %v2753
  %v5346 = vpack.c.b16 %v2770, %v2754
  %v5347 = vpack.c.b16 %v2771, %v2755
  %v5348 = vpack.c.b16 %v2772, %v2756
  %v5349 = vpack.c.b16 %v2789, %v2773
  %v5350 = vpack.c.b16 %v2790, %v2774
  %v5351 = vpack.c.b16 %v2791, %v2775
  %v5352 = vpack.c.b16 %v2792, %v2776
  %v5353 = vpack.c.b16 %v2793, %v2777
  %v5354 = vpack.c.b16 %v2794, %v2778
  %v5355 = vpack.c.b16 %v2795, %v2779
  %v5356 = vpack.c.b16 %v2796, %v2780
  %v5357 = vpack.c.b16 %v2797, %v2781
  %v5358 = vpack.c.b16 %v2798, %v2782
  %v5359 = vpack.c.b16 %v2799, %v2783
  %v5360 = vpack.c.b16 %v2800, %v2784
  %v5361 = vpack.c.b16 %v2801, %v2785
  %v5362 = vpack.c.b16 %v2802, %v2786
  %v5363 = vpack.c.b16 %v2803, %v2787
  %v5364 = vpack.c.b16 %v2804, %v2788
  %v5365 = vpack.c.b16 %v2821, %v2805
  %v5366 = vpack.c.b16 %v2822, %v2806
  %v5367 = vpack.c.b16 %v2823, %v2807
  %v5368 = vpack.c.b16 %v2824, %v2808
  %v5369 = vpack.c.b16 %v2825, %v2809
  %v5370 = vpack.c.b16 %v2826, %v2810
  %v5371 = vpack.c.b16 %v2827, %v2811
  %v5372 = vpack.c.b16 %v2828, %v2812
  %v5373 = vpack.c.b16 %v2829, %v2813
  %v5374 = vpack.c.b16 %v2830, %v2814
  %v5375 = vpack.c.b16 %v2831, %v2815
  %v5376 = vpack.c.b16 %v2832, %v2816
  %v5377 = vpack.c.b16 %v2833, %v2817
  %v5378 = vpack.c.b16 %v2834, %v2818
  %v5379 = vpack.c.b16 %v2835, %v2819
  %v5380 = vpack.c.b16 %v2836, %v2820
  %v5381 = vpack.c.b16 %v2853, %v2837
  %v5382 = vpack.c.b16 %v2854, %v2838
  %v5383 = vpack.c.b16 %v2855, %v2839
  %v5384 = vpack.c.b16 %v2856, %v2840
  %v5385 = vpack.c.b16 %v2857, %v2841
  %v5386 = vpack.c.b16 %v2858, %v2842
  %v5387 = vpack.c.b16 %v2859, %v2843
  %v5388 = vpack.c.b16 %v2860, %v2844
  %v5389 = vpack.c.b16 %v2861, %v2845
  %v5390 = vpack.c.b16 %v2862, %v2846
  %v5391 = vpack.c.b16 %v2863, %v2847
  %v5392 = vpack.c.b16 %v2864, %v2848
  %v5393 = vpack.c.b16 %v2865, %v2849
  %v5394 = vpack.c.b16 %v2866, %v2850
  %v5395 = vpack.c.b16 %v2867, %v2851
  %v5396 = vpack.c.b16 %v2868, %v2852
  %v5397 = vpack.c.b16 %v2885, %v2869
  %v5398 = vpack.c.b16 %v2886, %v2870
  %v5399 = vpack.c.b16 %v2887, %v2871
  %v5400 = vpack.c.b16 %v2888, %v2872
  %v5401 = vpack.c.b16 %v2889, %v2873
  %v5402 = vpack.c.b16 %v2890, %v2874
  %v5403 = vpack.c.b16 %v2891, %v2875
  %v5404 = vpack.c.b16 %v2892, %v2876
  %v5405 = vpack.c.b16 %v2893, %v2877
  %v5406 = vpack.c.b16 %v2894, %v2878
  %v5407 = vpack.c.b16 %v2895, %v2879
  %v5408 = vpack.c.b16 %v2896, %v2880
  %v5409 = vpack.c.b16 %v2897, %v2881
  %v5410 = vpack.c.b16 %v2898, %v2882
  %v5411 = vpack.c.b16 %v2899, %v2883
  %v5412 = vpack.c.b16 %v2900, %v2884
  %v5413 = vpack.c.b16 %v2917, %v2901
  %v5414 = vpack.c.b16 %v2918, %v2902
  %v5415 = vpack.c.b16 %v2919, %v2903
  %v5416 = vpack.c.b16 %v2920, %v2904
  %v5417 = vpack.c.b16 %v2921, %v2905
  %v5418 = vpack.c.b16 %v2922, %v2906
  %v5419 = vpack.c.b16 %v2923, %v2907
  %v5420 = vpack.c.b16 %v2924, %v2908
  %v5421 = vpack.c.b16 %v2925, %v2909
  %v5422 = vpack.c.b16 %v2926, %v2910
  %v5423 = vpack.c.b16 %v2927, %v2911
  %v5424 = vpack.c.b16 %v2928, %v2912
  %v5425 = vpack.c.b16 %v2929, %v2913
  %v5426 = vpack.c.b16 %v2930, %v2914
  %v5427 = vpack.c.b16 %v2931, %v2915
  %v5428 = vpack.c.b16 %v2932, %v2916
  %v5429 = vpack.c.b16 %v2949, %v2933
  %v5430 = vpack.c.b16 %v2950, %v2934
  %v5431 = vpack.c.b16 %v2951, %v2935
  %v5432 = vpack.c.b16 %v2952, %v2936
  %v5433 = vpack.c.b16 %v2953, %v2937
  %v5434 = vpack.c.b16 %v2954, %v2938
  %v5435 = vpack.c.b16 %v2955, %v2939
  %v5436 = vpack.c.b16 %v2956, %v2940
  %v5437 = vpack.c.b16 %v2957, %v2941
  %v5438 = vpack.c.b16 %v2958, %v2942
  %v5439 = vpack.c.b16 %v2959, %v2943
  %v5440 = vpack.c.b16 %v2960, %v2944
  %v5441 = vpack.c.b16 %v2961, %v2945
  %v5442 = vpack.c.b16 %v2962, %v2946
  %v5443 = vpack.c.b16 %v2963, %v2947
  %v5444 = vpack.c.b16 %v2964, %v2948
  %v5445 = vpack.c.b16 %v2981, %v2965
  %v5446 = vpack.c.b16 %v2982, %v2966
  %v5447 = vpack.c.b16 %v2983, %v2967
  %v5448 = vpack.c.b16 %v2984, %v2968
  %v5449 = vpack.c.b16 %v2985, %v2969
  %v5450 = vpack.c.b16 %v2986, %v2970
  %v5451 = vpack.c.b16 %v2987, %v2971
  %v5452 = vpack.c.b16 %v2988, %v2972
  %v5453 = vpack.c.b16 %v2989, %v2973
  %v5454 = vpack.c.b16 %v2990, %v2974
  %v5455 = vpack.c.b16 %v2991, %v2975
  %v5456 = vpack.c.b16 %v2992, %v2976
  %v5457 = vpack.c.b16 %v2993, %v2977
  %v5458 = vpack.c.b16 %v2994, %v2978
  %v5459 = vpack.c.b16 %v2995, %v2979
  %v5460 = vpack.c.b16 %v2996, %v2980
  %v5461 = vpack.c.b16 %v3013, %v2997
  %v5462 = vpack.c.b16 %v3014, %v2998
  %v5463 = vpack.c.b16 %v3015, %v2999
  %v5464 = vpack.c.b16 %v3016, %v3000
  %v5465 = vpack.c.b16 %v3017, %v3001
  %v5466 = vpack.c.b16 %v3018, %v3002
  %v5467 = vpack.c.b16 %v3019, %v3003
  %v5468 = vpack.c.b16 %v3020, %v3004
  %v5469 = vpack.c.b16 %v3021, %v3005
  %v5470 = vpack.c.b16 %v3022, %v3006
  %v5471 = vpack.c.b16 %v3023, %v3007
  %v5472 = vpack.c.b16 %v3024, %v3008
  %v5473 = vpack.c.b16 %v3025, %v3009
  %v5474 = vpack.c.b16 %v3026, %v3010
  %v5475 = vpack.c.b16 %v3027, %v3011
  %v5476 = vpack.c.b16 %v3028, %v3012
  %v5477 = vpack.c.b16 %v3045, %v3029
  %v5478 = vpack.c.b16 %v3046, %v3030
  %v5479 = vpack.c.b16 %v3047, %v3031
  %v5480 = vpack.c.b16 %v3048, %v3032
  %v5481 = vpack.c.b16 %v3049, %v3033
  %v5482 = vpack.c.b16 %v3050, %v3034
  %v5483 = vpack.c.b16 %v3051, %v3035
  %v5484 = vpack.c.b16 %v3052, %v3036
  %v5485 = vpack.c.b16 %v3053, %v3037
  %v5486 = vpack.c.b16 %v3054, %v3038
  %v5487 = vpack.c.b16 %v3055, %v3039
  %v5488 = vpack.c.b16 %v3056, %v3040
  %v5489 = vpack.c.b16 %v3057, %v3041
  %v5490 = vpack.c.b16 %v3058, %v3042
  %v5491 = vpack.c.b16 %v3059, %v3043
  %v5492 = vpack.c.b16 %v3060, %v3044
  %v5493 = vpack.c.b16 %v3077, %v3061
  %v5494 = vpack.c.b16 %v3078, %v3062
  %v5495 = vpack.c.b16 %v3079, %v3063
  %v5496 = vpack.c.b16 %v3080, %v3064
  %v5497 = vpack.c.b16 %v3081, %v3065
  %v5498 = vpack.c.b16 %v3082, %v3066
  %v5499 = vpack.c.b16 %v3083, %v3067
  %v5500 = vpack.c.b16 %v3084, %v3068
  %v5501 = vpack.c.b16 %v3085, %v3069
  %v5502 = vpack.c.b16 %v3086, %v3070
  %v5503 = vpack.c.b16 %v3087, %v3071
  %v5504 = vpack.c.b16 %v3088, %v3072
  %v5505 = vpack.c.b16 %v3089, %v3073
  %v5506 = vpack.c.b16 %v3090, %v3074
  %v5507 = vpack.c.b16 %v3091, %v3075
  %v5508 = vpack.c.b16 %v3092, %v3076
  %v5509 = vpack.c.b16 %v3109, %v3093
  %v5510 = vpack.c.b16 %v3110, %v3094
  %v5511 = vpack.c.b16 %v3111, %v3095
  %v5512 = vpack.c.b16 %v3112, %v3096
  %v5513 = vpack.c.b16 %v3113, %v3097
  %v5514 = vpack.c.b16 %v3114, %v3098
  %v5515 = vpack.c.b16 %v3115, %v3099
  %v5516 = vpack.c.b16 %v3116, %v3100
  %v5517 = vpack.c.b16 %v3117, %v3101
  %v5518 = vpack.c.b16 %v3118, %v3102
  %v5519 = vpack.c.b16 %v3119, %v3103
  %v5520 = vpack.c.b16 %v3120, %v3104
  %v5521 = vpack.c.b16 %v3121, %v3105
  %v5522 = vpack.c.b16 %v3122, %v3106
  %v5523 = vpack.c.b16 %v3123, %v3107
  %v5524 = vpack.c.b16 %v3124, %v3108
  %v5525 = vpack.c.b16 %v3141, %v3125
  %v5526 = vpack.c.b16 %v3142, %v3126
  %v5527 = vpack.c.b16 %v3143, %v3127
  %v5528 = vpack.c.b16 %v3144, %v3128
  %v5529 = vpack.c.b16 %v3145, %v3129
  %v5530 = vpack.c.b16 %v3146, %v3130
  %v5531 = vpack.c.b16 %v3147, %v3131
  %v5532 = vpack.c.b16 %v3148, %v3132
  %v5533 = vpack.c.b16 %v3149, %v3133
  %v5534 = vpack.c.b16 %v3150, %v3134
  %v5535 = vpack.c.b16 %v3151, %v3135
  %v5536 = vpack.c.b16 %v3152, %v3136
  %v5537 = vpack.c.b16 %v3153, %v3137
  %v5538 = vpack.c.b16 %v3154, %v3138
  %v5539 = vpack.c.b16 %v3155, %v3139
  %v5540 = vpack.c.b16 %v3156, %v3140
  %v5541 = vpack.c.b16 %v3173, %v3157
  %v5542 = vpack.c.b16 %v3174, %v3158
  %v5543 = vpack.c.b16 %v3175, %v3159
  %v5544 = vpack.c.b16 %v3176, %v3160
  %v5545 = vpack.c.b16 %v3177, %v3161
  %v5546 = vpack.c.b16 %v3178, %v3162
  %v5547 = vpack.c.b16 %v3179, %v3163
  %v5548 = vpack.c.b16 %v3180, %v3164
  %v5549 = vpack.c.b16 %v3181, %v3165
  %v5550 = vpack.c.b16 %v3182, %v3166
  %v5551 = vpack.c.b16 %v3183, %v3167
  %v5552 = vpack.c.b16 %v3184, %v3168
  %v5553 = vpack.c.b16 %v3185, %v3169
  %v5554 = vpack.c.b16 %v3186, %v3170
  %v5555 = vpack.c.b16 %v3187, %v3171
  %v5556 = vpack.c.b16 %v3188, %v3172
  %v5557 = vpack.c.b16 %v3205, %v3189
  %v5558 = vpack.c.b16 %v3206, %v3190
  %v5559 = vpack.c.b16 %v3207, %v3191
  %v5560 = vpack.c.b16 %v3208, %v3192
  %v5561 = vpack.c.b16 %v3209, %v3193
  %v5562 = vpack.c.b16 %v3210, %v3194
  %v5563 = vpack.c.b16 %v3211, %v3195
  %v5564 = vpack.c.b16 %v3212, %v3196
  %v5565 = vpack.c.b16 %v3213, %v3197
  %v5566 = vpack.c.b16 %v3214, %v3198
  %v5567 = vpack.c.b16 %v3215, %v3199
  %v5568 = vpack.c.b16 %v3216, %v3200
  %v5569 = vpack.c.b16 %v3217, %v3201
  %v5570 = vpack.c.b16 %v3218, %v3202
  %v5571 = vpack.c.b16 %v3219, %v3203
  %v5572 = vpack.c.b16 %v3220, %v3204
  %v5573 = vpack.c.b16 %v3237, %v3221
  %v5574 = vpack.c.b16 %v3238, %v3222
  %v5575 = vpack.c.b16 %v3239, %v3223
  %v5576 = vpack.c.b16 %v3240, %v3224
  %v5577 = vpack.c.b16 %v3241, %v3225
  %v5578 = vpack.c.b16 %v3242, %v3226
  %v5579 = vpack.c.b16 %v3243, %v3227
  %v5580 = vpack.c.b16 %v3244, %v3228
  %v5581 = vpack.c.b16 %v3245, %v3229
  %v5582 = vpack.c.b16 %v3246, %v3230
  %v5583 = vpack.c.b16 %v3247, %v3231
  %v5584 = vpack.c.b16 %v3248, %v3232
  %v5585 = vpack.c.b16 %v3249, %v3233
  %v5586 = vpack.c.b16 %v3250, %v3234
  %v5587 = vpack.c.b16 %v3251, %v3235
  %v5588 = vpack.c.b16 %v3252, %v3236
  %v5589 = vpack.c.b16 %v3269, %v3253
  %v5590 = vpack.c.b16 %v3270, %v3254
  %v5591 = vpack.c.b16 %v3271, %v3255
  %v5592 = vpack.c.b16 %v3272, %v3256
  %v5593 = vpack.c.b16 %v3273, %v3257
  %v5594 = vpack.c.b16 %v3274, %v3258
  %v5595 = vpack.c.b16 %v3275, %v3259
  %v5596 = vpack.c.b16 %v3276, %v3260
  %v5597 = vpack.c.b16 %v3277, %v3261
  %v5598 = vpack.c.b16 %v3278, %v3262
  %v5599 = vpack.c.b16 %v3279, %v3263
  %v5600 = vpack.c.b16 %v3280, %v3264
  %v5601 = vpack.c.b16 %v3281, %v3265
  %v5602 = vpack.c.b16 %v3282, %v3266
  %v5603 = vpack.c.b16 %v3283, %v3267
  %v5604 = vpack.c.b16 %v3284, %v3268
  %v5605 = vpack.c.b16 %v3301, %v3285
  %v5606 = vpack.c.b16 %v3302, %v3286
  %v5607 = vpack.c.b16 %v3303, %v3287
  %v5608 = vpack.c.b16 %v3304, %v3288
  %v5609 = vpack.c.b16 %v3305, %v3289
  %v5610 = vpack.c.b16 %v3306, %v3290
  %v5611 = vpack.c.b16 %v3307, %v3291
  %v5612 = vpack.c.b16 %v3308, %v3292
  %v5613 = vpack.c.b16 %v3309, %v3293
  %v5614 = vpack.c.b16 %v3310, %v3294
  %v5615 = vpack.c.b16 %v3311, %v3295
  %v5616 = vpack.c.b16 %v3312, %v3296
  %v5617 = vpack.c.b16 %v3313, %v3297
  %v5618 = vpack.c.b16 %v3314, %v3298
  %v5619 = vpack.c.b16 %v3315, %v3299
  %v5620 = vpack.c.b16 %v3316, %v3300
  %v5621 = vpack.c.b16 %v3333, %v3317
  %v5622 = vpack.c.b16 %v3334, %v3318
  %v5623 = vpack.c.b16 %v3335, %v3319
  %v5624 = vpack.c.b16 %v3336, %v3320
  %v5625 = vpack.c.b16 %v3337, %v3321
  %v5626 = vpack.c.b16 %v3338, %v3322
  %v5627 = vpack.c.b16 %v3339, %v3323
  %v5628 = vpack.c.b16 %v3340, %v3324
  %v5629 = vpack.c.b16 %v3341, %v3325
  %v5630 = vpack.c.b16 %v3342, %v3326
  %v5631 = vpack.c.b16 %v3343, %v3327
  %v5632 = vpack.c.b16 %v3344, %v3328
  %v5633 = vpack.c.b16 %v3345, %v3329
  %v5634 = vpack.c.b16 %v3346, %v3330
  %v5635 = vpack.c.b16 %v3347, %v3331
  %v5636 = vpack.c.b16 %v3348, %v3332
  %v5637 = vpack.c.b16 %v3365, %v3349
  %v5638 = vpack.c.b16 %v3366, %v3350
  %v5639 = vpack.c.b16 %v3367, %v3351
  %v5640 = vpack.c.b16 %v3368, %v3352
  %v5641 = vpack.c.b16 %v3369, %v3353
  %v5642 = vpack.c.b16 %v3370, %v3354
  %v5643 = vpack.c.b16 %v3371, %v3355
  %v5644 = vpack.c.b16 %v3372, %v3356
  %v5645 = vpack.c.b16 %v3373, %v3357
  %v5646 = vpack.c.b16 %v3374, %v3358
  %v5647 = vpack.c.b16 %v3375, %v3359
  %v5648 = vpack.c.b16 %v3376, %v3360
  %v5649 = vpack.c.b16 %v3377, %v3361
  %v5650 = vpack.c.b16 %v3378, %v3362
  %v5651 = vpack.c.b16 %v3379, %v3363
  %v5652 = vpack.c.b16 %v3380, %v3364
  %v5653 = vpack.c.b16 %v3397, %v3381
  %v5654 = vpack.c.b16 %v3398, %v3382
  %v5655 = vpack.c.b16 %v3399, %v3383
  %v5656 = vpack.c.b16 %v3400, %v3384
  %v5657 = vpack.c.b16 %v3401, %v3385
  %v5658 = vpack.c.b16 %v3402, %v3386
  %v5659 = vpack.c.b16 %v3403, %v3387
  %v5660 = vpack.c.b16 %v3404, %v3388
  %v5661 = vpack.c.b16 %v3405, %v3389
  %v5662 = vpack.c.b16 %v3406, %v3390
  %v5663 = vpack.c.b16 %v3407, %v3391
  %v5664 = vpack.c.b16 %v3408, %v3392
  %v5665 = vpack.c.b16 %v3409, %v3393
  %v5666 = vpack.c.b16 %v3410, %v3394
  %v5667 = vpack.c.b16 %v3411, %v3395
  %v5668 = vpack.c.b16 %v3412, %v3396
  %v5669 = vpack.c.b16 %v3429, %v3413
  %v5670 = vpack.c.b16 %v3430, %v3414
  %v5671 = vpack.c.b16 %v3431, %v3415
  %v5672 = vpack.c.b16 %v3432, %v3416
  %v5673 = vpack.c.b16 %v3433, %v3417
  %v5674 = vpack.c.b16 %v3434, %v3418
  %v5675 = vpack.c.b16 %v3435, %v3419
  %v5676 = vpack.c.b16 %v3436, %v3420
  %v5677 = vpack.c.b16 %v3437, %v3421
  %v5678 = vpack.c.b16 %v3438, %v3422
  %v5679 = vpack.c.b16 %v3439, %v3423
  %v5680 = vpack.c.b16 %v3440, %v3424
  %v5681 = vpack.c.b16 %v3441, %v3425
  %v5682 = vpack.c.b16 %v3442, %v3426
  %v5683 = vpack.c.b16 %v3443, %v3427
  %v5684 = vpack.c.b16 %v3444, %v3428
  %v5685 = vpack.c.b16 %v3461, %v3445
  %v5686 = vpack.c.b16 %v3462, %v3446
  %v5687 = vpack.c.b16 %v3463, %v3447
  %v5688 = vpack.c.b16 %v3464, %v3448
  %v5689 = vpack.c.b16 %v3465, %v3449
  %v5690 = vpack.c.b16 %v3466, %v3450
  %v5691 = vpack.c.b16 %v3467, %v3451
  %v5692 = vpack.c.b16 %v3468, %v3452
  %v5693 = vpack.c.b16 %v3469, %v3453
  %v5694 = vpack.c.b16 %v3470, %v3454
  %v5695 = vpack.c.b16 %v3471, %v3455
  %v5696 = vpack.c.b16 %v3472, %v3456
  %v5697 = vpack.c.b16 %v3473, %v3457
  %v5698 = vpack.c.b16 %v3474, %v3458
  %v5699 = vpack.c.b16 %v3475, %v3459
  %v5700 = vpack.c.b16 %v3476, %v3460
  %v5701 = vpack.c.b16 %v3493, %v3477
  %v5702 = vpack.c.b16 %v3494, %v3478
  %v5703 = vpack.c.b16 %v3495, %v3479
  %v5704 = vpack.c.b16 %v3496, %v3480
  %v5705 = vpack.c.b16 %v3497, %v3481
  %v5706 = vpack.c.b16 %v3498, %v3482
  %v5707 = vpack.c.b16 %v3499, %v3483
  %v5708 = vpack.c.b16 %v3500, %v3484
  %v5709 = vpack.c.b16 %v3501, %v3485
  %v5710 = vpack.c.b16 %v3502, %v3486
  %v5711 = vpack.c.b16 %v3503, %v3487
  %v5712 = vpack.c.b16 %v3504, %v3488
  %v5713 = vpack.c.b16 %v3505, %v3489
  %v5714 = vpack.c.b16 %v3506, %v3490
  %v5715 = vpack.c.b16 %v3507, %v3491
  %v5716 = vpack.c.b16 %v3508, %v3492
  %v5717 = vpack.c.b16 %v3525, %v3509
  %v5718 = vpack.c.b16 %v3526, %v3510
  %v5719 = vpack.c.b16 %v3527, %v3511
  %v5720 = vpack.c.b16 %v3528, %v3512
  %v5721 = vpack.c.b16 %v3529, %v3513
  %v5722 = vpack.c.b16 %v3530, %v3514
  %v5723 = vpack.c.b16 %v3531, %v3515
  %v5724 = vpack.c.b16 %v3532, %v3516
  %v5725 = vpack.c.b16 %v3533, %v3517
  %v5726 = vpack.c.b16 %v3534, %v3518
  %v5727 = vpack.c.b16 %v3535, %v3519
  %v5728 = vpack.c.b16 %v3536, %v3520
  %v5729 = vpack.c.b16 %v3537, %v3521
  %v5730 = vpack.c.b16 %v3538, %v3522
  %v5731 = vpack.c.b16 %v3539, %v3523
  %v5732 = vpack.c.b16 %v3540, %v3524
  %v5733 = vpack.c.b16 %v3557, %v3541
  %v5734 = vpack.c.b16 %v3558, %v3542
  %v5735 = vpack.c.b16 %v3559, %v3543
  %v5736 = vpack.c.b16 %v3560, %v3544
  %v5737 = vpack.c.b16 %v3561, %v3545
  %v5738 = vpack.c.b16 %v3562, %v3546
  %v5739 = vpack.c.b16 %v3563, %v3547
  %v5740 = vpack.c.b16 %v3564, %v3548
  %v5741 = vpack.c.b16 %v3565, %v3549
  %v5742 = vpack.c.b16 %v3566, %v3550
  %v5743 = vpack.c.b16 %v3567, %v3551
  %v5744 = vpack.c.b16 %v3568, %v3552
  %v5745 = vpack.c.b16 %v3569, %v3553
  %v5746 = vpack.c.b16 %v3570, %v3554
  %v5747 = vpack.c.b16 %v3571, %v3555
  %v5748 = vpack.c.b16 %v3572, %v3556
  %v5749 = vpack.c.b16 %v3589, %v3573
  %v5750 = vpack.c.b16 %v3590, %v3574
  %v5751 = vpack.c.b16 %v3591, %v3575
  %v5752 = vpack.c.b16 %v3592, %v3576
  %v5753 = vpack.c.b16 %v3593, %v3577
  %v5754 = vpack.c.b16 %v3594, %v3578
  %v5755 = vpack.c.b16 %v3595, %v3579
  %v5756 = vpack.c.b16 %v3596, %v3580
  %v5757 = vpack.c.b16 %v3597, %v3581
  %v5758 = vpack.c.b16 %v3598, %v3582
  %v5759 = vpack.c.b16 %v3599, %v3583
  %v5760 = vpack.c.b16 %v3600, %v3584
  %v5761 = vpack.c.b16 %v3601, %v3585
  %v5762 = vpack.c.b16 %v3602, %v3586
  %v5763 = vpack.c.b16 %v3603, %v3587
  %v5764 = vpack.c.b16 %v3604, %v3588
  %v5765 = vpack.c.b16 %v3621, %v3605
  %v5766 = vpack.c.b16 %v3622, %v3606
  %v5767 = vpack.c.b16 %v3623, %v3607
  %v5768 = vpack.c.b16 %v3624, %v3608
  %v5769 = vpack.c.b16 %v3625, %v3609
  %v5770 = vpack.c.b16 %v3626, %v3610
  %v5771 = vpack.c.b16 %v3627, %v3611
  %v5772 = vpack.c.b16 %v3628, %v3612
  %v5773 = vpack.c.b16 %v3629, %v3613
  %v5774 = vpack.c.b16 %v3630, %v3614
  %v5775 = vpack.c.b16 %v3631, %v3615
  %v5776 = vpack.c.b16 %v3632, %v3616
  %v5777 = vpack.c.b16 %v3633, %v3617
  %v5778 = vpack.c.b16 %v3634, %v3618
  %v5779 = vpack.c.b16 %v3635, %v3619
  %v5780 = vpack.c.b16 %v3636, %v3620
  %v5781 = vpack.c.b16 %v3653, %v3637
  %v5782 = vpack.c.b16 %v3654, %v3638
  %v5783 = vpack.c.b16 %v3655, %v3639
  %v5784 = vpack.c.b16 %v3656, %v3640
  %v5785 = vpack.c.b16 %v3657, %v3641
  %v5786 = vpack.c.b16 %v3658, %v3642
  %v5787 = vpack.c.b16 %v3659, %v3643
  %v5788 = vpack.c.b16 %v3660, %v3644
  %v5789 = vpack.c.b16 %v3661, %v3645
  %v5790 = vpack.c.b16 %v3662, %v3646
  %v5791 = vpack.c.b16 %v3663, %v3647
  %v5792 = vpack.c.b16 %v3664, %v3648
  %v5793 = vpack.c.b16 %v3665, %v3649
  %v5794 = vpack.c.b16 %v3666, %v3650
  %v5795 = vpack.c.b16 %v3667, %v3651
  %v5796 = vpack.c.b16 %v3668, %v3652
  %v5797 = vpack.c.b16 %v3685, %v3669
  %v5798 = vpack.c.b16 %v3686, %v3670
  %v5799 = vpack.c.b16 %v3687, %v3671
  %v5800 = vpack.c.b16 %v3688, %v3672
  %v5801 = vpack.c.b16 %v3689, %v3673
  %v5802 = vpack.c.b16 %v3690, %v3674
  %v5803 = vpack.c.b16 %v3691, %v3675
  %v5804 = vpack.c.b16 %v3692, %v3676
  %v5805 = vpack.c.b16 %v3693, %v3677
  %v5806 = vpack.c.b16 %v3694, %v3678
  %v5807 = vpack.c.b16 %v3695, %v3679
  %v5808 = vpack.c.b16 %v3696, %v3680
  %v5809 = vpack.c.b16 %v3697, %v3681
  %v5810 = vpack.c.b16 %v3698, %v3682
  %v5811 = vpack.c.b16 %v3699, %v3683
  %v5812 = vpack.c.b16 %v3700, %v3684
  %v5813 = vpack.c.b16 %v3717, %v3701
  %v5814 = vpack.c.b16 %v3718, %v3702
  %v5815 = vpack.c.b16 %v3719, %v3703
  %v5816 = vpack.c.b16 %v3720, %v3704
  %v5817 = vpack.c.b16 %v3721, %v3705
  %v5818 = vpack.c.b16 %v3722, %v3706
  %v5819 = vpack.c.b16 %v3723, %v3707
  %v5820 = vpack.c.b16 %v3724, %v3708
  %v5821 = vpack.c.b16 %v3725, %v3709
  %v5822 = vpack.c.b16 %v3726, %v3710
  %v5823 = vpack.c.b16 %v3727, %v3711
  %v5824 = vpack.c.b16 %v3728, %v3712
  %v5825 = vpack.c.b16 %v3729, %v3713
  %v5826 = vpack.c.b16 %v3730, %v3714
  %v5827 = vpack.c.b16 %v3731, %v3715
  %v5828 = vpack.c.b16 %v3732, %v3716
  %v5829 = vpack.c.b16 %v3749, %v3733
  %v5830 = vpack.c.b16 %v3750, %v3734
  %v5831 = vpack.c.b16 %v3751, %v3735
  %v5832 = vpack.c.b16 %v3752, %v3736
  %v5833 = vpack.c.b16 %v3753, %v3737
  %v5834 = vpack.c.b16 %v3754, %v3738
  %v5835 = vpack.c.b16 %v3755, %v3739
  %v5836 = vpack.c.b16 %v3756, %v3740
  %v5837 = vpack.c.b16 %v3757, %v3741
  %v5838 = vpack.c.b16 %v3758, %v3742
  %v5839 = vpack.c.b16 %v3759, %v3743
  %v5840 = vpack.c.b16 %v3760, %v3744
  %v5841 = vpack.c.b16 %v3761, %v3745
  %v5842 = vpack.c.b16 %v3762, %v3746
  %v5843 = vpack.c.b16 %v3763, %v3747
  %v5844 = vpack.c.b16 %v3764, %v3748
  %v5845 = vpack.c.b16 %v3781, %v3765
  %v5846 = vpack.c.b16 %v3782, %v3766
  %v5847 = vpack.c.b16 %v3783, %v3767
  %v5848 = vpack.c.b16 %v3784, %v3768
  %v5849 = vpack.c.b16 %v3785, %v3769
  %v5850 = vpack.c.b16 %v3786, %v3770
  %v5851 = vpack.c.b16 %v3787, %v3771
  %v5852 = vpack.c.b16 %v3788, %v3772
  %v5853 = vpack.c.b16 %v3789, %v3773
  %v5854 = vpack.c.b16 %v3790, %v3774
  %v5855 = vpack.c.b16 %v3791, %v3775
  %v5856 = vpack.c.b16 %v3792, %v3776
  %v5857 = vpack.c.b16 %v3793, %v3777
  %v5858 = vpack.c.b16 %v3794, %v3778
  %v5859 = vpack.c.b16 %v3795, %v3779
  %v5860 = vpack.c.b16 %v3796, %v3780
  %v5861 = vpack.c.b16 %v3813, %v3797
  %v5862 = vpack.c.b16 %v3814, %v3798
  %v5863 = vpack.c.b16 %v3815, %v3799
  %v5864 = vpack.c.b16 %v3816, %v3800
  %v5865 = vpack.c.b16 %v3817, %v3801
  %v5866 = vpack.c.b16 %v3818, %v3802
  %v5867 = vpack.c.b16 %v3819, %v3803
  %v5868 = vpack.c.b16 %v3820, %v3804
  %v5869 = vpack.c.b16 %v3821, %v3805
  %v5870 = vpack.c.b16 %v3822, %v3806
  %v5871 = vpack.c.b16 %v3823, %v3807
  %v5872 = vpack.c.b16 %v3824, %v3808
  %v5873 = vpack.c.b16 %v3825, %v3809
  %v5874 = vpack.c.b16 %v3826, %v3810
  %v5875 = vpack.c.b16 %v3827, %v3811
  %v5876 = vpack.c.b16 %v3828, %v3812
  %v5877 = vpack.c.b16 %v3845, %v3829
  %v5878 = vpack.c.b16 %v3846, %v3830
  %v5879 = vpack.c.b16 %v3847, %v3831
  %v5880 = vpack.c.b16 %v3848, %v3832
  %v5881 = vpack.c.b16 %v3849, %v3833
  %v5882 = vpack.c.b16 %v3850, %v3834
  %v5883 = vpack.c.b16 %v3851, %v3835
  %v5884 = vpack.c.b16 %v3852, %v3836
  %v5885 = vpack.c.b16 %v3853, %v3837
  %v5886 = vpack.c.b16 %v3854, %v3838
  %v5887 = vpack.c.b16 %v3855, %v3839
  %v5888 = vpack.c.b16 %v3856, %v3840
  %v5889 = vpack.c.b16 %v3857, %v3841
  %v5890 = vpack.c.b16 %v3858, %v3842
  %v5891 = vpack.c.b16 %v3859, %v3843
  %v5892 = vpack.c.b16 %v3860, %v3844
  %v5893 = vpack.c.b16 %v3877, %v3861
  %v5894 = vpack.c.b16 %v3878, %v3862
  %v5895 = vpack.c.b16 %v3879, %v3863
  %v5896 = vpack.c.b16 %v3880, %v3864
  %v5897 = vpack.c.b16 %v3881, %v3865
  %v5898 = vpack.c.b16 %v3882, %v3866
  %v5899 = vpack.c.b16 %v3883, %v3867
  %v5900 = vpack.c.b16 %v3884, %v3868
  %v5901 = vpack.c.b16 %v3885, %v3869
  %v5902 = vpack.c.b16 %v3886, %v3870
  %v5903 = vpack.c.b16 %v3887, %v3871
  %v5904 = vpack.c.b16 %v3888, %v3872
  %v5905 = vpack.c.b16 %v3889, %v3873
  %v5906 = vpack.c.b16 %v3890, %v3874
  %v5907 = vpack.c.b16 %v3891, %v3875
  %v5908 = vpack.c.b16 %v3892, %v3876
  %v5909 = vpack.c.b16 %v3909, %v3893
  %v5910 = vpack.c.b16 %v3910, %v3894
  %v5911 = vpack.c.b16 %v3911, %v3895
  %v5912 = vpack.c.b16 %v3912, %v3896
  %v5913 = vpack.c.b16 %v3913, %v3897
  %v5914 = vpack.c.b16 %v3914, %v3898
  %v5915 = vpack.c.b16 %v3915, %v3899
  %v5916 = vpack.c.b16 %v3916, %v3900
  %v5917 = vpack.c.b16 %v3917, %v3901
  %v5918 = vpack.c.b16 %v3918, %v3902
  %v5919 = vpack.c.b16 %v3919, %v3903
  %v5920 = vpack.c.b16 %v3920, %v3904
  %v5921 = vpack.c.b16 %v3921, %v3905
  %v5922 = vpack.c.b16 %v3922, %v3906
  %v5923 = vpack.c.b16 %v3923, %v3907
  %v5924 = vpack.c.b16 %v3924, %v3908
  %v5925 = vpack.c.b16 %v3941, %v3925
  %v5926 = vpack.c.b16 %v3942, %v3926
  %v5927 = vpack.c.b16 %v3943, %v3927
  %v5928 = vpack.c.b16 %v3944, %v3928
  %v5929 = vpack.c.b16 %v3945, %v3929
  %v5930 = vpack.c.b16 %v3946, %v3930
  %v5931 = vpack.c.b16 %v3947, %v3931
  %v5932 = vpack.c.b16 %v3948, %v3932
  %v5933 = vpack.c.b16 %v3949, %v3933
  %v5934 = vpack.c.b16 %v3950, %v3934
  %v5935 = vpack.c.b16 %v3951, %v3935
  %v5936 = vpack.c.b16 %v3952, %v3936
  %v5937 = vpack.c.b16 %v3953, %v3937
  %v5938 = vpack.c.b16 %v3954, %v3938
  %v5939 = vpack.c.b16 %v3955, %v3939
  %v5940 = vpack.c.b16 %v3956, %v3940
  %v5941 = vpack.c.b16 %v3973, %v3957
  %v5942 = vpack.c.b16 %v3974, %v3958
  %v5943 = vpack.c.b16 %v3975, %v3959
  %v5944 = vpack.c.b16 %v3976, %v3960
  %v5945 = vpack.c.b16 %v3977, %v3961
  %v5946 = vpack.c.b16 %v3978, %v3962
  %v5947 = vpack.c.b16 %v3979, %v3963
  %v5948 = vpack.c.b16 %v3980, %v3964
  %v5949 = vpack.c.b16 %v3981, %v3965
  %v5950 = vpack.c.b16 %v3982, %v3966
  %v5951 = vpack.c.b16 %v3983, %v3967
  %v5952 = vpack.c.b16 %v3984, %v3968
  %v5953 = vpack.c.b16 %v3985, %v3969
  %v5954 = vpack.c.b16 %v3986, %v3970
  %v5955 = vpack.c.b16 %v3987, %v3971
  %v5956 = vpack.c.b16 %v3988, %v3972
  %v5957 = vpack.c.b16 %v4005, %v3989
  %v5958 = vpack.c.b16 %v4006, %v3990
  %v5959 = vpack.c.b16 %v4007, %v3991
  %v5960 = vpack.c.b16 %v4008, %v3992
  %v5961 = vpack.c.b16 %v4009, %v3993
  %v5962 = vpack.c.b16 %v4010, %v3994
  %v5963 = vpack.c.b16 %v4011, %v3995
  %v5964 = vpack.c.b16 %v4012, %v3996
  %v5965 = vpack.c.b16 %v4013, %v3997
  %v5966 = vpack.c.b16 %v4014, %v3998
  %v5967 = vpack.c.b16 %v4015, %v3999
  %v5968 = vpack.c.b16 %v4016, %v4000
  %v5969 = vpack.c.b16 %v4017, %v4001
  %v5970 = vpack.c.b16 %v4018, %v4002
  %v5971 = vpack.c.b16 %v4019, %v4003
  %v5972 = vpack.c.b16 %v4020, %v4004
  %v5973 = vpack.c.b16 %v4037, %v4021
  %v5974 = vpack.c.b16 %v4038, %v4022
  %v5975 = vpack.c.b16 %v4039, %v4023
  %v5976 = vpack.c.b16 %v4040, %v4024
  %v5977 = vpack.c.b16 %v4041, %v4025
  %v5978 = vpack.c.b16 %v4042, %v4026
  %v5979 = vpack.c.b16 %v4043, %v4027
  %v5980 = vpack.c.b16 %v4044, %v4028
  %v5981 = vpack.c.b16 %v4045, %v4029
  %v5982 = vpack.c.b16 %v4046, %v4030
  %v5983 = vpack.c.b16 %v4047, %v4031
  %v5984 = vpack.c.b16 %v4048, %v4032
  %v5985 = vpack.c.b16 %v4049, %v4033
  %v5986 = vpack.c.b16 %v4050, %v4034
  %v5987 = vpack.c.b16 %v4051, %v4035
  %v5988 = vpack.c.b16 %v4052, %v4036
  %v5989 = vpack.c.b16 %v4069, %v4053
  %v5990 = vpack.c.b16 %v4070, %v4054
  %v5991 = vpack.c.b16 %v4071, %v4055
  %v5992 = vpack.c.b16 %v4072, %v4056
  %v5993 = vpack.c.b16 %v4073, %v4057
  %v5994 = vpack.c.b16 %v4074, %v4058
  %v5995 = vpack.c.b16 %v4075, %v4059
  %v5996 = vpack.c.b16 %v4076, %v4060
  %v5997 = vpack.c.b16 %v4077, %v4061
  %v5998 = vpack.c.b16 %v4078, %v4062
  %v5999 = vpack.c.b16 %v4079, %v4063
  %v6000 = vpack.c.b16 %v4080, %v4064
  %v6001 = vpack.c.b16 %v4081, %v4065
  %v6002 = vpack.c.b16 %v4082, %v4066
  %v6003 = vpack.c.b16 %v4083, %v4067
  %v6004 = vpack.c.b16 %v4084, %v4068
  %v6005 = vpack.c.b16 %v4101, %v4085
  %v6006 = vpack.c.b16 %v4102, %v4086
  %v6007 = vpack.c.b16 %v4103, %v4087
  %v6008 = vpack.c.b16 %v4104, %v4088
  %v6009 = vpack.c.b16 %v4105, %v4089
  %v6010 = vpack.c.b16 %v4106, %v4090
  %v6011 = vpack.c.b16 %v4107, %v4091
  %v6012 = vpack.c.b16 %v4108, %v4092
  %v6013 = vpack.c.b16 %v4109, %v4093
  %v6014 = vpack.c.b16 %v4110, %v4094
  %v6015 = vpack.c.b16 %v4111, %v4095
  %v6016 = vpack.c.b16 %v4112, %v4096
  %v6017 = vpack.c.b16 %v4113, %v4097
  %v6018 = vpack.c.b16 %v4114, %v4098
  %v6019 = vpack.c.b16 %v4115, %v4099
  %v6020 = vpack.c.b16 %v4116, %v4100
  %v6021 = vpack.c.b16 %v4133, %v4117
  %v6022 = vpack.c.b16 %v4134, %v4118
  %v6023 = vpack.c.b16 %v4135, %v4119
  %v6024 = vpack.c.b16 %v4136, %v4120
  %v6025 = vpack.c.b16 %v4137, %v4121
  %v6026 = vpack.c.b16 %v4138, %v4122
  %v6027 = vpack.c.b16 %v4139, %v4123
  %v6028 = vpack.c.b16 %v4140, %v4124
  %v6029 = vpack.c.b16 %v4141, %v4125
  %v6030 = vpack.c.b16 %v4142, %v4126
  %v6031 = vpack.c.b16 %v4143, %v4127
  %v6032 = vpack.c.b16 %v4144, %v4128
  %v6033 = vpack.c.b16 %v4145, %v4129
  %v6034 = vpack.c.b16 %v4146, %v4130
  %v6035 = vpack.c.b16 %v4147, %v4131
  %v6036 = vpack.c.b16 %v4148, %v4132
  %v6037 = vpack.c.b16 %v4165, %v4149
  %v6038 = vpack.c.b16 %v4166, %v4150
  %v6039 = vpack.c.b16 %v4167, %v4151
  %v6040 = vpack.c.b16 %v4168, %v4152
  %v6041 = vpack.c.b16 %v4169, %v4153
  %v6042 = vpack.c.b16 %v4170, %v4154
  %v6043 = vpack.c.b16 %v4171, %v4155
  %v6044 = vpack.c.b16 %v4172, %v4156
  %v6045 = vpack.c.b16 %v4173, %v4157
  %v6046 = vpack.c.b16 %v4174, %v4158
  %v6047 = vpack.c.b16 %v4175, %v4159
  %v6048 = vpack.c.b16 %v4176, %v4160
  %v6049 = vpack.c.b16 %v4177, %v4161
  %v6050 = vpack.c.b16 %v4178, %v4162
  %v6051 = vpack.c.b16 %v4179, %v4163
  %v6052 = vpack.c.b16 %v4180, %v4164
  %v6053 = vpack.c.b16 %v4197, %v4181
  %v6054 = vpack.c.b16 %v4198, %v4182
  %v6055 = vpack.c.b16 %v4199, %v4183
  %v6056 = vpack.c.b16 %v4200, %v4184
  %v6057 = vpack.c.b16 %v4201, %v4185
  %v6058 = vpack.c.b16 %v4202, %v4186
  %v6059 = vpack.c.b16 %v4203, %v4187
  %v6060 = vpack.c.b16 %v4204, %v4188
  %v6061 = vpack.c.b16 %v4205, %v4189
  %v6062 = vpack.c.b16 %v4206, %v4190
  %v6063 = vpack.c.b16 %v4207, %v4191
  %v6064 = vpack.c.b16 %v4208, %v4192
  %v6065 = vpack.c.b16 %v4209, %v4193
  %v6066 = vpack.c.b16 %v4210, %v4194
  %v6067 = vpack.c.b16 %v4211, %v4195
  %v6068 = vpack.c.b16 %v4212, %v4196
  %v6069 = vpack.c.b16 %v4229, %v4213
  %v6070 = vpack.c.b16 %v4230, %v4214
  %v6071 = vpack.c.b16 %v4231, %v4215
  %v6072 = vpack.c.b16 %v4232, %v4216
  %v6073 = vpack.c.b16 %v4233, %v4217
  %v6074 = vpack.c.b16 %v4234, %v4218
  %v6075 = vpack.c.b16 %v4235, %v4219
  %v6076 = vpack.c.b16 %v4236, %v4220
  %v6077 = vpack.c.b16 %v4237, %v4221
  %v6078 = vpack.c.b16 %v4238, %v4222
  %v6079 = vpack.c.b16 %v4239, %v4223
  %v6080 = vpack.c.b16 %v4240, %v4224
  %v6081 = vpack.c.b16 %v4241, %v4225
  %v6082 = vpack.c.b16 %v4242, %v4226
  %v6083 = vpack.c.b16 %v4243, %v4227
  %v6084 = vpack.c.b16 %v4244, %v4228
  %v6085 = vpack.c.b16 %v4261, %v4245
  %v6086 = vpack.c.b16 %v4262, %v4246
  %v6087 = vpack.c.b16 %v4263, %v4247
  %v6088 = vpack.c.b16 %v4264, %v4248
  %v6089 = vpack.c.b16 %v4265, %v4249
  %v6090 = vpack.c.b16 %v4266, %v4250
  %v6091 = vpack.c.b16 %v4267, %v4251
  %v6092 = vpack.c.b16 %v4268, %v4252
  %v6093 = vpack.c.b16 %v4269, %v4253
  %v6094 = vpack.c.b16 %v4270, %v4254
  %v6095 = vpack.c.b16 %v4271, %v4255
  %v6096 = vpack.c.b16 %v4272, %v4256
  %v6097 = vpack.c.b16 %v4273, %v4257
  %v6098 = vpack.c.b16 %v4274, %v4258
  %v6099 = vpack.c.b16 %v4275, %v4259
  %v6100 = vpack.c.b16 %v4276, %v4260
  %v6101 = vpack.c.b16 %v4293, %v4277
  %v6102 = vpack.c.b16 %v4294, %v4278
  %v6103 = vpack.c.b16 %v4295, %v4279
  %v6104 = vpack.c.b16 %v4296, %v4280
  %v6105 = vpack.c.b16 %v4297, %v4281
  %v6106 = vpack.c.b16 %v4298, %v4282
  %v6107 = vpack.c.b16 %v4299, %v4283
  %v6108 = vpack.c.b16 %v4300, %v4284
  %v6109 = vpack.c.b16 %v4301, %v4285
  %v6110 = vpack.c.b16 %v4302, %v4286
  %v6111 = vpack.c.b16 %v4303, %v4287
  %v6112 = vpack.c.b16 %v4304, %v4288
  %v6113 = vpack.c.b16 %v4305, %v4289
  %v6114 = vpack.c.b16 %v4306, %v4290
  %v6115 = vpack.c.b16 %v4307, %v4291
  %v6116 = vpack.c.b16 %v4308, %v4292
  %v6117 = vpack.c.b16 %v4325, %v4309
  %v6118 = vpack.c.b16 %v4326, %v4310
  %v6119 = vpack.c.b16 %v4327, %v4311
  %v6120 = vpack.c.b16 %v4328, %v4312
  %v6121 = vpack.c.b16 %v4329, %v4313
  %v6122 = vpack.c.b16 %v4330, %v4314
  %v6123 = vpack.c.b16 %v4331, %v4315
  %v6124 = vpack.c.b16 %v4332, %v4316
  %v6125 = vpack.c.b16 %v4333, %v4317
  %v6126 = vpack.c.b16 %v4334, %v4318
  %v6127 = vpack.c.b16 %v4335, %v4319
  %v6128 = vpack.c.b16 %v4336, %v4320
  %v6129 = vpack.c.b16 %v4337, %v4321
  %v6130 = vpack.c.b16 %v4338, %v4322
  %v6131 = vpack.c.b16 %v4339, %v4323
  %v6132 = vpack.c.b16 %v4340, %v4324
  %v6133 = vpack.c.b16 %v4357, %v4341
  %v6134 = vpack.c.b16 %v4358, %v4342
  %v6135 = vpack.c.b16 %v4359, %v4343
  %v6136 = vpack.c.b16 %v4360, %v4344
  %v6137 = vpack.c.b16 %v4361, %v4345
  %v6138 = vpack.c.b16 %v4362, %v4346
  %v6139 = vpack.c.b16 %v4363, %v4347
  %v6140 = vpack.c.b16 %v4364, %v4348
  %v6141 = vpack.c.b16 %v4365, %v4349
  %v6142 = vpack.c.b16 %v4366, %v4350
  %v6143 = vpack.c.b16 %v4367, %v4351
  %v6144 = vpack.c.b16 %v4368, %v4352
  %v6145 = vpack.c.b16 %v4369, %v4353
  %v6146 = vpack.c.b16 %v4370, %v4354
  %v6147 = vpack.c.b16 %v4371, %v4355
  %v6148 = vpack.c.b16 %v4372, %v4356
  %v6149 = vpack.c.b16 %v4389, %v4373
  %v6150 = vpack.c.b16 %v4390, %v4374
  %v6151 = vpack.c.b16 %v4391, %v4375
  %v6152 = vpack.c.b16 %v4392, %v4376
  %v6153 = vpack.c.b16 %v4393, %v4377
  %v6154 = vpack.c.b16 %v4394, %v4378
  %v6155 = vpack.c.b16 %v4395, %v4379
  %v6156 = vpack.c.b16 %v4396, %v4380
  %v6157 = vpack.c.b16 %v4397, %v4381
  %v6158 = vpack.c.b16 %v4398, %v4382
  %v6159 = vpack.c.b16 %v4399, %v4383
  %v6160 = vpack.c.b16 %v4400, %v4384
  %v6161 = vpack.c.b16 %v4401, %v4385
  %v6162 = vpack.c.b16 %v4402, %v4386
  %v6163 = vpack.c.b16 %v4403, %v4387
  %v6164 = vpack.c.b16 %v4404, %v4388
  %v6165 = vpack.c.b16 %v4421, %v4405
  %v6166 = vpack.c.b16 %v4422, %v4406
  %v6167 = vpack.c.b16 %v4423, %v4407
  %v6168 = vpack.c.b16 %v4424, %v4408
  %v6169 = vpack.c.b16 %v4425, %v4409
  %v6170 = vpack.c.b16 %v4426, %v4410
  %v6171 = vpack.c.b16 %v4427, %v4411
  %v6172 = vpack.c.b16 %v4428, %v4412
  %v6173 = vpack.c.b16 %v4429, %v4413
  %v6174 = vpack.c.b16 %v4430, %v4414
  %v6175 = vpack.c.b16 %v4431, %v4415
  %v6176 = vpack.c.b16 %v4432, %v4416
  %v6177 = vpack.c.b16 %v4433, %v4417
  %v6178 = vpack.c.b16 %v4434, %v4418
  %v6179 = vpack.c.b16 %v4435, %v4419
  %v6180 = vpack.c.b16 %v4436, %v4420
  %v6181 = vpack.c.b16 %v4453, %v4437
  %v6182 = vpack.c.b16 %v4454, %v4438
  %v6183 = vpack.c.b16 %v4455, %v4439
  %v6184 = vpack.c.b16 %v4456, %v4440
  %v6185 = vpack.c.b16 %v4457, %v4441
  %v6186 = vpack.c.b16 %v4458, %v4442
  %v6187 = vpack.c.b16 %v4459, %v4443
  %v6188 = vpack.c.b16 %v4460, %v4444
  %v6189 = vpack.c.b16 %v4461, %v4445
  %v6190 = vpack.c.b16 %v4462, %v4446
  %v6191 = vpack.c.b16 %v4463, %v4447
  %v6192 = vpack.c.b16 %v4464, %v4448
  %v6193 = vpack.c.b16 %v4465, %v4449
  %v6194 = vpack.c.b16 %v4466, %v4450
  %v6195 = vpack.c.b16 %v4467, %v4451
  %v6196 = vpack.c.b16 %v4468, %v4452
  %v6197 = vpack.c.b16 %v4485, %v4469
  %v6198 = vpack.c.b16 %v4486, %v4470
  %v6199 = vpack.c.b16 %v4487, %v4471
  %v6200 = vpack.c.b16 %v4488, %v4472
  %v6201 = vpack.c.b16 %v4489, %v4473
  %v6202 = vpack.c.b16 %v4490, %v4474
  %v6203 = vpack.c.b16 %v4491, %v4475
  %v6204 = vpack.c.b16 %v4492, %v4476
  %v6205 = vpack.c.b16 %v4493, %v4477
  %v6206 = vpack.c.b16 %v4494, %v4478
  %v6207 = vpack.c.b16 %v4495, %v4479
  %v6208 = vpack.c.b16 %v4496, %v4480
  %v6209 = vpack.c.b16 %v4497, %v4481
  %v6210 = vpack.c.b16 %v4498, %v4482
  %v6211 = vpack.c.b16 %v4499, %v4483
  %v6212 = vpack.c.b16 %v4500, %v4484
  %v6213 = vpack.c.b16 %v4517, %v4501
  %v6214 = vpack.c.b16 %v4518, %v4502
  %v6215 = vpack.c.b16 %v4519, %v4503
  %v6216 = vpack.c.b16 %v4520, %v4504
  %v6217 = vpack.c.b16 %v4521, %v4505
  %v6218 = vpack.c.b16 %v4522, %v4506
  %v6219 = vpack.c.b16 %v4523, %v4507
  %v6220 = vpack.c.b16 %v4524, %v4508
  %v6221 = vpack.c.b16 %v4525, %v4509
  %v6222 = vpack.c.b16 %v4526, %v4510
  %v6223 = vpack.c.b16 %v4527, %v4511
  %v6224 = vpack.c.b16 %v4528, %v4512
  %v6225 = vpack.c.b16 %v4529, %v4513
  %v6226 = vpack.c.b16 %v4530, %v4514
  %v6227 = vpack.c.b16 %v4531, %v4515
  %v6228 = vpack.c.b16 %v4532, %v4516
  %v6229 = vpack.c.b16 %v4549, %v4533
  %v6230 = vpack.c.b16 %v4550, %v4534
  %v6231 = vpack.c.b16 %v4551, %v4535
  %v6232 = vpack.c.b16 %v4552, %v4536
  %v6233 = vpack.c.b16 %v4553, %v4537
  %v6234 = vpack.c.b16 %v4554, %v4538
  %v6235 = vpack.c.b16 %v4555, %v4539
  %v6236 = vpack.c.b16 %v4556, %v4540
  %v6237 = vpack.c.b16 %v4557, %v4541
  %v6238 = vpack.c.b16 %v4558, %v4542
  %v6239 = vpack.c.b16 %v4559, %v4543
  %v6240 = vpack.c.b16 %v4560, %v4544
  %v6241 = vpack.c.b16 %v4561, %v4545
  %v6242 = vpack.c.b16 %v4562, %v4546
  %v6243 = vpack.c.b16 %v4563, %v4547
  %v6244 = vpack.c.b16 %v4564, %v4548
  %v6245 = vpack.c.b16 %v4581, %v4565
  %v6246 = vpack.c.b16 %v4582, %v4566
  %v6247 = vpack.c.b16 %v4583, %v4567
  %v6248 = vpack.c.b16 %v4584, %v4568
  %v6249 = vpack.c.b16 %v4585, %v4569
  %v6250 = vpack.c.b16 %v4586, %v4570
  %v6251 = vpack.c.b16 %v4587, %v4571
  %v6252 = vpack.c.b16 %v4588, %v4572
  %v6253 = vpack.c.b16 %v4589, %v4573
  %v6254 = vpack.c.b16 %v4590, %v4574
  %v6255 = vpack.c.b16 %v4591, %v4575
  %v6256 = vpack.c.b16 %v4592, %v4576
  %v6257 = vpack.c.b16 %v4593, %v4577
  %v6258 = vpack.c.b16 %v4594, %v4578
  %v6259 = vpack.c.b16 %v4595, %v4579
  %v6260 = vpack.c.b16 %v4596, %v4580
  %v6261 = vpack.c.b16 %v4613, %v4597
  %v6262 = vpack.c.b16 %v4614, %v4598
  %v6263 = vpack.c.b16 %v4615, %v4599
  %v6264 = vpack.c.b16 %v4616, %v4600
  %v6265 = vpack.c.b16 %v4617, %v4601
  %v6266 = vpack.c.b16 %v4618, %v4602
  %v6267 = vpack.c.b16 %v4619, %v4603
  %v6268 = vpack.c.b16 %v4620, %v4604
  %v6269 = vpack.c.b16 %v4621, %v4605
  %v6270 = vpack.c.b16 %v4622, %v4606
  %v6271 = vpack.c.b16 %v4623, %v4607
  %v6272 = vpack.c.b16 %v4624, %v4608
  %v6273 = vpack.c.b16 %v4625, %v4609
  %v6274 = vpack.c.b16 %v4626, %v4610
  %v6275 = vpack.c.b16 %v4627, %v4611
  %v6276 = vpack.c.b16 %v4628, %v4612
  %v6277 = vpack.c.b16 %v4645, %v4629
  %v6278 = vpack.c.b16 %v4646, %v4630
  %v6279 = vpack.c.b16 %v4647, %v4631
  %v6280 = vpack.c.b16 %v4648, %v4632
  %v6281 = vpack.c.b16 %v4649, %v4633
  %v6282 = vpack.c.b16 %v4650, %v4634
  %v6283 = vpack.c.b16 %v4651, %v4635
  %v6284 = vpack.c.b16 %v4652, %v4636
  %v6285 = vpack.c.b16 %v4653, %v4637
  %v6286 = vpack.c.b16 %v4654, %v4638
  %v6287 = vpack.c.b16 %v4655, %v4639
  %v6288 = vpack.c.b16 %v4656, %v4640
  %v6289 = vpack.c.b16 %v4657, %v4641
  %v6290 = vpack.c.b16 %v4658, %v4642
  %v6291 = vpack.c.b16 %v4659, %v4643
  %v6292 = vpack.c.b16 %v4660, %v4644
  %v6293 = vpack.c.b16 %v4677, %v4661
  %v6294 = vpack.c.b16 %v4678, %v4662
  %v6295 = vpack.c.b16 %v4679, %v4663
  %v6296 = vpack.c.b16 %v4680, %v4664
  %v6297 = vpack.c.b16 %v4681, %v4665
  %v6298 = vpack.c.b16 %v4682, %v4666
  %v6299 = vpack.c.b16 %v4683, %v4667
  %v6300 = vpack.c.b16 %v4684, %v4668
  %v6301 = vpack.c.b16 %v4685, %v4669
  %v6302 = vpack.c.b16 %v4686, %v4670
  %v6303 = vpack.c.b16 %v4687, %v4671
  %v6304 = vpack.c.b16 %v4688, %v4672
  %v6305 = vpack.c.b16 %v4689, %v4673
  %v6306 = vpack.c.b16 %v4690, %v4674
  %v6307 = vpack.c.b16 %v4691, %v4675
  %v6308 = vpack.c.b16 %v4692, %v4676
  %v6309 = vpack.c.b16 %v4709, %v4693
  %v6310 = vpack.c.b16 %v4710, %v4694
  %v6311 = vpack.c.b16 %v4711, %v4695
  %v6312 = vpack.c.b16 %v4712, %v4696
  %v6313 = vpack.c.b16 %v4713, %v4697
  %v6314 = vpack.c.b16 %v4714, %v4698
  %v6315 = vpack.c.b16 %v4715, %v4699
  %v6316 = vpack.c.b16 %v4716, %v4700
  %v6317 = vpack.c.b16 %v4717, %v4701
  %v6318 = vpack.c.b16 %v4718, %v4702
  %v6319 = vpack.c.b16 %v4719, %v4703
  %v6320 = vpack.c.b16 %v4720, %v4704
  %v6321 = vpack.c.b16 %v4721, %v4705
  %v6322 = vpack.c.b16 %v4722, %v4706
  %v6323 = vpack.c.b16 %v4723, %v4707
  %v6324 = vpack.c.b16 %v4724, %v4708
  %v6325 = vpack.c.b16 %v4741, %v4725
  %v6326 = vpack.c.b16 %v4742, %v4726
  %v6327 = vpack.c.b16 %v4743, %v4727
  %v6328 = vpack.c.b16 %v4744, %v4728
  %v6329 = vpack.c.b16 %v4745, %v4729
  %v6330 = vpack.c.b16 %v4746, %v4730
  %v6331 = vpack.c.b16 %v4747, %v4731
  %v6332 = vpack.c.b16 %v4748, %v4732
  %v6333 = vpack.c.b16 %v4749, %v4733
  %v6334 = vpack.c.b16 %v4750, %v4734
  %v6335 = vpack.c.b16 %v4751, %v4735
  %v6336 = vpack.c.b16 %v4752, %v4736
  %v6337 = vpack.c.b16 %v4753, %v4737
  %v6338 = vpack.c.b16 %v4754, %v4738
  %v6339 = vpack.c.b16 %v4755, %v4739
  %v6340 = vpack.c.b16 %v4756, %v4740
  %v6341 = vpack.c.b16 %v4773, %v4757
  %v6342 = vpack.c.b16 %v4774, %v4758
  %v6343 = vpack.c.b16 %v4775, %v4759
  %v6344 = vpack.c.b16 %v4776, %v4760
  %v6345 = vpack.c.b16 %v4777, %v4761
  %v6346 = vpack.c.b16 %v4778, %v4762
  %v6347 = vpack.c.b16 %v4779, %v4763
  %v6348 = vpack.c.b16 %v4780, %v4764
  %v6349 = vpack.c.b16 %v4781, %v4765
  %v6350 = vpack.c.b16 %v4782, %v4766
  %v6351 = vpack.c.b16 %v4783, %v4767
  %v6352 = vpack.c.b16 %v4784, %v4768
  %v6353 = vpack.c.b16 %v4785, %v4769
  %v6354 = vpack.c.b16 %v4786, %v4770
  %v6355 = vpack.c.b16 %v4787, %v4771
  %v6356 = vpack.c.b16 %v4788, %v4772
  %v6357 = vpack.c.b16 %v4805, %v4789
  %v6358 = vpack.c.b16 %v4806, %v4790
  %v6359 = vpack.c.b16 %v4807, %v4791
  %v6360 = vpack.c.b16 %v4808, %v4792
  %v6361 = vpack.c.b16 %v4809, %v4793
  %v6362 = vpack.c.b16 %v4810, %v4794
  %v6363 = vpack.c.b16 %v4811, %v4795
  %v6364 = vpack.c.b16 %v4812, %v4796
  %v6365 = vpack.c.b16 %v4813, %v4797
  %v6366 = vpack.c.b16 %v4814, %v4798
  %v6367 = vpack.c.b16 %v4815, %v4799
  %v6368 = vpack.c.b16 %v4816, %v4800
  %v6369 = vpack.c.b16 %v4817, %v4801
  %v6370 = vpack.c.b16 %v4818, %v4802
  %v6371 = vpack.c.b16 %v4819, %v4803
  %v6372 = vpack.c.b16 %v4820, %v4804
  %v6373 = vpack.c.b16 %v4837, %v4821
  %v6374 = vpack.c.b16 %v4838, %v4822
  %v6375 = vpack.c.b16 %v4839, %v4823
  %v6376 = vpack.c.b16 %v4840, %v4824
  %v6377 = vpack.c.b16 %v4841, %v4825
  %v6378 = vpack.c.b16 %v4842, %v4826
  %v6379 = vpack.c.b16 %v4843, %v4827
  %v6380 = vpack.c.b16 %v4844, %v4828
  %v6381 = vpack.c.b16 %v4845, %v4829
  %v6382 = vpack.c.b16 %v4846, %v4830
  %v6383 = vpack.c.b16 %v4847, %v4831
  %v6384 = vpack.c.b16 %v4848, %v4832
  %v6385 = vpack.c.b16 %v4849, %v4833
  %v6386 = vpack.c.b16 %v4850, %v4834
  %v6387 = vpack.c.b16 %v4851, %v4835
  %v6388 = vpack.c.b16 %v4852, %v4836
  %v6389 = vpack.c.b16 %v4869, %v4853
  %v6390 = vpack.c.b16 %v4870, %v4854
  %v6391 = vpack.c.b16 %v4871, %v4855
  %v6392 = vpack.c.b16 %v4872, %v4856
  %v6393 = vpack.c.b16 %v4873, %v4857
  %v6394 = vpack.c.b16 %v4874, %v4858
  %v6395 = vpack.c.b16 %v4875, %v4859
  %v6396 = vpack.c.b16 %v4876, %v4860
  %v6397 = vpack.c.b16 %v4877, %v4861
  %v6398 = vpack.c.b16 %v4878, %v4862
  %v6399 = vpack.c.b16 %v4879, %v4863
  %v6400 = vpack.c.b16 %v4880, %v4864
  %v6401 = vpack.c.b16 %v4881, %v4865
  %v6402 = vpack.c.b16 %v4882, %v4866
  %v6403 = vpack.c.b16 %v4883, %v4867
  %v6404 = vpack.c.b16 %v4884, %v4868
  %v6405 = vpack.c.b16 %v4901, %v4885
  %v6406 = vpack.c.b16 %v4902, %v4886
  %v6407 = vpack.c.b16 %v4903, %v4887
  %v6408 = vpack.c.b16 %v4904, %v4888
  %v6409 = vpack.c.b16 %v4905, %v4889
  %v6410 = vpack.c.b16 %v4906, %v4890
  %v6411 = vpack.c.b16 %v4907, %v4891
  %v6412 = vpack.c.b16 %v4908, %v4892
  %v6413 = vpack.c.b16 %v4909, %v4893
  %v6414 = vpack.c.b16 %v4910, %v4894
  %v6415 = vpack.c.b16 %v4911, %v4895
  %v6416 = vpack.c.b16 %v4912, %v4896
  %v6417 = vpack.c.b16 %v4913, %v4897
  %v6418 = vpack.c.b16 %v4914, %v4898
  %v6419 = vpack.c.b16 %v4915, %v4899
  %v6420 = vpack.c.b16 %v4916, %v4900
  %v6421 = vpack.c.b16 %v4933, %v4917
  %v6422 = vpack.c.b16 %v4934, %v4918
  %v6423 = vpack.c.b16 %v4935, %v4919
  %v6424 = vpack.c.b16 %v4936, %v4920
  %v6425 = vpack.c.b16 %v4937, %v4921
  %v6426 = vpack.c.b16 %v4938, %v4922
  %v6427 = vpack.c.b16 %v4939, %v4923
  %v6428 = vpack.c.b16 %v4940, %v4924
  %v6429 = vpack.c.b16 %v4941, %v4925
  %v6430 = vpack.c.b16 %v4942, %v4926
  %v6431 = vpack.c.b16 %v4943, %v4927
  %v6432 = vpack.c.b16 %v4944, %v4928
  %v6433 = vpack.c.b16 %v4945, %v4929
  %v6434 = vpack.c.b16 %v4946, %v4930
  %v6435 = vpack.c.b16 %v4947, %v4931
  %v6436 = vpack.c.b16 %v4948, %v4932
  %v6437 = vpack.c.b16 %v4965, %v4949
  %v6438 = vpack.c.b16 %v4966, %v4950
  %v6439 = vpack.c.b16 %v4967, %v4951
  %v6440 = vpack.c.b16 %v4968, %v4952
  %v6441 = vpack.c.b16 %v4969, %v4953
  %v6442 = vpack.c.b16 %v4970, %v4954
  %v6443 = vpack.c.b16 %v4971, %v4955
  %v6444 = vpack.c.b16 %v4972, %v4956
  %v6445 = vpack.c.b16 %v4973, %v4957
  %v6446 = vpack.c.b16 %v4974, %v4958
  %v6447 = vpack.c.b16 %v4975, %v4959
  %v6448 = vpack.c.b16 %v4976, %v4960
  %v6449 = vpack.c.b16 %v4977, %v4961
  %v6450 = vpack.c.b16 %v4978, %v4962
  %v6451 = vpack.c.b16 %v4979, %v4963
  %v6452 = vpack.c.b16 %v4980, %v4964
  %v6453 = vpack.c.b16 %v4997, %v4981
  %v6454 = vpack.c.b16 %v4998, %v4982
  %v6455 = vpack.c.b16 %v4999, %v4983
  %v6456 = vpack.c.b16 %v5000, %v4984
  %v6457 = vpack.c.b16 %v5001, %v4985
  %v6458 = vpack.c.b16 %v5002, %v4986
  %v6459 = vpack.c.b16 %v5003, %v4987
  %v6460 = vpack.c.b16 %v5004, %v4988
  %v6461 = vpack.c.b16 %v5005, %v4989
  %v6462 = vpack.c.b16 %v5006, %v4990
  %v6463 = vpack.c.b16 %v5007, %v4991
  %v6464 = vpack.c.b16 %v5008, %v4992
  %v6465 = vpack.c.b16 %v5009, %v4993
  %v6466 = vpack.c.b16 %v5010, %v4994
  %v6467 = vpack.c.b16 %v5011, %v4995
  %v6468 = vpack.c.b16 %v5012, %v4996
  %v6469 = vpack.c.b16 %v5029, %v5013
  %v6470 = vpack.c.b16 %v5030, %v5014
  %v6471 = vpack.c.b16 %v5031, %v5015
  %v6472 = vpack.c.b16 %v5032, %v5016
  %v6473 = vpack.c.b16 %v5033, %v5017
  %v6474 = vpack.c.b16 %v5034, %v5018
  %v6475 = vpack.c.b16 %v5035, %v5019
  %v6476 = vpack.c.b16 %v5036, %v5020
  %v6477 = vpack.c.b16 %v5037, %v5021
  %v6478 = vpack.c.b16 %v5038, %v5022
  %v6479 = vpack.c.b16 %v5039, %v5023
  %v6480 = vpack.c.b16 %v5040, %v5024
  %v6481 = vpack.c.b16 %v5041, %v5025
  %v6482 = vpack.c.b16 %v5042, %v5026
  %v6483 = vpack.c.b16 %v5043, %v5027
  %v6484 = vpack.c.b16 %v5044, %v5028
  %v6485 = vpack.c.b16 %v5061, %v5045
  %v6486 = vpack.c.b16 %v5062, %v5046
  %v6487 = vpack.c.b16 %v5063, %v5047
  %v6488 = vpack.c.b16 %v5064, %v5048
  %v6489 = vpack.c.b16 %v5065, %v5049
  %v6490 = vpack.c.b16 %v5066, %v5050
  %v6491 = vpack.c.b16 %v5067, %v5051
  %v6492 = vpack.c.b16 %v5068, %v5052
  %v6493 = vpack.c.b16 %v5069, %v5053
  %v6494 = vpack.c.b16 %v5070, %v5054
  %v6495 = vpack.c.b16 %v5071, %v5055
  %v6496 = vpack.c.b16 %v5072, %v5056
  %v6497 = vpack.c.b16 %v5073, %v5057
  %v6498 = vpack.c.b16 %v5074, %v5058
  %v6499 = vpack.c.b16 %v5075, %v5059
  %v6500 = vpack.c.b16 %v5076, %v5060
  %v6501 = vpack.c.b16 %v5093, %v5077
  %v6502 = vpack.c.b16 %v5094, %v5078
  %v6503 = vpack.c.b16 %v5095, %v5079
  %v6504 = vpack.c.b16 %v5096, %v5080
  %v6505 = vpack.c.b16 %v5097, %v5081
  %v6506 = vpack.c.b16 %v5098, %v5082
  %v6507 = vpack.c.b16 %v5099, %v5083
  %v6508 = vpack.c.b16 %v5100, %v5084
  %v6509 = vpack.c.b16 %v5101, %v5085
  %v6510 = vpack.c.b16 %v5102, %v5086
  %v6511 = vpack.c.b16 %v5103, %v5087
  %v6512 = vpack.c.b16 %v5104, %v5088
  %v6513 = vpack.c.b16 %v5105, %v5089
  %v6514 = vpack.c.b16 %v5106, %v5090
  %v6515 = vpack.c.b16 %v5107, %v5091
  %v6516 = vpack.c.b16 %v5108, %v5092
  %v6517 = vpack.c.b16 %v5125, %v5109
  %v6518 = vpack.c.b16 %v5126, %v5110
  %v6519 = vpack.c.b16 %v5127, %v5111
  %v6520 = vpack.c.b16 %v5128, %v5112
  %v6521 = vpack.c.b16 %v5129, %v5113
  %v6522 = vpack.c.b16 %v5130, %v5114
  %v6523 = vpack.c.b16 %v5131, %v5115
  %v6524 = vpack.c.b16 %v5132, %v5116
  %v6525 = vpack.c.b16 %v5133, %v5117
  %v6526 = vpack.c.b16 %v5134, %v5118
  %v6527 = vpack.c.b16 %v5135, %v5119
  %v6528 = vpack.c.b16 %v5136, %v5120
  %v6529 = vpack.c.b16 %v5137, %v5121
  %v6530 = vpack.c.b16 %v5138, %v5122
  %v6531 = vpack.c.b16 %v5139, %v5123
  %v6532 = vpack.c.b16 %v5140, %v5124
  %v6533 = vpack.c.b16 %v5157, %v5141
  %v6534 = vpack.c.b16 %v5158, %v5142
  %v6535 = vpack.c.b16 %v5159, %v5143
  %v6536 = vpack.c.b16 %v5160, %v5144
  %v6537 = vpack.c.b16 %v5161, %v5145
  %v6538 = vpack.c.b16 %v5162, %v5146
  %v6539 = vpack.c.b16 %v5163, %v5147
  %v6540 = vpack.c.b16 %v5164, %v5148
  %v6541 = vpack.c.b16 %v5165, %v5149
  %v6542 = vpack.c.b16 %v5166, %v5150
  %v6543 = vpack.c.b16 %v5167, %v5151
  %v6544 = vpack.c.b16 %v5168, %v5152
  %v6545 = vpack.c.b16 %v5169, %v5153
  %v6546 = vpack.c.b16 %v5170, %v5154
  %v6547 = vpack.c.b16 %v5171, %v5155
  %v6548 = vpack.c.b16 %v5172, %v5156
  %v6549 = vpack.c.b16 %v5189, %v5173
  %v6550 = vpack.c.b16 %v5190, %v5174
  %v6551 = vpack.c.b16 %v5191, %v5175
  %v6552 = vpack.c.b16 %v5192, %v5176
  %v6553 = vpack.c.b16 %v5193, %v5177
  %v6554 = vpack.c.b16 %v5194, %v5178
  %v6555 = vpack.c.b16 %v5195, %v5179
  %v6556 = vpack.c.b16 %v5196, %v5180
  %v6557 = vpack.c.b16 %v5197, %v5181
  %v6558 = vpack.c.b16 %v5198, %v5182
  %v6559 = vpack.c.b16 %v5199, %v5183
  %v6560 = vpack.c.b16 %v5200, %v5184
  %v6561 = vpack.c.b16 %v5201, %v5185
  %v6562 = vpack.c.b16 %v5202, %v5186
  %v6563 = vpack.c.b16 %v5203, %v5187
  %v6564 = vpack.c.b16 %v5204, %v5188
  %v6565 = vpack.c.b16 %v5221, %v5205
  %v6566 = vpack.c.b16 %v5222, %v5206
  %v6567 = vpack.c.b16 %v5223, %v5207
  %v6568 = vpack.c.b16 %v5224, %v5208
  %v6569 = vpack.c.b16 %v5225, %v5209
  %v6570 = vpack.c.b16 %v5226, %v5210
  %v6571 = vpack.c.b16 %v5227, %v5211
  %v6572 = vpack.c.b16 %v5228, %v5212
  %v6573 = vpack.c.b16 %v5229, %v5213
  %v6574 = vpack.c.b16 %v5230, %v5214
  %v6575 = vpack.c.b16 %v5231, %v5215
  %v6576 = vpack.c.b16 %v5232, %v5216
  %v6577 = vpack.c.b16 %v5233, %v5217
  %v6578 = vpack.c.b16 %v5234, %v5218
  %v6579 = vpack.c.b16 %v5235, %v5219
  %v6580 = vpack.c.b16 %v5236, %v5220
  %v6581 = vpack.c.b16 %v5253, %v5237
  %v6582 = vpack.c.b16 %v5254, %v5238
  %v6583 = vpack.c.b16 %v5255, %v5239
  %v6584 = vpack.c.b16 %v5256, %v5240
  %v6585 = vpack.c.b16 %v5257, %v5241
  %v6586 = vpack.c.b16 %v5258, %v5242
  %v6587 = vpack.c.b16 %v5259, %v5243
  %v6588 = vpack.c.b16 %v5260, %v5244
  %v6589 = vpack.c.b16 %v5261, %v5245
  %v6590 = vpack.c.b16 %v5262, %v5246
  %v6591 = vpack.c.b16 %v5263, %v5247
  %v6592 = vpack.c.b16 %v5264, %v5248
  %v6593 = vpack.c.b16 %v5265, %v5249
  %v6594 = vpack.c.b16 %v5266, %v5250
  %v6595 = vpack.c.b16 %v5267, %v5251
  %v6596 = vpack.c.b16 %v5268, %v5252
  %v6597 = vpack.c.b16 %v5285, %v5269
  %v6598 = vpack.c.b16 %v5286, %v5270
  %v6599 = vpack.c.b16 %v5287, %v5271
  %v6600 = vpack.c.b16 %v5288, %v5272
  %v6601 = vpack.c.b16 %v5289, %v5273
  %v6602 = vpack.c.b16 %v5290, %v5274
  %v6603 = vpack.c.b16 %v5291, %v5275
  %v6604 = vpack.c.b16 %v5292, %v5276
  %v6605 = vpack.c.b16 %v5293, %v5277
  %v6606 = vpack.c.b16 %v5294, %v5278
  %v6607 = vpack.c.b16 %v5295, %v5279
  %v6608 = vpack.c.b16 %v5296, %v5280
  %v6609 = vpack.c.b16 %v5297, %v5281
  %v6610 = vpack.c.b16 %v5298, %v5282
  %v6611 = vpack.c.b16 %v5299, %v5283
  %v6612 = vpack.c.b16 %v5300, %v5284
  %v6613 = vpack.c.b16 %v5317, %v5301
  %v6614 = vpack.c.b16 %v5318, %v5302
  %v6615 = vpack.c.b16 %v5319, %v5303
  %v6616 = vpack.c.b16 %v5320, %v5304
  %v6617 = vpack.c.b16 %v5321, %v5305
  %v6618 = vpack.c.b16 %v5322, %v5306
  %v6619 = vpack.c.b16 %v5323, %v5307
  %v6620 = vpack.c.b16 %v5324, %v5308
  %v6621 = vpack.c.b16 %v5325, %v5309
  %v6622 = vpack.c.b16 %v5326, %v5310
  %v6623 = vpack.c.b16 %v5327, %v5311
  %v6624 = vpack.c.b16 %v5328, %v5312
  %v6625 = vpack.c.b16 %v5329, %v5313
  %v6626 = vpack.c.b16 %v5330, %v5314
  %v6627 = vpack.c.b16 %v5331, %v5315
  %v6628 = vpack.c.b16 %v5332, %v5316
  %vm7925 = vcmask 130048
  %v7927 = vsel %vm7925, %v1434, 0
  %7929 = vmatprep.subr.bf16.mxu0 %v5334
  %7930 = vmatpush1.bf16.msra.mxu0 %v5333
  %7931 = vmatprep.subr.bf16.mxu0 %v5350
  %7932 = vmatpush1.bf16.msra.mxu0 %v5349
  %7933 = vmatprep.subr.bf16.mxu0 %v5366
  %7934 = vmatpush1.bf16.msra.mxu0 %v5365
  %7935 = vmatprep.subr.bf16.mxu0 %v5382
  %7936 = vmatpush1.bf16.msra.mxu0 %v5381
  %7937 = vmatprep.subr.bf16.mxu0 %v5398
  %7938 = vmatpush1.bf16.msra.mxu0 %v5397
  %7939 = vmatprep.subr.bf16.mxu0 %v5414
  %7940 = vmatpush1.bf16.msra.mxu0 %v5413
  %7941 = vmatprep.subr.bf16.mxu0 %v5430
  %7942 = vmatpush1.bf16.msra.mxu0 %v5429
  %7943 = vmatprep.subr.bf16.mxu0 %v5446
  %7944 = vmatpush1.bf16.msra.mxu0 %v5445
  %7945 = vmatprep.subr.bf16.mxu0 %v5462
  %7946 = vmatpush1.bf16.msra.mxu0 %v5461
  %7947 = vmatprep.subr.bf16.mxu0 %v5478
  %7948 = vmatpush1.bf16.msra.mxu0 %v5477
  %7949 = vmatprep.subr.bf16.mxu0 %v5494
  %7950 = vmatpush1.bf16.msra.mxu0 %v5493
  %7951 = vmatprep.subr.bf16.mxu0 %v5510
  %7952 = vmatpush1.bf16.msra.mxu0 %v5509
  %7953 = vmatprep.subr.bf16.mxu0 %v5526
  %7954 = vmatpush1.bf16.msra.mxu0 %v5525
  %7955 = vmatprep.subr.bf16.mxu0 %v5542
  %7956 = vmatpush1.bf16.msra.mxu0 %v5541
  %7957 = vmatprep.subr.bf16.mxu0 %v5558
  %7958 = vmatpush1.bf16.msra.mxu0 %v5557
  %7959 = vmatprep.subr.bf16.mxu0 %v5574
  %7960 = vmatpush1.bf16.msra.mxu0 %v5573
  %7961 = vmatprep.mubr.bf16.mxu0 %v1425
  %7962 = vmatmul.mubr.bf16.gmra.mrb[0].mxu0 %v1424
  %v7963 = vpop.f32.mrb[0].mxu0
  %v7964 = vadd.f32 %v1330, %v7963
  %v7965 = vpop.f32.mrb[0].mxu0
  %v7966 = vadd.f32 %v1334, %v7965
  %v7967 = vpop.f32.mrb[0].mxu0
  %v7968 = vpop.f32.mrb[0].mxu0
  %7969 = vdwg.mxu0
  %7970 = vmatprep.subr.bf16.mxu0 %v5590
  %7971 = vmatpush1.bf16.msra.mxu0 %v5589
  %7972 = vmatprep.subr.bf16.mxu0 %v5606
  %7973 = vmatpush1.bf16.msra.mxu0 %v5605
  %7974 = vmatprep.subr.bf16.mxu0 %v5622
  %7975 = vmatpush1.bf16.msra.mxu0 %v5621
  %7976 = vmatprep.subr.bf16.mxu0 %v5638
  %7977 = vmatpush1.bf16.msra.mxu0 %v5637
  %7978 = vmatprep.subr.bf16.mxu0 %v5654
  %7979 = vmatpush1.bf16.msra.mxu0 %v5653
  %7980 = vmatprep.subr.bf16.mxu0 %v5670
  %7981 = vmatpush1.bf16.msra.mxu0 %v5669
  %7982 = vmatprep.subr.bf16.mxu0 %v5686
  %7983 = vmatpush1.bf16.msra.mxu0 %v5685
  %7984 = vmatprep.subr.bf16.mxu0 %v5702
  %7985 = vmatpush1.bf16.msra.mxu0 %v5701
  %7986 = vmatprep.subr.bf16.mxu0 %v5718
  %7987 = vmatpush1.bf16.msra.mxu0 %v5717
  %7988 = vmatprep.subr.bf16.mxu0 %v5734
  %7989 = vmatpush1.bf16.msra.mxu0 %v5733
  %7990 = vmatprep.subr.bf16.mxu0 %v5750
  %7991 = vmatpush1.bf16.msra.mxu0 %v5749
  %7992 = vmatprep.subr.bf16.mxu0 %v5766
  %7993 = vmatpush1.bf16.msra.mxu0 %v5765
  %7994 = vmatprep.subr.bf16.mxu0 %v5782
  %7995 = vmatpush1.bf16.msra.mxu0 %v5781
  %7996 = vmatprep.subr.bf16.mxu0 %v5798
  %7997 = vmatpush1.bf16.msra.mxu0 %v5797
  %7998 = vmatprep.subr.bf16.mxu0 %v5814
  %7999 = vmatpush1.bf16.msra.mxu0 %v5813
  %8000 = vmatprep.subr.bf16.mxu0 %v5830
  %8001 = vmatpush1.bf16.msra.mxu0 %v5829
  %8002 = vmatprep.mubr.bf16.mxu0 %v1427
  %8003 = vmatmul.mubr.bf16.gmra.mrb[0].mxu0 %v1426
  %v8004 = vpop.f32.mrb[0].mxu0
  %v8005 = vadd.f32 %v7964, %v8004
  %v8006 = vpop.f32.mrb[0].mxu0
  %v8007 = vadd.f32 %v7966, %v8006
  %v8008 = vpop.f32.mrb[0].mxu0
  %v8009 = vpop.f32.mrb[0].mxu0
  %8010 = vdwg.mxu0
  %8011 = vmatprep.subr.bf16.mxu0 %v5846
  %8012 = vmatpush1.bf16.msra.mxu0 %v5845
  %8013 = vmatprep.subr.bf16.mxu0 %v5862
  %8014 = vmatpush1.bf16.msra.mxu0 %v5861
  %8015 = vmatprep.subr.bf16.mxu0 %v5878
  %8016 = vmatpush1.bf16.msra.mxu0 %v5877
  %8017 = vmatprep.subr.bf16.mxu0 %v5894
  %8018 = vmatpush1.bf16.msra.mxu0 %v5893
  %8019 = vmatprep.subr.bf16.mxu0 %v5910
  %8020 = vmatpush1.bf16.msra.mxu0 %v5909
  %8021 = vmatprep.subr.bf16.mxu0 %v5926
  %8022 = vmatpush1.bf16.msra.mxu0 %v5925
  %8023 = vmatprep.subr.bf16.mxu0 %v5942
  %8024 = vmatpush1.bf16.msra.mxu0 %v5941
  %8025 = vmatprep.subr.bf16.mxu0 %v5958
  %8026 = vmatpush1.bf16.msra.mxu0 %v5957
  %8027 = vmatprep.subr.bf16.mxu0 %v5974
  %8028 = vmatpush1.bf16.msra.mxu0 %v5973
  %8029 = vmatprep.subr.bf16.mxu0 %v5990
  %8030 = vmatpush1.bf16.msra.mxu0 %v5989
  %8031 = vmatprep.subr.bf16.mxu0 %v6006
  %8032 = vmatpush1.bf16.msra.mxu0 %v6005
  %8033 = vmatprep.subr.bf16.mxu0 %v6022
  %8034 = vmatpush1.bf16.msra.mxu0 %v6021
  %8035 = vmatprep.subr.bf16.mxu0 %v6038
  %8036 = vmatpush1.bf16.msra.mxu0 %v6037
  %8037 = vmatprep.subr.bf16.mxu0 %v6054
  %8038 = vmatpush1.bf16.msra.mxu0 %v6053
  %8039 = vmatprep.subr.bf16.mxu0 %v6070
  %8040 = vmatpush1.bf16.msra.mxu0 %v6069
  %8041 = vmatprep.subr.bf16.mxu0 %v6086
  %8042 = vmatpush1.bf16.msra.mxu0 %v6085
  %8043 = vmatprep.mubr.bf16.mxu0 %v1429
  %8044 = vmatmul.mubr.bf16.gmra.mrb[0].mxu0 %v1428
  %v8045 = vpop.f32.mrb[0].mxu0
  %v8046 = vadd.f32 %v8005, %v8045
  %v8047 = vpop.f32.mrb[0].mxu0
  %v8048 = vadd.f32 %v8007, %v8047
  %v8049 = vpop.f32.mrb[0].mxu0
  %v8050 = vpop.f32.mrb[0].mxu0
  %8051 = vdwg.mxu0
  %8052 = vmatprep.subr.bf16.mxu0 %v6102
  %8053 = vmatpush1.bf16.msra.mxu0 %v6101
  %8054 = vmatprep.subr.bf16.mxu0 %v6118
  %8055 = vmatpush1.bf16.msra.mxu0 %v6117
  %8056 = vmatprep.subr.bf16.mxu0 %v6134
  %8057 = vmatpush1.bf16.msra.mxu0 %v6133
  %8058 = vmatprep.subr.bf16.mxu0 %v6150
  %8059 = vmatpush1.bf16.msra.mxu0 %v6149
  %8060 = vmatprep.subr.bf16.mxu0 %v6166
  %8061 = vmatpush1.bf16.msra.mxu0 %v6165
  %8062 = vmatprep.subr.bf16.mxu0 %v6182
  %8063 = vmatpush1.bf16.msra.mxu0 %v6181
  %8064 = vmatprep.subr.bf16.mxu0 %v6198
  %8065 = vmatpush1.bf16.msra.mxu0 %v6197
  %8066 = vmatprep.subr.bf16.mxu0 %v6214
  %8067 = vmatpush1.bf16.msra.mxu0 %v6213
  %8068 = vmatprep.subr.bf16.mxu0 %v6230
  %8069 = vmatpush1.bf16.msra.mxu0 %v6229
  %8070 = vmatprep.subr.bf16.mxu0 %v6246
  %8071 = vmatpush1.bf16.msra.mxu0 %v6245
  %8072 = vmatprep.subr.bf16.mxu0 %v6262
  %8073 = vmatpush1.bf16.msra.mxu0 %v6261
  %8074 = vmatprep.subr.bf16.mxu0 %v6278
  %8075 = vmatpush1.bf16.msra.mxu0 %v6277
  %8076 = vmatprep.subr.bf16.mxu0 %v6294
  %8077 = vmatpush1.bf16.msra.mxu0 %v6293
  %8078 = vmatprep.subr.bf16.mxu0 %v6310
  %8079 = vmatpush1.bf16.msra.mxu0 %v6309
  %8080 = vmatprep.subr.bf16.mxu0 %v6326
  %8081 = vmatpush1.bf16.msra.mxu0 %v6325
  %8082 = vmatprep.subr.bf16.mxu0 %v6342
  %8083 = vmatpush1.bf16.msra.mxu0 %v6341
  %8084 = vmatprep.mubr.bf16.mxu0 %v1431
  %8085 = vmatmul.mubr.bf16.gmra.mrb[0].mxu0 %v1430
  %v8086 = vpop.f32.mrb[0].mxu0
  %v8087 = vadd.f32 %v8046, %v8086
  %v8088 = vpop.f32.mrb[0].mxu0
  %v8089 = vadd.f32 %v8048, %v8088
  %v8090 = vpop.f32.mrb[0].mxu0
  %v8091 = vpop.f32.mrb[0].mxu0
  %8092 = vdwg.mxu0
  %8093 = vmatprep.subr.bf16.mxu0 %v6358
  %8094 = vmatpush1.bf16.msra.mxu0 %v6357
  %8095 = vmatprep.subr.bf16.mxu0 %v6374
  %8096 = vmatpush1.bf16.msra.mxu0 %v6373
  %8097 = vmatprep.subr.bf16.mxu0 %v6390
  %8098 = vmatpush1.bf16.msra.mxu0 %v6389
  %8099 = vmatprep.subr.bf16.mxu0 %v6406
  %8100 = vmatpush1.bf16.msra.mxu0 %v6405
  %8101 = vmatprep.subr.bf16.mxu0 %v6422
  %8102 = vmatpush1.bf16.msra.mxu0 %v6421
  %8103 = vmatprep.subr.bf16.mxu0 %v6438
  %8104 = vmatpush1.bf16.msra.mxu0 %v6437
  %8105 = vmatprep.subr.bf16.mxu0 %v6454
  %8106 = vmatpush1.bf16.msra.mxu0 %v6453
  %8107 = vmatprep.subr.bf16.mxu0 %v6470
  %8108 = vmatpush1.bf16.msra.mxu0 %v6469
  %8109 = vmatprep.subr.bf16.mxu0 %v6486
  %8110 = vmatpush1.bf16.msra.mxu0 %v6485
  %8111 = vmatprep.subr.bf16.mxu0 %v6502
  %8112 = vmatpush1.bf16.msra.mxu0 %v6501
  %8113 = vmatprep.subr.bf16.mxu0 %v6518
  %8114 = vmatpush1.bf16.msra.mxu0 %v6517
  %8115 = vmatprep.subr.bf16.mxu0 %v6534
  %8116 = vmatpush1.bf16.msra.mxu0 %v6533
  %8117 = vmatprep.subr.bf16.mxu0 %v6550
  %8118 = vmatpush1.bf16.msra.mxu0 %v6549
  %8119 = vmatprep.subr.bf16.mxu0 %v6566
  %8120 = vmatpush1.bf16.msra.mxu0 %v6565
  %8121 = vmatprep.subr.bf16.mxu0 %v6582
  %8122 = vmatpush1.bf16.msra.mxu0 %v6581
  %8123 = vmatprep.subr.bf16.mxu0 %v6598
  %8124 = vmatpush1.bf16.msra.mxu0 %v6597
  %8125 = vmatprep.mubr.bf16.mxu0 %v1433
  %8126 = vmatmul.mubr.bf16.gmra.mrb[0].mxu0 %v1432
  %v8127 = vpop.f32.mrb[0].mxu0
  %v8128 = vadd.f32 %v8087, %v8127
  %v8129 = vpop.f32.mrb[0].mxu0
  %v8130 = vadd.f32 %v8089, %v8129
  %v8131 = vpop.f32.mrb[0].mxu0
  %v8132 = vpop.f32.mrb[0].mxu0
  %8133 = vdwg.mxu0
  %8134 = vmatprep.subr.bf16.mxu0 %v6614
  %8135 = vmatpush1.bf16.msra.mxu0 %v6613
  %8136 = vmatprep.subr.bf16.mxu0 0
  %8137 = vmatpush1.bf16.msra.mxu0 0
  %8138 = vmatprep.subr.bf16.mxu0 0
  %8139 = vmatpush1.bf16.msra.mxu0 0
  %8140 = vmatprep.subr.bf16.mxu0 0
  %8141 = vmatpush1.bf16.msra.mxu0 0
  %8142 = vmatprep.subr.bf16.mxu0 0
  %8143 = vmatpush1.bf16.msra.mxu0 0
  %8144 = vmatprep.subr.bf16.mxu0 0
  %8145 = vmatpush1.bf16.msra.mxu0 0
  %8146 = vmatprep.subr.bf16.mxu0 0
  %8147 = vmatpush1.bf16.msra.mxu0 0
  %8148 = vmatprep.subr.bf16.mxu0 0
  %8149 = vmatpush1.bf16.msra.mxu0 0
  %8150 = vmatprep.subr.bf16.mxu0 0
  %8151 = vmatpush1.bf16.msra.mxu0 0
  %8152 = vmatprep.subr.bf16.mxu0 0
  %8153 = vmatpush1.bf16.msra.mxu0 0
  %8154 = vmatprep.subr.bf16.mxu0 0
  %8155 = vmatpush1.bf16.msra.mxu0 0
  %8156 = vmatprep.subr.bf16.mxu0 0
  %8157 = vmatpush1.bf16.msra.mxu0 0
  %8158 = vmatprep.subr.bf16.mxu0 0
  %8159 = vmatpush1.bf16.msra.mxu0 0
  %8160 = vmatprep.subr.bf16.mxu0 0
  %8161 = vmatpush1.bf16.msra.mxu0 0
  %8162 = vmatprep.subr.bf16.mxu0 0
  %8163 = vmatpush1.bf16.msra.mxu0 0
  %8164 = vmatprep.subr.bf16.mxu0 0
  %8165 = vmatpush1.bf16.msra.mxu0 0
  %8166 = vmatprep.mubr.bf16.mxu0 0
  %8167 = vmatmul.mubr.bf16.gmra.mrb[0].mxu0 %v7927
  %v8168 = vpop.f32.mrb[0].mxu0
  %v8169 = vadd.f32 %v8128, %v8168
  %v8170 = vpop.f32.mrb[0].mxu0
  %v8171 = vadd.f32 %v8130, %v8170
  %v8172 = vpop.f32.mrb[0].mxu0
  %v8173 = vpop.f32.mrb[0].mxu0
  %8174 = vdwg.mxu0
  %8175 = vmatprep.subr.bf16.mxu0 %v5336
  %8176 = vmatpush1.bf16.msra.mxu0 %v5335
  %8177 = vmatprep.subr.bf16.mxu0 %v5352
  %8178 = vmatpush1.bf16.msra.mxu0 %v5351
  %8179 = vmatprep.subr.bf16.mxu0 %v5368
  %8180 = vmatpush1.bf16.msra.mxu0 %v5367
  %8181 = vmatprep.subr.bf16.mxu0 %v5384
  %8182 = vmatpush1.bf16.msra.mxu0 %v5383
  %8183 = vmatprep.subr.bf16.mxu0 %v5400
  %8184 = vmatpush1.bf16.msra.mxu0 %v5399
  %8185 = vmatprep.subr.bf16.mxu0 %v5416
  %8186 = vmatpush1.bf16.msra.mxu0 %v5415
  %8187 = vmatprep.subr.bf16.mxu0 %v5432
  %8188 = vmatpush1.bf16.msra.mxu0 %v5431
  %8189 = vmatprep.subr.bf16.mxu0 %v5448
  %8190 = vmatpush1.bf16.msra.mxu0 %v5447
  %8191 = vmatprep.subr.bf16.mxu0 %v5464
  %8192 = vmatpush1.bf16.msra.mxu0 %v5463
  %8193 = vmatprep.subr.bf16.mxu0 %v5480
  %8194 = vmatpush1.bf16.msra.mxu0 %v5479
  %8195 = vmatprep.subr.bf16.mxu0 %v5496
  %8196 = vmatpush1.bf16.msra.mxu0 %v5495
  %8197 = vmatprep.subr.bf16.mxu0 %v5512
  %8198 = vmatpush1.bf16.msra.mxu0 %v5511
  %8199 = vmatprep.subr.bf16.mxu0 %v5528
  %8200 = vmatpush1.bf16.msra.mxu0 %v5527
  %8201 = vmatprep.subr.bf16.mxu0 %v5544
  %8202 = vmatpush1.bf16.msra.mxu0 %v5543
  %8203 = vmatprep.subr.bf16.mxu0 %v5560
  %8204 = vmatpush1.bf16.msra.mxu0 %v5559
  %8205 = vmatprep.subr.bf16.mxu0 %v5576
  %8206 = vmatpush1.bf16.msra.mxu0 %v5575
  %8207 = vmatprep.mubr.bf16.mxu0 %v1425
  %8208 = vmatmul.mubr.bf16.gmra.mrb[0].mxu0 %v1424
  %v8209 = vpop.f32.mrb[0].mxu0
  %v8210 = vadd.f32 %v1338, %v8209
  %v8211 = vpop.f32.mrb[0].mxu0
  %v8212 = vadd.f32 %v1342, %v8211
  %v8213 = vpop.f32.mrb[0].mxu0
  %v8214 = vpop.f32.mrb[0].mxu0
  %8215 = vdwg.mxu0
  %8216 = vmatprep.subr.bf16.mxu0 %v5592
  %8217 = vmatpush1.bf16.msra.mxu0 %v5591
  %8218 = vmatprep.subr.bf16.mxu0 %v5608
  %8219 = vmatpush1.bf16.msra.mxu0 %v5607
  %8220 = vmatprep.subr.bf16.mxu0 %v5624
  %8221 = vmatpush1.bf16.msra.mxu0 %v5623
  %8222 = vmatprep.subr.bf16.mxu0 %v5640
  %8223 = vmatpush1.bf16.msra.mxu0 %v5639
  %8224 = vmatprep.subr.bf16.mxu0 %v5656
  %8225 = vmatpush1.bf16.msra.mxu0 %v5655
  %8226 = vmatprep.subr.bf16.mxu0 %v5672
  %8227 = vmatpush1.bf16.msra.mxu0 %v5671
  %8228 = vmatprep.subr.bf16.mxu0 %v5688
  %8229 = vmatpush1.bf16.msra.mxu0 %v5687
  %8230 = vmatprep.subr.bf16.mxu0 %v5704
  %8231 = vmatpush1.bf16.msra.mxu0 %v5703
  %8232 = vmatprep.subr.bf16.mxu0 %v5720
  %8233 = vmatpush1.bf16.msra.mxu0 %v5719
  %8234 = vmatprep.subr.bf16.mxu0 %v5736
  %8235 = vmatpush1.bf16.msra.mxu0 %v5735
  %8236 = vmatprep.subr.bf16.mxu0 %v5752
  %8237 = vmatpush1.bf16.msra.mxu0 %v5751
  %8238 = vmatprep.subr.bf16.mxu0 %v5768
  %8239 = vmatpush1.bf16.msra.mxu0 %v5767
  %8240 = vmatprep.subr.bf16.mxu0 %v5784
  %8241 = vmatpush1.bf16.msra.mxu0 %v5783
  %8242 = vmatprep.subr.bf16.mxu0 %v5800
  %8243 = vmatpush1.bf16.msra.mxu0 %v5799
  %8244 = vmatprep.subr.bf16.mxu0 %v5816
  %8245 = vmatpush1.bf16.msra.mxu0 %v5815
  %8246 = vmatprep.subr.bf16.mxu0 %v5832
  %8247 = vmatpush1.bf16.msra.mxu0 %v5831
  %8248 = vmatprep.mubr.bf16.mxu0 %v1427
  %8249 = vmatmul.mubr.bf16.gmra.mrb[0].mxu0 %v1426
  %v8250 = vpop.f32.mrb[0].mxu0
  %v8251 = vadd.f32 %v8210, %v8250
  %v8252 = vpop.f32.mrb[0].mxu0
  %v8253 = vadd.f32 %v8212, %v8252
  %v8254 = vpop.f32.mrb[0].mxu0
  %v8255 = vpop.f32.mrb[0].mxu0
  %8256 = vdwg.mxu0
  %8257 = vmatprep.subr.bf16.mxu0 %v5848
  %8258 = vmatpush1.bf16.msra.mxu0 %v5847
  %8259 = vmatprep.subr.bf16.mxu0 %v5864
  %8260 = vmatpush1.bf16.msra.mxu0 %v5863
  %8261 = vmatprep.subr.bf16.mxu0 %v5880
  %8262 = vmatpush1.bf16.msra.mxu0 %v5879
  %8263 = vmatprep.subr.bf16.mxu0 %v5896
  %8264 = vmatpush1.bf16.msra.mxu0 %v5895
  %8265 = vmatprep.subr.bf16.mxu0 %v5912
  %8266 = vmatpush1.bf16.msra.mxu0 %v5911
  %8267 = vmatprep.subr.bf16.mxu0 %v5928
  %8268 = vmatpush1.bf16.msra.mxu0 %v5927
  %8269 = vmatprep.subr.bf16.mxu0 %v5944
  %8270 = vmatpush1.bf16.msra.mxu0 %v5943
  %8271 = vmatprep.subr.bf16.mxu0 %v5960
  %8272 = vmatpush1.bf16.msra.mxu0 %v5959
  %8273 = vmatprep.subr.bf16.mxu0 %v5976
  %8274 = vmatpush1.bf16.msra.mxu0 %v5975
  %8275 = vmatprep.subr.bf16.mxu0 %v5992
  %8276 = vmatpush1.bf16.msra.mxu0 %v5991
  %8277 = vmatprep.subr.bf16.mxu0 %v6008
  %8278 = vmatpush1.bf16.msra.mxu0 %v6007
  %8279 = vmatprep.subr.bf16.mxu0 %v6024
  %8280 = vmatpush1.bf16.msra.mxu0 %v6023
  %8281 = vmatprep.subr.bf16.mxu0 %v6040
  %8282 = vmatpush1.bf16.msra.mxu0 %v6039
  %8283 = vmatprep.subr.bf16.mxu0 %v6056
  %8284 = vmatpush1.bf16.msra.mxu0 %v6055
  %8285 = vmatprep.subr.bf16.mxu0 %v6072
  %8286 = vmatpush1.bf16.msra.mxu0 %v6071
  %8287 = vmatprep.subr.bf16.mxu0 %v6088
  %8288 = vmatpush1.bf16.msra.mxu0 %v6087
  %8289 = vmatprep.mubr.bf16.mxu0 %v1429
  %8290 = vmatmul.mubr.bf16.gmra.mrb[0].mxu0 %v1428
  %v8291 = vpop.f32.mrb[0].mxu0
  %v8292 = vadd.f32 %v8251, %v8291
  %v8293 = vpop.f32.mrb[0].mxu0
  %v8294 = vadd.f32 %v8253, %v8293
  %v8295 = vpop.f32.mrb[0].mxu0
  %v8296 = vpop.f32.mrb[0].mxu0
  %8297 = vdwg.mxu0
  %8298 = vmatprep.subr.bf16.mxu0 %v6104
  %8299 = vmatpush1.bf16.msra.mxu0 %v6103
  %8300 = vmatprep.subr.bf16.mxu0 %v6120
  %8301 = vmatpush1.bf16.msra.mxu0 %v6119
  %8302 = vmatprep.subr.bf16.mxu0 %v6136
  %8303 = vmatpush1.bf16.msra.mxu0 %v6135
  %8304 = vmatprep.subr.bf16.mxu0 %v6152
  %8305 = vmatpush1.bf16.msra.mxu0 %v6151
  %8306 = vmatprep.subr.bf16.mxu0 %v6168
  %8307 = vmatpush1.bf16.msra.mxu0 %v6167
  %8308 = vmatprep.subr.bf16.mxu0 %v6184
  %8309 = vmatpush1.bf16.msra.mxu0 %v6183
  %8310 = vmatprep.subr.bf16.mxu0 %v6200
  %8311 = vmatpush1.bf16.msra.mxu0 %v6199
  %8312 = vmatprep.subr.bf16.mxu0 %v6216
  %8313 = vmatpush1.bf16.msra.mxu0 %v6215
  %8314 = vmatprep.subr.bf16.mxu0 %v6232
  %8315 = vmatpush1.bf16.msra.mxu0 %v6231
  %8316 = vmatprep.subr.bf16.mxu0 %v6248
  %8317 = vmatpush1.bf16.msra.mxu0 %v6247
  %8318 = vmatprep.subr.bf16.mxu0 %v6264
  %8319 = vmatpush1.bf16.msra.mxu0 %v6263
  %8320 = vmatprep.subr.bf16.mxu0 %v6280
  %8321 = vmatpush1.bf16.msra.mxu0 %v6279
  %8322 = vmatprep.subr.bf16.mxu0 %v6296
  %8323 = vmatpush1.bf16.msra.mxu0 %v6295
  %8324 = vmatprep.subr.bf16.mxu0 %v6312
  %8325 = vmatpush1.bf16.msra.mxu0 %v6311
  %8326 = vmatprep.subr.bf16.mxu0 %v6328
  %8327 = vmatpush1.bf16.msra.mxu0 %v6327
  %8328 = vmatprep.subr.bf16.mxu0 %v6344
  %8329 = vmatpush1.bf16.msra.mxu0 %v6343
  %8330 = vmatprep.mubr.bf16.mxu0 %v1431
  %8331 = vmatmul.mubr.bf16.gmra.mrb[0].mxu0 %v1430
  %v8332 = vpop.f32.mrb[0].mxu0
  %v8333 = vadd.f32 %v8292, %v8332
  %v8334 = vpop.f32.mrb[0].mxu0
  %v8335 = vadd.f32 %v8294, %v8334
  %v8336 = vpop.f32.mrb[0].mxu0
  %v8337 = vpop.f32.mrb[0].mxu0
  %8338 = vdwg.mxu0
  %8339 = vmatprep.subr.bf16.mxu0 %v6360
  %8340 = vmatpush1.bf16.msra.mxu0 %v6359
  %8341 = vmatprep.subr.bf16.mxu0 %v6376
  %8342 = vmatpush1.bf16.msra.mxu0 %v6375
  %8343 = vmatprep.subr.bf16.mxu0 %v6392
  %8344 = vmatpush1.bf16.msra.mxu0 %v6391
  %8345 = vmatprep.subr.bf16.mxu0 %v6408
  %8346 = vmatpush1.bf16.msra.mxu0 %v6407
  %8347 = vmatprep.subr.bf16.mxu0 %v6424
  %8348 = vmatpush1.bf16.msra.mxu0 %v6423
  %8349 = vmatprep.subr.bf16.mxu0 %v6440
  %8350 = vmatpush1.bf16.msra.mxu0 %v6439
  %8351 = vmatprep.subr.bf16.mxu0 %v6456
  %8352 = vmatpush1.bf16.msra.mxu0 %v6455
  %8353 = vmatprep.subr.bf16.mxu0 %v6472
  %8354 = vmatpush1.bf16.msra.mxu0 %v6471
  %8355 = vmatprep.subr.bf16.mxu0 %v6488
  %8356 = vmatpush1.bf16.msra.mxu0 %v6487
  %8357 = vmatprep.subr.bf16.mxu0 %v6504
  %8358 = vmatpush1.bf16.msra.mxu0 %v6503
  %8359 = vmatprep.subr.bf16.mxu0 %v6520
  %8360 = vmatpush1.bf16.msra.mxu0 %v6519
  %8361 = vmatprep.subr.bf16.mxu0 %v6536
  %8362 = vmatpush1.bf16.msra.mxu0 %v6535
  %8363 = vmatprep.subr.bf16.mxu0 %v6552
  %8364 = vmatpush1.bf16.msra.mxu0 %v6551
  %8365 = vmatprep.subr.bf16.mxu0 %v6568
  %8366 = vmatpush1.bf16.msra.mxu0 %v6567
  %8367 = vmatprep.subr.bf16.mxu0 %v6584
  %8368 = vmatpush1.bf16.msra.mxu0 %v6583
  %8369 = vmatprep.subr.bf16.mxu0 %v6600
  %8370 = vmatpush1.bf16.msra.mxu0 %v6599
  %8371 = vmatprep.mubr.bf16.mxu0 %v1433
  %8372 = vmatmul.mubr.bf16.gmra.mrb[0].mxu0 %v1432
  %v8373 = vpop.f32.mrb[0].mxu0
  %v8374 = vadd.f32 %v8333, %v8373
  %v8375 = vpop.f32.mrb[0].mxu0
  %v8376 = vadd.f32 %v8335, %v8375
  %v8377 = vpop.f32.mrb[0].mxu0
  %v8378 = vpop.f32.mrb[0].mxu0
  %8379 = vdwg.mxu0
  %8380 = vmatprep.subr.bf16.mxu0 %v6616
  %8381 = vmatpush1.bf16.msra.mxu0 %v6615
  %8382 = vmatprep.subr.bf16.mxu0 0
  %8383 = vmatpush1.bf16.msra.mxu0 0
  %8384 = vmatprep.subr.bf16.mxu0 0
  %8385 = vmatpush1.bf16.msra.mxu0 0
  %8386 = vmatprep.subr.bf16.mxu0 0
  %8387 = vmatpush1.bf16.msra.mxu0 0
  %8388 = vmatprep.subr.bf16.mxu0 0
  %8389 = vmatpush1.bf16.msra.mxu0 0
  %8390 = vmatprep.subr.bf16.mxu0 0
  %8391 = vmatpush1.bf16.msra.mxu0 0
  %8392 = vmatprep.subr.bf16.mxu0 0
  %8393 = vmatpush1.bf16.msra.mxu0 0
  %8394 = vmatprep.subr.bf16.mxu0 0
  %8395 = vmatpush1.bf16.msra.mxu0 0
  %8396 = vmatprep.subr.bf16.mxu0 0
  %8397 = vmatpush1.bf16.msra.mxu0 0
  %8398 = vmatprep.subr.bf16.mxu0 0
  %8399 = vmatpush1.bf16.msra.mxu0 0
  %8400 = vmatprep.subr.bf16.mxu0 0
  %8401 = vmatpush1.bf16.msra.mxu0 0
  %8402 = vmatprep.subr.bf16.mxu0 0
  %8403 = vmatpush1.bf16.msra.mxu0 0
  %8404 = vmatprep.subr.bf16.mxu0 0
  %8405 = vmatpush1.bf16.msra.mxu0 0
  %8406 = vmatprep.subr.bf16.mxu0 0
  %8407 = vmatpush1.bf16.msra.mxu0 0
  %8408 = vmatprep.subr.bf16.mxu0 0
  %8409 = vmatpush1.bf16.msra.mxu0 0
  %8410 = vmatprep.subr.bf16.mxu0 0
  %8411 = vmatpush1.bf16.msra.mxu0 0
  %8412 = vmatprep.mubr.bf16.mxu0 0
  %8413 = vmatmul.mubr.bf16.gmra.mrb[0].mxu0 %v7927
  %v8414 = vpop.f32.mrb[0].mxu0
  %v8415 = vadd.f32 %v8374, %v8414
  %v8416 = vpop.f32.mrb[0].mxu0
  %v8417 = vadd.f32 %v8376, %v8416
  %v8418 = vpop.f32.mrb[0].mxu0
  %v8419 = vpop.f32.mrb[0].mxu0
  %8420 = vdwg.mxu0
  %8421 = vmatprep.subr.bf16.mxu0 %v5338
  %8422 = vmatpush1.bf16.msra.mxu0 %v5337
  %8423 = vmatprep.subr.bf16.mxu0 %v5354
  %8424 = vmatpush1.bf16.msra.mxu0 %v5353
  %8425 = vmatprep.subr.bf16.mxu0 %v5370
  %8426 = vmatpush1.bf16.msra.mxu0 %v5369
  %8427 = vmatprep.subr.bf16.mxu0 %v5386
  %8428 = vmatpush1.bf16.msra.mxu0 %v5385
  %8429 = vmatprep.subr.bf16.mxu0 %v5402
  %8430 = vmatpush1.bf16.msra.mxu0 %v5401
  %8431 = vmatprep.subr.bf16.mxu0 %v5418
  %8432 = vmatpush1.bf16.msra.mxu0 %v5417
  %8433 = vmatprep.subr.bf16.mxu0 %v5434
  %8434 = vmatpush1.bf16.msra.mxu0 %v5433
  %8435 = vmatprep.subr.bf16.mxu0 %v5450
  %8436 = vmatpush1.bf16.msra.mxu0 %v5449
  %8437 = vmatprep.subr.bf16.mxu0 %v5466
  %8438 = vmatpush1.bf16.msra.mxu0 %v5465
  %8439 = vmatprep.subr.bf16.mxu0 %v5482
  %8440 = vmatpush1.bf16.msra.mxu0 %v5481
  %8441 = vmatprep.subr.bf16.mxu0 %v5498
  %8442 = vmatpush1.bf16.msra.mxu0 %v5497
  %8443 = vmatprep.subr.bf16.mxu0 %v5514
  %8444 = vmatpush1.bf16.msra.mxu0 %v5513
  %8445 = vmatprep.subr.bf16.mxu0 %v5530
  %8446 = vmatpush1.bf16.msra.mxu0 %v5529
  %8447 = vmatprep.subr.bf16.mxu0 %v5546
  %8448 = vmatpush1.bf16.msra.mxu0 %v5545
  %8449 = vmatprep.subr.bf16.mxu0 %v5562
  %8450 = vmatpush1.bf16.msra.mxu0 %v5561
  %8451 = vmatprep.subr.bf16.mxu0 %v5578
  %8452 = vmatpush1.bf16.msra.mxu0 %v5577
  %8453 = vmatprep.mubr.bf16.mxu0 %v1425
  %8454 = vmatmul.mubr.bf16.gmra.mrb[0].mxu0 %v1424
  %v8455 = vpop.f32.mrb[0].mxu0
  %v8456 = vadd.f32 %v1346, %v8455
  %v8457 = vpop.f32.mrb[0].mxu0
  %v8458 = vadd.f32 %v1350, %v8457
  %v8459 = vpop.f32.mrb[0].mxu0
  %v8460 = vpop.f32.mrb[0].mxu0
  %8461 = vdwg.mxu0
  %8462 = vmatprep.subr.bf16.mxu0 %v5594
  %8463 = vmatpush1.bf16.msra.mxu0 %v5593
  %8464 = vmatprep.subr.bf16.mxu0 %v5610
  %8465 = vmatpush1.bf16.msra.mxu0 %v5609
  %8466 = vmatprep.subr.bf16.mxu0 %v5626
  %8467 = vmatpush1.bf16.msra.mxu0 %v5625
  %8468 = vmatprep.subr.bf16.mxu0 %v5642
  %8469 = vmatpush1.bf16.msra.mxu0 %v5641
  %8470 = vmatprep.subr.bf16.mxu0 %v5658
  %8471 = vmatpush1.bf16.msra.mxu0 %v5657
  %8472 = vmatprep.subr.bf16.mxu0 %v5674
  %8473 = vmatpush1.bf16.msra.mxu0 %v5673
  %8474 = vmatprep.subr.bf16.mxu0 %v5690
  %8475 = vmatpush1.bf16.msra.mxu0 %v5689
  %8476 = vmatprep.subr.bf16.mxu0 %v5706
  %8477 = vmatpush1.bf16.msra.mxu0 %v5705
  %8478 = vmatprep.subr.bf16.mxu0 %v5722
  %8479 = vmatpush1.bf16.msra.mxu0 %v5721
  %8480 = vmatprep.subr.bf16.mxu0 %v5738
  %8481 = vmatpush1.bf16.msra.mxu0 %v5737
  %8482 = vmatprep.subr.bf16.mxu0 %v5754
  %8483 = vmatpush1.bf16.msra.mxu0 %v5753
  %8484 = vmatprep.subr.bf16.mxu0 %v5770
  %8485 = vmatpush1.bf16.msra.mxu0 %v5769
  %8486 = vmatprep.subr.bf16.mxu0 %v5786
  %8487 = vmatpush1.bf16.msra.mxu0 %v5785
  %8488 = vmatprep.subr.bf16.mxu0 %v5802
  %8489 = vmatpush1.bf16.msra.mxu0 %v5801
  %8490 = vmatprep.subr.bf16.mxu0 %v5818
  %8491 = vmatpush1.bf16.msra.mxu0 %v5817
  %8492 = vmatprep.subr.bf16.mxu0 %v5834
  %8493 = vmatpush1.bf16.msra.mxu0 %v5833
  %8494 = vmatprep.mubr.bf16.mxu0 %v1427
  %8495 = vmatmul.mubr.bf16.gmra.mrb[0].mxu0 %v1426
  %v8496 = vpop.f32.mrb[0].mxu0
  %v8497 = vadd.f32 %v8456, %v8496
  %v8498 = vpop.f32.mrb[0].mxu0
  %v8499 = vadd.f32 %v8458, %v8498
  %v8500 = vpop.f32.mrb[0].mxu0
  %v8501 = vpop.f32.mrb[0].mxu0
  %8502 = vdwg.mxu0
  %8503 = vmatprep.subr.bf16.mxu0 %v5850
  %8504 = vmatpush1.bf16.msra.mxu0 %v5849
  %8505 = vmatprep.subr.bf16.mxu0 %v5866
  %8506 = vmatpush1.bf16.msra.mxu0 %v5865
  %8507 = vmatprep.subr.bf16.mxu0 %v5882
  %8508 = vmatpush1.bf16.msra.mxu0 %v5881
  %8509 = vmatprep.subr.bf16.mxu0 %v5898
  %8510 = vmatpush1.bf16.msra.mxu0 %v5897
  %8511 = vmatprep.subr.bf16.mxu0 %v5914
  %8512 = vmatpush1.bf16.msra.mxu0 %v5913
  %8513 = vmatprep.subr.bf16.mxu0 %v5930
  %8514 = vmatpush1.bf16.msra.mxu0 %v5929
  %8515 = vmatprep.subr.bf16.mxu0 %v5946
  %8516 = vmatpush1.bf16.msra.mxu0 %v5945
  %8517 = vmatprep.subr.bf16.mxu0 %v5962
  %8518 = vmatpush1.bf16.msra.mxu0 %v5961
  %8519 = vmatprep.subr.bf16.mxu0 %v5978
  %8520 = vmatpush1.bf16.msra.mxu0 %v5977
  %8521 = vmatprep.subr.bf16.mxu0 %v5994
  %8522 = vmatpush1.bf16.msra.mxu0 %v5993
  %8523 = vmatprep.subr.bf16.mxu0 %v6010
  %8524 = vmatpush1.bf16.msra.mxu0 %v6009
  %8525 = vmatprep.subr.bf16.mxu0 %v6026
  %8526 = vmatpush1.bf16.msra.mxu0 %v6025
  %8527 = vmatprep.subr.bf16.mxu0 %v6042
  %8528 = vmatpush1.bf16.msra.mxu0 %v6041
  %8529 = vmatprep.subr.bf16.mxu0 %v6058
  %8530 = vmatpush1.bf16.msra.mxu0 %v6057
  %8531 = vmatprep.subr.bf16.mxu0 %v6074
  %8532 = vmatpush1.bf16.msra.mxu0 %v6073
  %8533 = vmatprep.subr.bf16.mxu0 %v6090
  %8534 = vmatpush1.bf16.msra.mxu0 %v6089
  %8535 = vmatprep.mubr.bf16.mxu0 %v1429
  %8536 = vmatmul.mubr.bf16.gmra.mrb[0].mxu0 %v1428
  %v8537 = vpop.f32.mrb[0].mxu0
  %v8538 = vadd.f32 %v8497, %v8537
  %v8539 = vpop.f32.mrb[0].mxu0
  %v8540 = vadd.f32 %v8499, %v8539
  %v8541 = vpop.f32.mrb[0].mxu0
  %v8542 = vpop.f32.mrb[0].mxu0
  %8543 = vdwg.mxu0
  %8544 = vmatprep.subr.bf16.mxu0 %v6106
  %8545 = vmatpush1.bf16.msra.mxu0 %v6105
  %8546 = vmatprep.subr.bf16.mxu0 %v6122
  %8547 = vmatpush1.bf16.msra.mxu0 %v6121
  %8548 = vmatprep.subr.bf16.mxu0 %v6138
  %8549 = vmatpush1.bf16.msra.mxu0 %v6137
  %8550 = vmatprep.subr.bf16.mxu0 %v6154
  %8551 = vmatpush1.bf16.msra.mxu0 %v6153
  %8552 = vmatprep.subr.bf16.mxu0 %v6170
  %8553 = vmatpush1.bf16.msra.mxu0 %v6169
  %8554 = vmatprep.subr.bf16.mxu0 %v6186
  %8555 = vmatpush1.bf16.msra.mxu0 %v6185
  %8556 = vmatprep.subr.bf16.mxu0 %v6202
  %8557 = vmatpush1.bf16.msra.mxu0 %v6201
  %8558 = vmatprep.subr.bf16.mxu0 %v6218
  %8559 = vmatpush1.bf16.msra.mxu0 %v6217
  %8560 = vmatprep.subr.bf16.mxu0 %v6234
  %8561 = vmatpush1.bf16.msra.mxu0 %v6233
  %8562 = vmatprep.subr.bf16.mxu0 %v6250
  %8563 = vmatpush1.bf16.msra.mxu0 %v6249
  %8564 = vmatprep.subr.bf16.mxu0 %v6266
  %8565 = vmatpush1.bf16.msra.mxu0 %v6265
  %8566 = vmatprep.subr.bf16.mxu0 %v6282
  %8567 = vmatpush1.bf16.msra.mxu0 %v6281
  %8568 = vmatprep.subr.bf16.mxu0 %v6298
  %8569 = vmatpush1.bf16.msra.mxu0 %v6297
  %8570 = vmatprep.subr.bf16.mxu0 %v6314
  %8571 = vmatpush1.bf16.msra.mxu0 %v6313
  %8572 = vmatprep.subr.bf16.mxu0 %v6330
  %8573 = vmatpush1.bf16.msra.mxu0 %v6329
  %8574 = vmatprep.subr.bf16.mxu0 %v6346
  %8575 = vmatpush1.bf16.msra.mxu0 %v6345
  %8576 = vmatprep.mubr.bf16.mxu0 %v1431
  %8577 = vmatmul.mubr.bf16.gmra.mrb[0].mxu0 %v1430
  %v8578 = vpop.f32.mrb[0].mxu0
  %v8579 = vadd.f32 %v8538, %v8578
  %v8580 = vpop.f32.mrb[0].mxu0
  %v8581 = vadd.f32 %v8540, %v8580
  %v8582 = vpop.f32.mrb[0].mxu0
  %v8583 = vpop.f32.mrb[0].mxu0
  %8584 = vdwg.mxu0
  %8585 = vmatprep.subr.bf16.mxu0 %v6362
  %8586 = vmatpush1.bf16.msra.mxu0 %v6361
  %8587 = vmatprep.subr.bf16.mxu0 %v6378
  %8588 = vmatpush1.bf16.msra.mxu0 %v6377
  %8589 = vmatprep.subr.bf16.mxu0 %v6394
  %8590 = vmatpush1.bf16.msra.mxu0 %v6393
  %8591 = vmatprep.subr.bf16.mxu0 %v6410
  %8592 = vmatpush1.bf16.msra.mxu0 %v6409
  %8593 = vmatprep.subr.bf16.mxu0 %v6426
  %8594 = vmatpush1.bf16.msra.mxu0 %v6425
  %8595 = vmatprep.subr.bf16.mxu0 %v6442
  %8596 = vmatpush1.bf16.msra.mxu0 %v6441
  %8597 = vmatprep.subr.bf16.mxu0 %v6458
  %8598 = vmatpush1.bf16.msra.mxu0 %v6457
  %8599 = vmatprep.subr.bf16.mxu0 %v6474
  %8600 = vmatpush1.bf16.msra.mxu0 %v6473
  %8601 = vmatprep.subr.bf16.mxu0 %v6490
  %8602 = vmatpush1.bf16.msra.mxu0 %v6489
  %8603 = vmatprep.subr.bf16.mxu0 %v6506
  %8604 = vmatpush1.bf16.msra.mxu0 %v6505
  %8605 = vmatprep.subr.bf16.mxu0 %v6522
  %8606 = vmatpush1.bf16.msra.mxu0 %v6521
  %8607 = vmatprep.subr.bf16.mxu0 %v6538
  %8608 = vmatpush1.bf16.msra.mxu0 %v6537
  %8609 = vmatprep.subr.bf16.mxu0 %v6554
  %8610 = vmatpush1.bf16.msra.mxu0 %v6553
  %8611 = vmatprep.subr.bf16.mxu0 %v6570
  %8612 = vmatpush1.bf16.msra.mxu0 %v6569
  %8613 = vmatprep.subr.bf16.mxu0 %v6586
  %8614 = vmatpush1.bf16.msra.mxu0 %v6585
  %8615 = vmatprep.subr.bf16.mxu0 %v6602
  %8616 = vmatpush1.bf16.msra.mxu0 %v6601
  %8617 = vmatprep.mubr.bf16.mxu0 %v1433
  %8618 = vmatmul.mubr.bf16.gmra.mrb[0].mxu0 %v1432
  %v8619 = vpop.f32.mrb[0].mxu0
  %v8620 = vadd.f32 %v8579, %v8619
  %v8621 = vpop.f32.mrb[0].mxu0
  %v8622 = vadd.f32 %v8581, %v8621
  %v8623 = vpop.f32.mrb[0].mxu0
  %v8624 = vpop.f32.mrb[0].mxu0
  %8625 = vdwg.mxu0
  %8626 = vmatprep.subr.bf16.mxu0 %v6618
  %8627 = vmatpush1.bf16.msra.mxu0 %v6617
  %8628 = vmatprep.subr.bf16.mxu0 0
  %8629 = vmatpush1.bf16.msra.mxu0 0
  %8630 = vmatprep.subr.bf16.mxu0 0
  %8631 = vmatpush1.bf16.msra.mxu0 0
  %8632 = vmatprep.subr.bf16.mxu0 0
  %8633 = vmatpush1.bf16.msra.mxu0 0
  %8634 = vmatprep.subr.bf16.mxu0 0
  %8635 = vmatpush1.bf16.msra.mxu0 0
  %8636 = vmatprep.subr.bf16.mxu0 0
  %8637 = vmatpush1.bf16.msra.mxu0 0
  %8638 = vmatprep.subr.bf16.mxu0 0
  %8639 = vmatpush1.bf16.msra.mxu0 0
  %8640 = vmatprep.subr.bf16.mxu0 0
  %8641 = vmatpush1.bf16.msra.mxu0 0
  %8642 = vmatprep.subr.bf16.mxu0 0
  %8643 = vmatpush1.bf16.msra.mxu0 0
  %8644 = vmatprep.subr.bf16.mxu0 0
  %8645 = vmatpush1.bf16.msra.mxu0 0
  %8646 = vmatprep.subr.bf16.mxu0 0
  %8647 = vmatpush1.bf16.msra.mxu0 0
  %8648 = vmatprep.subr.bf16.mxu0 0
  %8649 = vmatpush1.bf16.msra.mxu0 0
  %8650 = vmatprep.subr.bf16.mxu0 0
  %8651 = vmatpush1.bf16.msra.mxu0 0
  %8652 = vmatprep.subr.bf16.mxu0 0
  %8653 = vmatpush1.bf16.msra.mxu0 0
  %8654 = vmatprep.subr.bf16.mxu0 0
  %8655 = vmatpush1.bf16.msra.mxu0 0
  %8656 = vmatprep.subr.bf16.mxu0 0
  %8657 = vmatpush1.bf16.msra.mxu0 0
  %8658 = vmatprep.mubr.bf16.mxu0 0
  %8659 = vmatmul.mubr.bf16.gmra.mrb[0].mxu0 %v7927
  %v8660 = vpop.f32.mrb[0].mxu0
  %v8661 = vadd.f32 %v8620, %v8660
  %v8662 = vpop.f32.mrb[0].mxu0
  %v8663 = vadd.f32 %v8622, %v8662
  %v8664 = vpop.f32.mrb[0].mxu0
  %v8665 = vpop.f32.mrb[0].mxu0
  %8666 = vdwg.mxu0
  %8667 = vmatprep.subr.bf16.mxu0 %v5340
  %8668 = vmatpush1.bf16.msra.mxu0 %v5339
  %8669 = vmatprep.subr.bf16.mxu0 %v5356
  %8670 = vmatpush1.bf16.msra.mxu0 %v5355
  %8671 = vmatprep.subr.bf16.mxu0 %v5372
  %8672 = vmatpush1.bf16.msra.mxu0 %v5371
  %8673 = vmatprep.subr.bf16.mxu0 %v5388
  %8674 = vmatpush1.bf16.msra.mxu0 %v5387
  %8675 = vmatprep.subr.bf16.mxu0 %v5404
  %8676 = vmatpush1.bf16.msra.mxu0 %v5403
  %8677 = vmatprep.subr.bf16.mxu0 %v5420
  %8678 = vmatpush1.bf16.msra.mxu0 %v5419
  %8679 = vmatprep.subr.bf16.mxu0 %v5436
  %8680 = vmatpush1.bf16.msra.mxu0 %v5435
  %8681 = vmatprep.subr.bf16.mxu0 %v5452
  %8682 = vmatpush1.bf16.msra.mxu0 %v5451
  %8683 = vmatprep.subr.bf16.mxu0 %v5468
  %8684 = vmatpush1.bf16.msra.mxu0 %v5467
  %8685 = vmatprep.subr.bf16.mxu0 %v5484
  %8686 = vmatpush1.bf16.msra.mxu0 %v5483
  %8687 = vmatprep.subr.bf16.mxu0 %v5500
  %8688 = vmatpush1.bf16.msra.mxu0 %v5499
  %8689 = vmatprep.subr.bf16.mxu0 %v5516
  %8690 = vmatpush1.bf16.msra.mxu0 %v5515
  %8691 = vmatprep.subr.bf16.mxu0 %v5532
  %8692 = vmatpush1.bf16.msra.mxu0 %v5531
  %8693 = vmatprep.subr.bf16.mxu0 %v5548
  %8694 = vmatpush1.bf16.msra.mxu0 %v5547
  %8695 = vmatprep.subr.bf16.mxu0 %v5564
  %8696 = vmatpush1.bf16.msra.mxu0 %v5563
  %8697 = vmatprep.subr.bf16.mxu0 %v5580
  %8698 = vmatpush1.bf16.msra.mxu0 %v5579
  %8699 = vmatprep.mubr.bf16.mxu0 %v1425
  %8700 = vmatmul.mubr.bf16.gmra.mrb[0].mxu0 %v1424
  %v8701 = vpop.f32.mrb[0].mxu0
  %v8702 = vadd.f32 %v1354, %v8701
  %v8703 = vpop.f32.mrb[0].mxu0
  %v8704 = vadd.f32 %v1358, %v8703
  %v8705 = vpop.f32.mrb[0].mxu0
  %v8706 = vpop.f32.mrb[0].mxu0
  %8707 = vdwg.mxu0
  %8708 = vmatprep.subr.bf16.mxu0 %v5596
  %8709 = vmatpush1.bf16.msra.mxu0 %v5595
  %8710 = vmatprep.subr.bf16.mxu0 %v5612
  %8711 = vmatpush1.bf16.msra.mxu0 %v5611
  %8712 = vmatprep.subr.bf16.mxu0 %v5628
  %8713 = vmatpush1.bf16.msra.mxu0 %v5627
  %8714 = vmatprep.subr.bf16.mxu0 %v5644
  %8715 = vmatpush1.bf16.msra.mxu0 %v5643
  %8716 = vmatprep.subr.bf16.mxu0 %v5660
  %8717 = vmatpush1.bf16.msra.mxu0 %v5659
  %8718 = vmatprep.subr.bf16.mxu0 %v5676
  %8719 = vmatpush1.bf16.msra.mxu0 %v5675
  %8720 = vmatprep.subr.bf16.mxu0 %v5692
  %8721 = vmatpush1.bf16.msra.mxu0 %v5691
  %8722 = vmatprep.subr.bf16.mxu0 %v5708
  %8723 = vmatpush1.bf16.msra.mxu0 %v5707
  %8724 = vmatprep.subr.bf16.mxu0 %v5724
  %8725 = vmatpush1.bf16.msra.mxu0 %v5723
  %8726 = vmatprep.subr.bf16.mxu0 %v5740
  %8727 = vmatpush1.bf16.msra.mxu0 %v5739
  %8728 = vmatprep.subr.bf16.mxu0 %v5756
  %8729 = vmatpush1.bf16.msra.mxu0 %v5755
  %8730 = vmatprep.subr.bf16.mxu0 %v5772
  %8731 = vmatpush1.bf16.msra.mxu0 %v5771
  %8732 = vmatprep.subr.bf16.mxu0 %v5788
  %8733 = vmatpush1.bf16.msra.mxu0 %v5787
  %8734 = vmatprep.subr.bf16.mxu0 %v5804
  %8735 = vmatpush1.bf16.msra.mxu0 %v5803
  %8736 = vmatprep.subr.bf16.mxu0 %v5820
  %8737 = vmatpush1.bf16.msra.mxu0 %v5819
  %8738 = vmatprep.subr.bf16.mxu0 %v5836
  %8739 = vmatpush1.bf16.msra.mxu0 %v5835
  %8740 = vmatprep.mubr.bf16.mxu0 %v1427
  %8741 = vmatmul.mubr.bf16.gmra.mrb[0].mxu0 %v1426
  %v8742 = vpop.f32.mrb[0].mxu0
  %v8743 = vadd.f32 %v8702, %v8742
  %v8744 = vpop.f32.mrb[0].mxu0
  %v8745 = vadd.f32 %v8704, %v8744
  %v8746 = vpop.f32.mrb[0].mxu0
  %v8747 = vpop.f32.mrb[0].mxu0
  %8748 = vdwg.mxu0
  %8749 = vmatprep.subr.bf16.mxu0 %v5852
  %8750 = vmatpush1.bf16.msra.mxu0 %v5851
  %8751 = vmatprep.subr.bf16.mxu0 %v5868
  %8752 = vmatpush1.bf16.msra.mxu0 %v5867
  %8753 = vmatprep.subr.bf16.mxu0 %v5884
  %8754 = vmatpush1.bf16.msra.mxu0 %v5883
  %8755 = vmatprep.subr.bf16.mxu0 %v5900
  %8756 = vmatpush1.bf16.msra.mxu0 %v5899
  %8757 = vmatprep.subr.bf16.mxu0 %v5916
  %8758 = vmatpush1.bf16.msra.mxu0 %v5915
  %8759 = vmatprep.subr.bf16.mxu0 %v5932
  %8760 = vmatpush1.bf16.msra.mxu0 %v5931
  %8761 = vmatprep.subr.bf16.mxu0 %v5948
  %8762 = vmatpush1.bf16.msra.mxu0 %v5947
  %8763 = vmatprep.subr.bf16.mxu0 %v5964
  %8764 = vmatpush1.bf16.msra.mxu0 %v5963
  %8765 = vmatprep.subr.bf16.mxu0 %v5980
  %8766 = vmatpush1.bf16.msra.mxu0 %v5979
  %8767 = vmatprep.subr.bf16.mxu0 %v5996
  %8768 = vmatpush1.bf16.msra.mxu0 %v5995
  %8769 = vmatprep.subr.bf16.mxu0 %v6012
  %8770 = vmatpush1.bf16.msra.mxu0 %v6011
  %8771 = vmatprep.subr.bf16.mxu0 %v6028
  %8772 = vmatpush1.bf16.msra.mxu0 %v6027
  %8773 = vmatprep.subr.bf16.mxu0 %v6044
  %8774 = vmatpush1.bf16.msra.mxu0 %v6043
  %8775 = vmatprep.subr.bf16.mxu0 %v6060
  %8776 = vmatpush1.bf16.msra.mxu0 %v6059
  %8777 = vmatprep.subr.bf16.mxu0 %v6076
  %8778 = vmatpush1.bf16.msra.mxu0 %v6075
  %8779 = vmatprep.subr.bf16.mxu0 %v6092
  %8780 = vmatpush1.bf16.msra.mxu0 %v6091
  %8781 = vmatprep.mubr.bf16.mxu0 %v1429
  %8782 = vmatmul.mubr.bf16.gmra.mrb[0].mxu0 %v1428
  %v8783 = vpop.f32.mrb[0].mxu0
  %v8784 = vadd.f32 %v8743, %v8783
  %v8785 = vpop.f32.mrb[0].mxu0
  %v8786 = vadd.f32 %v8745, %v8785
  %v8787 = vpop.f32.mrb[0].mxu0
  %v8788 = vpop.f32.mrb[0].mxu0
  %8789 = vdwg.mxu0
  %8790 = vmatprep.subr.bf16.mxu0 %v6108
  %8791 = vmatpush1.bf16.msra.mxu0 %v6107
  %8792 = vmatprep.subr.bf16.mxu0 %v6124
  %8793 = vmatpush1.bf16.msra.mxu0 %v6123
  %8794 = vmatprep.subr.bf16.mxu0 %v6140
  %8795 = vmatpush1.bf16.msra.mxu0 %v6139
  %8796 = vmatprep.subr.bf16.mxu0 %v6156
  %8797 = vmatpush1.bf16.msra.mxu0 %v6155
  %8798 = vmatprep.subr.bf16.mxu0 %v6172
  %8799 = vmatpush1.bf16.msra.mxu0 %v6171
  %8800 = vmatprep.subr.bf16.mxu0 %v6188
  %8801 = vmatpush1.bf16.msra.mxu0 %v6187
  %8802 = vmatprep.subr.bf16.mxu0 %v6204
  %8803 = vmatpush1.bf16.msra.mxu0 %v6203
  %8804 = vmatprep.subr.bf16.mxu0 %v6220
  %8805 = vmatpush1.bf16.msra.mxu0 %v6219
  %8806 = vmatprep.subr.bf16.mxu0 %v6236
  %8807 = vmatpush1.bf16.msra.mxu0 %v6235
  %8808 = vmatprep.subr.bf16.mxu0 %v6252
  %8809 = vmatpush1.bf16.msra.mxu0 %v6251
  %8810 = vmatprep.subr.bf16.mxu0 %v6268
  %8811 = vmatpush1.bf16.msra.mxu0 %v6267
  %8812 = vmatprep.subr.bf16.mxu0 %v6284
  %8813 = vmatpush1.bf16.msra.mxu0 %v6283
  %8814 = vmatprep.subr.bf16.mxu0 %v6300
  %8815 = vmatpush1.bf16.msra.mxu0 %v6299
  %8816 = vmatprep.subr.bf16.mxu0 %v6316
  %8817 = vmatpush1.bf16.msra.mxu0 %v6315
  %8818 = vmatprep.subr.bf16.mxu0 %v6332
  %8819 = vmatpush1.bf16.msra.mxu0 %v6331
  %8820 = vmatprep.subr.bf16.mxu0 %v6348
  %8821 = vmatpush1.bf16.msra.mxu0 %v6347
  %8822 = vmatprep.mubr.bf16.mxu0 %v1431
  %8823 = vmatmul.mubr.bf16.gmra.mrb[0].mxu0 %v1430
  %v8824 = vpop.f32.mrb[0].mxu0
  %v8825 = vadd.f32 %v8784, %v8824
  %v8826 = vpop.f32.mrb[0].mxu0
  %v8827 = vadd.f32 %v8786, %v8826
  %v8828 = vpop.f32.mrb[0].mxu0
  %v8829 = vpop.f32.mrb[0].mxu0
  %8830 = vdwg.mxu0
  %8831 = vmatprep.subr.bf16.mxu0 %v6364
  %8832 = vmatpush1.bf16.msra.mxu0 %v6363
  %8833 = vmatprep.subr.bf16.mxu0 %v6380
  %8834 = vmatpush1.bf16.msra.mxu0 %v6379
  %8835 = vmatprep.subr.bf16.mxu0 %v6396
  %8836 = vmatpush1.bf16.msra.mxu0 %v6395
  %8837 = vmatprep.subr.bf16.mxu0 %v6412
  %8838 = vmatpush1.bf16.msra.mxu0 %v6411
  %8839 = vmatprep.subr.bf16.mxu0 %v6428
  %8840 = vmatpush1.bf16.msra.mxu0 %v6427
  %8841 = vmatprep.subr.bf16.mxu0 %v6444
  %8842 = vmatpush1.bf16.msra.mxu0 %v6443
  %8843 = vmatprep.subr.bf16.mxu0 %v6460
  %8844 = vmatpush1.bf16.msra.mxu0 %v6459
  %8845 = vmatprep.subr.bf16.mxu0 %v6476
  %8846 = vmatpush1.bf16.msra.mxu0 %v6475
  %8847 = vmatprep.subr.bf16.mxu0 %v6492
  %8848 = vmatpush1.bf16.msra.mxu0 %v6491
  %8849 = vmatprep.subr.bf16.mxu0 %v6508
  %8850 = vmatpush1.bf16.msra.mxu0 %v6507
  %8851 = vmatprep.subr.bf16.mxu0 %v6524
  %8852 = vmatpush1.bf16.msra.mxu0 %v6523
  %8853 = vmatprep.subr.bf16.mxu0 %v6540
  %8854 = vmatpush1.bf16.msra.mxu0 %v6539
  %8855 = vmatprep.subr.bf16.mxu0 %v6556
  %8856 = vmatpush1.bf16.msra.mxu0 %v6555
  %8857 = vmatprep.subr.bf16.mxu0 %v6572
  %8858 = vmatpush1.bf16.msra.mxu0 %v6571
  %8859 = vmatprep.subr.bf16.mxu0 %v6588
  %8860 = vmatpush1.bf16.msra.mxu0 %v6587
  %8861 = vmatprep.subr.bf16.mxu0 %v6604
  %8862 = vmatpush1.bf16.msra.mxu0 %v6603
  %8863 = vmatprep.mubr.bf16.mxu0 %v1433
  %8864 = vmatmul.mubr.bf16.gmra.mrb[0].mxu0 %v1432
  %v8865 = vpop.f32.mrb[0].mxu0
  %v8866 = vadd.f32 %v8825, %v8865
  %v8867 = vpop.f32.mrb[0].mxu0
  %v8868 = vadd.f32 %v8827, %v8867
  %v8869 = vpop.f32.mrb[0].mxu0
  %v8870 = vpop.f32.mrb[0].mxu0
  %8871 = vdwg.mxu0
  %8872 = vmatprep.subr.bf16.mxu0 %v6620
  %8873 = vmatpush1.bf16.msra.mxu0 %v6619
  %8874 = vmatprep.subr.bf16.mxu0 0
  %8875 = vmatpush1.bf16.msra.mxu0 0
  %8876 = vmatprep.subr.bf16.mxu0 0
  %8877 = vmatpush1.bf16.msra.mxu0 0
  %8878 = vmatprep.subr.bf16.mxu0 0
  %8879 = vmatpush1.bf16.msra.mxu0 0
  %8880 = vmatprep.subr.bf16.mxu0 0
  %8881 = vmatpush1.bf16.msra.mxu0 0
  %8882 = vmatprep.subr.bf16.mxu0 0
  %8883 = vmatpush1.bf16.msra.mxu0 0
  %8884 = vmatprep.subr.bf16.mxu0 0
  %8885 = vmatpush1.bf16.msra.mxu0 0
  %8886 = vmatprep.subr.bf16.mxu0 0
  %8887 = vmatpush1.bf16.msra.mxu0 0
  %8888 = vmatprep.subr.bf16.mxu0 0
  %8889 = vmatpush1.bf16.msra.mxu0 0
  %8890 = vmatprep.subr.bf16.mxu0 0
  %8891 = vmatpush1.bf16.msra.mxu0 0
  %8892 = vmatprep.subr.bf16.mxu0 0
  %8893 = vmatpush1.bf16.msra.mxu0 0
  %8894 = vmatprep.subr.bf16.mxu0 0
  %8895 = vmatpush1.bf16.msra.mxu0 0
  %8896 = vmatprep.subr.bf16.mxu0 0
  %8897 = vmatpush1.bf16.msra.mxu0 0
  %8898 = vmatprep.subr.bf16.mxu0 0
  %8899 = vmatpush1.bf16.msra.mxu0 0
  %8900 = vmatprep.subr.bf16.mxu0 0
  %8901 = vmatpush1.bf16.msra.mxu0 0
  %8902 = vmatprep.subr.bf16.mxu0 0
  %8903 = vmatpush1.bf16.msra.mxu0 0
  %8904 = vmatprep.mubr.bf16.mxu0 0
  %8905 = vmatmul.mubr.bf16.gmra.mrb[0].mxu0 %v7927
  %v8906 = vpop.f32.mrb[0].mxu0
  %v8907 = vadd.f32 %v8866, %v8906
  %v8908 = vpop.f32.mrb[0].mxu0
  %v8909 = vadd.f32 %v8868, %v8908
  %v8910 = vpop.f32.mrb[0].mxu0
  %v8911 = vpop.f32.mrb[0].mxu0
  %8912 = vdwg.mxu0
  %8913 = vmatprep.subr.bf16.mxu0 %v5342
  %8914 = vmatpush1.bf16.msra.mxu0 %v5341
  %8915 = vmatprep.subr.bf16.mxu0 %v5358
  %8916 = vmatpush1.bf16.msra.mxu0 %v5357
  %8917 = vmatprep.subr.bf16.mxu0 %v5374
  %8918 = vmatpush1.bf16.msra.mxu0 %v5373
  %8919 = vmatprep.subr.bf16.mxu0 %v5390
  %8920 = vmatpush1.bf16.msra.mxu0 %v5389
  %8921 = vmatprep.subr.bf16.mxu0 %v5406
  %8922 = vmatpush1.bf16.msra.mxu0 %v5405
  %8923 = vmatprep.subr.bf16.mxu0 %v5422
  %8924 = vmatpush1.bf16.msra.mxu0 %v5421
  %8925 = vmatprep.subr.bf16.mxu0 %v5438
  %8926 = vmatpush1.bf16.msra.mxu0 %v5437
  %8927 = vmatprep.subr.bf16.mxu0 %v5454
  %8928 = vmatpush1.bf16.msra.mxu0 %v5453
  %8929 = vmatprep.subr.bf16.mxu0 %v5470
  %8930 = vmatpush1.bf16.msra.mxu0 %v5469
  %8931 = vmatprep.subr.bf16.mxu0 %v5486
  %8932 = vmatpush1.bf16.msra.mxu0 %v5485
  %8933 = vmatprep.subr.bf16.mxu0 %v5502
  %8934 = vmatpush1.bf16.msra.mxu0 %v5501
  %8935 = vmatprep.subr.bf16.mxu0 %v5518
  %8936 = vmatpush1.bf16.msra.mxu0 %v5517
  %8937 = vmatprep.subr.bf16.mxu0 %v5534
  %8938 = vmatpush1.bf16.msra.mxu0 %v5533
  %8939 = vmatprep.subr.bf16.mxu0 %v5550
  %8940 = vmatpush1.bf16.msra.mxu0 %v5549
  %8941 = vmatprep.subr.bf16.mxu0 %v5566
  %8942 = vmatpush1.bf16.msra.mxu0 %v5565
  %8943 = vmatprep.subr.bf16.mxu0 %v5582
  %8944 = vmatpush1.bf16.msra.mxu0 %v5581
  %8945 = vmatprep.mubr.bf16.mxu0 %v1425
  %8946 = vmatmul.mubr.bf16.gmra.mrb[0].mxu0 %v1424
  %v8947 = vpop.f32.mrb[0].mxu0
  %v8948 = vadd.f32 %v1362, %v8947
  %v8949 = vpop.f32.mrb[0].mxu0
  %v8950 = vadd.f32 %v1366, %v8949
  %v8951 = vpop.f32.mrb[0].mxu0
  %v8952 = vpop.f32.mrb[0].mxu0
  %8953 = vdwg.mxu0
  %8954 = vmatprep.subr.bf16.mxu0 %v5598
  %8955 = vmatpush1.bf16.msra.mxu0 %v5597
  %8956 = vmatprep.subr.bf16.mxu0 %v5614
  %8957 = vmatpush1.bf16.msra.mxu0 %v5613
  %8958 = vmatprep.subr.bf16.mxu0 %v5630
  %8959 = vmatpush1.bf16.msra.mxu0 %v5629
  %8960 = vmatprep.subr.bf16.mxu0 %v5646
  %8961 = vmatpush1.bf16.msra.mxu0 %v5645
  %8962 = vmatprep.subr.bf16.mxu0 %v5662
  %8963 = vmatpush1.bf16.msra.mxu0 %v5661
  %8964 = vmatprep.subr.bf16.mxu0 %v5678
  %8965 = vmatpush1.bf16.msra.mxu0 %v5677
  %8966 = vmatprep.subr.bf16.mxu0 %v5694
  %8967 = vmatpush1.bf16.msra.mxu0 %v5693
  %8968 = vmatprep.subr.bf16.mxu0 %v5710
  %8969 = vmatpush1.bf16.msra.mxu0 %v5709
  %8970 = vmatprep.subr.bf16.mxu0 %v5726
  %8971 = vmatpush1.bf16.msra.mxu0 %v5725
  %8972 = vmatprep.subr.bf16.mxu0 %v5742
  %8973 = vmatpush1.bf16.msra.mxu0 %v5741
  %8974 = vmatprep.subr.bf16.mxu0 %v5758
  %8975 = vmatpush1.bf16.msra.mxu0 %v5757
  %8976 = vmatprep.subr.bf16.mxu0 %v5774
  %8977 = vmatpush1.bf16.msra.mxu0 %v5773
  %8978 = vmatprep.subr.bf16.mxu0 %v5790
  %8979 = vmatpush1.bf16.msra.mxu0 %v5789
  %8980 = vmatprep.subr.bf16.mxu0 %v5806
  %8981 = vmatpush1.bf16.msra.mxu0 %v5805
  %8982 = vmatprep.subr.bf16.mxu0 %v5822
  %8983 = vmatpush1.bf16.msra.mxu0 %v5821
  %8984 = vmatprep.subr.bf16.mxu0 %v5838
  %8985 = vmatpush1.bf16.msra.mxu0 %v5837
  %8986 = vmatprep.mubr.bf16.mxu0 %v1427
  %8987 = vmatmul.mubr.bf16.gmra.mrb[0].mxu0 %v1426
  %v8988 = vpop.f32.mrb[0].mxu0
  %v8989 = vadd.f32 %v8948, %v8988
  %v8990 = vpop.f32.mrb[0].mxu0
  %v8991 = vadd.f32 %v8950, %v8990
  %v8992 = vpop.f32.mrb[0].mxu0
  %v8993 = vpop.f32.mrb[0].mxu0
  %8994 = vdwg.mxu0
  %8995 = vmatprep.subr.bf16.mxu0 %v5854
  %8996 = vmatpush1.bf16.msra.mxu0 %v5853
  %8997 = vmatprep.subr.bf16.mxu0 %v5870
  %8998 = vmatpush1.bf16.msra.mxu0 %v5869
  %8999 = vmatprep.subr.bf16.mxu0 %v5886
  %9000 = vmatpush1.bf16.msra.mxu0 %v5885
  %9001 = vmatprep.subr.bf16.mxu0 %v5902
  %9002 = vmatpush1.bf16.msra.mxu0 %v5901
  %9003 = vmatprep.subr.bf16.mxu0 %v5918
  %9004 = vmatpush1.bf16.msra.mxu0 %v5917
  %9005 = vmatprep.subr.bf16.mxu0 %v5934
  %9006 = vmatpush1.bf16.msra.mxu0 %v5933
  %9007 = vmatprep.subr.bf16.mxu0 %v5950
  %9008 = vmatpush1.bf16.msra.mxu0 %v5949
  %9009 = vmatprep.subr.bf16.mxu0 %v5966
  %9010 = vmatpush1.bf16.msra.mxu0 %v5965
  %9011 = vmatprep.subr.bf16.mxu0 %v5982
  %9012 = vmatpush1.bf16.msra.mxu0 %v5981
  %9013 = vmatprep.subr.bf16.mxu0 %v5998
  %9014 = vmatpush1.bf16.msra.mxu0 %v5997
  %9015 = vmatprep.subr.bf16.mxu0 %v6014
  %9016 = vmatpush1.bf16.msra.mxu0 %v6013
  %9017 = vmatprep.subr.bf16.mxu0 %v6030
  %9018 = vmatpush1.bf16.msra.mxu0 %v6029
  %9019 = vmatprep.subr.bf16.mxu0 %v6046
  %9020 = vmatpush1.bf16.msra.mxu0 %v6045
  %9021 = vmatprep.subr.bf16.mxu0 %v6062
  %9022 = vmatpush1.bf16.msra.mxu0 %v6061
  %9023 = vmatprep.subr.bf16.mxu0 %v6078
  %9024 = vmatpush1.bf16.msra.mxu0 %v6077
  %9025 = vmatprep.subr.bf16.mxu0 %v6094
  %9026 = vmatpush1.bf16.msra.mxu0 %v6093
  %9027 = vmatprep.mubr.bf16.mxu0 %v1429
  %9028 = vmatmul.mubr.bf16.gmra.mrb[0].mxu0 %v1428
  %v9029 = vpop.f32.mrb[0].mxu0
  %v9030 = vadd.f32 %v8989, %v9029
  %v9031 = vpop.f32.mrb[0].mxu0
  %v9032 = vadd.f32 %v8991, %v9031
  %v9033 = vpop.f32.mrb[0].mxu0
  %v9034 = vpop.f32.mrb[0].mxu0
  %9035 = vdwg.mxu0
  %9036 = vmatprep.subr.bf16.mxu0 %v6110
  %9037 = vmatpush1.bf16.msra.mxu0 %v6109
  %9038 = vmatprep.subr.bf16.mxu0 %v6126
  %9039 = vmatpush1.bf16.msra.mxu0 %v6125
  %9040 = vmatprep.subr.bf16.mxu0 %v6142
  %9041 = vmatpush1.bf16.msra.mxu0 %v6141
  %9042 = vmatprep.subr.bf16.mxu0 %v6158
  %9043 = vmatpush1.bf16.msra.mxu0 %v6157
  %9044 = vmatprep.subr.bf16.mxu0 %v6174
  %9045 = vmatpush1.bf16.msra.mxu0 %v6173
  %9046 = vmatprep.subr.bf16.mxu0 %v6190
  %9047 = vmatpush1.bf16.msra.mxu0 %v6189
  %9048 = vmatprep.subr.bf16.mxu0 %v6206
  %9049 = vmatpush1.bf16.msra.mxu0 %v6205
  %9050 = vmatprep.subr.bf16.mxu0 %v6222
  %9051 = vmatpush1.bf16.msra.mxu0 %v6221
  %9052 = vmatprep.subr.bf16.mxu0 %v6238
  %9053 = vmatpush1.bf16.msra.mxu0 %v6237
  %9054 = vmatprep.subr.bf16.mxu0 %v6254
  %9055 = vmatpush1.bf16.msra.mxu0 %v6253
  %9056 = vmatprep.subr.bf16.mxu0 %v6270
  %9057 = vmatpush1.bf16.msra.mxu0 %v6269
  %9058 = vmatprep.subr.bf16.mxu0 %v6286
  %9059 = vmatpush1.bf16.msra.mxu0 %v6285
  %9060 = vmatprep.subr.bf16.mxu0 %v6302
  %9061 = vmatpush1.bf16.msra.mxu0 %v6301
  %9062 = vmatprep.subr.bf16.mxu0 %v6318
  %9063 = vmatpush1.bf16.msra.mxu0 %v6317
  %9064 = vmatprep.subr.bf16.mxu0 %v6334
  %9065 = vmatpush1.bf16.msra.mxu0 %v6333
  %9066 = vmatprep.subr.bf16.mxu0 %v6350
  %9067 = vmatpush1.bf16.msra.mxu0 %v6349
  %9068 = vmatprep.mubr.bf16.mxu0 %v1431
  %9069 = vmatmul.mubr.bf16.gmra.mrb[0].mxu0 %v1430
  %v9070 = vpop.f32.mrb[0].mxu0
  %v9071 = vadd.f32 %v9030, %v9070
  %v9072 = vpop.f32.mrb[0].mxu0
  %v9073 = vadd.f32 %v9032, %v9072
  %v9074 = vpop.f32.mrb[0].mxu0
  %v9075 = vpop.f32.mrb[0].mxu0
  %9076 = vdwg.mxu0
  %9077 = vmatprep.subr.bf16.mxu0 %v6366
  %9078 = vmatpush1.bf16.msra.mxu0 %v6365
  %9079 = vmatprep.subr.bf16.mxu0 %v6382
  %9080 = vmatpush1.bf16.msra.mxu0 %v6381
  %9081 = vmatprep.subr.bf16.mxu0 %v6398
  %9082 = vmatpush1.bf16.msra.mxu0 %v6397
  %9083 = vmatprep.subr.bf16.mxu0 %v6414
  %9084 = vmatpush1.bf16.msra.mxu0 %v6413
  %9085 = vmatprep.subr.bf16.mxu0 %v6430
  %9086 = vmatpush1.bf16.msra.mxu0 %v6429
  %9087 = vmatprep.subr.bf16.mxu0 %v6446
  %9088 = vmatpush1.bf16.msra.mxu0 %v6445
  %9089 = vmatprep.subr.bf16.mxu0 %v6462
  %9090 = vmatpush1.bf16.msra.mxu0 %v6461
  %9091 = vmatprep.subr.bf16.mxu0 %v6478
  %9092 = vmatpush1.bf16.msra.mxu0 %v6477
  %9093 = vmatprep.subr.bf16.mxu0 %v6494
  %9094 = vmatpush1.bf16.msra.mxu0 %v6493
  %9095 = vmatprep.subr.bf16.mxu0 %v6510
  %9096 = vmatpush1.bf16.msra.mxu0 %v6509
  %9097 = vmatprep.subr.bf16.mxu0 %v6526
  %9098 = vmatpush1.bf16.msra.mxu0 %v6525
  %9099 = vmatprep.subr.bf16.mxu0 %v6542
  %9100 = vmatpush1.bf16.msra.mxu0 %v6541
  %9101 = vmatprep.subr.bf16.mxu0 %v6558
  %9102 = vmatpush1.bf16.msra.mxu0 %v6557
  %9103 = vmatprep.subr.bf16.mxu0 %v6574
  %9104 = vmatpush1.bf16.msra.mxu0 %v6573
  %9105 = vmatprep.subr.bf16.mxu0 %v6590
  %9106 = vmatpush1.bf16.msra.mxu0 %v6589
  %9107 = vmatprep.subr.bf16.mxu0 %v6606
  %9108 = vmatpush1.bf16.msra.mxu0 %v6605
  %9109 = vmatprep.mubr.bf16.mxu0 %v1433
  %9110 = vmatmul.mubr.bf16.gmra.mrb[0].mxu0 %v1432
  %v9111 = vpop.f32.mrb[0].mxu0
  %v9112 = vadd.f32 %v9071, %v9111
  %v9113 = vpop.f32.mrb[0].mxu0
  %v9114 = vadd.f32 %v9073, %v9113
  %v9115 = vpop.f32.mrb[0].mxu0
  %v9116 = vpop.f32.mrb[0].mxu0
  %9117 = vdwg.mxu0
  %9118 = vmatprep.subr.bf16.mxu0 %v6622
  %9119 = vmatpush1.bf16.msra.mxu0 %v6621
  %9120 = vmatprep.subr.bf16.mxu0 0
  %9121 = vmatpush1.bf16.msra.mxu0 0
  %9122 = vmatprep.subr.bf16.mxu0 0
  %9123 = vmatpush1.bf16.msra.mxu0 0
  %9124 = vmatprep.subr.bf16.mxu0 0
  %9125 = vmatpush1.bf16.msra.mxu0 0
  %9126 = vmatprep.subr.bf16.mxu0 0
  %9127 = vmatpush1.bf16.msra.mxu0 0
  %9128 = vmatprep.subr.bf16.mxu0 0
  %9129 = vmatpush1.bf16.msra.mxu0 0
  %9130 = vmatprep.subr.bf16.mxu0 0
  %9131 = vmatpush1.bf16.msra.mxu0 0
  %9132 = vmatprep.subr.bf16.mxu0 0
  %9133 = vmatpush1.bf16.msra.mxu0 0
  %9134 = vmatprep.subr.bf16.mxu0 0
  %9135 = vmatpush1.bf16.msra.mxu0 0
  %9136 = vmatprep.subr.bf16.mxu0 0
  %9137 = vmatpush1.bf16.msra.mxu0 0
  %9138 = vmatprep.subr.bf16.mxu0 0
  %9139 = vmatpush1.bf16.msra.mxu0 0
  %9140 = vmatprep.subr.bf16.mxu0 0
  %9141 = vmatpush1.bf16.msra.mxu0 0
  %9142 = vmatprep.subr.bf16.mxu0 0
  %9143 = vmatpush1.bf16.msra.mxu0 0
  %9144 = vmatprep.subr.bf16.mxu0 0
  %9145 = vmatpush1.bf16.msra.mxu0 0
  %9146 = vmatprep.subr.bf16.mxu0 0
  %9147 = vmatpush1.bf16.msra.mxu0 0
  %9148 = vmatprep.subr.bf16.mxu0 0
  %9149 = vmatpush1.bf16.msra.mxu0 0
  %9150 = vmatprep.mubr.bf16.mxu0 0
  %9151 = vmatmul.mubr.bf16.gmra.mrb[0].mxu0 %v7927
  %v9152 = vpop.f32.mrb[0].mxu0
  %v9153 = vadd.f32 %v9112, %v9152
  %v9154 = vpop.f32.mrb[0].mxu0
  %v9155 = vadd.f32 %v9114, %v9154
  %v9156 = vpop.f32.mrb[0].mxu0
  %v9157 = vpop.f32.mrb[0].mxu0
  %9158 = vdwg.mxu0
  %9159 = vmatprep.subr.bf16.mxu0 %v5344
  %9160 = vmatpush1.bf16.msra.mxu0 %v5343
  %9161 = vmatprep.subr.bf16.mxu0 %v5360
  %9162 = vmatpush1.bf16.msra.mxu0 %v5359
  %9163 = vmatprep.subr.bf16.mxu0 %v5376
  %9164 = vmatpush1.bf16.msra.mxu0 %v5375
  %9165 = vmatprep.subr.bf16.mxu0 %v5392
  %9166 = vmatpush1.bf16.msra.mxu0 %v5391
  %9167 = vmatprep.subr.bf16.mxu0 %v5408
  %9168 = vmatpush1.bf16.msra.mxu0 %v5407
  %9169 = vmatprep.subr.bf16.mxu0 %v5424
  %9170 = vmatpush1.bf16.msra.mxu0 %v5423
  %9171 = vmatprep.subr.bf16.mxu0 %v5440
  %9172 = vmatpush1.bf16.msra.mxu0 %v5439
  %9173 = vmatprep.subr.bf16.mxu0 %v5456
  %9174 = vmatpush1.bf16.msra.mxu0 %v5455
  %9175 = vmatprep.subr.bf16.mxu0 %v5472
  %9176 = vmatpush1.bf16.msra.mxu0 %v5471
  %9177 = vmatprep.subr.bf16.mxu0 %v5488
  %9178 = vmatpush1.bf16.msra.mxu0 %v5487
  %9179 = vmatprep.subr.bf16.mxu0 %v5504
  %9180 = vmatpush1.bf16.msra.mxu0 %v5503
  %9181 = vmatprep.subr.bf16.mxu0 %v5520
  %9182 = vmatpush1.bf16.msra.mxu0 %v5519
  %9183 = vmatprep.subr.bf16.mxu0 %v5536
  %9184 = vmatpush1.bf16.msra.mxu0 %v5535
  %9185 = vmatprep.subr.bf16.mxu0 %v5552
  %9186 = vmatpush1.bf16.msra.mxu0 %v5551
  %9187 = vmatprep.subr.bf16.mxu0 %v5568
  %9188 = vmatpush1.bf16.msra.mxu0 %v5567
  %9189 = vmatprep.subr.bf16.mxu0 %v5584
  %9190 = vmatpush1.bf16.msra.mxu0 %v5583
  %9191 = vmatprep.mubr.bf16.mxu0 %v1425
  %9192 = vmatmul.mubr.bf16.gmra.mrb[0].mxu0 %v1424
  %v9193 = vpop.f32.mrb[0].mxu0
  %v9194 = vadd.f32 %v1370, %v9193
  %v9195 = vpop.f32.mrb[0].mxu0
  %v9196 = vadd.f32 %v1374, %v9195
  %v9197 = vpop.f32.mrb[0].mxu0
  %v9198 = vpop.f32.mrb[0].mxu0
  %9199 = vdwg.mxu0
  %9200 = vmatprep.subr.bf16.mxu0 %v5600
  %9201 = vmatpush1.bf16.msra.mxu0 %v5599
  %9202 = vmatprep.subr.bf16.mxu0 %v5616
  %9203 = vmatpush1.bf16.msra.mxu0 %v5615
  %9204 = vmatprep.subr.bf16.mxu0 %v5632
  %9205 = vmatpush1.bf16.msra.mxu0 %v5631
  %9206 = vmatprep.subr.bf16.mxu0 %v5648
  %9207 = vmatpush1.bf16.msra.mxu0 %v5647
  %9208 = vmatprep.subr.bf16.mxu0 %v5664
  %9209 = vmatpush1.bf16.msra.mxu0 %v5663
  %9210 = vmatprep.subr.bf16.mxu0 %v5680
  %9211 = vmatpush1.bf16.msra.mxu0 %v5679
  %9212 = vmatprep.subr.bf16.mxu0 %v5696
  %9213 = vmatpush1.bf16.msra.mxu0 %v5695
  %9214 = vmatprep.subr.bf16.mxu0 %v5712
  %9215 = vmatpush1.bf16.msra.mxu0 %v5711
  %9216 = vmatprep.subr.bf16.mxu0 %v5728
  %9217 = vmatpush1.bf16.msra.mxu0 %v5727
  %9218 = vmatprep.subr.bf16.mxu0 %v5744
  %9219 = vmatpush1.bf16.msra.mxu0 %v5743
  %9220 = vmatprep.subr.bf16.mxu0 %v5760
  %9221 = vmatpush1.bf16.msra.mxu0 %v5759
  %9222 = vmatprep.subr.bf16.mxu0 %v5776
  %9223 = vmatpush1.bf16.msra.mxu0 %v5775
  %9224 = vmatprep.subr.bf16.mxu0 %v5792
  %9225 = vmatpush1.bf16.msra.mxu0 %v5791
  %9226 = vmatprep.subr.bf16.mxu0 %v5808
  %9227 = vmatpush1.bf16.msra.mxu0 %v5807
  %9228 = vmatprep.subr.bf16.mxu0 %v5824
  %9229 = vmatpush1.bf16.msra.mxu0 %v5823
  %9230 = vmatprep.subr.bf16.mxu0 %v5840
  %9231 = vmatpush1.bf16.msra.mxu0 %v5839
  %9232 = vmatprep.mubr.bf16.mxu0 %v1427
  %9233 = vmatmul.mubr.bf16.gmra.mrb[0].mxu0 %v1426
  %v9234 = vpop.f32.mrb[0].mxu0
  %v9235 = vadd.f32 %v9194, %v9234
  %v9236 = vpop.f32.mrb[0].mxu0
  %v9237 = vadd.f32 %v9196, %v9236
  %v9238 = vpop.f32.mrb[0].mxu0
  %v9239 = vpop.f32.mrb[0].mxu0
  %9240 = vdwg.mxu0
  %9241 = vmatprep.subr.bf16.mxu0 %v5856
  %9242 = vmatpush1.bf16.msra.mxu0 %v5855
  %9243 = vmatprep.subr.bf16.mxu0 %v5872
  %9244 = vmatpush1.bf16.msra.mxu0 %v5871
  %9245 = vmatprep.subr.bf16.mxu0 %v5888
  %9246 = vmatpush1.bf16.msra.mxu0 %v5887
  %9247 = vmatprep.subr.bf16.mxu0 %v5904
  %9248 = vmatpush1.bf16.msra.mxu0 %v5903
  %9249 = vmatprep.subr.bf16.mxu0 %v5920
  %9250 = vmatpush1.bf16.msra.mxu0 %v5919
  %9251 = vmatprep.subr.bf16.mxu0 %v5936
  %9252 = vmatpush1.bf16.msra.mxu0 %v5935
  %9253 = vmatprep.subr.bf16.mxu0 %v5952
  %9254 = vmatpush1.bf16.msra.mxu0 %v5951
  %9255 = vmatprep.subr.bf16.mxu0 %v5968
  %9256 = vmatpush1.bf16.msra.mxu0 %v5967
  %9257 = vmatprep.subr.bf16.mxu0 %v5984
  %9258 = vmatpush1.bf16.msra.mxu0 %v5983
  %9259 = vmatprep.subr.bf16.mxu0 %v6000
  %9260 = vmatpush1.bf16.msra.mxu0 %v5999
  %9261 = vmatprep.subr.bf16.mxu0 %v6016
  %9262 = vmatpush1.bf16.msra.mxu0 %v6015
  %9263 = vmatprep.subr.bf16.mxu0 %v6032
  %9264 = vmatpush1.bf16.msra.mxu0 %v6031
  %9265 = vmatprep.subr.bf16.mxu0 %v6048
  %9266 = vmatpush1.bf16.msra.mxu0 %v6047
  %9267 = vmatprep.subr.bf16.mxu0 %v6064
  %9268 = vmatpush1.bf16.msra.mxu0 %v6063
  %9269 = vmatprep.subr.bf16.mxu0 %v6080
  %9270 = vmatpush1.bf16.msra.mxu0 %v6079
  %9271 = vmatprep.subr.bf16.mxu0 %v6096
  %9272 = vmatpush1.bf16.msra.mxu0 %v6095
  %9273 = vmatprep.mubr.bf16.mxu0 %v1429
  %9274 = vmatmul.mubr.bf16.gmra.mrb[0].mxu0 %v1428
  %v9275 = vpop.f32.mrb[0].mxu0
  %v9276 = vadd.f32 %v9235, %v9275
  %v9277 = vpop.f32.mrb[0].mxu0
  %v9278 = vadd.f32 %v9237, %v9277
  %v9279 = vpop.f32.mrb[0].mxu0
  %v9280 = vpop.f32.mrb[0].mxu0
  %9281 = vdwg.mxu0
  %9282 = vmatprep.subr.bf16.mxu0 %v6112
  %9283 = vmatpush1.bf16.msra.mxu0 %v6111
  %9284 = vmatprep.subr.bf16.mxu0 %v6128
  %9285 = vmatpush1.bf16.msra.mxu0 %v6127
  %9286 = vmatprep.subr.bf16.mxu0 %v6144
  %9287 = vmatpush1.bf16.msra.mxu0 %v6143
  %9288 = vmatprep.subr.bf16.mxu0 %v6160
  %9289 = vmatpush1.bf16.msra.mxu0 %v6159
  %9290 = vmatprep.subr.bf16.mxu0 %v6176
  %9291 = vmatpush1.bf16.msra.mxu0 %v6175
  %9292 = vmatprep.subr.bf16.mxu0 %v6192
  %9293 = vmatpush1.bf16.msra.mxu0 %v6191
  %9294 = vmatprep.subr.bf16.mxu0 %v6208
  %9295 = vmatpush1.bf16.msra.mxu0 %v6207
  %9296 = vmatprep.subr.bf16.mxu0 %v6224
  %9297 = vmatpush1.bf16.msra.mxu0 %v6223
  %9298 = vmatprep.subr.bf16.mxu0 %v6240
  %9299 = vmatpush1.bf16.msra.mxu0 %v6239
  %9300 = vmatprep.subr.bf16.mxu0 %v6256
  %9301 = vmatpush1.bf16.msra.mxu0 %v6255
  %9302 = vmatprep.subr.bf16.mxu0 %v6272
  %9303 = vmatpush1.bf16.msra.mxu0 %v6271
  %9304 = vmatprep.subr.bf16.mxu0 %v6288
  %9305 = vmatpush1.bf16.msra.mxu0 %v6287
  %9306 = vmatprep.subr.bf16.mxu0 %v6304
  %9307 = vmatpush1.bf16.msra.mxu0 %v6303
  %9308 = vmatprep.subr.bf16.mxu0 %v6320
  %9309 = vmatpush1.bf16.msra.mxu0 %v6319
  %9310 = vmatprep.subr.bf16.mxu0 %v6336
  %9311 = vmatpush1.bf16.msra.mxu0 %v6335
  %9312 = vmatprep.subr.bf16.mxu0 %v6352
  %9313 = vmatpush1.bf16.msra.mxu0 %v6351
  %9314 = vmatprep.mubr.bf16.mxu0 %v1431
  %9315 = vmatmul.mubr.bf16.gmra.mrb[0].mxu0 %v1430
  %v9316 = vpop.f32.mrb[0].mxu0
  %v9317 = vadd.f32 %v9276, %v9316
  %v9318 = vpop.f32.mrb[0].mxu0
  %v9319 = vadd.f32 %v9278, %v9318
  %v9320 = vpop.f32.mrb[0].mxu0
  %v9321 = vpop.f32.mrb[0].mxu0
  %9322 = vdwg.mxu0
  %9323 = vmatprep.subr.bf16.mxu0 %v6368
  %9324 = vmatpush1.bf16.msra.mxu0 %v6367
  %9325 = vmatprep.subr.bf16.mxu0 %v6384
  %9326 = vmatpush1.bf16.msra.mxu0 %v6383
  %9327 = vmatprep.subr.bf16.mxu0 %v6400
  %9328 = vmatpush1.bf16.msra.mxu0 %v6399
  %9329 = vmatprep.subr.bf16.mxu0 %v6416
  %9330 = vmatpush1.bf16.msra.mxu0 %v6415
  %9331 = vmatprep.subr.bf16.mxu0 %v6432
  %9332 = vmatpush1.bf16.msra.mxu0 %v6431
  %9333 = vmatprep.subr.bf16.mxu0 %v6448
  %9334 = vmatpush1.bf16.msra.mxu0 %v6447
  %9335 = vmatprep.subr.bf16.mxu0 %v6464
  %9336 = vmatpush1.bf16.msra.mxu0 %v6463
  %9337 = vmatprep.subr.bf16.mxu0 %v6480
  %9338 = vmatpush1.bf16.msra.mxu0 %v6479
  %9339 = vmatprep.subr.bf16.mxu0 %v6496
  %9340 = vmatpush1.bf16.msra.mxu0 %v6495
  %9341 = vmatprep.subr.bf16.mxu0 %v6512
  %9342 = vmatpush1.bf16.msra.mxu0 %v6511
  %9343 = vmatprep.subr.bf16.mxu0 %v6528
  %9344 = vmatpush1.bf16.msra.mxu0 %v6527
  %9345 = vmatprep.subr.bf16.mxu0 %v6544
  %9346 = vmatpush1.bf16.msra.mxu0 %v6543
  %9347 = vmatprep.subr.bf16.mxu0 %v6560
  %9348 = vmatpush1.bf16.msra.mxu0 %v6559
  %9349 = vmatprep.subr.bf16.mxu0 %v6576
  %9350 = vmatpush1.bf16.msra.mxu0 %v6575
  %9351 = vmatprep.subr.bf16.mxu0 %v6592
  %9352 = vmatpush1.bf16.msra.mxu0 %v6591
  %9353 = vmatprep.subr.bf16.mxu0 %v6608
  %9354 = vmatpush1.bf16.msra.mxu0 %v6607
  %9355 = vmatprep.mubr.bf16.mxu0 %v1433
  %9356 = vmatmul.mubr.bf16.gmra.mrb[0].mxu0 %v1432
  %v9357 = vpop.f32.mrb[0].mxu0
  %v9358 = vadd.f32 %v9317, %v9357
  %v9359 = vpop.f32.mrb[0].mxu0
  %v9360 = vadd.f32 %v9319, %v9359
  %v9361 = vpop.f32.mrb[0].mxu0
  %v9362 = vpop.f32.mrb[0].mxu0
  %9363 = vdwg.mxu0
  %9364 = vmatprep.subr.bf16.mxu0 %v6624
  %9365 = vmatpush1.bf16.msra.mxu0 %v6623
  %9366 = vmatprep.subr.bf16.mxu0 0
  %9367 = vmatpush1.bf16.msra.mxu0 0
  %9368 = vmatprep.subr.bf16.mxu0 0
  %9369 = vmatpush1.bf16.msra.mxu0 0
  %9370 = vmatprep.subr.bf16.mxu0 0
  %9371 = vmatpush1.bf16.msra.mxu0 0
  %9372 = vmatprep.subr.bf16.mxu0 0
  %9373 = vmatpush1.bf16.msra.mxu0 0
  %9374 = vmatprep.subr.bf16.mxu0 0
  %9375 = vmatpush1.bf16.msra.mxu0 0
  %9376 = vmatprep.subr.bf16.mxu0 0
  %9377 = vmatpush1.bf16.msra.mxu0 0
  %9378 = vmatprep.subr.bf16.mxu0 0
  %9379 = vmatpush1.bf16.msra.mxu0 0
  %9380 = vmatprep.subr.bf16.mxu0 0
  %9381 = vmatpush1.bf16.msra.mxu0 0
  %9382 = vmatprep.subr.bf16.mxu0 0
  %9383 = vmatpush1.bf16.msra.mxu0 0
  %9384 = vmatprep.subr.bf16.mxu0 0
  %9385 = vmatpush1.bf16.msra.mxu0 0
  %9386 = vmatprep.subr.bf16.mxu0 0
  %9387 = vmatpush1.bf16.msra.mxu0 0
  %9388 = vmatprep.subr.bf16.mxu0 0
  %9389 = vmatpush1.bf16.msra.mxu0 0
  %9390 = vmatprep.subr.bf16.mxu0 0
  %9391 = vmatpush1.bf16.msra.mxu0 0
  %9392 = vmatprep.subr.bf16.mxu0 0
  %9393 = vmatpush1.bf16.msra.mxu0 0
  %9394 = vmatprep.subr.bf16.mxu0 0
  %9395 = vmatpush1.bf16.msra.mxu0 0
  %9396 = vmatprep.mubr.bf16.mxu0 0
  %9397 = vmatmul.mubr.bf16.gmra.mrb[0].mxu0 %v7927
  %v9398 = vpop.f32.mrb[0].mxu0
  %v9399 = vadd.f32 %v9358, %v9398
  %v9400 = vpop.f32.mrb[0].mxu0
  %v9401 = vadd.f32 %v9360, %v9400
  %v9402 = vpop.f32.mrb[0].mxu0
  %v9403 = vpop.f32.mrb[0].mxu0
  %9404 = vdwg.mxu0
  %9405 = vmatprep.subr.bf16.mxu0 %v5346
  %9406 = vmatpush1.bf16.msra.mxu0 %v5345
  %9407 = vmatprep.subr.bf16.mxu0 %v5362
  %9408 = vmatpush1.bf16.msra.mxu0 %v5361
  %9409 = vmatprep.subr.bf16.mxu0 %v5378
  %9410 = vmatpush1.bf16.msra.mxu0 %v5377
  %9411 = vmatprep.subr.bf16.mxu0 %v5394
  %9412 = vmatpush1.bf16.msra.mxu0 %v5393
  %9413 = vmatprep.subr.bf16.mxu0 %v5410
  %9414 = vmatpush1.bf16.msra.mxu0 %v5409
  %9415 = vmatprep.subr.bf16.mxu0 %v5426
  %9416 = vmatpush1.bf16.msra.mxu0 %v5425
  %9417 = vmatprep.subr.bf16.mxu0 %v5442
  %9418 = vmatpush1.bf16.msra.mxu0 %v5441
  %9419 = vmatprep.subr.bf16.mxu0 %v5458
  %9420 = vmatpush1.bf16.msra.mxu0 %v5457
  %9421 = vmatprep.subr.bf16.mxu0 %v5474
  %9422 = vmatpush1.bf16.msra.mxu0 %v5473
  %9423 = vmatprep.subr.bf16.mxu0 %v5490
  %9424 = vmatpush1.bf16.msra.mxu0 %v5489
  %9425 = vmatprep.subr.bf16.mxu0 %v5506
  %9426 = vmatpush1.bf16.msra.mxu0 %v5505
  %9427 = vmatprep.subr.bf16.mxu0 %v5522
  %9428 = vmatpush1.bf16.msra.mxu0 %v5521
  %9429 = vmatprep.subr.bf16.mxu0 %v5538
  %9430 = vmatpush1.bf16.msra.mxu0 %v5537
  %9431 = vmatprep.subr.bf16.mxu0 %v5554
  %9432 = vmatpush1.bf16.msra.mxu0 %v5553
  %9433 = vmatprep.subr.bf16.mxu0 %v5570
  %9434 = vmatpush1.bf16.msra.mxu0 %v5569
  %9435 = vmatprep.subr.bf16.mxu0 %v5586
  %9436 = vmatpush1.bf16.msra.mxu0 %v5585
  %9437 = vmatprep.mubr.bf16.mxu0 %v1425
  %9438 = vmatmul.mubr.bf16.gmra.mrb[0].mxu0 %v1424
  %v9439 = vpop.f32.mrb[0].mxu0
  %v9440 = vadd.f32 %v1378, %v9439
  %v9441 = vpop.f32.mrb[0].mxu0
  %v9442 = vadd.f32 %v1382, %v9441
  %v9443 = vpop.f32.mrb[0].mxu0
  %v9444 = vpop.f32.mrb[0].mxu0
  %9445 = vdwg.mxu0
  %9446 = vmatprep.subr.bf16.mxu0 %v5602
  %9447 = vmatpush1.bf16.msra.mxu0 %v5601
  %9448 = vmatprep.subr.bf16.mxu0 %v5618
  %9449 = vmatpush1.bf16.msra.mxu0 %v5617
  %9450 = vmatprep.subr.bf16.mxu0 %v5634
  %9451 = vmatpush1.bf16.msra.mxu0 %v5633
  %9452 = vmatprep.subr.bf16.mxu0 %v5650
  %9453 = vmatpush1.bf16.msra.mxu0 %v5649
  %9454 = vmatprep.subr.bf16.mxu0 %v5666
  %9455 = vmatpush1.bf16.msra.mxu0 %v5665
  %9456 = vmatprep.subr.bf16.mxu0 %v5682
  %9457 = vmatpush1.bf16.msra.mxu0 %v5681
  %9458 = vmatprep.subr.bf16.mxu0 %v5698
  %9459 = vmatpush1.bf16.msra.mxu0 %v5697
  %9460 = vmatprep.subr.bf16.mxu0 %v5714
  %9461 = vmatpush1.bf16.msra.mxu0 %v5713
  %9462 = vmatprep.subr.bf16.mxu0 %v5730
  %9463 = vmatpush1.bf16.msra.mxu0 %v5729
  %9464 = vmatprep.subr.bf16.mxu0 %v5746
  %9465 = vmatpush1.bf16.msra.mxu0 %v5745
  %9466 = vmatprep.subr.bf16.mxu0 %v5762
  %9467 = vmatpush1.bf16.msra.mxu0 %v5761
  %9468 = vmatprep.subr.bf16.mxu0 %v5778
  %9469 = vmatpush1.bf16.msra.mxu0 %v5777
  %9470 = vmatprep.subr.bf16.mxu0 %v5794
  %9471 = vmatpush1.bf16.msra.mxu0 %v5793
  %9472 = vmatprep.subr.bf16.mxu0 %v5810
  %9473 = vmatpush1.bf16.msra.mxu0 %v5809
  %9474 = vmatprep.subr.bf16.mxu0 %v5826
  %9475 = vmatpush1.bf16.msra.mxu0 %v5825
  %9476 = vmatprep.subr.bf16.mxu0 %v5842
  %9477 = vmatpush1.bf16.msra.mxu0 %v5841
  %9478 = vmatprep.mubr.bf16.mxu0 %v1427
  %9479 = vmatmul.mubr.bf16.gmra.mrb[0].mxu0 %v1426
  %v9480 = vpop.f32.mrb[0].mxu0
  %v9481 = vadd.f32 %v9440, %v9480
  %v9482 = vpop.f32.mrb[0].mxu0
  %v9483 = vadd.f32 %v9442, %v9482
  %v9484 = vpop.f32.mrb[0].mxu0
  %v9485 = vpop.f32.mrb[0].mxu0
  %9486 = vdwg.mxu0
  %9487 = vmatprep.subr.bf16.mxu0 %v5858
  %9488 = vmatpush1.bf16.msra.mxu0 %v5857
  %9489 = vmatprep.subr.bf16.mxu0 %v5874
  %9490 = vmatpush1.bf16.msra.mxu0 %v5873
  %9491 = vmatprep.subr.bf16.mxu0 %v5890
  %9492 = vmatpush1.bf16.msra.mxu0 %v5889
  %9493 = vmatprep.subr.bf16.mxu0 %v5906
  %9494 = vmatpush1.bf16.msra.mxu0 %v5905
  %9495 = vmatprep.subr.bf16.mxu0 %v5922
  %9496 = vmatpush1.bf16.msra.mxu0 %v5921
  %9497 = vmatprep.subr.bf16.mxu0 %v5938
  %9498 = vmatpush1.bf16.msra.mxu0 %v5937
  %9499 = vmatprep.subr.bf16.mxu0 %v5954
  %9500 = vmatpush1.bf16.msra.mxu0 %v5953
  %9501 = vmatprep.subr.bf16.mxu0 %v5970
  %9502 = vmatpush1.bf16.msra.mxu0 %v5969
  %9503 = vmatprep.subr.bf16.mxu0 %v5986
  %9504 = vmatpush1.bf16.msra.mxu0 %v5985
  %9505 = vmatprep.subr.bf16.mxu0 %v6002
  %9506 = vmatpush1.bf16.msra.mxu0 %v6001
  %9507 = vmatprep.subr.bf16.mxu0 %v6018
  %9508 = vmatpush1.bf16.msra.mxu0 %v6017
  %9509 = vmatprep.subr.bf16.mxu0 %v6034
  %9510 = vmatpush1.bf16.msra.mxu0 %v6033
  %9511 = vmatprep.subr.bf16.mxu0 %v6050
  %9512 = vmatpush1.bf16.msra.mxu0 %v6049
  %9513 = vmatprep.subr.bf16.mxu0 %v6066
  %9514 = vmatpush1.bf16.msra.mxu0 %v6065
  %9515 = vmatprep.subr.bf16.mxu0 %v6082
  %9516 = vmatpush1.bf16.msra.mxu0 %v6081
  %9517 = vmatprep.subr.bf16.mxu0 %v6098
  %9518 = vmatpush1.bf16.msra.mxu0 %v6097
  %9519 = vmatprep.mubr.bf16.mxu0 %v1429
  %9520 = vmatmul.mubr.bf16.gmra.mrb[0].mxu0 %v1428
  %v9521 = vpop.f32.mrb[0].mxu0
  %v9522 = vadd.f32 %v9481, %v9521
  %v9523 = vpop.f32.mrb[0].mxu0
  %v9524 = vadd.f32 %v9483, %v9523
  %v9525 = vpop.f32.mrb[0].mxu0
  %v9526 = vpop.f32.mrb[0].mxu0
  %9527 = vdwg.mxu0
  %9528 = vmatprep.subr.bf16.mxu0 %v6114
  %9529 = vmatpush1.bf16.msra.mxu0 %v6113
  %9530 = vmatprep.subr.bf16.mxu0 %v6130
  %9531 = vmatpush1.bf16.msra.mxu0 %v6129
  %9532 = vmatprep.subr.bf16.mxu0 %v6146
  %9533 = vmatpush1.bf16.msra.mxu0 %v6145
  %9534 = vmatprep.subr.bf16.mxu0 %v6162
  %9535 = vmatpush1.bf16.msra.mxu0 %v6161
  %9536 = vmatprep.subr.bf16.mxu0 %v6178
  %9537 = vmatpush1.bf16.msra.mxu0 %v6177
  %9538 = vmatprep.subr.bf16.mxu0 %v6194
  %9539 = vmatpush1.bf16.msra.mxu0 %v6193
  %9540 = vmatprep.subr.bf16.mxu0 %v6210
  %9541 = vmatpush1.bf16.msra.mxu0 %v6209
  %9542 = vmatprep.subr.bf16.mxu0 %v6226
  %9543 = vmatpush1.bf16.msra.mxu0 %v6225
  %9544 = vmatprep.subr.bf16.mxu0 %v6242
  %9545 = vmatpush1.bf16.msra.mxu0 %v6241
  %9546 = vmatprep.subr.bf16.mxu0 %v6258
  %9547 = vmatpush1.bf16.msra.mxu0 %v6257
  %9548 = vmatprep.subr.bf16.mxu0 %v6274
  %9549 = vmatpush1.bf16.msra.mxu0 %v6273
  %9550 = vmatprep.subr.bf16.mxu0 %v6290
  %9551 = vmatpush1.bf16.msra.mxu0 %v6289
  %9552 = vmatprep.subr.bf16.mxu0 %v6306
  %9553 = vmatpush1.bf16.msra.mxu0 %v6305
  %9554 = vmatprep.subr.bf16.mxu0 %v6322
  %9555 = vmatpush1.bf16.msra.mxu0 %v6321
  %9556 = vmatprep.subr.bf16.mxu0 %v6338
  %9557 = vmatpush1.bf16.msra.mxu0 %v6337
  %9558 = vmatprep.subr.bf16.mxu0 %v6354
  %9559 = vmatpush1.bf16.msra.mxu0 %v6353
  %9560 = vmatprep.mubr.bf16.mxu0 %v1431
  %9561 = vmatmul.mubr.bf16.gmra.mrb[0].mxu0 %v1430
  %v9562 = vpop.f32.mrb[0].mxu0
  %v9563 = vadd.f32 %v9522, %v9562
  %v9564 = vpop.f32.mrb[0].mxu0
  %v9565 = vadd.f32 %v9524, %v9564
  %v9566 = vpop.f32.mrb[0].mxu0
  %v9567 = vpop.f32.mrb[0].mxu0
  %9568 = vdwg.mxu0
  %9569 = vmatprep.subr.bf16.mxu0 %v6370
  %9570 = vmatpush1.bf16.msra.mxu0 %v6369
  %9571 = vmatprep.subr.bf16.mxu0 %v6386
  %9572 = vmatpush1.bf16.msra.mxu0 %v6385
  %9573 = vmatprep.subr.bf16.mxu0 %v6402
  %9574 = vmatpush1.bf16.msra.mxu0 %v6401
  %9575 = vmatprep.subr.bf16.mxu0 %v6418
  %9576 = vmatpush1.bf16.msra.mxu0 %v6417
  %9577 = vmatprep.subr.bf16.mxu0 %v6434
  %9578 = vmatpush1.bf16.msra.mxu0 %v6433
  %9579 = vmatprep.subr.bf16.mxu0 %v6450
  %9580 = vmatpush1.bf16.msra.mxu0 %v6449
  %9581 = vmatprep.subr.bf16.mxu0 %v6466
  %9582 = vmatpush1.bf16.msra.mxu0 %v6465
  %9583 = vmatprep.subr.bf16.mxu0 %v6482
  %9584 = vmatpush1.bf16.msra.mxu0 %v6481
  %9585 = vmatprep.subr.bf16.mxu0 %v6498
  %9586 = vmatpush1.bf16.msra.mxu0 %v6497
  %9587 = vmatprep.subr.bf16.mxu0 %v6514
  %9588 = vmatpush1.bf16.msra.mxu0 %v6513
  %9589 = vmatprep.subr.bf16.mxu0 %v6530
  %9590 = vmatpush1.bf16.msra.mxu0 %v6529
  %9591 = vmatprep.subr.bf16.mxu0 %v6546
  %9592 = vmatpush1.bf16.msra.mxu0 %v6545
  %9593 = vmatprep.subr.bf16.mxu0 %v6562
  %9594 = vmatpush1.bf16.msra.mxu0 %v6561
  %9595 = vmatprep.subr.bf16.mxu0 %v6578
  %9596 = vmatpush1.bf16.msra.mxu0 %v6577
  %9597 = vmatprep.subr.bf16.mxu0 %v6594
  %9598 = vmatpush1.bf16.msra.mxu0 %v6593
  %9599 = vmatprep.subr.bf16.mxu0 %v6610
  %9600 = vmatpush1.bf16.msra.mxu0 %v6609
  %9601 = vmatprep.mubr.bf16.mxu0 %v1433
  %9602 = vmatmul.mubr.bf16.gmra.mrb[0].mxu0 %v1432
  %v9603 = vpop.f32.mrb[0].mxu0
  %v9604 = vadd.f32 %v9563, %v9603
  %v9605 = vpop.f32.mrb[0].mxu0
  %v9606 = vadd.f32 %v9565, %v9605
  %v9607 = vpop.f32.mrb[0].mxu0
  %v9608 = vpop.f32.mrb[0].mxu0
  %9609 = vdwg.mxu0
  %9610 = vmatprep.subr.bf16.mxu0 %v6626
  %9611 = vmatpush1.bf16.msra.mxu0 %v6625
  %9612 = vmatprep.subr.bf16.mxu0 0
  %9613 = vmatpush1.bf16.msra.mxu0 0
  %9614 = vmatprep.subr.bf16.mxu0 0
  %9615 = vmatpush1.bf16.msra.mxu0 0
  %9616 = vmatprep.subr.bf16.mxu0 0
  %9617 = vmatpush1.bf16.msra.mxu0 0
  %9618 = vmatprep.subr.bf16.mxu0 0
  %9619 = vmatpush1.bf16.msra.mxu0 0
  %9620 = vmatprep.subr.bf16.mxu0 0
  %9621 = vmatpush1.bf16.msra.mxu0 0
  %9622 = vmatprep.subr.bf16.mxu0 0
  %9623 = vmatpush1.bf16.msra.mxu0 0
  %9624 = vmatprep.subr.bf16.mxu0 0
  %9625 = vmatpush1.bf16.msra.mxu0 0
  %9626 = vmatprep.subr.bf16.mxu0 0
  %9627 = vmatpush1.bf16.msra.mxu0 0
  %9628 = vmatprep.subr.bf16.mxu0 0
  %9629 = vmatpush1.bf16.msra.mxu0 0
  %9630 = vmatprep.subr.bf16.mxu0 0
  %9631 = vmatpush1.bf16.msra.mxu0 0
  %9632 = vmatprep.subr.bf16.mxu0 0
  %9633 = vmatpush1.bf16.msra.mxu0 0
  %9634 = vmatprep.subr.bf16.mxu0 0
  %9635 = vmatpush1.bf16.msra.mxu0 0
  %9636 = vmatprep.subr.bf16.mxu0 0
  %9637 = vmatpush1.bf16.msra.mxu0 0
  %9638 = vmatprep.subr.bf16.mxu0 0
  %9639 = vmatpush1.bf16.msra.mxu0 0
  %9640 = vmatprep.subr.bf16.mxu0 0
  %9641 = vmatpush1.bf16.msra.mxu0 0
  %9642 = vmatprep.mubr.bf16.mxu0 0
  %9643 = vmatmul.mubr.bf16.gmra.mrb[0].mxu0 %v7927
  %v9644 = vpop.f32.mrb[0].mxu0
  %v9645 = vadd.f32 %v9604, %v9644
  %v9646 = vpop.f32.mrb[0].mxu0
  %v9647 = vadd.f32 %v9606, %v9646
  %v9648 = vpop.f32.mrb[0].mxu0
  %v9649 = vpop.f32.mrb[0].mxu0
  %9650 = vdwg.mxu0
  %9651 = vmatprep.subr.bf16.mxu0 %v5348
  %9652 = vmatpush1.bf16.msra.mxu0 %v5347
  %9653 = vmatprep.subr.bf16.mxu0 %v5364
  %9654 = vmatpush1.bf16.msra.mxu0 %v5363
  %9655 = vmatprep.subr.bf16.mxu0 %v5380
  %9656 = vmatpush1.bf16.msra.mxu0 %v5379
  %9657 = vmatprep.subr.bf16.mxu0 %v5396
  %9658 = vmatpush1.bf16.msra.mxu0 %v5395
  %9659 = vmatprep.subr.bf16.mxu0 %v5412
  %9660 = vmatpush1.bf16.msra.mxu0 %v5411
  %9661 = vmatprep.subr.bf16.mxu0 %v5428
  %9662 = vmatpush1.bf16.msra.mxu0 %v5427
  %9663 = vmatprep.subr.bf16.mxu0 %v5444
  %9664 = vmatpush1.bf16.msra.mxu0 %v5443
  %9665 = vmatprep.subr.bf16.mxu0 %v5460
  %9666 = vmatpush1.bf16.msra.mxu0 %v5459
  %9667 = vmatprep.subr.bf16.mxu0 %v5476
  %9668 = vmatpush1.bf16.msra.mxu0 %v5475
  %9669 = vmatprep.subr.bf16.mxu0 %v5492
  %9670 = vmatpush1.bf16.msra.mxu0 %v5491
  %9671 = vmatprep.subr.bf16.mxu0 %v5508
  %9672 = vmatpush1.bf16.msra.mxu0 %v5507
  %9673 = vmatprep.subr.bf16.mxu0 %v5524
  %9674 = vmatpush1.bf16.msra.mxu0 %v5523
  %9675 = vmatprep.subr.bf16.mxu0 %v5540
  %9676 = vmatpush1.bf16.msra.mxu0 %v5539
  %9677 = vmatprep.subr.bf16.mxu0 %v5556
  %9678 = vmatpush1.bf16.msra.mxu0 %v5555
  %9679 = vmatprep.subr.bf16.mxu0 %v5572
  %9680 = vmatpush1.bf16.msra.mxu0 %v5571
  %9681 = vmatprep.subr.bf16.mxu0 %v5588
  %9682 = vmatpush1.bf16.msra.mxu0 %v5587
  %9683 = vmatprep.mubr.bf16.mxu0 %v1425
  %9684 = vmatmul.mubr.bf16.gmra.mrb[0].mxu0 %v1424
  %v9685 = vpop.f32.mrb[0].mxu0
  %v9686 = vadd.f32 %v1386, %v9685
  %v9687 = vpop.f32.mrb[0].mxu0
  %v9688 = vadd.f32 %v1390, %v9687
  %v9689 = vpop.f32.mrb[0].mxu0
  %v9690 = vpop.f32.mrb[0].mxu0
  %9691 = vdwg.mxu0
  %9692 = vmatprep.subr.bf16.mxu0 %v5604
  %9693 = vmatpush1.bf16.msra.mxu0 %v5603
  %9694 = vmatprep.subr.bf16.mxu0 %v5620
  %9695 = vmatpush1.bf16.msra.mxu0 %v5619
  %9696 = vmatprep.subr.bf16.mxu0 %v5636
  %9697 = vmatpush1.bf16.msra.mxu0 %v5635
  %9698 = vmatprep.subr.bf16.mxu0 %v5652
  %9699 = vmatpush1.bf16.msra.mxu0 %v5651
  %9700 = vmatprep.subr.bf16.mxu0 %v5668
  %9701 = vmatpush1.bf16.msra.mxu0 %v5667
  %9702 = vmatprep.subr.bf16.mxu0 %v5684
  %9703 = vmatpush1.bf16.msra.mxu0 %v5683
  %9704 = vmatprep.subr.bf16.mxu0 %v5700
  %9705 = vmatpush1.bf16.msra.mxu0 %v5699
  %9706 = vmatprep.subr.bf16.mxu0 %v5716
  %9707 = vmatpush1.bf16.msra.mxu0 %v5715
  %9708 = vmatprep.subr.bf16.mxu0 %v5732
  %9709 = vmatpush1.bf16.msra.mxu0 %v5731
  %9710 = vmatprep.subr.bf16.mxu0 %v5748
  %9711 = vmatpush1.bf16.msra.mxu0 %v5747
  %9712 = vmatprep.subr.bf16.mxu0 %v5764
  %9713 = vmatpush1.bf16.msra.mxu0 %v5763
  %9714 = vmatprep.subr.bf16.mxu0 %v5780
  %9715 = vmatpush1.bf16.msra.mxu0 %v5779
  %9716 = vmatprep.subr.bf16.mxu0 %v5796
  %9717 = vmatpush1.bf16.msra.mxu0 %v5795
  %9718 = vmatprep.subr.bf16.mxu0 %v5812
  %9719 = vmatpush1.bf16.msra.mxu0 %v5811
  %9720 = vmatprep.subr.bf16.mxu0 %v5828
  %9721 = vmatpush1.bf16.msra.mxu0 %v5827
  %9722 = vmatprep.subr.bf16.mxu0 %v5844
  %9723 = vmatpush1.bf16.msra.mxu0 %v5843
  %9724 = vmatprep.mubr.bf16.mxu0 %v1427
  %9725 = vmatmul.mubr.bf16.gmra.mrb[0].mxu0 %v1426
  %v9726 = vpop.f32.mrb[0].mxu0
  %v9727 = vadd.f32 %v9686, %v9726
  %v9728 = vpop.f32.mrb[0].mxu0
  %v9729 = vadd.f32 %v9688, %v9728
  %v9730 = vpop.f32.mrb[0].mxu0
  %v9731 = vpop.f32.mrb[0].mxu0
  %9732 = vdwg.mxu0
  %9733 = vmatprep.subr.bf16.mxu0 %v5860
  %9734 = vmatpush1.bf16.msra.mxu0 %v5859
  %9735 = vmatprep.subr.bf16.mxu0 %v5876
  %9736 = vmatpush1.bf16.msra.mxu0 %v5875
  %9737 = vmatprep.subr.bf16.mxu0 %v5892
  %9738 = vmatpush1.bf16.msra.mxu0 %v5891
  %9739 = vmatprep.subr.bf16.mxu0 %v5908
  %9740 = vmatpush1.bf16.msra.mxu0 %v5907
  %9741 = vmatprep.subr.bf16.mxu0 %v5924
  %9742 = vmatpush1.bf16.msra.mxu0 %v5923
  %9743 = vmatprep.subr.bf16.mxu0 %v5940
  %9744 = vmatpush1.bf16.msra.mxu0 %v5939
  %9745 = vmatprep.subr.bf16.mxu0 %v5956
  %9746 = vmatpush1.bf16.msra.mxu0 %v5955
  %9747 = vmatprep.subr.bf16.mxu0 %v5972
  %9748 = vmatpush1.bf16.msra.mxu0 %v5971
  %9749 = vmatprep.subr.bf16.mxu0 %v5988
  %9750 = vmatpush1.bf16.msra.mxu0 %v5987
  %9751 = vmatprep.subr.bf16.mxu0 %v6004
  %9752 = vmatpush1.bf16.msra.mxu0 %v6003
  %9753 = vmatprep.subr.bf16.mxu0 %v6020
  %9754 = vmatpush1.bf16.msra.mxu0 %v6019
  %9755 = vmatprep.subr.bf16.mxu0 %v6036
  %9756 = vmatpush1.bf16.msra.mxu0 %v6035
  %9757 = vmatprep.subr.bf16.mxu0 %v6052
  %9758 = vmatpush1.bf16.msra.mxu0 %v6051
  %9759 = vmatprep.subr.bf16.mxu0 %v6068
  %9760 = vmatpush1.bf16.msra.mxu0 %v6067
  %9761 = vmatprep.subr.bf16.mxu0 %v6084
  %9762 = vmatpush1.bf16.msra.mxu0 %v6083
  %9763 = vmatprep.subr.bf16.mxu0 %v6100
  %9764 = vmatpush1.bf16.msra.mxu0 %v6099
  %9765 = vmatprep.mubr.bf16.mxu0 %v1429
  %9766 = vmatmul.mubr.bf16.gmra.mrb[0].mxu0 %v1428
  %v9767 = vpop.f32.mrb[0].mxu0
  %v9768 = vadd.f32 %v9727, %v9767
  %v9769 = vpop.f32.mrb[0].mxu0
  %v9770 = vadd.f32 %v9729, %v9769
  %v9771 = vpop.f32.mrb[0].mxu0
  %v9772 = vpop.f32.mrb[0].mxu0
  %9773 = vdwg.mxu0
  %9774 = vmatprep.subr.bf16.mxu0 %v6116
  %9775 = vmatpush1.bf16.msra.mxu0 %v6115
  %9776 = vmatprep.subr.bf16.mxu0 %v6132
  %9777 = vmatpush1.bf16.msra.mxu0 %v6131
  %9778 = vmatprep.subr.bf16.mxu0 %v6148
  %9779 = vmatpush1.bf16.msra.mxu0 %v6147
  %9780 = vmatprep.subr.bf16.mxu0 %v6164
  %9781 = vmatpush1.bf16.msra.mxu0 %v6163
  %9782 = vmatprep.subr.bf16.mxu0 %v6180
  %9783 = vmatpush1.bf16.msra.mxu0 %v6179
  %9784 = vmatprep.subr.bf16.mxu0 %v6196
  %9785 = vmatpush1.bf16.msra.mxu0 %v6195
  %9786 = vmatprep.subr.bf16.mxu0 %v6212
  %9787 = vmatpush1.bf16.msra.mxu0 %v6211
  %9788 = vmatprep.subr.bf16.mxu0 %v6228
  %9789 = vmatpush1.bf16.msra.mxu0 %v6227
  %9790 = vmatprep.subr.bf16.mxu0 %v6244
  %9791 = vmatpush1.bf16.msra.mxu0 %v6243
  %9792 = vmatprep.subr.bf16.mxu0 %v6260
  %9793 = vmatpush1.bf16.msra.mxu0 %v6259
  %9794 = vmatprep.subr.bf16.mxu0 %v6276
  %9795 = vmatpush1.bf16.msra.mxu0 %v6275
  %9796 = vmatprep.subr.bf16.mxu0 %v6292
  %9797 = vmatpush1.bf16.msra.mxu0 %v6291
  %9798 = vmatprep.subr.bf16.mxu0 %v6308
  %9799 = vmatpush1.bf16.msra.mxu0 %v6307
  %9800 = vmatprep.subr.bf16.mxu0 %v6324
  %9801 = vmatpush1.bf16.msra.mxu0 %v6323
  %9802 = vmatprep.subr.bf16.mxu0 %v6340
  %9803 = vmatpush1.bf16.msra.mxu0 %v6339
  %9804 = vmatprep.subr.bf16.mxu0 %v6356
  %9805 = vmatpush1.bf16.msra.mxu0 %v6355
  %9806 = vmatprep.mubr.bf16.mxu0 %v1431
  %9807 = vmatmul.mubr.bf16.gmra.mrb[0].mxu0 %v1430
  %v9808 = vpop.f32.mrb[0].mxu0
  %v9809 = vadd.f32 %v9768, %v9808
  %v9810 = vpop.f32.mrb[0].mxu0
  %v9811 = vadd.f32 %v9770, %v9810
  %v9812 = vpop.f32.mrb[0].mxu0
  %v9813 = vpop.f32.mrb[0].mxu0
  %9814 = vdwg.mxu0
  %9815 = vmatprep.subr.bf16.mxu0 %v6372
  %9816 = vmatpush1.bf16.msra.mxu0 %v6371
  %9817 = vmatprep.subr.bf16.mxu0 %v6388
  %9818 = vmatpush1.bf16.msra.mxu0 %v6387
  %9819 = vmatprep.subr.bf16.mxu0 %v6404
  %9820 = vmatpush1.bf16.msra.mxu0 %v6403
  %9821 = vmatprep.subr.bf16.mxu0 %v6420
  %9822 = vmatpush1.bf16.msra.mxu0 %v6419
  %9823 = vmatprep.subr.bf16.mxu0 %v6436
  %9824 = vmatpush1.bf16.msra.mxu0 %v6435
  %9825 = vmatprep.subr.bf16.mxu0 %v6452
  %9826 = vmatpush1.bf16.msra.mxu0 %v6451
  %9827 = vmatprep.subr.bf16.mxu0 %v6468
  %9828 = vmatpush1.bf16.msra.mxu0 %v6467
  %9829 = vmatprep.subr.bf16.mxu0 %v6484
  %9830 = vmatpush1.bf16.msra.mxu0 %v6483
  %9831 = vmatprep.subr.bf16.mxu0 %v6500
  %9832 = vmatpush1.bf16.msra.mxu0 %v6499
  %9833 = vmatprep.subr.bf16.mxu0 %v6516
  %9834 = vmatpush1.bf16.msra.mxu0 %v6515
  %9835 = vmatprep.subr.bf16.mxu0 %v6532
  %9836 = vmatpush1.bf16.msra.mxu0 %v6531
  %9837 = vmatprep.subr.bf16.mxu0 %v6548
  %9838 = vmatpush1.bf16.msra.mxu0 %v6547
  %9839 = vmatprep.subr.bf16.mxu0 %v6564
  %9840 = vmatpush1.bf16.msra.mxu0 %v6563
  %9841 = vmatprep.subr.bf16.mxu0 %v6580
  %9842 = vmatpush1.bf16.msra.mxu0 %v6579
  %9843 = vmatprep.subr.bf16.mxu0 %v6596
  %9844 = vmatpush1.bf16.msra.mxu0 %v6595
  %9845 = vmatprep.subr.bf16.mxu0 %v6612
  %9846 = vmatpush1.bf16.msra.mxu0 %v6611
  %9847 = vmatprep.mubr.bf16.mxu0 %v1433
  %9848 = vmatmul.mubr.bf16.gmra.mrb[0].mxu0 %v1432
  %v9849 = vpop.f32.mrb[0].mxu0
  %v9850 = vadd.f32 %v9809, %v9849
  %v9851 = vpop.f32.mrb[0].mxu0
  %v9852 = vadd.f32 %v9811, %v9851
  %v9853 = vpop.f32.mrb[0].mxu0
  %v9854 = vpop.f32.mrb[0].mxu0
  %9855 = vdwg.mxu0
  %9856 = vmatprep.subr.bf16.mxu0 %v6628
  %9857 = vmatpush1.bf16.msra.mxu0 %v6627
  %9858 = vmatprep.subr.bf16.mxu0 0
  %9859 = vmatpush1.bf16.msra.mxu0 0
  %9860 = vmatprep.subr.bf16.mxu0 0
  %9861 = vmatpush1.bf16.msra.mxu0 0
  %9862 = vmatprep.subr.bf16.mxu0 0
  %9863 = vmatpush1.bf16.msra.mxu0 0
  %9864 = vmatprep.subr.bf16.mxu0 0
  %9865 = vmatpush1.bf16.msra.mxu0 0
  %9866 = vmatprep.subr.bf16.mxu0 0
  %9867 = vmatpush1.bf16.msra.mxu0 0
  %9868 = vmatprep.subr.bf16.mxu0 0
  %9869 = vmatpush1.bf16.msra.mxu0 0
  %9870 = vmatprep.subr.bf16.mxu0 0
  %9871 = vmatpush1.bf16.msra.mxu0 0
  %9872 = vmatprep.subr.bf16.mxu0 0
  %9873 = vmatpush1.bf16.msra.mxu0 0
  %9874 = vmatprep.subr.bf16.mxu0 0
  %9875 = vmatpush1.bf16.msra.mxu0 0
  %9876 = vmatprep.subr.bf16.mxu0 0
  %9877 = vmatpush1.bf16.msra.mxu0 0
  %9878 = vmatprep.subr.bf16.mxu0 0
  %9879 = vmatpush1.bf16.msra.mxu0 0
  %9880 = vmatprep.subr.bf16.mxu0 0
  %9881 = vmatpush1.bf16.msra.mxu0 0
  %9882 = vmatprep.subr.bf16.mxu0 0
  %9883 = vmatpush1.bf16.msra.mxu0 0
  %9884 = vmatprep.subr.bf16.mxu0 0
  %9885 = vmatpush1.bf16.msra.mxu0 0
  %9886 = vmatprep.subr.bf16.mxu0 0
  %9887 = vmatpush1.bf16.msra.mxu0 0
  %9888 = vmatprep.mubr.bf16.mxu0 0
  %9889 = vmatmul.mubr.bf16.gmra.mrb[0].mxu0 %v7927
  %v9890 = vpop.f32.mrb[0].mxu0
  %v9891 = vadd.f32 %v9850, %v9890
  %v9892 = vpop.f32.mrb[0].mxu0
  %v9893 = vadd.f32 %v9852, %v9892
  %v9894 = vpop.f32.mrb[0].mxu0
  %v9895 = vpop.f32.mrb[0].mxu0
  %9896 = vdwg.mxu0
  %v9897 = vmax.f32 %v8169, 0.0
  %v9898 = vmax.f32 %v8171, 0.0
  %v9899 = vmax.f32 %v8415, 0.0
  %v9900 = vmax.f32 %v8417, 0.0
  %v9901 = vmax.f32 %v8661, 0.0
  %v9902 = vmax.f32 %v8663, 0.0
  %v9903 = vmax.f32 %v8907, 0.0
  %v9904 = vmax.f32 %v8909, 0.0
  %v9905 = vmax.f32 %v9153, 0.0
  %v9906 = vmax.f32 %v9155, 0.0
  %v9907 = vmax.f32 %v9399, 0.0
  %v9908 = vmax.f32 %v9401, 0.0
  %v9909 = vmax.f32 %v9645, 0.0
  %v9910 = vmax.f32 %v9647, 0.0
  %v9911 = vmax.f32 %v9891, 0.0
  %v9912 = vmax.f32 %v9893, 0.0
  %v9913 = vpack.c.bf16 %v9897, %v9897
  %v9914 = vpack.c.bf16 %v9898, %v9898
  %v9915 = vpack.c.bf16 %v9899, %v9899
  %v9916 = vpack.c.bf16 %v9900, %v9900
  %v9917 = vpack.c.bf16 %v9901, %v9901
  %v9918 = vpack.c.bf16 %v9902, %v9902
  %v9919 = vpack.c.bf16 %v9903, %v9903
  %v9920 = vpack.c.bf16 %v9904, %v9904
  %v9921 = vpack.c.bf16 %v9905, %v9905
  %v9922 = vpack.c.bf16 %v9906, %v9906
  %v9923 = vpack.c.bf16 %v9907, %v9907
  %v9924 = vpack.c.bf16 %v9908, %v9908
  %v9925 = vpack.c.bf16 %v9909, %v9909
  %v9926 = vpack.c.bf16 %v9910, %v9910
  %v9927 = vpack.c.bf16 %v9911, %v9911
  %v9928 = vpack.c.bf16 %v9912, %v9912
  %v9929 = vld [vmem:[%s3] sm:$0xf]
  %v9930 = vld [vmem:[%s3 + $0x4] sm:$0xf]
  %v9931 = vld [vmem:[%s3 + $0x8] sm:$0xf]
  %v9932 = vld [vmem:[%s3 + $0xc] sm:$0xf]
  %v9933 = vld [vmem:[%s3 + $0x10] sm:$0xf]
  %v9934 = vld [vmem:[%s3 + $0x14] sm:$0xf]
  %v9935 = vld [vmem:[%s3 + $0x18] sm:$0xf]
  %v9936 = vld [vmem:[%s3 + $0x1c] sm:$0xf]
  %v9937 = vld [vmem:[%s3 + $0x20] sm:$0xf]
  %v9938 = vld [vmem:[%s3 + $0x24] sm:$0xf]
  %v9939 = vld [vmem:[%s3 + $0x28] sm:$0xf]
  %v9940 = vld [vmem:[%s3 + $0x2c] sm:$0xf]
  %v9941 = vld [vmem:[%s3 + $0x30] sm:$0xf]
  %v9942 = vld [vmem:[%s3 + $0x34] sm:$0xf]
  %v9943 = vld [vmem:[%s3 + $0x38] sm:$0xf]
  %v9944 = vld [vmem:[%s3 + $0x3c] sm:$0xf]
  %v9945 = vld [vmem:[%s3 + $0x40] sm:$0xf]
  %v9946 = vld [vmem:[%s3 + $0x44] sm:$0xf]
  %v9947 = vld [vmem:[%s3 + $0x48] sm:$0xf]
  %v9948 = vld [vmem:[%s3 + $0x4c] sm:$0xf]
  %v9949 = vld [vmem:[%s3 + $0x50] sm:$0xf]
  %v9950 = vld [vmem:[%s3 + $0x54] sm:$0xf]
  %v9951 = vld [vmem:[%s3 + $0x58] sm:$0xf]
  %v9952 = vld [vmem:[%s3 + $0x5c] sm:$0xf]
  %v9953 = vld [vmem:[%s3 + $0x60] sm:$0xf]
  %v9954 = vld [vmem:[%s3 + $0x64] sm:$0xf]
  %v9955 = vld [vmem:[%s3 + $0x68] sm:$0xf]
  %v9956 = vld [vmem:[%s3 + $0x6c] sm:$0xf]
  %v9957 = vld [vmem:[%s3 + $0x70] sm:$0xf]
  %v9958 = vld [vmem:[%s3 + $0x74] sm:$0xf]
  %v9959 = vld [vmem:[%s3 + $0x78] sm:$0xf]
  %v9960 = vld [vmem:[%s3 + $0x7c] sm:$0xf]
  %v9961 = vld [vmem:[%s3 + $0x80] sm:$0xf]
  %v9962 = vld [vmem:[%s3 + $0x84] sm:$0xf]
  %v9963 = vld [vmem:[%s3 + $0x88] sm:$0xf]
  %v9964 = vld [vmem:[%s3 + $0x8c] sm:$0xf]
  %v9965 = vld [vmem:[%s3 + $0x90] sm:$0xf]
  %v9966 = vld [vmem:[%s3 + $0x94] sm:$0xf]
  %v9967 = vld [vmem:[%s3 + $0x98] sm:$0xf]
  %v9968 = vld [vmem:[%s3 + $0x9c] sm:$0xf]
  %v9969 = vld [vmem:[%s3 + $0xa0] sm:$0xf]
  %v9970 = vld [vmem:[%s3 + $0xa4] sm:$0xf]
  %v9971 = vld [vmem:[%s3 + $0xa8] sm:$0xf]
  %v9972 = vld [vmem:[%s3 + $0xac] sm:$0xf]
  %v9973 = vld [vmem:[%s3 + $0xb0] sm:$0xf]
  %v9974 = vld [vmem:[%s3 + $0xb4] sm:$0xf]
  %v9975 = vld [vmem:[%s3 + $0xb8] sm:$0xf]
  %v9976 = vld [vmem:[%s3 + $0xbc] sm:$0xf]
  %v9977 = vld [vmem:[%s3 + $0xc0] sm:$0xf]
  %v9978 = vld [vmem:[%s3 + $0xc4] sm:$0xf]
  %v9979 = vld [vmem:[%s3 + $0xc8] sm:$0xf]
  %v9980 = vld [vmem:[%s3 + $0xcc] sm:$0xf]
  %v9981 = vld [vmem:[%s3 + $0xd0] sm:$0xf]
  %v9982 = vld [vmem:[%s3 + $0xd4] sm:$0xf]
  %v9983 = vld [vmem:[%s3 + $0xd8] sm:$0xf]
  %v9984 = vld [vmem:[%s3 + $0xdc] sm:$0xf]
  %v9985 = vld [vmem:[%s3 + $0xe0] sm:$0xf]
  %v9986 = vld [vmem:[%s3 + $0xe4] sm:$0xf]
  %v9987 = vld [vmem:[%s3 + $0xe8] sm:$0xf]
  %v9988 = vld [vmem:[%s3 + $0xec] sm:$0xf]
  %v9989 = vld [vmem:[%s3 + $0xf0] sm:$0xf]
  %v9990 = vld [vmem:[%s3 + $0xf4] sm:$0xf]
  %v9991 = vld [vmem:[%s3 + $0xf8] sm:$0xf]
  %v9992 = vld [vmem:[%s3 + $0xfc] sm:$0xf]
  %v9993 = vld [vmem:[%s3 + $0x100] sm:$0xf]
  %v9994 = vld [vmem:[%s3 + $0x104] sm:$0xf]
  %v9995 = vld [vmem:[%s3 + $0x108] sm:$0xf]
  %v9996 = vld [vmem:[%s3 + $0x10c] sm:$0xf]
  %v9997 = vld [vmem:[%s3 + $0x110] sm:$0xf]
  %v9998 = vld [vmem:[%s3 + $0x114] sm:$0xf]
  %v9999 = vld [vmem:[%s3 + $0x118] sm:$0xf]
  %v10000 = vld [vmem:[%s3 + $0x11c] sm:$0xf]
  %v10001 = vld [vmem:[%s3 + $0x120] sm:$0xf]
  %v10002 = vld [vmem:[%s3 + $0x124] sm:$0xf]
  %v10003 = vld [vmem:[%s3 + $0x128] sm:$0xf]
  %v10004 = vld [vmem:[%s3 + $0x12c] sm:$0xf]
  %v10005 = vld [vmem:[%s3 + $0x130] sm:$0xf]
  %v10006 = vld [vmem:[%s3 + $0x134] sm:$0xf]
  %v10007 = vld [vmem:[%s3 + $0x138] sm:$0xf]
  %v10008 = vld [vmem:[%s3 + $0x13c] sm:$0xf]
  %v10009 = vld [vmem:[%s3 + $0x140] sm:$0xf]
  %v10010 = vld [vmem:[%s3 + $0x144] sm:$0xf]
  %v10011 = vld [vmem:[%s3 + $0x148] sm:$0xf]
  %v10012 = vld [vmem:[%s3 + $0x14c] sm:$0xf]
  %v10013 = vld [vmem:[%s3 + $0x150] sm:$0xf]
  %v10014 = vld [vmem:[%s3 + $0x154] sm:$0xf]
  %v10015 = vld [vmem:[%s3 + $0x158] sm:$0xf]
  %v10016 = vld [vmem:[%s3 + $0x15c] sm:$0xf]
  %v10017 = vld [vmem:[%s3 + $0x160] sm:$0xf]
  %v10018 = vld [vmem:[%s3 + $0x164] sm:$0xf]
  %v10019 = vld [vmem:[%s3 + $0x168] sm:$0xf]
  %v10020 = vld [vmem:[%s3 + $0x16c] sm:$0xf]
  %v10021 = vld [vmem:[%s3 + $0x170] sm:$0xf]
  %v10022 = vld [vmem:[%s3 + $0x174] sm:$0xf]
  %v10023 = vld [vmem:[%s3 + $0x178] sm:$0xf]
  %v10024 = vld [vmem:[%s3 + $0x17c] sm:$0xf]
  %v10025 = vld [vmem:[%s3 + $0x180] sm:$0xf]
  %v10026 = vld [vmem:[%s3 + $0x184] sm:$0xf]
  %v10027 = vld [vmem:[%s3 + $0x188] sm:$0xf]
  %v10028 = vld [vmem:[%s3 + $0x18c] sm:$0xf]
  %v10029 = vld [vmem:[%s3 + $0x190] sm:$0xf]
  %v10030 = vld [vmem:[%s3 + $0x194] sm:$0xf]
  %v10031 = vld [vmem:[%s3 + $0x198] sm:$0xf]
  %v10032 = vld [vmem:[%s3 + $0x19c] sm:$0xf]
  %v10033 = vld [vmem:[%s3 + $0x1a0] sm:$0xf]
  %v10034 = vld [vmem:[%s3 + $0x1a4] sm:$0xf]
  %v10035 = vld [vmem:[%s3 + $0x1a8] sm:$0xf]
  %v10036 = vld [vmem:[%s3 + $0x1ac] sm:$0xf]
  %v10037 = vld [vmem:[%s3 + $0x1b0] sm:$0xf]
  %v10038 = vld [vmem:[%s3 + $0x1b4] sm:$0xf]
  %v10039 = vld [vmem:[%s3 + $0x1b8] sm:$0xf]
  %v10040 = vld [vmem:[%s3 + $0x1bc] sm:$0xf]
  %v10041 = vld [vmem:[%s3 + $0x1c0] sm:$0xf]
  %v10042 = vld [vmem:[%s3 + $0x1c4] sm:$0xf]
  %v10043 = vld [vmem:[%s3 + $0x1c8] sm:$0xf]
  %v10044 = vld [vmem:[%s3 + $0x1cc] sm:$0xf]
  %v10045 = vld [vmem:[%s3 + $0x1d0] sm:$0xf]
  %v10046 = vld [vmem:[%s3 + $0x1d4] sm:$0xf]
  %v10047 = vld [vmem:[%s3 + $0x1d8] sm:$0xf]
  %v10048 = vld [vmem:[%s3 + $0x1dc] sm:$0xf]
  %v10049 = vld [vmem:[%s3 + $0x1e0] sm:$0xf]
  %v10050 = vld [vmem:[%s3 + $0x1e4] sm:$0xf]
  %v10051 = vld [vmem:[%s3 + $0x1e8] sm:$0xf]
  %v10052 = vld [vmem:[%s3 + $0x1ec] sm:$0xf]
  %v10053 = vld [vmem:[%s3 + $0x1f0] sm:$0xf]
  %v10054 = vld [vmem:[%s3 + $0x1f4] sm:$0xf]
  %v10055 = vld [vmem:[%s3 + $0x1f8] sm:$0xf]
  %v10056 = vld [vmem:[%s3 + $0x1fc] sm:$0xf]
  %v10057 = vld [vmem:[%s3 + $0x200] sm:$0xf]
  %v10058 = vld [vmem:[%s3 + $0x204] sm:$0xf]
  %v10059 = vld [vmem:[%s3 + $0x208] sm:$0xf]
  %v10060 = vld [vmem:[%s3 + $0x20c] sm:$0xf]
  %v10061 = vld [vmem:[%s3 + $0x210] sm:$0xf]
  %v10062 = vld [vmem:[%s3 + $0x214] sm:$0xf]
  %v10063 = vld [vmem:[%s3 + $0x218] sm:$0xf]
  %v10064 = vld [vmem:[%s3 + $0x21c] sm:$0xf]
  %v10065 = vld [vmem:[%s3 + $0x220] sm:$0xf]
  %v10066 = vld [vmem:[%s3 + $0x224] sm:$0xf]
  %v10067 = vld [vmem:[%s3 + $0x228] sm:$0xf]
  %v10068 = vld [vmem:[%s3 + $0x22c] sm:$0xf]
  %v10069 = vld [vmem:[%s3 + $0x230] sm:$0xf]
  %v10070 = vld [vmem:[%s3 + $0x234] sm:$0xf]
  %v10071 = vld [vmem:[%s3 + $0x238] sm:$0xf]
  %v10072 = vld [vmem:[%s3 + $0x23c] sm:$0xf]
  %v10073 = vld [vmem:[%s3 + $0x240] sm:$0xf]
  %v10074 = vld [vmem:[%s3 + $0x244] sm:$0xf]
  %v10075 = vld [vmem:[%s3 + $0x248] sm:$0xf]
  %v10076 = vld [vmem:[%s3 + $0x24c] sm:$0xf]
  %v10077 = vld [vmem:[%s3 + $0x250] sm:$0xf]
  %v10078 = vld [vmem:[%s3 + $0x254] sm:$0xf]
  %v10079 = vld [vmem:[%s3 + $0x258] sm:$0xf]
  %v10080 = vld [vmem:[%s3 + $0x25c] sm:$0xf]
  %v10081 = vld [vmem:[%s3 + $0x260] sm:$0xf]
  %v10082 = vld [vmem:[%s3 + $0x264] sm:$0xf]
  %v10083 = vld [vmem:[%s3 + $0x268] sm:$0xf]
  %v10084 = vld [vmem:[%s3 + $0x26c] sm:$0xf]
  %v10085 = vld [vmem:[%s3 + $0x270] sm:$0xf]
  %v10086 = vld [vmem:[%s3 + $0x274] sm:$0xf]
  %v10087 = vld [vmem:[%s3 + $0x278] sm:$0xf]
  %v10088 = vld [vmem:[%s3 + $0x27c] sm:$0xf]
  %v10089 = vld [vmem:[%s3 + $0x280] sm:$0xf]
  %v10090 = vld [vmem:[%s3 + $0x284] sm:$0xf]
  %v10091 = vld [vmem:[%s3 + $0x288] sm:$0xf]
  %v10092 = vld [vmem:[%s3 + $0x28c] sm:$0xf]
  %v10093 = vld [vmem:[%s3 + $0x290] sm:$0xf]
  %v10094 = vld [vmem:[%s3 + $0x294] sm:$0xf]
  %v10095 = vld [vmem:[%s3 + $0x298] sm:$0xf]
  %v10096 = vld [vmem:[%s3 + $0x29c] sm:$0xf]
  %v10097 = vld [vmem:[%s3 + $0x2a0] sm:$0xf]
  %v10098 = vld [vmem:[%s3 + $0x2a4] sm:$0xf]
  %v10099 = vld [vmem:[%s3 + $0x2a8] sm:$0xf]
  %v10100 = vld [vmem:[%s3 + $0x2ac] sm:$0xf]
  %v10101 = vld [vmem:[%s3 + $0x2b0] sm:$0xf]
  %v10102 = vld [vmem:[%s3 + $0x2b4] sm:$0xf]
  %v10103 = vld [vmem:[%s3 + $0x2b8] sm:$0xf]
  %v10104 = vld [vmem:[%s3 + $0x2bc] sm:$0xf]
  %v10105 = vld [vmem:[%s3 + $0x2c0] sm:$0xf]
  %v10106 = vld [vmem:[%s3 + $0x2c4] sm:$0xf]
  %v10107 = vld [vmem:[%s3 + $0x2c8] sm:$0xf]
  %v10108 = vld [vmem:[%s3 + $0x2cc] sm:$0xf]
  %v10109 = vld [vmem:[%s3 + $0x2d0] sm:$0xf]
  %v10110 = vld [vmem:[%s3 + $0x2d4] sm:$0xf]
  %v10111 = vld [vmem:[%s3 + $0x2d8] sm:$0xf]
  %v10112 = vld [vmem:[%s3 + $0x2dc] sm:$0xf]
  %v10113 = vld [vmem:[%s3 + $0x2e0] sm:$0xf]
  %v10114 = vld [vmem:[%s3 + $0x2e4] sm:$0xf]
  %v10115 = vld [vmem:[%s3 + $0x2e8] sm:$0xf]
  %v10116 = vld [vmem:[%s3 + $0x2ec] sm:$0xf]
  %v10117 = vld [vmem:[%s3 + $0x2f0] sm:$0xf]
  %v10118 = vld [vmem:[%s3 + $0x2f4] sm:$0xf]
  %v10119 = vld [vmem:[%s3 + $0x2f8] sm:$0xf]
  %v10120 = vld [vmem:[%s3 + $0x2fc] sm:$0xf]
  %v10121 = vld [vmem:[%s3 + $0x300] sm:$0xf]
  %v10122 = vld [vmem:[%s3 + $0x304] sm:$0xf]
  %v10123 = vld [vmem:[%s3 + $0x308] sm:$0xf]
  %v10124 = vld [vmem:[%s3 + $0x30c] sm:$0xf]
  %v10125 = vld [vmem:[%s3 + $0x310] sm:$0xf]
  %v10126 = vld [vmem:[%s3 + $0x314] sm:$0xf]
  %v10127 = vld [vmem:[%s3 + $0x318] sm:$0xf]
  %v10128 = vld [vmem:[%s3 + $0x31c] sm:$0xf]
  %v10129 = vld [vmem:[%s3 + $0x320] sm:$0xf]
  %v10130 = vld [vmem:[%s3 + $0x324] sm:$0xf]
  %v10131 = vld [vmem:[%s3 + $0x328] sm:$0xf]
  %v10132 = vld [vmem:[%s3 + $0x32c] sm:$0xf]
  %v10133 = vld [vmem:[%s3 + $0x330] sm:$0xf]
  %v10134 = vld [vmem:[%s3 + $0x334] sm:$0xf]
  %v10135 = vld [vmem:[%s3 + $0x338] sm:$0xf]
  %v10136 = vld [vmem:[%s3 + $0x33c] sm:$0xf]
  %v10137 = vld [vmem:[%s3 + $0x340] sm:$0xf]
  %v10138 = vld [vmem:[%s3 + $0x344] sm:$0xf]
  %v10139 = vld [vmem:[%s3 + $0x348] sm:$0xf]
  %v10140 = vld [vmem:[%s3 + $0x34c] sm:$0xf]
  %v10141 = vld [vmem:[%s3 + $0x350] sm:$0xf]
  %v10142 = vld [vmem:[%s3 + $0x354] sm:$0xf]
  %v10143 = vld [vmem:[%s3 + $0x358] sm:$0xf]
  %v10144 = vld [vmem:[%s3 + $0x35c] sm:$0xf]
  %v10145 = vld [vmem:[%s3 + $0x360] sm:$0xf]
  %v10146 = vld [vmem:[%s3 + $0x364] sm:$0xf]
  %v10147 = vld [vmem:[%s3 + $0x368] sm:$0xf]
  %v10148 = vld [vmem:[%s3 + $0x36c] sm:$0xf]
  %v10149 = vld [vmem:[%s3 + $0x370] sm:$0xf]
  %v10150 = vld [vmem:[%s3 + $0x374] sm:$0xf]
  %v10151 = vld [vmem:[%s3 + $0x378] sm:$0xf]
  %v10152 = vld [vmem:[%s3 + $0x37c] sm:$0xf]
  %v10153 = vld [vmem:[%s3 + $0x380] sm:$0xf]
  %v10154 = vld [vmem:[%s3 + $0x384] sm:$0xf]
  %v10155 = vld [vmem:[%s3 + $0x388] sm:$0xf]
  %v10156 = vld [vmem:[%s3 + $0x38c] sm:$0xf]
  %v10157 = vld [vmem:[%s3 + $0x390] sm:$0xf]
  %v10158 = vld [vmem:[%s3 + $0x394] sm:$0xf]
  %v10159 = vld [vmem:[%s3 + $0x398] sm:$0xf]
  %v10160 = vld [vmem:[%s3 + $0x39c] sm:$0xf]
  %v10161 = vld [vmem:[%s3 + $0x3a0] sm:$0xf]
  %v10162 = vld [vmem:[%s3 + $0x3a4] sm:$0xf]
  %v10163 = vld [vmem:[%s3 + $0x3a8] sm:$0xf]
  %v10164 = vld [vmem:[%s3 + $0x3ac] sm:$0xf]
  %v10165 = vld [vmem:[%s3 + $0x3b0] sm:$0xf]
  %v10166 = vld [vmem:[%s3 + $0x3b4] sm:$0xf]
  %v10167 = vld [vmem:[%s3 + $0x3b8] sm:$0xf]
  %v10168 = vld [vmem:[%s3 + $0x3bc] sm:$0xf]
  %v10169 = vld [vmem:[%s3 + $0x3c0] sm:$0xf]
  %v10170 = vld [vmem:[%s3 + $0x3c4] sm:$0xf]
  %v10171 = vld [vmem:[%s3 + $0x3c8] sm:$0xf]
  %v10172 = vld [vmem:[%s3 + $0x3cc] sm:$0xf]
  %v10173 = vld [vmem:[%s3 + $0x3d0] sm:$0xf]
  %v10174 = vld [vmem:[%s3 + $0x3d4] sm:$0xf]
  %v10175 = vld [vmem:[%s3 + $0x3d8] sm:$0xf]
  %v10176 = vld [vmem:[%s3 + $0x3dc] sm:$0xf]
  %v10177 = vld [vmem:[%s3 + $0x3e0] sm:$0xf]
  %v10178 = vld [vmem:[%s3 + $0x3e4] sm:$0xf]
  %v10179 = vld [vmem:[%s3 + $0x3e8] sm:$0xf]
  %v10180 = vld [vmem:[%s3 + $0x3ec] sm:$0xf]
  %v10181 = vld [vmem:[%s3 + $0x3f0] sm:$0xf]
  %v10182 = vld [vmem:[%s3 + $0x3f4] sm:$0xf]
  %v10183 = vld [vmem:[%s3 + $0x3f8] sm:$0xf]
  %v10184 = vld [vmem:[%s3 + $0x3fc] sm:$0xf]
  %v10185 = vld [vmem:[%s4] sm:$0x1]
  %v10187 = vlaneseq
  %v10188 = vshrl.u32 %v10187, 7
  %v10189 = vsub.s32 0, %v10188
  %v10190 = vrot.slane %v10185, %v10189
  %v10448 = vunpack.c.l.b16 %v9929
  %v10449 = vunpack.c.l.b16 %v9930
  %v10450 = vunpack.c.l.b16 %v9931
  %v10451 = vunpack.c.l.b16 %v9932
  %v10452 = vunpack.c.l.b16 %v9933
  %v10453 = vunpack.c.l.b16 %v9934
  %v10454 = vunpack.c.l.b16 %v9935
  %v10455 = vunpack.c.l.b16 %v9936
  %v10456 = vunpack.c.l.b16 %v9937
  %v10457 = vunpack.c.l.b16 %v9938
  %v10458 = vunpack.c.l.b16 %v9939
  %v10459 = vunpack.c.l.b16 %v9940
  %v10460 = vunpack.c.l.b16 %v9941
  %v10461 = vunpack.c.l.b16 %v9942
  %v10462 = vunpack.c.l.b16 %v9943
  %v10463 = vunpack.c.l.b16 %v9944
  %v10464 = vunpack.c.l.b16 %v9945
  %v10465 = vunpack.c.l.b16 %v9946
  %v10466 = vunpack.c.l.b16 %v9947
  %v10467 = vunpack.c.l.b16 %v9948
  %v10468 = vunpack.c.l.b16 %v9949
  %v10469 = vunpack.c.l.b16 %v9950
  %v10470 = vunpack.c.l.b16 %v9951
  %v10471 = vunpack.c.l.b16 %v9952
  %v10472 = vunpack.c.l.b16 %v9953
  %v10473 = vunpack.c.l.b16 %v9954
  %v10474 = vunpack.c.l.b16 %v9955
  %v10475 = vunpack.c.l.b16 %v9956
  %v10476 = vunpack.c.l.b16 %v9957
  %v10477 = vunpack.c.l.b16 %v9958
  %v10478 = vunpack.c.l.b16 %v9959
  %v10479 = vunpack.c.l.b16 %v9960
  %v10480 = vunpack.c.l.b16 %v9961
  %v10481 = vunpack.c.l.b16 %v9962
  %v10482 = vunpack.c.l.b16 %v9963
  %v10483 = vunpack.c.l.b16 %v9964
  %v10484 = vunpack.c.l.b16 %v9965
  %v10485 = vunpack.c.l.b16 %v9966
  %v10486 = vunpack.c.l.b16 %v9967
  %v10487 = vunpack.c.l.b16 %v9968
  %v10488 = vunpack.c.l.b16 %v9969
  %v10489 = vunpack.c.l.b16 %v9970
  %v10490 = vunpack.c.l.b16 %v9971
  %v10491 = vunpack.c.l.b16 %v9972
  %v10492 = vunpack.c.l.b16 %v9973
  %v10493 = vunpack.c.l.b16 %v9974
  %v10494 = vunpack.c.l.b16 %v9975
  %v10495 = vunpack.c.l.b16 %v9976
  %v10496 = vunpack.c.l.b16 %v9977
  %v10497 = vunpack.c.l.b16 %v9978
  %v10498 = vunpack.c.l.b16 %v9979
  %v10499 = vunpack.c.l.b16 %v9980
  %v10500 = vunpack.c.l.b16 %v9981
  %v10501 = vunpack.c.l.b16 %v9982
  %v10502 = vunpack.c.l.b16 %v9983
  %v10503 = vunpack.c.l.b16 %v9984
  %v10504 = vunpack.c.l.b16 %v9985
  %v10505 = vunpack.c.l.b16 %v9986
  %v10506 = vunpack.c.l.b16 %v9987
  %v10507 = vunpack.c.l.b16 %v9988
  %v10508 = vunpack.c.l.b16 %v9989
  %v10509 = vunpack.c.l.b16 %v9990
  %v10510 = vunpack.c.l.b16 %v9991
  %v10511 = vunpack.c.l.b16 %v9992
  %v10512 = vunpack.c.l.b16 %v9993
  %v10513 = vunpack.c.l.b16 %v9994
  %v10514 = vunpack.c.l.b16 %v9995
  %v10515 = vunpack.c.l.b16 %v9996
  %v10516 = vunpack.c.l.b16 %v9997
  %v10517 = vunpack.c.l.b16 %v9998
  %v10518 = vunpack.c.l.b16 %v9999
  %v10519 = vunpack.c.l.b16 %v10000
  %v10520 = vunpack.c.l.b16 %v10001
  %v10521 = vunpack.c.l.b16 %v10002
  %v10522 = vunpack.c.l.b16 %v10003
  %v10523 = vunpack.c.l.b16 %v10004
  %v10524 = vunpack.c.l.b16 %v10005
  %v10525 = vunpack.c.l.b16 %v10006
  %v10526 = vunpack.c.l.b16 %v10007
  %v10527 = vunpack.c.l.b16 %v10008
  %v10528 = vunpack.c.l.b16 %v10009
  %v10529 = vunpack.c.l.b16 %v10010
  %v10530 = vunpack.c.l.b16 %v10011
  %v10531 = vunpack.c.l.b16 %v10012
  %v10532 = vunpack.c.l.b16 %v10013
  %v10533 = vunpack.c.l.b16 %v10014
  %v10534 = vunpack.c.l.b16 %v10015
  %v10535 = vunpack.c.l.b16 %v10016
  %v10536 = vunpack.c.l.b16 %v10017
  %v10537 = vunpack.c.l.b16 %v10018
  %v10538 = vunpack.c.l.b16 %v10019
  %v10539 = vunpack.c.l.b16 %v10020
  %v10540 = vunpack.c.l.b16 %v10021
  %v10541 = vunpack.c.l.b16 %v10022
  %v10542 = vunpack.c.l.b16 %v10023
  %v10543 = vunpack.c.l.b16 %v10024
  %v10544 = vunpack.c.l.b16 %v10025
  %v10545 = vunpack.c.l.b16 %v10026
  %v10546 = vunpack.c.l.b16 %v10027
  %v10547 = vunpack.c.l.b16 %v10028
  %v10548 = vunpack.c.l.b16 %v10029
  %v10549 = vunpack.c.l.b16 %v10030
  %v10550 = vunpack.c.l.b16 %v10031
  %v10551 = vunpack.c.l.b16 %v10032
  %v10552 = vunpack.c.l.b16 %v10033
  %v10553 = vunpack.c.l.b16 %v10034
  %v10554 = vunpack.c.l.b16 %v10035
  %v10555 = vunpack.c.l.b16 %v10036
  %v10556 = vunpack.c.l.b16 %v10037
  %v10557 = vunpack.c.l.b16 %v10038
  %v10558 = vunpack.c.l.b16 %v10039
  %v10559 = vunpack.c.l.b16 %v10040
  %v10560 = vunpack.c.l.b16 %v10041
  %v10561 = vunpack.c.l.b16 %v10042
  %v10562 = vunpack.c.l.b16 %v10043
  %v10563 = vunpack.c.l.b16 %v10044
  %v10564 = vunpack.c.l.b16 %v10045
  %v10565 = vunpack.c.l.b16 %v10046
  %v10566 = vunpack.c.l.b16 %v10047
  %v10567 = vunpack.c.l.b16 %v10048
  %v10568 = vunpack.c.l.b16 %v10049
  %v10569 = vunpack.c.l.b16 %v10050
  %v10570 = vunpack.c.l.b16 %v10051
  %v10571 = vunpack.c.l.b16 %v10052
  %v10572 = vunpack.c.l.b16 %v10053
  %v10573 = vunpack.c.l.b16 %v10054
  %v10574 = vunpack.c.l.b16 %v10055
  %v10575 = vunpack.c.l.b16 %v10056
  %v10576 = vunpack.c.l.b16 %v10057
  %v10577 = vunpack.c.l.b16 %v10058
  %v10578 = vunpack.c.l.b16 %v10059
  %v10579 = vunpack.c.l.b16 %v10060
  %v10580 = vunpack.c.l.b16 %v10061
  %v10581 = vunpack.c.l.b16 %v10062
  %v10582 = vunpack.c.l.b16 %v10063
  %v10583 = vunpack.c.l.b16 %v10064
  %v10584 = vunpack.c.l.b16 %v10065
  %v10585 = vunpack.c.l.b16 %v10066
  %v10586 = vunpack.c.l.b16 %v10067
  %v10587 = vunpack.c.l.b16 %v10068
  %v10588 = vunpack.c.l.b16 %v10069
  %v10589 = vunpack.c.l.b16 %v10070
  %v10590 = vunpack.c.l.b16 %v10071
  %v10591 = vunpack.c.l.b16 %v10072
  %v10592 = vunpack.c.l.b16 %v10073
  %v10593 = vunpack.c.l.b16 %v10074
  %v10594 = vunpack.c.l.b16 %v10075
  %v10595 = vunpack.c.l.b16 %v10076
  %v10596 = vunpack.c.l.b16 %v10077
  %v10597 = vunpack.c.l.b16 %v10078
  %v10598 = vunpack.c.l.b16 %v10079
  %v10599 = vunpack.c.l.b16 %v10080
  %v10600 = vunpack.c.l.b16 %v10081
  %v10601 = vunpack.c.l.b16 %v10082
  %v10602 = vunpack.c.l.b16 %v10083
  %v10603 = vunpack.c.l.b16 %v10084
  %v10604 = vunpack.c.l.b16 %v10085
  %v10605 = vunpack.c.l.b16 %v10086
  %v10606 = vunpack.c.l.b16 %v10087
  %v10607 = vunpack.c.l.b16 %v10088
  %v10608 = vunpack.c.l.b16 %v10089
  %v10609 = vunpack.c.l.b16 %v10090
  %v10610 = vunpack.c.l.b16 %v10091
  %v10611 = vunpack.c.l.b16 %v10092
  %v10612 = vunpack.c.l.b16 %v10093
  %v10613 = vunpack.c.l.b16 %v10094
  %v10614 = vunpack.c.l.b16 %v10095
  %v10615 = vunpack.c.l.b16 %v10096
  %v10616 = vunpack.c.l.b16 %v10097
  %v10617 = vunpack.c.l.b16 %v10098
  %v10618 = vunpack.c.l.b16 %v10099
  %v10619 = vunpack.c.l.b16 %v10100
  %v10620 = vunpack.c.l.b16 %v10101
  %v10621 = vunpack.c.l.b16 %v10102
  %v10622 = vunpack.c.l.b16 %v10103
  %v10623 = vunpack.c.l.b16 %v10104
  %v10624 = vunpack.c.l.b16 %v10105
  %v10625 = vunpack.c.l.b16 %v10106
  %v10626 = vunpack.c.l.b16 %v10107
  %v10627 = vunpack.c.l.b16 %v10108
  %v10628 = vunpack.c.l.b16 %v10109
  %v10629 = vunpack.c.l.b16 %v10110
  %v10630 = vunpack.c.l.b16 %v10111
  %v10631 = vunpack.c.l.b16 %v10112
  %v10632 = vunpack.c.l.b16 %v10113
  %v10633 = vunpack.c.l.b16 %v10114
  %v10634 = vunpack.c.l.b16 %v10115
  %v10635 = vunpack.c.l.b16 %v10116
  %v10636 = vunpack.c.l.b16 %v10117
  %v10637 = vunpack.c.l.b16 %v10118
  %v10638 = vunpack.c.l.b16 %v10119
  %v10639 = vunpack.c.l.b16 %v10120
  %v10640 = vunpack.c.l.b16 %v10121
  %v10641 = vunpack.c.l.b16 %v10122
  %v10642 = vunpack.c.l.b16 %v10123
  %v10643 = vunpack.c.l.b16 %v10124
  %v10644 = vunpack.c.l.b16 %v10125
  %v10645 = vunpack.c.l.b16 %v10126
  %v10646 = vunpack.c.l.b16 %v10127
  %v10647 = vunpack.c.l.b16 %v10128
  %v10648 = vunpack.c.l.b16 %v10129
  %v10649 = vunpack.c.l.b16 %v10130
  %v10650 = vunpack.c.l.b16 %v10131
  %v10651 = vunpack.c.l.b16 %v10132
  %v10652 = vunpack.c.l.b16 %v10133
  %v10653 = vunpack.c.l.b16 %v10134
  %v10654 = vunpack.c.l.b16 %v10135
  %v10655 = vunpack.c.l.b16 %v10136
  %v10656 = vunpack.c.l.b16 %v10137
  %v10657 = vunpack.c.l.b16 %v10138
  %v10658 = vunpack.c.l.b16 %v10139
  %v10659 = vunpack.c.l.b16 %v10140
  %v10660 = vunpack.c.l.b16 %v10141
  %v10661 = vunpack.c.l.b16 %v10142
  %v10662 = vunpack.c.l.b16 %v10143
  %v10663 = vunpack.c.l.b16 %v10144
  %v10664 = vunpack.c.l.b16 %v10145
  %v10665 = vunpack.c.l.b16 %v10146
  %v10666 = vunpack.c.l.b16 %v10147
  %v10667 = vunpack.c.l.b16 %v10148
  %v10668 = vunpack.c.l.b16 %v10149
  %v10669 = vunpack.c.l.b16 %v10150
  %v10670 = vunpack.c.l.b16 %v10151
  %v10671 = vunpack.c.l.b16 %v10152
  %v10672 = vunpack.c.l.b16 %v10153
  %v10673 = vunpack.c.l.b16 %v10154
  %v10674 = vunpack.c.l.b16 %v10155
  %v10675 = vunpack.c.l.b16 %v10156
  %v10676 = vunpack.c.l.b16 %v10157
  %v10677 = vunpack.c.l.b16 %v10158
  %v10678 = vunpack.c.l.b16 %v10159
  %v10679 = vunpack.c.l.b16 %v10160
  %v10680 = vunpack.c.l.b16 %v10161
  %v10681 = vunpack.c.l.b16 %v10162
  %v10682 = vunpack.c.l.b16 %v10163
  %v10683 = vunpack.c.l.b16 %v10164
  %v10684 = vunpack.c.l.b16 %v10165
  %v10685 = vunpack.c.l.b16 %v10166
  %v10686 = vunpack.c.l.b16 %v10167
  %v10687 = vunpack.c.l.b16 %v10168
  %v10688 = vunpack.c.l.b16 %v10169
  %v10689 = vunpack.c.l.b16 %v10170
  %v10690 = vunpack.c.l.b16 %v10171
  %v10691 = vunpack.c.l.b16 %v10172
  %v10692 = vunpack.c.l.b16 %v10173
  %v10693 = vunpack.c.l.b16 %v10174
  %v10694 = vunpack.c.l.b16 %v10175
  %v10695 = vunpack.c.l.b16 %v10176
  %v10696 = vunpack.c.l.b16 %v10177
  %v10697 = vunpack.c.l.b16 %v10178
  %v10698 = vunpack.c.l.b16 %v10179
  %v10699 = vunpack.c.l.b16 %v10180
  %v10700 = vunpack.c.l.b16 %v10181
  %v10701 = vunpack.c.l.b16 %v10182
  %v10702 = vunpack.c.l.b16 %v10183
  %v10703 = vunpack.c.l.b16 %v10184
  %v10704 = vpack.c.b16 %v10449, %v10448
  %v10705 = vpack.c.b16 %v10451, %v10450
  %v10706 = vpack.c.b16 %v10453, %v10452
  %v10707 = vpack.c.b16 %v10455, %v10454
  %v10708 = vpack.c.b16 %v10457, %v10456
  %v10709 = vpack.c.b16 %v10459, %v10458
  %v10710 = vpack.c.b16 %v10461, %v10460
  %v10711 = vpack.c.b16 %v10463, %v10462
  %v10712 = vpack.c.b16 %v10465, %v10464
  %v10713 = vpack.c.b16 %v10467, %v10466
  %v10714 = vpack.c.b16 %v10469, %v10468
  %v10715 = vpack.c.b16 %v10471, %v10470
  %v10716 = vpack.c.b16 %v10473, %v10472
  %v10717 = vpack.c.b16 %v10475, %v10474
  %v10718 = vpack.c.b16 %v10477, %v10476
  %v10719 = vpack.c.b16 %v10479, %v10478
  %v10720 = vpack.c.b16 %v10481, %v10480
  %v10721 = vpack.c.b16 %v10483, %v10482
  %v10722 = vpack.c.b16 %v10485, %v10484
  %v10723 = vpack.c.b16 %v10487, %v10486
  %v10724 = vpack.c.b16 %v10489, %v10488
  %v10725 = vpack.c.b16 %v10491, %v10490
  %v10726 = vpack.c.b16 %v10493, %v10492
  %v10727 = vpack.c.b16 %v10495, %v10494
  %v10728 = vpack.c.b16 %v10497, %v10496
  %v10729 = vpack.c.b16 %v10499, %v10498
  %v10730 = vpack.c.b16 %v10501, %v10500
  %v10731 = vpack.c.b16 %v10503, %v10502
  %v10732 = vpack.c.b16 %v10505, %v10504
  %v10733 = vpack.c.b16 %v10507, %v10506
  %v10734 = vpack.c.b16 %v10509, %v10508
  %v10735 = vpack.c.b16 %v10511, %v10510
  %v10736 = vpack.c.b16 %v10513, %v10512
  %v10737 = vpack.c.b16 %v10515, %v10514
  %v10738 = vpack.c.b16 %v10517, %v10516
  %v10739 = vpack.c.b16 %v10519, %v10518
  %v10740 = vpack.c.b16 %v10521, %v10520
  %v10741 = vpack.c.b16 %v10523, %v10522
  %v10742 = vpack.c.b16 %v10525, %v10524
  %v10743 = vpack.c.b16 %v10527, %v10526
  %v10744 = vpack.c.b16 %v10529, %v10528
  %v10745 = vpack.c.b16 %v10531, %v10530
  %v10746 = vpack.c.b16 %v10533, %v10532
  %v10747 = vpack.c.b16 %v10535, %v10534
  %v10748 = vpack.c.b16 %v10537, %v10536
  %v10749 = vpack.c.b16 %v10539, %v10538
  %v10750 = vpack.c.b16 %v10541, %v10540
  %v10751 = vpack.c.b16 %v10543, %v10542
  %v10752 = vpack.c.b16 %v10545, %v10544
  %v10753 = vpack.c.b16 %v10547, %v10546
  %v10754 = vpack.c.b16 %v10549, %v10548
  %v10755 = vpack.c.b16 %v10551, %v10550
  %v10756 = vpack.c.b16 %v10553, %v10552
  %v10757 = vpack.c.b16 %v10555, %v10554
  %v10758 = vpack.c.b16 %v10557, %v10556
  %v10759 = vpack.c.b16 %v10559, %v10558
  %v10760 = vpack.c.b16 %v10561, %v10560
  %v10761 = vpack.c.b16 %v10563, %v10562
  %v10762 = vpack.c.b16 %v10565, %v10564
  %v10763 = vpack.c.b16 %v10567, %v10566
  %v10764 = vpack.c.b16 %v10569, %v10568
  %v10765 = vpack.c.b16 %v10571, %v10570
  %v10766 = vpack.c.b16 %v10573, %v10572
  %v10767 = vpack.c.b16 %v10575, %v10574
  %v10768 = vpack.c.b16 %v10577, %v10576
  %v10769 = vpack.c.b16 %v10579, %v10578
  %v10770 = vpack.c.b16 %v10581, %v10580
  %v10771 = vpack.c.b16 %v10583, %v10582
  %v10772 = vpack.c.b16 %v10585, %v10584
  %v10773 = vpack.c.b16 %v10587, %v10586
  %v10774 = vpack.c.b16 %v10589, %v10588
  %v10775 = vpack.c.b16 %v10591, %v10590
  %v10776 = vpack.c.b16 %v10593, %v10592
  %v10777 = vpack.c.b16 %v10595, %v10594
  %v10778 = vpack.c.b16 %v10597, %v10596
  %v10779 = vpack.c.b16 %v10599, %v10598
  %v10780 = vpack.c.b16 %v10601, %v10600
  %v10781 = vpack.c.b16 %v10603, %v10602
  %v10782 = vpack.c.b16 %v10605, %v10604
  %v10783 = vpack.c.b16 %v10607, %v10606
  %v10784 = vpack.c.b16 %v10609, %v10608
  %v10785 = vpack.c.b16 %v10611, %v10610
  %v10786 = vpack.c.b16 %v10613, %v10612
  %v10787 = vpack.c.b16 %v10615, %v10614
  %v10788 = vpack.c.b16 %v10617, %v10616
  %v10789 = vpack.c.b16 %v10619, %v10618
  %v10790 = vpack.c.b16 %v10621, %v10620
  %v10791 = vpack.c.b16 %v10623, %v10622
  %v10792 = vpack.c.b16 %v10625, %v10624
  %v10793 = vpack.c.b16 %v10627, %v10626
  %v10794 = vpack.c.b16 %v10629, %v10628
  %v10795 = vpack.c.b16 %v10631, %v10630
  %v10796 = vpack.c.b16 %v10633, %v10632
  %v10797 = vpack.c.b16 %v10635, %v10634
  %v10798 = vpack.c.b16 %v10637, %v10636
  %v10799 = vpack.c.b16 %v10639, %v10638
  %v10800 = vpack.c.b16 %v10641, %v10640
  %v10801 = vpack.c.b16 %v10643, %v10642
  %v10802 = vpack.c.b16 %v10645, %v10644
  %v10803 = vpack.c.b16 %v10647, %v10646
  %v10804 = vpack.c.b16 %v10649, %v10648
  %v10805 = vpack.c.b16 %v10651, %v10650
  %v10806 = vpack.c.b16 %v10653, %v10652
  %v10807 = vpack.c.b16 %v10655, %v10654
  %v10808 = vpack.c.b16 %v10657, %v10656
  %v10809 = vpack.c.b16 %v10659, %v10658
  %v10810 = vpack.c.b16 %v10661, %v10660
  %v10811 = vpack.c.b16 %v10663, %v10662
  %v10812 = vpack.c.b16 %v10665, %v10664
  %v10813 = vpack.c.b16 %v10667, %v10666
  %v10814 = vpack.c.b16 %v10669, %v10668
  %v10815 = vpack.c.b16 %v10671, %v10670
  %v10816 = vpack.c.b16 %v10673, %v10672
  %v10817 = vpack.c.b16 %v10675, %v10674
  %v10818 = vpack.c.b16 %v10677, %v10676
  %v10819 = vpack.c.b16 %v10679, %v10678
  %v10820 = vpack.c.b16 %v10681, %v10680
  %v10821 = vpack.c.b16 %v10683, %v10682
  %v10822 = vpack.c.b16 %v10685, %v10684
  %v10823 = vpack.c.b16 %v10687, %v10686
  %v10824 = vpack.c.b16 %v10689, %v10688
  %v10825 = vpack.c.b16 %v10691, %v10690
  %v10826 = vpack.c.b16 %v10693, %v10692
  %v10827 = vpack.c.b16 %v10695, %v10694
  %v10828 = vpack.c.b16 %v10697, %v10696
  %v10829 = vpack.c.b16 %v10699, %v10698
  %v10830 = vpack.c.b16 %v10701, %v10700
  %v10831 = vpack.c.b16 %v10703, %v10702
  %10960 = vmatprep.subr.bf16.mxu0 0
  %10961 = vmatpush1.bf16.msra.mxu0 %v10704
  %10962 = vmatprep.subr.bf16.mxu0 0
  %10963 = vmatpush1.bf16.msra.mxu0 %v10705
  %10964 = vmatprep.subr.bf16.mxu0 0
  %10965 = vmatpush1.bf16.msra.mxu0 %v10706
  %10966 = vmatprep.subr.bf16.mxu0 0
  %10967 = vmatpush1.bf16.msra.mxu0 %v10707
  %10968 = vmatprep.subr.bf16.mxu0 0
  %10969 = vmatpush1.bf16.msra.mxu0 %v10708
  %10970 = vmatprep.subr.bf16.mxu0 0
  %10971 = vmatpush1.bf16.msra.mxu0 %v10709
  %10972 = vmatprep.subr.bf16.mxu0 0
  %10973 = vmatpush1.bf16.msra.mxu0 %v10710
  %10974 = vmatprep.subr.bf16.mxu0 0
  %10975 = vmatpush1.bf16.msra.mxu0 %v10711
  %10976 = vmatprep.subr.bf16.mxu0 0
  %10977 = vmatpush1.bf16.msra.mxu0 %v10712
  %10978 = vmatprep.subr.bf16.mxu0 0
  %10979 = vmatpush1.bf16.msra.mxu0 %v10713
  %10980 = vmatprep.subr.bf16.mxu0 0
  %10981 = vmatpush1.bf16.msra.mxu0 %v10714
  %10982 = vmatprep.subr.bf16.mxu0 0
  %10983 = vmatpush1.bf16.msra.mxu0 %v10715
  %10984 = vmatprep.subr.bf16.mxu0 0
  %10985 = vmatpush1.bf16.msra.mxu0 %v10716
  %10986 = vmatprep.subr.bf16.mxu0 0
  %10987 = vmatpush1.bf16.msra.mxu0 %v10717
  %10988 = vmatprep.subr.bf16.mxu0 0
  %10989 = vmatpush1.bf16.msra.mxu0 %v10718
  %10990 = vmatprep.subr.bf16.mxu0 0
  %10991 = vmatpush1.bf16.msra.mxu0 %v10719
  %10992 = vmatprep.mubr.bf16.mxu0 %v9914
  %10993 = vmatmul.mubr.bf16.gmra.mrb[0].mxu0 %v9913
  %v10994 = vpop.f32.mrb[0].mxu0
  %v10995 = vadd.f32 %v10190, %v10994
  %v10996 = vpop.f32.mrb[0].mxu0
  %v10997 = vpop.f32.mrb[0].mxu0
  %v10998 = vpop.f32.mrb[0].mxu0
  %10999 = vdwg.mxu0
  %11000 = vmatprep.subr.bf16.mxu0 0
  %11001 = vmatpush1.bf16.msra.mxu0 %v10720
  %11002 = vmatprep.subr.bf16.mxu0 0
  %11003 = vmatpush1.bf16.msra.mxu0 %v10721
  %11004 = vmatprep.subr.bf16.mxu0 0
  %11005 = vmatpush1.bf16.msra.mxu0 %v10722
  %11006 = vmatprep.subr.bf16.mxu0 0
  %11007 = vmatpush1.bf16.msra.mxu0 %v10723
  %11008 = vmatprep.subr.bf16.mxu0 0
  %11009 = vmatpush1.bf16.msra.mxu0 %v10724
  %11010 = vmatprep.subr.bf16.mxu0 0
  %11011 = vmatpush1.bf16.msra.mxu0 %v10725
  %11012 = vmatprep.subr.bf16.mxu0 0
  %11013 = vmatpush1.bf16.msra.mxu0 %v10726
  %11014 = vmatprep.subr.bf16.mxu0 0
  %11015 = vmatpush1.bf16.msra.mxu0 %v10727
  %11016 = vmatprep.subr.bf16.mxu0 0
  %11017 = vmatpush1.bf16.msra.mxu0 %v10728
  %11018 = vmatprep.subr.bf16.mxu0 0
  %11019 = vmatpush1.bf16.msra.mxu0 %v10729
  %11020 = vmatprep.subr.bf16.mxu0 0
  %11021 = vmatpush1.bf16.msra.mxu0 %v10730
  %11022 = vmatprep.subr.bf16.mxu0 0
  %11023 = vmatpush1.bf16.msra.mxu0 %v10731
  %11024 = vmatprep.subr.bf16.mxu0 0
  %11025 = vmatpush1.bf16.msra.mxu0 %v10732
  %11026 = vmatprep.subr.bf16.mxu0 0
  %11027 = vmatpush1.bf16.msra.mxu0 %v10733
  %11028 = vmatprep.subr.bf16.mxu0 0
  %11029 = vmatpush1.bf16.msra.mxu0 %v10734
  %11030 = vmatprep.subr.bf16.mxu0 0
  %11031 = vmatpush1.bf16.msra.mxu0 %v10735
  %11032 = vmatprep.mubr.bf16.mxu0 %v9916
  %11033 = vmatmul.mubr.bf16.gmra.mrb[0].mxu0 %v9915
  %v11034 = vpop.f32.mrb[0].mxu0
  %v11035 = vadd.f32 %v10995, %v11034
  %v11036 = vpop.f32.mrb[0].mxu0
  %v11037 = vpop.f32.mrb[0].mxu0
  %v11038 = vpop.f32.mrb[0].mxu0
  %11039 = vdwg.mxu0
  %11040 = vmatprep.subr.bf16.mxu0 0
  %11041 = vmatpush1.bf16.msra.mxu0 %v10736
  %11042 = vmatprep.subr.bf16.mxu0 0
  %11043 = vmatpush1.bf16.msra.mxu0 %v10737
  %11044 = vmatprep.subr.bf16.mxu0 0
  %11045 = vmatpush1.bf16.msra.mxu0 %v10738
  %11046 = vmatprep.subr.bf16.mxu0 0
  %11047 = vmatpush1.bf16.msra.mxu0 %v10739
  %11048 = vmatprep.subr.bf16.mxu0 0
  %11049 = vmatpush1.bf16.msra.mxu0 %v10740
  %11050 = vmatprep.subr.bf16.mxu0 0
  %11051 = vmatpush1.bf16.msra.mxu0 %v10741
  %11052 = vmatprep.subr.bf16.mxu0 0
  %11053 = vmatpush1.bf16.msra.mxu0 %v10742
  %11054 = vmatprep.subr.bf16.mxu0 0
  %11055 = vmatpush1.bf16.msra.mxu0 %v10743
  %11056 = vmatprep.subr.bf16.mxu0 0
  %11057 = vmatpush1.bf16.msra.mxu0 %v10744
  %11058 = vmatprep.subr.bf16.mxu0 0
  %11059 = vmatpush1.bf16.msra.mxu0 %v10745
  %11060 = vmatprep.subr.bf16.mxu0 0
  %11061 = vmatpush1.bf16.msra.mxu0 %v10746
  %11062 = vmatprep.subr.bf16.mxu0 0
  %11063 = vmatpush1.bf16.msra.mxu0 %v10747
  %11064 = vmatprep.subr.bf16.mxu0 0
  %11065 = vmatpush1.bf16.msra.mxu0 %v10748
  %11066 = vmatprep.subr.bf16.mxu0 0
  %11067 = vmatpush1.bf16.msra.mxu0 %v10749
  %11068 = vmatprep.subr.bf16.mxu0 0
  %11069 = vmatpush1.bf16.msra.mxu0 %v10750
  %11070 = vmatprep.subr.bf16.mxu0 0
  %11071 = vmatpush1.bf16.msra.mxu0 %v10751
  %11072 = vmatprep.mubr.bf16.mxu0 %v9918
  %11073 = vmatmul.mubr.bf16.gmra.mrb[0].mxu0 %v9917
  %v11074 = vpop.f32.mrb[0].mxu0
  %v11075 = vadd.f32 %v11035, %v11074
  %v11076 = vpop.f32.mrb[0].mxu0
  %v11077 = vpop.f32.mrb[0].mxu0
  %v11078 = vpop.f32.mrb[0].mxu0
  %11079 = vdwg.mxu0
  %11080 = vmatprep.subr.bf16.mxu0 0
  %11081 = vmatpush1.bf16.msra.mxu0 %v10752
  %11082 = vmatprep.subr.bf16.mxu0 0
  %11083 = vmatpush1.bf16.msra.mxu0 %v10753
  %11084 = vmatprep.subr.bf16.mxu0 0
  %11085 = vmatpush1.bf16.msra.mxu0 %v10754
  %11086 = vmatprep.subr.bf16.mxu0 0
  %11087 = vmatpush1.bf16.msra.mxu0 %v10755
  %11088 = vmatprep.subr.bf16.mxu0 0
  %11089 = vmatpush1.bf16.msra.mxu0 %v10756
  %11090 = vmatprep.subr.bf16.mxu0 0
  %11091 = vmatpush1.bf16.msra.mxu0 %v10757
  %11092 = vmatprep.subr.bf16.mxu0 0
  %11093 = vmatpush1.bf16.msra.mxu0 %v10758
  %11094 = vmatprep.subr.bf16.mxu0 0
  %11095 = vmatpush1.bf16.msra.mxu0 %v10759
  %11096 = vmatprep.subr.bf16.mxu0 0
  %11097 = vmatpush1.bf16.msra.mxu0 %v10760
  %11098 = vmatprep.subr.bf16.mxu0 0
  %11099 = vmatpush1.bf16.msra.mxu0 %v10761
  %11100 = vmatprep.subr.bf16.mxu0 0
  %11101 = vmatpush1.bf16.msra.mxu0 %v10762
  %11102 = vmatprep.subr.bf16.mxu0 0
  %11103 = vmatpush1.bf16.msra.mxu0 %v10763
  %11104 = vmatprep.subr.bf16.mxu0 0
  %11105 = vmatpush1.bf16.msra.mxu0 %v10764
  %11106 = vmatprep.subr.bf16.mxu0 0
  %11107 = vmatpush1.bf16.msra.mxu0 %v10765
  %11108 = vmatprep.subr.bf16.mxu0 0
  %11109 = vmatpush1.bf16.msra.mxu0 %v10766
  %11110 = vmatprep.subr.bf16.mxu0 0
  %11111 = vmatpush1.bf16.msra.mxu0 %v10767
  %11112 = vmatprep.mubr.bf16.mxu0 %v9920
  %11113 = vmatmul.mubr.bf16.gmra.mrb[0].mxu0 %v9919
  %v11114 = vpop.f32.mrb[0].mxu0
  %v11115 = vadd.f32 %v11075, %v11114
  %v11116 = vpop.f32.mrb[0].mxu0
  %v11117 = vpop.f32.mrb[0].mxu0
  %v11118 = vpop.f32.mrb[0].mxu0
  %11119 = vdwg.mxu0
  %11120 = vmatprep.subr.bf16.mxu0 0
  %11121 = vmatpush1.bf16.msra.mxu0 %v10768
  %11122 = vmatprep.subr.bf16.mxu0 0
  %11123 = vmatpush1.bf16.msra.mxu0 %v10769
  %11124 = vmatprep.subr.bf16.mxu0 0
  %11125 = vmatpush1.bf16.msra.mxu0 %v10770
  %11126 = vmatprep.subr.bf16.mxu0 0
  %11127 = vmatpush1.bf16.msra.mxu0 %v10771
  %11128 = vmatprep.subr.bf16.mxu0 0
  %11129 = vmatpush1.bf16.msra.mxu0 %v10772
  %11130 = vmatprep.subr.bf16.mxu0 0
  %11131 = vmatpush1.bf16.msra.mxu0 %v10773
  %11132 = vmatprep.subr.bf16.mxu0 0
  %11133 = vmatpush1.bf16.msra.mxu0 %v10774
  %11134 = vmatprep.subr.bf16.mxu0 0
  %11135 = vmatpush1.bf16.msra.mxu0 %v10775
  %11136 = vmatprep.subr.bf16.mxu0 0
  %11137 = vmatpush1.bf16.msra.mxu0 %v10776
  %11138 = vmatprep.subr.bf16.mxu0 0
  %11139 = vmatpush1.bf16.msra.mxu0 %v10777
  %11140 = vmatprep.subr.bf16.mxu0 0
  %11141 = vmatpush1.bf16.msra.mxu0 %v10778
  %11142 = vmatprep.subr.bf16.mxu0 0
  %11143 = vmatpush1.bf16.msra.mxu0 %v10779
  %11144 = vmatprep.subr.bf16.mxu0 0
  %11145 = vmatpush1.bf16.msra.mxu0 %v10780
  %11146 = vmatprep.subr.bf16.mxu0 0
  %11147 = vmatpush1.bf16.msra.mxu0 %v10781
  %11148 = vmatprep.subr.bf16.mxu0 0
  %11149 = vmatpush1.bf16.msra.mxu0 %v10782
  %11150 = vmatprep.subr.bf16.mxu0 0
  %11151 = vmatpush1.bf16.msra.mxu0 %v10783
  %11152 = vmatprep.mubr.bf16.mxu0 %v9922
  %11153 = vmatmul.mubr.bf16.gmra.mrb[0].mxu0 %v9921
  %v11154 = vpop.f32.mrb[0].mxu0
  %v11155 = vadd.f32 %v11115, %v11154
  %v11156 = vpop.f32.mrb[0].mxu0
  %v11157 = vpop.f32.mrb[0].mxu0
  %v11158 = vpop.f32.mrb[0].mxu0
  %11159 = vdwg.mxu0
  %11160 = vmatprep.subr.bf16.mxu0 0
  %11161 = vmatpush1.bf16.msra.mxu0 %v10784
  %11162 = vmatprep.subr.bf16.mxu0 0
  %11163 = vmatpush1.bf16.msra.mxu0 %v10785
  %11164 = vmatprep.subr.bf16.mxu0 0
  %11165 = vmatpush1.bf16.msra.mxu0 %v10786
  %11166 = vmatprep.subr.bf16.mxu0 0
  %11167 = vmatpush1.bf16.msra.mxu0 %v10787
  %11168 = vmatprep.subr.bf16.mxu0 0
  %11169 = vmatpush1.bf16.msra.mxu0 %v10788
  %11170 = vmatprep.subr.bf16.mxu0 0
  %11171 = vmatpush1.bf16.msra.mxu0 %v10789
  %11172 = vmatprep.subr.bf16.mxu0 0
  %11173 = vmatpush1.bf16.msra.mxu0 %v10790
  %11174 = vmatprep.subr.bf16.mxu0 0
  %11175 = vmatpush1.bf16.msra.mxu0 %v10791
  %11176 = vmatprep.subr.bf16.mxu0 0
  %11177 = vmatpush1.bf16.msra.mxu0 %v10792
  %11178 = vmatprep.subr.bf16.mxu0 0
  %11179 = vmatpush1.bf16.msra.mxu0 %v10793
  %11180 = vmatprep.subr.bf16.mxu0 0
  %11181 = vmatpush1.bf16.msra.mxu0 %v10794
  %11182 = vmatprep.subr.bf16.mxu0 0
  %11183 = vmatpush1.bf16.msra.mxu0 %v10795
  %11184 = vmatprep.subr.bf16.mxu0 0
  %11185 = vmatpush1.bf16.msra.mxu0 %v10796
  %11186 = vmatprep.subr.bf16.mxu0 0
  %11187 = vmatpush1.bf16.msra.mxu0 %v10797
  %11188 = vmatprep.subr.bf16.mxu0 0
  %11189 = vmatpush1.bf16.msra.mxu0 %v10798
  %11190 = vmatprep.subr.bf16.mxu0 0
  %11191 = vmatpush1.bf16.msra.mxu0 %v10799
  %11192 = vmatprep.mubr.bf16.mxu0 %v9924
  %11193 = vmatmul.mubr.bf16.gmra.mrb[0].mxu0 %v9923
  %v11194 = vpop.f32.mrb[0].mxu0
  %v11195 = vadd.f32 %v11155, %v11194
  %v11196 = vpop.f32.mrb[0].mxu0
  %v11197 = vpop.f32.mrb[0].mxu0
  %v11198 = vpop.f32.mrb[0].mxu0
  %11199 = vdwg.mxu0
  %11200 = vmatprep.subr.bf16.mxu0 0
  %11201 = vmatpush1.bf16.msra.mxu0 %v10800
  %11202 = vmatprep.subr.bf16.mxu0 0
  %11203 = vmatpush1.bf16.msra.mxu0 %v10801
  %11204 = vmatprep.subr.bf16.mxu0 0
  %11205 = vmatpush1.bf16.msra.mxu0 %v10802
  %11206 = vmatprep.subr.bf16.mxu0 0
  %11207 = vmatpush1.bf16.msra.mxu0 %v10803
  %11208 = vmatprep.subr.bf16.mxu0 0
  %11209 = vmatpush1.bf16.msra.mxu0 %v10804
  %11210 = vmatprep.subr.bf16.mxu0 0
  %11211 = vmatpush1.bf16.msra.mxu0 %v10805
  %11212 = vmatprep.subr.bf16.mxu0 0
  %11213 = vmatpush1.bf16.msra.mxu0 %v10806
  %11214 = vmatprep.subr.bf16.mxu0 0
  %11215 = vmatpush1.bf16.msra.mxu0 %v10807
  %11216 = vmatprep.subr.bf16.mxu0 0
  %11217 = vmatpush1.bf16.msra.mxu0 %v10808
  %11218 = vmatprep.subr.bf16.mxu0 0
  %11219 = vmatpush1.bf16.msra.mxu0 %v10809
  %11220 = vmatprep.subr.bf16.mxu0 0
  %11221 = vmatpush1.bf16.msra.mxu0 %v10810
  %11222 = vmatprep.subr.bf16.mxu0 0
  %11223 = vmatpush1.bf16.msra.mxu0 %v10811
  %11224 = vmatprep.subr.bf16.mxu0 0
  %11225 = vmatpush1.bf16.msra.mxu0 %v10812
  %11226 = vmatprep.subr.bf16.mxu0 0
  %11227 = vmatpush1.bf16.msra.mxu0 %v10813
  %11228 = vmatprep.subr.bf16.mxu0 0
  %11229 = vmatpush1.bf16.msra.mxu0 %v10814
  %11230 = vmatprep.subr.bf16.mxu0 0
  %11231 = vmatpush1.bf16.msra.mxu0 %v10815
  %11232 = vmatprep.mubr.bf16.mxu0 %v9926
  %11233 = vmatmul.mubr.bf16.gmra.mrb[0].mxu0 %v9925
  %v11234 = vpop.f32.mrb[0].mxu0
  %v11235 = vadd.f32 %v11195, %v11234
  %v11236 = vpop.f32.mrb[0].mxu0
  %v11237 = vpop.f32.mrb[0].mxu0
  %v11238 = vpop.f32.mrb[0].mxu0
  %11239 = vdwg.mxu0
  %11240 = vmatprep.subr.bf16.mxu0 0
  %11241 = vmatpush1.bf16.msra.mxu0 %v10816
  %11242 = vmatprep.subr.bf16.mxu0 0
  %11243 = vmatpush1.bf16.msra.mxu0 %v10817
  %11244 = vmatprep.subr.bf16.mxu0 0
  %11245 = vmatpush1.bf16.msra.mxu0 %v10818
  %11246 = vmatprep.subr.bf16.mxu0 0
  %11247 = vmatpush1.bf16.msra.mxu0 %v10819
  %11248 = vmatprep.subr.bf16.mxu0 0
  %11249 = vmatpush1.bf16.msra.mxu0 %v10820
  %11250 = vmatprep.subr.bf16.mxu0 0
  %11251 = vmatpush1.bf16.msra.mxu0 %v10821
  %11252 = vmatprep.subr.bf16.mxu0 0
  %11253 = vmatpush1.bf16.msra.mxu0 %v10822
  %11254 = vmatprep.subr.bf16.mxu0 0
  %11255 = vmatpush1.bf16.msra.mxu0 %v10823
  %11256 = vmatprep.subr.bf16.mxu0 0
  %11257 = vmatpush1.bf16.msra.mxu0 %v10824
  %11258 = vmatprep.subr.bf16.mxu0 0
  %11259 = vmatpush1.bf16.msra.mxu0 %v10825
  %11260 = vmatprep.subr.bf16.mxu0 0
  %11261 = vmatpush1.bf16.msra.mxu0 %v10826
  %11262 = vmatprep.subr.bf16.mxu0 0
  %11263 = vmatpush1.bf16.msra.mxu0 %v10827
  %11264 = vmatprep.subr.bf16.mxu0 0
  %11265 = vmatpush1.bf16.msra.mxu0 %v10828
  %11266 = vmatprep.subr.bf16.mxu0 0
  %11267 = vmatpush1.bf16.msra.mxu0 %v10829
  %11268 = vmatprep.subr.bf16.mxu0 0
  %11269 = vmatpush1.bf16.msra.mxu0 %v10830
  %11270 = vmatprep.subr.bf16.mxu0 0
  %11271 = vmatpush1.bf16.msra.mxu0 %v10831
  %11272 = vmatprep.mubr.bf16.mxu0 %v9928
  %11273 = vmatmul.mubr.bf16.gmra.mrb[0].mxu0 %v9927
  %v11274 = vpop.f32.mrb[0].mxu0
  %v11275 = vadd.f32 %v11235, %v11274
  %v11276 = vpop.f32.mrb[0].mxu0
  %v11277 = vpop.f32.mrb[0].mxu0
  %v11278 = vpop.f32.mrb[0].mxu0
  %11279 = vdwg.mxu0
  %vm11280 = vcmask 80896
  %v11281 = vsel %vm11280, %v11275, -inf
  %11282 = vmax.xlane.f32.xlu0 %v11281
  %v11283 = vpop.xlane.xlu0 %11282
  %v11284 = vsub.f32 %v11275, %v11283
  %v11285 = vmul.f32 %v11284, 1.442695
  %v11286 = vpow.pop %v11285
  %v11287 = vsel %vm11280, %v11286, 0.0
  %11288 = vadd.xlane.f32.xlu0 %v11287
  %v11289 = vpop.xlane.xlu0 %11288
  %v11290 = vrcp.pop %v11289
  %v11291 = vmul.f32 %v11286, %v11290
  %11292 = vst.msk [vmem:[%s5] sm:$0xff] %vm11280, %v11291
  // Predicated region
  $region22: #{value_net_forward.1} parent=0 // pred_check
    _
  $region23: #{value_net_forward.1} parent=0 // pred_check_branch
    %11294 = sbr.rel (0) target = $region25
  $region24: #{value_net_forward.1} parent=0 // pred_region
    _
  $region25: #{value_net_forward.1} parent=0 // pred_fallthru
    _
  // Predicated region
  $region26: #{value_net_forward.1} parent=0 // pred_check
    _
  $region27: #{value_net_forward.1} parent=0 // pred_check_branch
    %11296 = sbr.rel (0) target = $region29
  $region28: #{value_net_forward.1} parent=0 // pred_region
    _
  $region29: #{value_net_forward.1} parent=0 // pred_fallthru
    _

</llo_original>
